<compile_context>
chip_gen: v7x
topology: tpu7x:2x2x1
jax: 0.10.0
libtpu: 0.0.40
codegen_flags: <defaults>
</compile_context>

<pallas_src>
import functools
import math

import jax
import jax.numpy as jnp
from jax.experimental import pallas as pl
from jax.experimental.pallas import tpu as pltpu


# ----------------------------- kernel -----------------------------

def _layer_norm(x, gamma, beta, eps=1e-5):
    mu = jnp.mean(x, axis=-1, keepdims=True)
    var = jnp.mean((x - mu) ** 2, axis=-1, keepdims=True)
    return (x - mu) * jax.lax.rsqrt(var + eps) * gamma + beta


def decoder_layer_kernel(
    x_ref,      # (1, S, D)        full sequence for this batch element
    wq_ref,     # (D, H*Dp)        compute dtype, head-padded
    wk_ref,     # (D, H*Dp)
    wv_ref,     # (D, H*Dp)
    bqkv_ref,   # (3, H*Dp) f32    rows [bq, bk, bv]
    wout_ref,   # (H*Dp, D)
    w1_ref,     # (D, TI)          d_inner tile
    b1_ref,     # (1, TI)   f32
    w2_ref,     # (TI, D)
    vecd_ref,   # (6, D)    f32    rows [bout, g1, be1, b2, g2, be2]
    o_ref,      # (1, TQ, D)
    y_sc,       # (TQ, D)   f32    attention + LN1 output, carried across d_inner tiles
    acc_sc,     # (TQ, D)   f32    FFN accumulator
    *,
    n_heads, d_head_p, sm_scale, tq, compute_dtype,
):
    qi = pl.program_id(1)
    di = pl.program_id(2)
    cd = compute_dtype
    hdh_p = n_heads * d_head_p

    # ---- attention + residual + LayerNorm (once per (batch, query-block)) ----
    @pl.when(di == 0)
    def _attention():
        x_full = x_ref[0]                                   # (S, D)
        seq = x_full.shape[0]
        q0 = pl.multiple_of(qi * tq, tq)
        x_q = x_ref[0, pl.ds(q0, tq), :]                    # (TQ, D) query rows + residual

        x_c = x_full.astype(cd)
        xq_c = x_q.astype(cd)

        # Q only for the query block; K/V for the full sequence.
        q = jnp.dot(xq_c, wq_ref[...], preferred_element_type=jnp.float32) + bqkv_ref[0:1, :]
        k = jnp.dot(x_c, wk_ref[...], preferred_element_type=jnp.float32) + bqkv_ref[1:2, :]
        v = jnp.dot(x_c, wv_ref[...], preferred_element_type=jnp.float32) + bqkv_ref[2:3, :]

        if sm_scale != 1.0:                                 # fold 1/sqrt(d_head) into q
            q = q * sm_scale

        # Heads batched into single einsums (contraction over Dp, batch over heads);
        # Dp is a multiple of 128 so these reshapes stay lane-aligned.
        qh = q.reshape(tq, n_heads, d_head_p).astype(cd)
        kh = k.reshape(seq, n_heads, d_head_p).astype(cd)
        vh = v.reshape(seq, n_heads, d_head_p).astype(cd)

        s = jnp.einsum("qhd,khd->hqk", qh, kh, preferred_element_type=jnp.float32)
        # TODO(synk): masked_fill path for mask is not None (only mask=None implemented).
        m = jnp.max(s, axis=-1, keepdims=True)
        p = jnp.exp(s - m)
        p = p * pl.reciprocal(jnp.sum(p, axis=-1, keepdims=True), approx=True)

        av = jnp.einsum("hqk,khd->qhd", p.astype(cd), vh, preferred_element_type=jnp.float32)
        attn_vec = av.reshape(tq, hdh_p)

        proj = jnp.dot(attn_vec.astype(cd), wout_ref[...], preferred_element_type=jnp.float32)
        proj = proj + vecd_ref[0:1, :]

        y_sc[...] = _layer_norm(x_q.astype(jnp.float32) + proj,
                                vecd_ref[1:2, :], vecd_ref[2:3, :])
        acc_sc[...] = jnp.zeros_like(acc_sc)

    # ---- feed-forward: stream one (D, TI)/(TI, D) weight tile and accumulate ----
    y = y_sc[...]
    h1 = jnp.dot(y.astype(cd), w1_ref[...], preferred_element_type=jnp.float32) + b1_ref[...]
    h1 = jnp.maximum(h1, 0.0)
    acc_sc[...] += jnp.dot(h1.astype(cd), w2_ref[...], preferred_element_type=jnp.float32)

    @pl.when(di == pl.num_programs(2) - 1)
    def _finalize():
        h2 = acc_sc[...] + vecd_ref[3:4, :]
        out = _layer_norm(h2 + y_sc[...], vecd_ref[4:5, :], vecd_ref[5:6, :])   # MergeLayer adds y
        o_ref[0] = out.astype(o_ref.dtype)


# ----------------------------- wrapper -----------------------------

def _pad_heads_last(w, n_heads, d_head, d_head_p):
    """Zero-pad the per-head feature dim of a (..., n_heads*d_head) tensor to d_head_p."""
    if d_head_p == d_head:
        return w
    lead = w.shape[:-1]
    w = w.reshape(lead + (n_heads, d_head))
    w = jnp.pad(w, [(0, 0)] * len(lead) + [(0, 0), (0, d_head_p - d_head)])
    return w.reshape(lead + (n_heads * d_head_p,))


def _pad_heads_first(w, n_heads, d_head, d_head_p):
    """Zero-pad the per-head rows of a (n_heads*d_head, D) tensor to d_head_p."""
    if d_head_p == d_head:
        return w
    d = w.shape[-1]
    w = w.reshape(n_heads, d_head, d)
    w = jnp.pad(w, ((0, 0), (0, d_head_p - d_head), (0, 0)))
    return w.reshape(n_heads * d_head_p, d)


def decoder_layer(x, params, *, n_heads, d_head, scale=True,
                  compute_dtype=jnp.bfloat16, q_block=256, inner_block=512):
    B, S, D = x.shape
    d_inner = params["w1"].shape[1]

    # Pad d_head to a 128-lane multiple (exact: padded q/k/v/attn columns are all zero).
    d_head_p = ((d_head + 127) // 128) * 128
    hdh_p = n_heads * d_head_p

    tq = q_block if (q_block <= S and S % q_block == 0) else S
    ti = inner_block if (inner_block <= d_inner and d_inner % inner_block == 0) else d_inner
    nq, ni = S // tq, d_inner // ti

    cd = compute_dtype
    f32 = jnp.float32

    wq_, wk_, wv_ = jnp.split(params["wqkv"], 3, axis=-1)
    bq_, bk_, bv_ = jnp.split(params["bqkv"], 3, axis=-1)
    wq = _pad_heads_last(wq_, n_heads, d_head, d_head_p).astype(cd)
    wk = _pad_heads_last(wk_, n_heads, d_head, d_head_p).astype(cd)
    wv = _pad_heads_last(wv_, n_heads, d_head, d_head_p).astype(cd)
    bqkv = jnp.concatenate(
        [_pad_heads_last(b, n_heads, d_head, d_head_p) for b in (bq_, bk_, bv_)],
        axis=0).astype(f32)                                                # (3, H*Dp)
    wout = _pad_heads_first(params["wout"], n_heads, d_head, d_head_p).astype(cd)
    w1 = params["w1"].astype(cd)
    b1 = params["b1"].astype(f32)
    w2 = params["w2"].astype(cd)
    vecd = jnp.concatenate(
        [params["bout"], params["g1"], params["be1"],
         params["b2"], params["g2"], params["be2"]], axis=0).astype(f32)   # (6, D)

    sm_scale = (1.0 / math.sqrt(d_head)) if scale else 1.0

    kernel = functools.partial(
        decoder_layer_kernel, n_heads=n_heads, d_head_p=d_head_p,
        sm_scale=sm_scale, tq=tq, compute_dtype=cd)

    def const(shape):
        return pl.BlockSpec(shape, lambda b, qi, di: (0,) * len(shape))

    itemsize = jnp.ones((), cd).dtype.itemsize
    flops = (2 * B * S * D * 3 * hdh_p
             + 4 * B * n_heads * S * S * d_head_p
             + 2 * B * S * hdh_p * D
             + 4 * B * S * D * d_inner)
    bytes_accessed = (2 * B * S * D * x.dtype.itemsize
                      + (4 * D * hdh_p + 2 * D * d_inner) * itemsize
                      + (3 * hdh_p + 6 * D + d_inner) * 4)
    cost = pl.CostEstimate(flops=int(flops),
                           transcendentals=int(B * n_heads * S * S),
                           bytes_accessed=int(bytes_accessed))

    return pl.pallas_call(
        kernel,
        out_shape=jax.ShapeDtypeStruct((B, S, D), x.dtype),
        grid=(B, nq, ni),
        in_specs=[
            pl.BlockSpec((1, S, D), lambda b, qi, di: (b, 0, 0)),   # x (full seq, per batch)
            const((D, hdh_p)),                                      # wq
            const((D, hdh_p)),                                      # wk
            const((D, hdh_p)),                                      # wv
            const((3, hdh_p)),                                      # packed bq/bk/bv
            const((hdh_p, D)),                                      # wout
            pl.BlockSpec((D, ti), lambda b, qi, di: (0, di)),       # w1 tile
            pl.BlockSpec((1, ti), lambda b, qi, di: (0, di)),       # b1 tile
            pl.BlockSpec((ti, D), lambda b, qi, di: (di, 0)),       # w2 tile
            const((6, D)),                                          # packed bout/g1/be1/b2/g2/be2
        ],
        out_specs=pl.BlockSpec((1, tq, D), lambda b, qi, di: (b, qi, 0)),
        scratch_shapes=[
            pltpu.VMEM((tq, D), jnp.float32),   # y  (attention + LN1 output)
            pltpu.VMEM((tq, D), jnp.float32),   # FFN accumulator
        ],
        compiler_params=pltpu.CompilerParams(
            dimension_semantics=("parallel", "parallel", "arbitrary"),
            vmem_limit_bytes=48 * 1024 * 1024),
        cost_estimate=cost,
    )(x, wq, wk, wv, bqkv, wout, w1, b1, w2, vecd)


# ----------------------------- pure-JAX reference -----------------------------

def decoder_layer_ref(x, params, *, n_heads, d_head, scale=True):
    B, S, D = x.shape
    hdh = n_heads * d_head
    qkv = x @ params["wqkv"] + params["bqkv"]
    q, k, v = jnp.split(qkv, 3, axis=-1)
    q = q.reshape(B, S, n_heads, d_head).transpose(0, 2, 1, 3)
    k = k.reshape(B, S, n_heads, d_head).transpose(0, 2, 3, 1)
    v = v.reshape(B, S, n_heads, d_head).transpose(0, 2, 1, 3)
    s = jnp.matmul(q, k)
    if scale:
        s = s / math.sqrt(d_head)
    p = jax.nn.softmax(s, axis=-1)
    av = jnp.matmul(p, v).transpose(0, 2, 1, 3).reshape(B, S, hdh)
    proj = av @ params["wout"] + params["bout"]

    def ln(z, g, b):
        mu = jnp.mean(z, -1, keepdims=True)
        var = jnp.mean((z - mu) ** 2, -1, keepdims=True)
        return (z - mu) / jnp.sqrt(var + 1e-5) * g + b

    y = ln(x + proj, params["g1"], params["be1"])
    h1 = jnp.maximum(y @ params["w1"] + params["b1"], 0.0)
    h2 = h1 @ params["w2"] + params["b2"]
    return ln(h2 + y, params["g2"], params["be2"])


# ----------------------------- main -----------------------------

if __name__ == "__main__":
    B, S = 2, 128
    n_heads, d_model, d_head, d_inner = 4, 256, 64, 512
    hdh = n_heads * d_head

    key = jax.random.PRNGKey(0)
    ks = jax.random.split(key, 9)

    def init(k, shape, s=0.02):
        return (s * jax.random.normal(k, shape)).astype(jnp.float32)

    params = {
        "wqkv": init(ks[0], (d_model, 3 * hdh)),
        "bqkv": init(ks[1], (1, 3 * hdh)),
        "wout": init(ks[2], (hdh, d_model)),
        "bout": init(ks[3], (1, d_model)),
        "g1": jnp.ones((1, d_model), jnp.float32),
        "be1": jnp.zeros((1, d_model), jnp.float32),
        "w1": init(ks[4], (d_model, d_inner)),
        "b1": init(ks[5], (1, d_inner)),
        "w2": init(ks[6], (d_inner, d_model)),
        "b2": init(ks[7], (1, d_model)),
        "g2": jnp.ones((1, d_model), jnp.float32),
        "be2": jnp.zeros((1, d_model), jnp.float32),
    }

    x = jax.random.normal(ks[8], (B, S, d_model), jnp.float32)

    ref = decoder_layer_ref(x, params, n_heads=n_heads, d_head=d_head, scale=True)

    # f32 compute, exercising the tiled path (2 query blocks x 2 d_inner tiles per batch elem).
    out_f32 = decoder_layer(x, params, n_heads=n_heads, d_head=d_head, scale=True,
                            compute_dtype=jnp.float32, q_block=64, inner_block=256)
    out_f32 = jax.block_until_ready(out_f32)
    assert out_f32.shape == (B, S, d_model)
    assert jnp.allclose(out_f32, ref, atol=2e-2, rtol=2e-2), "f32 kernel mismatch vs reference"

    # Default fast path: bf16 MXU inputs with f32 accumulation.
    out_bf16 = decoder_layer(x, params, n_heads=n_heads, d_head=d_head, scale=True,
                             compute_dtype=jnp.bfloat16)
    out_bf16 = jax.block_until_ready(out_bf16)
    assert jnp.allclose(out_bf16, ref, atol=5e-2, rtol=5e-2), "bf16 kernel mismatch vs reference"

    print("KERNEL_OK")
</pallas_src>

<mosaic_0001>
module attributes {stable_mosaic.version = 11 : i64} {
  func.func @decoder_layer_kernel(%arg0: i32, %arg1: i32, %arg2: i32, %arg3: memref<1x128x256xf32, #tpu.memory_space<vmem>>, %arg4: memref<256x512xf32, #tpu.memory_space<vmem>>, %arg5: memref<256x512xf32, #tpu.memory_space<vmem>>, %arg6: memref<256x512xf32, #tpu.memory_space<vmem>>, %arg7: memref<3x512xf32, #tpu.memory_space<vmem>>, %arg8: memref<512x256xf32, #tpu.memory_space<vmem>>, %arg9: memref<256x256xf32, #tpu.memory_space<vmem>>, %arg10: memref<1x256xf32, #tpu.memory_space<vmem>>, %arg11: memref<256x256xf32, #tpu.memory_space<vmem>>, %arg12: memref<6x256xf32, #tpu.memory_space<vmem>>, %arg13: memref<1x64x256xf32, #tpu.memory_space<vmem>>, %arg14: memref<64x256xf32, #tpu.memory_space<vmem>>, %arg15: memref<64x256xf32, #tpu.memory_space<vmem>>) attributes {dimension_semantics = [#tpu.dimension_semantics<parallel>, #tpu.dimension_semantics<parallel>, #tpu.dimension_semantics<arbitrary>], iteration_bounds = array<i64: 2, 2, 2>, scalar_prefetch = 0 : i64, scratch_operands = 2 : i64, tpu.core_type = #tpu.core_type<tc>, window_params = [{transform_indices = @transform_0, window_bounds = array<i64: 1, 128, 256>}, {pipeline_mode = #tpu.pipeline_mode<synchronous>, transform_indices = @transform_1, window_bounds = array<i64: 256, 512>}, {pipeline_mode = #tpu.pipeline_mode<synchronous>, transform_indices = @transform_2, window_bounds = array<i64: 256, 512>}, {pipeline_mode = #tpu.pipeline_mode<synchronous>, transform_indices = @transform_3, window_bounds = array<i64: 256, 512>}, {pipeline_mode = #tpu.pipeline_mode<synchronous>, transform_indices = @transform_4, window_bounds = array<i64: 3, 512>}, {pipeline_mode = #tpu.pipeline_mode<synchronous>, transform_indices = @transform_5, window_bounds = array<i64: 512, 256>}, {transform_indices = @transform_6, window_bounds = array<i64: 256, 256>}, {transform_indices = @transform_7, window_bounds = array<i64: 1, 256>}, {transform_indices = @transform_8, window_bounds = array<i64: 256, 256>}, {pipeline_mode = #tpu.pipeline_mode<synchronous>, transform_indices = @transform_9, window_bounds = array<i64: 6, 256>}, {transform_indices = @transform_10, window_bounds = array<i64: 1, 64, 256>}]} {
    %c0_i32 = arith.constant 0 : i32
    %0 = arith.cmpi eq, %arg2, %c0_i32 : i32
    %1 = arith.extui %0 : i1 to i32
    %c0_i32_0 = arith.constant 0 : i32
    %2 = arith.cmpi ne, %1, %c0_i32_0 : i32
    scf.if %2 {
      %c0_15 = arith.constant 0 : index
      %c0_16 = arith.constant 0 : index
      %c0_17 = arith.constant 0 : index
      %19 = vector.load %arg3[%c0_15, %c0_16, %c0_17] : memref<1x128x256xf32, #tpu.memory_space<vmem>>, vector<1x128x256xf32>
      %20 = vector.shape_cast %19 : vector<1x128x256xf32> to vector<128x256xf32>
      %c64_i32 = arith.constant 64 : i32
      %21 = arith.muli %arg1, %c64_i32 : i32
      %22 = tpu.assume_multiple %21, 64 : i32
      %c0_18 = arith.constant 0 : index
      %23 = arith.index_cast %22 : i32 to index
      %c0_19 = arith.constant 0 : index
      %24 = vector.load %arg3[%c0_18, %23, %c0_19] : memref<1x128x256xf32, #tpu.memory_space<vmem>>, vector<1x64x256xf32>
      %25 = vector.shape_cast %24 : vector<1x64x256xf32> to vector<64x256xf32>
      %c0_20 = arith.constant 0 : index
      %c0_21 = arith.constant 0 : index
      %26 = vector.load %arg4[%c0_20, %c0_21] : memref<256x512xf32, #tpu.memory_space<vmem>>, vector<256x512xf32>
      %cst_22 = arith.constant dense<0.000000e+00> : vector<64x512xf32>
      %27 = tpu.matmul %25, %26, %cst_22 {dimension_numbers = #tpu.dot_dimension_numbers<[1], [0], [0], [1], [0, 0, 1, 1], [], []>} : vector<64x256xf32>, vector<256x512xf32>, vector<64x512xf32> -> vector<64x512xf32>
      %c0_23 = arith.constant 0 : index
      %c0_24 = arith.constant 0 : index
      %28 = vector.load %arg7[%c0_23, %c0_24] : memref<3x512xf32, #tpu.memory_space<vmem>>, vector<1x512xf32>
      %29 = vector.broadcast %28 : vector<1x512xf32> to vector<64x512xf32>
      %30 = arith.addf %27, %29 : vector<64x512xf32>
      %c0_25 = arith.constant 0 : index
      %c0_26 = arith.constant 0 : index
      %31 = vector.load %arg5[%c0_25, %c0_26] : memref<256x512xf32, #tpu.memory_space<vmem>>, vector<256x512xf32>
      %cst_27 = arith.constant dense<0.000000e+00> : vector<128x512xf32>
      %32 = tpu.matmul %20, %31, %cst_27 {dimension_numbers = #tpu.dot_dimension_numbers<[1], [0], [0], [1], [0, 0, 1, 1], [], []>} : vector<128x256xf32>, vector<256x512xf32>, vector<128x512xf32> -> vector<128x512xf32>
      %c1 = arith.constant 1 : index
      %c0_28 = arith.constant 0 : index
      %33 = vector.load %arg7[%c1, %c0_28] : memref<3x512xf32, #tpu.memory_space<vmem>>, vector<1x512xf32>
      %34 = vector.broadcast %33 : vector<1x512xf32> to vector<128x512xf32>
      %35 = arith.addf %32, %34 : vector<128x512xf32>
      %c0_29 = arith.constant 0 : index
      %c0_30 = arith.constant 0 : index
      %36 = vector.load %arg6[%c0_29, %c0_30] : memref<256x512xf32, #tpu.memory_space<vmem>>, vector<256x512xf32>
      %cst_31 = arith.constant dense<0.000000e+00> : vector<128x512xf32>
      %37 = tpu.matmul %20, %36, %cst_31 {dimension_numbers = #tpu.dot_dimension_numbers<[1], [0], [0], [1], [0, 0, 1, 1], [], []>} : vector<128x256xf32>, vector<256x512xf32>, vector<128x512xf32> -> vector<128x512xf32>
      %c2 = arith.constant 2 : index
      %c0_32 = arith.constant 0 : index
      %38 = vector.load %arg7[%c2, %c0_32] : memref<3x512xf32, #tpu.memory_space<vmem>>, vector<1x512xf32>
      %39 = vector.broadcast %38 : vector<1x512xf32> to vector<128x512xf32>
      %40 = arith.addf %37, %39 : vector<128x512xf32>
      %cst_33 = arith.constant 1.250000e-01 : f32
      %41 = vector.broadcast %cst_33 : f32 to vector<64x512xf32>
      %42 = arith.mulf %30, %41 : vector<64x512xf32>
      %43 = vector.shape_cast %42 : vector<64x512xf32> to vector<64x4x128xf32>
      %44 = vector.shape_cast %35 : vector<128x512xf32> to vector<128x4x128xf32>
      %45 = vector.shape_cast %40 : vector<128x512xf32> to vector<128x4x128xf32>
      "tpu.trace_start"() <{level = 10 : i32, message = "qhd,khd->hqk"}> : () -> ()
      %cst_34 = arith.constant dense<0.000000e+00> : vector<4x64x128xf32>
      %46 = tpu.matmul %43, %44, %cst_34 {dimension_numbers = #tpu.dot_dimension_numbers<[2], [2], [0], [0], [0, 1, 0, 0, 1, 0], [1], [1]>} : vector<64x4x128xf32>, vector<128x4x128xf32>, vector<4x64x128xf32> -> vector<4x64x128xf32>
      "tpu.trace_stop"() : () -> ()
      %cst_35 = arith.constant dense<0xFF800000> : vector<4x64xf32>
      %47 = vector.multi_reduction <maximumf>, %46, %cst_35 [2] : vector<4x64x128xf32> to vector<4x64xf32>
      %48 = vector.shape_cast %47 : vector<4x64xf32> to vector<4x64x1xf32>
      %49 = vector.broadcast %48 : vector<4x64x1xf32> to vector<4x64x128xf32>
      %50 = arith.subf %46, %49 : vector<4x64x128xf32>
      %51 = math.exp %50 : vector<4x64x128xf32>
      %cst_36 = arith.constant dense<0.000000e+00> : vector<4x64xf32>
      %52 = vector.multi_reduction <add>, %51, %cst_36 [2] : vector<4x64x128xf32> to vector<4x64xf32>
      %53 = vector.shape_cast %52 : vector<4x64xf32> to vector<4x64x1xf32>
      %54 = tpu.reciprocal %53 {approx = true} : vector<4x64x1xf32> -> vector<4x64x1xf32>
      %55 = vector.broadcast %54 : vector<4x64x1xf32> to vector<4x64x128xf32>
      %56 = arith.mulf %51, %55 : vector<4x64x128xf32>
      "tpu.trace_start"() <{level = 10 : i32, message = "hqk,khd->qhd"}> : () -> ()
      %cst_37 = arith.constant dense<0.000000e+00> : vector<4x128x64xf32>
      %57 = tpu.matmul %45, %56, %cst_37 {dimension_numbers = #tpu.dot_dimension_numbers<[0], [2], [2], [1], [0, 1, 0, 2, 1, 1], [1], [0]>} : vector<128x4x128xf32>, vector<4x64x128xf32>, vector<4x128x64xf32> -> vector<4x128x64xf32>
      %58 = tpu.transpose %57, [2, 0, 1] : vector<4x128x64xf32> -> vector<64x4x128xf32>
      "tpu.trace_stop"() : () -> ()
      %59 = vector.shape_cast %58 : vector<64x4x128xf32> to vector<64x512xf32>
      %c0_38 = arith.constant 0 : index
      %c0_39 = arith.constant 0 : index
      %60 = vector.load %arg8[%c0_38, %c0_39] : memref<512x256xf32, #tpu.memory_space<vmem>>, vector<512x256xf32>
      %cst_40 = arith.constant dense<0.000000e+00> : vector<64x256xf32>
      %61 = tpu.matmul %59, %60, %cst_40 {dimension_numbers = #tpu.dot_dimension_numbers<[1], [0], [0], [1], [0, 0, 1, 1], [], []>} : vector<64x512xf32>, vector<512x256xf32>, vector<64x256xf32> -> vector<64x256xf32>
      %c0_41 = arith.constant 0 : index
      %c0_42 = arith.constant 0 : index
      %62 = vector.load %arg12[%c0_41, %c0_42] : memref<6x256xf32, #tpu.memory_space<vmem>>, vector<1x256xf32>
      %63 = vector.broadcast %62 : vector<1x256xf32> to vector<64x256xf32>
      %64 = arith.addf %61, %63 : vector<64x256xf32>
      %65 = arith.addf %25, %64 : vector<64x256xf32>
      %c1_43 = arith.constant 1 : index
      %c0_44 = arith.constant 0 : index
      %66 = vector.load %arg12[%c1_43, %c0_44] : memref<6x256xf32, #tpu.memory_space<vmem>>, vector<1x256xf32>
      %c2_45 = arith.constant 2 : index
      %c0_46 = arith.constant 0 : index
      %67 = vector.load %arg12[%c2_45, %c0_46] : memref<6x256xf32, #tpu.memory_space<vmem>>, vector<1x256xf32>
      %cst_47 = arith.constant dense<0.000000e+00> : vector<64xf32>
      %68 = vector.multi_reduction <add>, %65, %cst_47 [1] : vector<64x256xf32> to vector<64xf32>
      %69 = vector.shape_cast %68 : vector<64xf32> to vector<64x1xf32>
      %cst_48 = arith.constant 2.560000e+02 : f32
      %70 = vector.broadcast %cst_48 : f32 to vector<64x1xf32>
      %71 = arith.divf %69, %70 : vector<64x1xf32>
      %72 = vector.broadcast %71 : vector<64x1xf32> to vector<64x256xf32>
      %73 = arith.subf %65, %72 : vector<64x256xf32>
      %74 = arith.mulf %73, %73 : vector<64x256xf32>
      %cst_49 = arith.constant dense<0.000000e+00> : vector<64xf32>
      %75 = vector.multi_reduction <add>, %74, %cst_49 [1] : vector<64x256xf32> to vector<64xf32>
      %76 = vector.shape_cast %75 : vector<64xf32> to vector<64x1xf32>
      %cst_50 = arith.constant 2.560000e+02 : f32
      %77 = vector.broadcast %cst_50 : f32 to vector<64x1xf32>
      %78 = arith.divf %76, %77 : vector<64x1xf32>
      %79 = vector.broadcast %71 : vector<64x1xf32> to vector<64x256xf32>
      %80 = arith.subf %65, %79 : vector<64x256xf32>
      %cst_51 = arith.constant 9.99999974E-6 : f32
      %81 = vector.broadcast %cst_51 : f32 to vector<64x1xf32>
      %82 = arith.addf %78, %81 : vector<64x1xf32>
      %83 = math.rsqrt %82 : vector<64x1xf32>
      %84 = vector.broadcast %83 : vector<64x1xf32> to vector<64x256xf32>
      %85 = arith.mulf %80, %84 : vector<64x256xf32>
      %86 = vector.broadcast %66 : vector<1x256xf32> to vector<64x256xf32>
      %87 = arith.mulf %85, %86 : vector<64x256xf32>
      %88 = vector.broadcast %67 : vector<1x256xf32> to vector<64x256xf32>
      %89 = arith.addf %87, %88 : vector<64x256xf32>
      %c0_52 = arith.constant 0 : index
      %c0_53 = arith.constant 0 : index
      %90 = vector.load %arg14[%c0_52, %c0_53] : memref<64x256xf32, #tpu.memory_space<vmem>>, vector<64x256xf32>
      tpu.vector_store %arg14[%c0_52, %c0_53], %89 {strides = array<i32>} : memref<64x256xf32, #tpu.memory_space<vmem>>, vector<64x256xf32>,
      %cst_54 = arith.constant 0.000000e+00 : f32
      %91 = vector.broadcast %cst_54 : f32 to vector<64x256xf32>
      %c0_55 = arith.constant 0 : index
      %c0_56 = arith.constant 0 : index
      %92 = vector.load %arg15[%c0_55, %c0_56] : memref<64x256xf32, #tpu.memory_space<vmem>>, vector<64x256xf32>
      tpu.vector_store %arg15[%c0_55, %c0_56], %91 {strides = array<i32>} : memref<64x256xf32, #tpu.memory_space<vmem>>, vector<64x256xf32>,
    } else {
    }
    %c0 = arith.constant 0 : index
    %c0_1 = arith.constant 0 : index
    %3 = vector.load %arg14[%c0, %c0_1] : memref<64x256xf32, #tpu.memory_space<vmem>>, vector<64x256xf32>
    %c0_2 = arith.constant 0 : index
    %c0_3 = arith.constant 0 : index
    %4 = vector.load %arg9[%c0_2, %c0_3] : memref<256x256xf32, #tpu.memory_space<vmem>>, vector<256x256xf32>
    %cst = arith.constant dense<0.000000e+00> : vector<64x256xf32>
    %5 = tpu.matmul %3, %4, %cst {dimension_numbers = #tpu.dot_dimension_numbers<[1], [0], [0], [1], [0, 0, 1, 1], [], []>} : vector<64x256xf32>, vector<256x256xf32>, vector<64x256xf32> -> vector<64x256xf32>
    %c0_4 = arith.constant 0 : index
    %c0_5 = arith.constant 0 : index
    %6 = vector.load %arg10[%c0_4, %c0_5] : memref<1x256xf32, #tpu.memory_space<vmem>>, vector<1x256xf32>
    %7 = vector.broadcast %6 : vector<1x256xf32> to vector<64x256xf32>
    %8 = arith.addf %5, %7 : vector<64x256xf32>
    %cst_6 = arith.constant 0.000000e+00 : f32
    %9 = vector.broadcast %cst_6 : f32 to vector<64x256xf32>
    %10 = arith.maximumf %8, %9 : vector<64x256xf32>
    %c0_7 = arith.constant 0 : index
    %c0_8 = arith.constant 0 : index
    %11 = vector.load %arg15[%c0_7, %c0_8] : memref<64x256xf32, #tpu.memory_space<vmem>>, vector<64x256xf32>
    %c0_9 = arith.constant 0 : index
    %c0_10 = arith.constant 0 : index
    %12 = vector.load %arg11[%c0_9, %c0_10] : memref<256x256xf32, #tpu.memory_space<vmem>>, vector<256x256xf32>
    %cst_11 = arith.constant dense<0.000000e+00> : vector<64x256xf32>
    %13 = tpu.matmul %10, %12, %cst_11 {dimension_numbers = #tpu.dot_dimension_numbers<[1], [0], [0], [1], [0, 0, 1, 1], [], []>} : vector<64x256xf32>, vector<256x256xf32>, vector<64x256xf32> -> vector<64x256xf32>
    %14 = arith.addf %11, %13 : vector<64x256xf32>
    %c0_12 = arith.constant 0 : index
    %c0_13 = arith.constant 0 : index
    %15 = vector.load %arg15[%c0_12, %c0_13] : memref<64x256xf32, #tpu.memory_space<vmem>>, vector<64x256xf32>
    tpu.vector_store %arg15[%c0_12, %c0_13], %14 {strides = array<i32>} : memref<64x256xf32, #tpu.memory_space<vmem>>, vector<64x256xf32>,
    %c1_i32 = arith.constant 1 : i32
    %16 = arith.cmpi eq, %arg2, %c1_i32 : i32
    %17 = arith.extui %16 : i1 to i32
    %c0_i32_14 = arith.constant 0 : i32
    %18 = arith.cmpi ne, %17, %c0_i32_14 : i32
    scf.if %18 {
      %c0_15 = arith.constant 0 : index
      %c0_16 = arith.constant 0 : index
      %19 = vector.load %arg15[%c0_15, %c0_16] : memref<64x256xf32, #tpu.memory_space<vmem>>, vector<64x256xf32>
      %c3 = arith.constant 3 : index
      %c0_17 = arith.constant 0 : index
      %20 = vector.load %arg12[%c3, %c0_17] : memref<6x256xf32, #tpu.memory_space<vmem>>, vector<1x256xf32>
      %21 = vector.broadcast %20 : vector<1x256xf32> to vector<64x256xf32>
      %22 = arith.addf %19, %21 : vector<64x256xf32>
      %c0_18 = arith.constant 0 : index
      %c0_19 = arith.constant 0 : index
      %23 = vector.load %arg14[%c0_18, %c0_19] : memref<64x256xf32, #tpu.memory_space<vmem>>, vector<64x256xf32>
      %24 = arith.addf %22, %23 : vector<64x256xf32>
      %c4 = arith.constant 4 : index
      %c0_20 = arith.constant 0 : index
      %25 = vector.load %arg12[%c4, %c0_20] : memref<6x256xf32, #tpu.memory_space<vmem>>, vector<1x256xf32>
      %c5 = arith.constant 5 : index
      %c0_21 = arith.constant 0 : index
      %26 = vector.load %arg12[%c5, %c0_21] : memref<6x256xf32, #tpu.memory_space<vmem>>, vector<1x256xf32>
      %cst_22 = arith.constant dense<0.000000e+00> : vector<64xf32>
      %27 = vector.multi_reduction <add>, %24, %cst_22 [1] : vector<64x256xf32> to vector<64xf32>
      %28 = vector.shape_cast %27 : vector<64xf32> to vector<64x1xf32>
      %cst_23 = arith.constant 2.560000e+02 : f32
      %29 = vector.broadcast %cst_23 : f32 to vector<64x1xf32>
      %30 = arith.divf %28, %29 : vector<64x1xf32>
      %31 = vector.broadcast %30 : vector<64x1xf32> to vector<64x256xf32>
      %32 = arith.subf %24, %31 : vector<64x256xf32>
      %33 = arith.mulf %32, %32 : vector<64x256xf32>
      %cst_24 = arith.constant dense<0.000000e+00> : vector<64xf32>
      %34 = vector.multi_reduction <add>, %33, %cst_24 [1] : vector<64x256xf32> to vector<64xf32>
      %35 = vector.shape_cast %34 : vector<64xf32> to vector<64x1xf32>
      %cst_25 = arith.constant 2.560000e+02 : f32
      %36 = vector.broadcast %cst_25 : f32 to vector<64x1xf32>
      %37 = arith.divf %35, %36 : vector<64x1xf32>
      %38 = vector.broadcast %30 : vector<64x1xf32> to vector<64x256xf32>
      %39 = arith.subf %24, %38 : vector<64x256xf32>
      %cst_26 = arith.constant 9.99999974E-6 : f32
      %40 = vector.broadcast %cst_26 : f32 to vector<64x1xf32>
      %41 = arith.addf %37, %40 : vector<64x1xf32>
      %42 = math.rsqrt %41 : vector<64x1xf32>
      %43 = vector.broadcast %42 : vector<64x1xf32> to vector<64x256xf32>
      %44 = arith.mulf %39, %43 : vector<64x256xf32>
      %45 = vector.broadcast %25 : vector<1x256xf32> to vector<64x256xf32>
      %46 = arith.mulf %44, %45 : vector<64x256xf32>
      %47 = vector.broadcast %26 : vector<1x256xf32> to vector<64x256xf32>
      %48 = arith.addf %46, %47 : vector<64x256xf32>
      %c0_27 = arith.constant 0 : index
      %c0_28 = arith.constant 0 : index
      %c0_29 = arith.constant 0 : index
      %49 = vector.load %arg13[%c0_27, %c0_28, %c0_29] : memref<1x64x256xf32, #tpu.memory_space<vmem>>, vector<1x64x256xf32>
      %50 = vector.shape_cast %49 : vector<1x64x256xf32> to vector<64x256xf32>
      %51 = vector.shape_cast %48 : vector<64x256xf32> to vector<1x64x256xf32>
      tpu.vector_store %arg13[%c0_27, %c0_28, %c0_29], %51 {strides = array<i32>} : memref<1x64x256xf32, #tpu.memory_space<vmem>>, vector<1x64x256xf32>,
    } else {
    }
    return
  }
  func.func @transform_0(%arg0: i32, %arg1: i32, %arg2: i32) -> (i32, i32, i32) {
    %c0_i32 = arith.constant 0 : i32
    %c0_i32_0 = arith.constant 0 : i32
    %c0_i32_1 = arith.constant 0 : i32
    return %arg0, %c0_i32, %c0_i32_0 : i32, i32, i32
  }
  func.func @transform_1(%arg0: i32, %arg1: i32, %arg2: i32) -> (i32, i32) {
    %c0_i32 = arith.constant 0 : i32
    %c0_i32_0 = arith.constant 0 : i32
    %c0_i32_1 = arith.constant 0 : i32
    return %c0_i32, %c0_i32_0 : i32, i32
  }
  func.func @transform_2(%arg0: i32, %arg1: i32, %arg2: i32) -> (i32, i32) {
    %c0_i32 = arith.constant 0 : i32
    %c0_i32_0 = arith.constant 0 : i32
    %c0_i32_1 = arith.constant 0 : i32
    return %c0_i32, %c0_i32_0 : i32, i32
  }
  func.func @transform_3(%arg0: i32, %arg1: i32, %arg2: i32) -> (i32, i32) {
    %c0_i32 = arith.constant 0 : i32
    %c0_i32_0 = arith.constant 0 : i32
    %c0_i32_1 = arith.constant 0 : i32
    return %c0_i32, %c0_i32_0 : i32, i32
  }
  func.func @transform_4(%arg0: i32, %arg1: i32, %arg2: i32) -> (i32, i32) {
    %c0_i32 = arith.constant 0 : i32
    %c0_i32_0 = arith.constant 0 : i32
    %c0_i32_1 = arith.constant 0 : i32
    return %c0_i32, %c0_i32_0 : i32, i32
  }
  func.func @transform_5(%arg0: i32, %arg1: i32, %arg2: i32) -> (i32, i32) {
    %c0_i32 = arith.constant 0 : i32
    %c0_i32_0 = arith.constant 0 : i32
    %c0_i32_1 = arith.constant 0 : i32
    return %c0_i32, %c0_i32_0 : i32, i32
  }
  func.func @transform_6(%arg0: i32, %arg1: i32, %arg2: i32) -> (i32, i32) {
    %c0_i32 = arith.constant 0 : i32
    %c0_i32_0 = arith.constant 0 : i32
    return %c0_i32, %arg2 : i32, i32
  }
  func.func @transform_7(%arg0: i32, %arg1: i32, %arg2: i32) -> (i32, i32) {
    %c0_i32 = arith.constant 0 : i32
    %c0_i32_0 = arith.constant 0 : i32
    return %c0_i32, %arg2 : i32, i32
  }
  func.func @transform_8(%arg0: i32, %arg1: i32, %arg2: i32) -> (i32, i32) {
    %c0_i32 = arith.constant 0 : i32
    %c0_i32_0 = arith.constant 0 : i32
    return %arg2, %c0_i32 : i32, i32
  }
  func.func @transform_9(%arg0: i32, %arg1: i32, %arg2: i32) -> (i32, i32) {
    %c0_i32 = arith.constant 0 : i32
    %c0_i32_0 = arith.constant 0 : i32
    %c0_i32_1 = arith.constant 0 : i32
    return %c0_i32, %c0_i32_0 : i32, i32
  }
  func.func @transform_10(%arg0: i32, %arg1: i32, %arg2: i32) -> (i32, i32, i32) {
    %c0_i32 = arith.constant 0 : i32
    %c0_i32_0 = arith.constant 0 : i32
    return %arg0, %arg1, %c0_i32 : i32, i32, i32
  }
}

</mosaic_0001>

<llo_original>
// kernel: tpu_custom_call.1
$region0: #{tpu_custom_call.1}
  #allocation0 [shape = 'u32[]', space=smem, size = 0x4, offset = 0x4, fixed_abs, tag = 'smem constant byte address 0x4 - core index']
  #allocation1 [shape = 'u32[144,128]{1,0:T(1,128)}', space=vmem, size = 0x12000, scoped, tag = 'internal scratch']
  #allocation2 [shape = 'f32[64,256]{1,0:T(8,128)}', space=vmem, size = 0x10000, scoped, tag = 'scratch operand']
  #allocation3 [shape = 'f32[64,256]{1,0:T(8,128)}', space=vmem, size = 0x10000, scoped, tag = 'scratch operand']
  %s0 = inlined_call_operand.hbm [shape: f32[2,128,256], index: 0, kind: input, shape index: {}]
  %s1 = inlined_call_operand.hbm [shape: f32[256,512], index: 1, kind: input, shape index: {}]
  %s2 = inlined_call_operand.hbm [shape: f32[256,512], index: 2, kind: input, shape index: {}]
  %s3 = inlined_call_operand.hbm [shape: f32[256,512], index: 3, kind: input, shape index: {}]
  %s4 = inlined_call_operand.hbm [shape: f32[3,512], index: 4, kind: input, shape index: {}]
  %s5 = inlined_call_operand.hbm [shape: f32[512,256], index: 5, kind: input, shape index: {}]
  %s6 = inlined_call_operand.hbm [shape: f32[256,512], index: 6, kind: input, shape index: {}]
  %s7 = inlined_call_operand.vmem [shape: f32[1,512], index: 7, kind: input, shape index: {}]
  %s8 = inlined_call_operand.hbm [shape: f32[512,256], index: 8, kind: input, shape index: {}]
  %s9 = inlined_call_operand.vmem [shape: f32[6,256], index: 9, kind: input, shape index: {}]
  %s10 = inlined_call_operand.hbm [shape: f32[2,128,256], index: 10, kind: output, shape index: {}]
  %s11 = sld [smem:[#allocation0]]
  $region113: #{tpu_custom_call.1} parent=0
    _
  %s13 = ssub.s32 1, %s11
  %s14 = scalar_select 0, %s13, %s11
  $region1: #{tpu_custom_call.1} parent=0
    #allocation4 [shape = 'u8[262144]{0}', space=vmem, size = 0x40000, scoped, tag = 'input window, operand 0']
    #allocation5 [shape = 's32[2]{0}', space=sflag, size = 0x8, scoped, tag = 'scoped memory for tpu_custom_call.1']
    #allocation6 [shape = 's32[2]{0}', space=sflag, size = 0x8, scoped, tag = 'scoped memory for tpu_custom_call.1']
    #allocation7 [shape = 'u8[524288]{0}', space=vmem, size = 0x80000, scoped, tag = 'input window, operand 1, single buffered']
    #allocation8 [shape = 's32[1]{0}', space=sflag, size = 0x4, scoped, tag = 'scoped memory for tpu_custom_call.1']
    #allocation9 [shape = 'u8[524288]{0}', space=vmem, size = 0x80000, scoped, tag = 'input window, operand 2, single buffered']
    #allocation10 [shape = 'u8[524288]{0}', space=vmem, size = 0x80000, scoped, tag = 'input window, operand 3, single buffered']
    #allocation11 [shape = 's32[1]{0}', space=sflag, size = 0x4, scoped, tag = 'scoped memory for tpu_custom_call.1']
    #allocation12 [shape = 'u8[8192]{0}', space=vmem, size = 0x2000, scoped, tag = 'input window, operand 4, single buffered']
    #allocation13 [shape = 'u8[524288]{0}', space=vmem, size = 0x80000, scoped, tag = 'input window, operand 5, single buffered']
    #allocation14 [shape = 's32[1]{0}', space=sflag, size = 0x4, scoped, tag = 'scoped memory for tpu_custom_call.1']
    #allocation15 [shape = 'u8[524288]{0}', space=vmem, size = 0x80000, scoped, tag = 'input window, operand 6']
    #allocation16 [shape = 'u8[524288]{0}', space=vmem, size = 0x80000, scoped, tag = 'input window, operand 8']
    #allocation17 [shape = 'u8[131072]{0}', space=vmem, size = 0x20000, scoped, tag = 'output window, operand 0']
    %15 = vsyncpa [#allocation5], 0
    %s16 = scalar_lea.sflag [#allocation5], 1
    %17 = vsyncpa %s16, 0
    %18 = vsyncpa [#allocation8], 0
    %19 = vsyncpa [#allocation11], 0
    %20 = vsyncpa [#allocation14], 0
    %21 = vsyncpa [#allocation6], 0
    %s22 = scalar_lea.sflag [#allocation6], 1
    %23 = vsyncpa %s22, 0
    loop: start=0, step=1, limit=10
    $region2: #{tpu_custom_call.1} parent=1 // loop_pre_header
      _
    $region3: #{tpu_custom_call.1} parent=1 // loop_header
      %s25 = sphi 0, %s29
      %p26 = scmp.ge.s32.totalorder %s25, 10
      %s32 = sphi 0, %s51
      %s33 = sphi 0, %s47
      %s34 = sphi 0, %s43
      %s35 = sphi 0, %s32
      %s36 = sphi 0, %s33
      %s37 = sphi 0, %s34
      %s38 = sphi 0, %s35
      %s39 = sphi 0, %s36
      %s40 = sphi 0, %s37
      %s54 = sphi 0, %s56
      %s57 = sphi 0, %s54
      %s58 = sphi 0, %s57
      %s74 = sphi 0, %s58
      %s78 = sphi 0, %s78
      %s80 = sphi 0, %s78
      %s81 = sphi 0, %s80
      %s95 = sphi 0, %s81
      %s99 = sphi 0, %s99
      %s101 = sphi 0, %s99
      %s102 = sphi 0, %s101
      %s116 = sphi 0, %s102
      %s120 = sphi 0, %s120
      %s122 = sphi 0, %s120
      %s123 = sphi 0, %s122
      %s137 = sphi 0, %s123
      %s141 = sphi 0, %s141
      %s143 = sphi 0, %s141
      %s144 = sphi 0, %s143
      %s158 = sphi 0, %s144
      %s162 = sphi 0, %s162
      %s164 = sphi 0, %s162
      %s165 = sphi 0, %s164
      %s179 = sphi 0, %s165
      %s185 = sphi 0, %s187
      %s188 = sphi 0, %s185
      %s189 = sphi 0, %s188
      %s205 = sphi 0, %s189
      %s211 = sphi 0, %s213
      %s214 = sphi 0, %s211
      %s215 = sphi 0, %s214
      %s231 = sphi 0, %s215
      %s237 = sphi 0, %s239
      %s240 = sphi 0, %s237
      %s241 = sphi 0, %s240
      %s257 = sphi 0, %s241
      %s261 = sphi 0, %s261
      %s263 = sphi 0, %s261
      %s264 = sphi 0, %s263
      %s278 = sphi 0, %s264
      %s286 = sphi 0, %s288
      %s289 = sphi 0, %s286
      %s290 = sphi 0, %s289
      %s306 = sphi 0, %s290
    $region4: #{tpu_custom_call.1} parent=1 // loop_header_branch
      %28 = sbr.rel (%p26) target = $region8
    $region5: #{tpu_custom_call.1} parent=1 // loop_body
      %s30 = ssub.s32 %s25, 1
      %s31 = ssub.s32 %s25, 2
      %s41 = sadd.s32 1, %s34
      %p42 = scmp.ge.s32.totalorder %s41, 2
      %s43 = scalar_select %p42, 0, %s41
      %s44 = sadd.s32 1, %s33
      %s45 = scalar_select %p42, %s44, %s33
      %p46 = scmp.ge.s32.totalorder %s45, 2
      %s47 = scalar_select %p46, 0, %s45
      %s48 = sadd.s32 1, %s32
      %s49 = scalar_select %p46, %s48, %s32
      %p50 = scmp.ge.s32.totalorder %s49, 2
      %s51 = scalar_select %p50, 0, %s49
      %s52 = ssub.s32 %s32, %s51
      %p53 = scmp.eq.s32.totalorder %s52, 0
      %s55 = sadd.s32 %s54, 1
      %s56 = scalar_select %p53, %s54, %s55
      %p59 = pneg %p53
      %p60 = scmp.eq.s32.totalorder %s25, 7
      %p61 = por %p59, %p60
      %p62 = scmp.ne.s32.totalorder %s54, %s57
      %p63 = scmp.eq.s32.totalorder %s25, 0
      %p64 = por %p62, %p63
      %p65 = scmp.ne.s32.totalorder %s54, %s57
      %p66 = scmp.eq.s32.totalorder %s30, 7
      %p67 = por %p65, %p66
      %p68 = scmp.ne.s32.totalorder %s57, %s58
      %p69 = scmp.eq.s32.totalorder %s30, 0
      %p70 = por %p68, %p69
      %p71 = scmp.ne.s32.totalorder %s57, %s58
      %p72 = scmp.eq.s32.totalorder %s31, 7
      %p73 = por %p71, %p72
      %p75 = scmp.ne.s32.totalorder %s58, %s74
      %p76 = scmp.eq.s32.totalorder %s31, 0
      %p77 = por %p75, %p76
      %s79 = sadd.s32 %s78, 1
      %p82 = scmp.eq.s32.totalorder %s25, 7
      %p83 = scmp.ne.s32.totalorder %s78, %s80
      %p84 = scmp.eq.s32.totalorder %s25, 0
      %p85 = por %p83, %p84
      %p86 = scmp.ne.s32.totalorder %s78, %s80
      %p87 = scmp.eq.s32.totalorder %s30, 7
      %p88 = por %p86, %p87
      %p89 = scmp.ne.s32.totalorder %s80, %s81
      %p90 = scmp.eq.s32.totalorder %s30, 0
      %p91 = por %p89, %p90
      %p92 = scmp.ne.s32.totalorder %s80, %s81
      %p93 = scmp.eq.s32.totalorder %s31, 7
      %p94 = por %p92, %p93
      %p96 = scmp.ne.s32.totalorder %s81, %s95
      %p97 = scmp.eq.s32.totalorder %s31, 0
      %p98 = por %p96, %p97
      %s100 = sadd.s32 %s99, 1
      %p103 = scmp.eq.s32.totalorder %s25, 7
      %p104 = scmp.ne.s32.totalorder %s99, %s101
      %p105 = scmp.eq.s32.totalorder %s25, 0
      %p106 = por %p104, %p105
      %p107 = scmp.ne.s32.totalorder %s99, %s101
      %p108 = scmp.eq.s32.totalorder %s30, 7
      %p109 = por %p107, %p108
      %p110 = scmp.ne.s32.totalorder %s101, %s102
      %p111 = scmp.eq.s32.totalorder %s30, 0
      %p112 = por %p110, %p111
      %p113 = scmp.ne.s32.totalorder %s101, %s102
      %p114 = scmp.eq.s32.totalorder %s31, 7
      %p115 = por %p113, %p114
      %p117 = scmp.ne.s32.totalorder %s102, %s116
      %p118 = scmp.eq.s32.totalorder %s31, 0
      %p119 = por %p117, %p118
      %s121 = sadd.s32 %s120, 1
      %p124 = scmp.eq.s32.totalorder %s25, 7
      %p125 = scmp.ne.s32.totalorder %s120, %s122
      %p126 = scmp.eq.s32.totalorder %s25, 0
      %p127 = por %p125, %p126
      %p128 = scmp.ne.s32.totalorder %s120, %s122
      %p129 = scmp.eq.s32.totalorder %s30, 7
      %p130 = por %p128, %p129
      %p131 = scmp.ne.s32.totalorder %s122, %s123
      %p132 = scmp.eq.s32.totalorder %s30, 0
      %p133 = por %p131, %p132
      %p134 = scmp.ne.s32.totalorder %s122, %s123
      %p135 = scmp.eq.s32.totalorder %s31, 7
      %p136 = por %p134, %p135
      %p138 = scmp.ne.s32.totalorder %s123, %s137
      %p139 = scmp.eq.s32.totalorder %s31, 0
      %p140 = por %p138, %p139
      %s142 = sadd.s32 %s141, 1
      %p145 = scmp.eq.s32.totalorder %s25, 7
      %p146 = scmp.ne.s32.totalorder %s141, %s143
      %p147 = scmp.eq.s32.totalorder %s25, 0
      %p148 = por %p146, %p147
      %p149 = scmp.ne.s32.totalorder %s141, %s143
      %p150 = scmp.eq.s32.totalorder %s30, 7
      %p151 = por %p149, %p150
      %p152 = scmp.ne.s32.totalorder %s143, %s144
      %p153 = scmp.eq.s32.totalorder %s30, 0
      %p154 = por %p152, %p153
      %p155 = scmp.ne.s32.totalorder %s143, %s144
      %p156 = scmp.eq.s32.totalorder %s31, 7
      %p157 = por %p155, %p156
      %p159 = scmp.ne.s32.totalorder %s144, %s158
      %p160 = scmp.eq.s32.totalorder %s31, 0
      %p161 = por %p159, %p160
      %s163 = sadd.s32 %s162, 1
      %p166 = scmp.eq.s32.totalorder %s25, 7
      %p167 = scmp.ne.s32.totalorder %s162, %s164
      %p168 = scmp.eq.s32.totalorder %s25, 0
      %p169 = por %p167, %p168
      %p170 = scmp.ne.s32.totalorder %s162, %s164
      %p171 = scmp.eq.s32.totalorder %s30, 7
      %p172 = por %p170, %p171
      %p173 = scmp.ne.s32.totalorder %s164, %s165
      %p174 = scmp.eq.s32.totalorder %s30, 0
      %p175 = por %p173, %p174
      %p176 = scmp.ne.s32.totalorder %s164, %s165
      %p177 = scmp.eq.s32.totalorder %s31, 7
      %p178 = por %p176, %p177
      %p180 = scmp.ne.s32.totalorder %s165, %s179
      %p181 = scmp.eq.s32.totalorder %s31, 0
      %p182 = por %p180, %p181
      %s183 = ssub.s32 %s34, %s43
      %p184 = scmp.eq.s32.totalorder %s183, 0
      %s186 = sadd.s32 %s185, 1
      %s187 = scalar_select %p184, %s185, %s186
      %p190 = pneg %p184
      %p191 = scmp.eq.s32.totalorder %s25, 7
      %p192 = por %p190, %p191
      %p193 = scmp.ne.s32.totalorder %s185, %s188
      %p194 = scmp.eq.s32.totalorder %s25, 0
      %p195 = por %p193, %p194
      %p196 = scmp.ne.s32.totalorder %s185, %s188
      %p197 = scmp.eq.s32.totalorder %s30, 7
      %p198 = por %p196, %p197
      %p199 = scmp.ne.s32.totalorder %s188, %s189
      %p200 = scmp.eq.s32.totalorder %s30, 0
      %p201 = por %p199, %p200
      %p202 = scmp.ne.s32.totalorder %s188, %s189
      %p203 = scmp.eq.s32.totalorder %s31, 7
      %p204 = por %p202, %p203
      %p206 = scmp.ne.s32.totalorder %s189, %s205
      %p207 = scmp.eq.s32.totalorder %s31, 0
      %p208 = por %p206, %p207
      %s209 = ssub.s32 %s34, %s43
      %p210 = scmp.eq.s32.totalorder %s209, 0
      %s212 = sadd.s32 %s211, 1
      %s213 = scalar_select %p210, %s211, %s212
      %p216 = pneg %p210
      %p217 = scmp.eq.s32.totalorder %s25, 7
      %p218 = por %p216, %p217
      %p219 = scmp.ne.s32.totalorder %s211, %s214
      %p220 = scmp.eq.s32.totalorder %s25, 0
      %p221 = por %p219, %p220
      %p222 = scmp.ne.s32.totalorder %s211, %s214
      %p223 = scmp.eq.s32.totalorder %s30, 7
      %p224 = por %p222, %p223
      %p225 = scmp.ne.s32.totalorder %s214, %s215
      %p226 = scmp.eq.s32.totalorder %s30, 0
      %p227 = por %p225, %p226
      %p228 = scmp.ne.s32.totalorder %s214, %s215
      %p229 = scmp.eq.s32.totalorder %s31, 7
      %p230 = por %p228, %p229
      %p232 = scmp.ne.s32.totalorder %s215, %s231
      %p233 = scmp.eq.s32.totalorder %s31, 0
      %p234 = por %p232, %p233
      %s235 = ssub.s32 %s34, %s43
      %p236 = scmp.eq.s32.totalorder %s235, 0
      %s238 = sadd.s32 %s237, 1
      %s239 = scalar_select %p236, %s237, %s238
      %p242 = pneg %p236
      %p243 = scmp.eq.s32.totalorder %s25, 7
      %p244 = por %p242, %p243
      %p245 = scmp.ne.s32.totalorder %s237, %s240
      %p246 = scmp.eq.s32.totalorder %s25, 0
      %p247 = por %p245, %p246
      %p248 = scmp.ne.s32.totalorder %s237, %s240
      %p249 = scmp.eq.s32.totalorder %s30, 7
      %p250 = por %p248, %p249
      %p251 = scmp.ne.s32.totalorder %s240, %s241
      %p252 = scmp.eq.s32.totalorder %s30, 0
      %p253 = por %p251, %p252
      %p254 = scmp.ne.s32.totalorder %s240, %s241
      %p255 = scmp.eq.s32.totalorder %s31, 7
      %p256 = por %p254, %p255
      %p258 = scmp.ne.s32.totalorder %s241, %s257
      %p259 = scmp.eq.s32.totalorder %s31, 0
      %p260 = por %p258, %p259
      %s262 = sadd.s32 %s261, 1
      %p265 = scmp.eq.s32.totalorder %s25, 7
      %p266 = scmp.ne.s32.totalorder %s261, %s263
      %p267 = scmp.eq.s32.totalorder %s25, 0
      %p268 = por %p266, %p267
      %p269 = scmp.ne.s32.totalorder %s261, %s263
      %p270 = scmp.eq.s32.totalorder %s30, 7
      %p271 = por %p269, %p270
      %p272 = scmp.ne.s32.totalorder %s263, %s264
      %p273 = scmp.eq.s32.totalorder %s30, 0
      %p274 = por %p272, %p273
      %p275 = scmp.ne.s32.totalorder %s263, %s264
      %p276 = scmp.eq.s32.totalorder %s31, 7
      %p277 = por %p275, %p276
      %p279 = scmp.ne.s32.totalorder %s264, %s278
      %p280 = scmp.eq.s32.totalorder %s31, 0
      %p281 = por %p279, %p280
      %s282 = ssub.s32 %s32, %s51
      %s283 = ssub.s32 %s33, %s47
      %s284 = sor.u32 %s282, %s283
      %p285 = scmp.eq.s32.totalorder %s284, 0
      %s287 = sadd.s32 %s286, 1
      %s288 = scalar_select %p285, %s286, %s287
      %p291 = pneg %p285
      %p292 = scmp.eq.s32.totalorder %s25, 7
      %p293 = por %p291, %p292
      %p294 = scmp.ne.s32.totalorder %s286, %s289
      %p295 = scmp.eq.s32.totalorder %s25, 0
      %p296 = por %p294, %p295
      %p297 = scmp.ne.s32.totalorder %s286, %s289
      %p298 = scmp.eq.s32.totalorder %s30, 7
      %p299 = por %p297, %p298
      %p300 = scmp.ne.s32.totalorder %s289, %s290
      %p301 = scmp.eq.s32.totalorder %s30, 0
      %p302 = por %p300, %p301
      %p303 = scmp.ne.s32.totalorder %s289, %s290
      %p304 = scmp.eq.s32.totalorder %s31, 7
      %p305 = por %p303, %p304
      %p307 = scmp.ne.s32.totalorder %s290, %s306
      %p308 = scmp.eq.s32.totalorder %s31, 0
      %p309 = por %p307, %p308
      %p310 = scmp.le.s32.totalorder 1, %s25
      %p311 = scmp.lt.s32.totalorder %s25, 9
      %p312 = pnand %p310, %p311
      %p313 = pneg %p312
      // Predicated region
      $region9: #{tpu_custom_call.1} parent=5 // pred_check
        _
      $region10: #{tpu_custom_call.1} parent=5 // pred_check_branch
        %315 = sbr.rel (%p312) target = $region12
      $region11: #{tpu_custom_call.1} parent=5 // pred_region
        %s316 = ssub.s32 %s25, 1
        // Predicated region
        $region13: #{tpu_custom_call.1} parent=11 // pred_check
          %p317 = pneg %p91
        $region14: #{tpu_custom_call.1} parent=11 // pred_check_branch
          %319 = sbr.rel (%p317) target = $region16
        $region15: #{tpu_custom_call.1} parent=11 // pred_region
          %s321 = ssub.s32 16384, 16384
          %322 = vsyncadd [#allocation8], %s321
          %s323 = sshll.u32 [#allocation7], 4
          %s324 = int_to_ptr.vmem [resolvable:$true] %s323
          %329 = dma.hbm_to_vmem [thread:$0]  %s1, 16384, %s324, [#allocation8], 512, 512, 32
        $region16: #{tpu_custom_call.1} parent=11 // pred_fallthru
          _
        // Predicated region
        $region17: #{tpu_custom_call.1} parent=11 // pred_check
          %p330 = pneg %p112
        $region18: #{tpu_custom_call.1} parent=11 // pred_check_branch
          %332 = sbr.rel (%p330) target = $region20
        $region19: #{tpu_custom_call.1} parent=11 // pred_region
          %s334 = ssub.s32 16384, 16384
          %335 = vsyncadd [#allocation8], %s334
          %s336 = sshll.u32 [#allocation9], 4
          %s337 = int_to_ptr.vmem [resolvable:$true] %s336
          %342 = dma.hbm_to_vmem [thread:$0]  %s2, 16384, %s337, [#allocation8], 512, 512, 32
        $region20: #{tpu_custom_call.1} parent=11 // pred_fallthru
          _
        // Predicated region
        $region21: #{tpu_custom_call.1} parent=11 // pred_check
          %p343 = pneg %p133
        $region22: #{tpu_custom_call.1} parent=11 // pred_check_branch
          %345 = sbr.rel (%p343) target = $region24
        $region23: #{tpu_custom_call.1} parent=11 // pred_region
          %s347 = ssub.s32 16384, 16384
          %348 = vsyncadd [#allocation11], %s347
          %s349 = sshll.u32 [#allocation10], 4
          %s350 = int_to_ptr.vmem [resolvable:$true] %s349
          %355 = dma.hbm_to_vmem [thread:$0]  %s3, 16384, %s350, [#allocation11], 512, 512, 32
        $region24: #{tpu_custom_call.1} parent=11 // pred_fallthru
          _
        // Predicated region
        $region25: #{tpu_custom_call.1} parent=11 // pred_check
          %p356 = pneg %p154
        $region26: #{tpu_custom_call.1} parent=11 // pred_check_branch
          %358 = sbr.rel (%p356) target = $region28
        $region27: #{tpu_custom_call.1} parent=11 // pred_region
          %s360 = ssub.s32 256, 256
          %361 = vsyncadd [#allocation11], %s360
          %s363 = sshll.u32 [#allocation12], 4
          %s364 = int_to_ptr.vmem [resolvable:$true] %s363
          %366 = dma.hbm_to_vmem [thread:$0]  %s4, 256, %s364, [#allocation11]
        $region28: #{tpu_custom_call.1} parent=11 // pred_fallthru
          _
        // Predicated region
        $region29: #{tpu_custom_call.1} parent=11 // pred_check
          %p367 = pneg %p175
        $region30: #{tpu_custom_call.1} parent=11 // pred_check_branch
          %369 = sbr.rel (%p367) target = $region32
        $region31: #{tpu_custom_call.1} parent=11 // pred_region
          %s371 = ssub.s32 16384, 16384
          %372 = vsyncadd [#allocation14], %s371
          %s373 = sshll.u32 [#allocation13], 4
          %s374 = int_to_ptr.vmem [resolvable:$true] %s373
          %379 = dma.hbm_to_vmem [thread:$0]  %s5, 16384, %s374, [#allocation14], 256, 256, 16
        $region32: #{tpu_custom_call.1} parent=11 // pred_fallthru
          _
        // Predicated region
        $region33: #{tpu_custom_call.1} parent=11 // pred_check
          %p380 = pneg %p274
        $region34: #{tpu_custom_call.1} parent=11 // pred_check_branch
          %382 = sbr.rel (%p380) target = $region36
        $region35: #{tpu_custom_call.1} parent=11 // pred_region
          _
        $region36: #{tpu_custom_call.1} parent=11 // pred_fallthru
          _
      $region12: #{tpu_custom_call.1} parent=5 // pred_fallthru
        _
      %p383 = scmp.lt.s32.totalorder %s25, 8
      // Predicated region
      $region37: #{tpu_custom_call.1} parent=5 // pred_check
        %p384 = pneg %p383
      $region38: #{tpu_custom_call.1} parent=5 // pred_check_branch
        %386 = sbr.rel (%p384) target = $region40
      $region39: #{tpu_custom_call.1} parent=5 // pred_region
        // Predicated region
        $region41: #{tpu_custom_call.1} parent=39 // pred_check
          %p387 = pneg %p64
        $region42: #{tpu_custom_call.1} parent=39 // pred_check_branch
          %389 = sbr.rel (%p387) target = $region44
        $region43: #{tpu_custom_call.1} parent=39 // pred_region
          %s390 = sand.u32 %s25, 1
          %s391 = scalar_lea.sflag [#allocation5], %s390
          %s392 = sand.u32 %s54, 1
          %s393 = smul.addr %s392, 256
          %s394 = scalar_lea.vmem [#allocation4], %s393
          %s396 = ssub.s32 4096, 4096
          %397 = vsyncadd %s391, %s396
          %s398 = smul.addr %s32, 32
          %s399 = smul.addr %s398, 128
          %s400 = scalar_lea.hbm %s0, %s399
          %s401 = sshll.u32 %s394, 4
          %s402 = int_to_ptr.vmem [resolvable:$true] %s401
          %407 = dma.hbm_to_vmem [thread:$0]  %s400, 4096, %s402, %s391, 256, 256, 16
        $region44: #{tpu_custom_call.1} parent=39 // pred_fallthru
          _
        // Predicated region
        $region45: #{tpu_custom_call.1} parent=39 // pred_check
          %p408 = pneg %p195
        $region46: #{tpu_custom_call.1} parent=39 // pred_check_branch
          %410 = sbr.rel (%p408) target = $region48
        $region47: #{tpu_custom_call.1} parent=39 // pred_region
          %s411 = sand.u32 %s25, 1
          %s412 = scalar_lea.sflag [#allocation5], %s411
          %s413 = sand.u32 %s185, 1
          %s414 = smul.addr %s413, 512
          %s415 = scalar_lea.vmem [#allocation15], %s414
          %s416 = smul.u32 2, %s34
          %s418 = ssub.s32 8192, 8192
          %419 = vsyncadd %s412, %s418
          %s420 = smul.addr %s416, 128
          %s421 = scalar_lea.hbm %s6, %s420
          %s422 = sshll.u32 %s415, 4
          %s423 = int_to_ptr.vmem [resolvable:$true] %s422
          %428 = dma.hbm_to_vmem [thread:$0]  %s421, 8192, %s423, %s412, 512, 256, 16
        $region48: #{tpu_custom_call.1} parent=39 // pred_fallthru
          _
        // Predicated region
        $region49: #{tpu_custom_call.1} parent=39 // pred_check
          %p429 = pneg %p221
        $region50: #{tpu_custom_call.1} parent=39 // pred_check_branch
          %431 = sbr.rel (%p429) target = $region52
        $region51: #{tpu_custom_call.1} parent=39 // pred_region
          %s432 = smul.u32 2, %s34
          %p433 = scmp.lt.s32.totalorder %s432, 3
          %s434 = scalar_select %p433, %s432, 3
          %s435 = scalar_lea.vmem %s7, %s434
          %s436 = smul.u32 2, %s34
        $region52: #{tpu_custom_call.1} parent=39 // pred_fallthru
          _
        // Predicated region
        $region53: #{tpu_custom_call.1} parent=39 // pred_check
          %p437 = pneg %p247
        $region54: #{tpu_custom_call.1} parent=39 // pred_check_branch
          %439 = sbr.rel (%p437) target = $region56
        $region55: #{tpu_custom_call.1} parent=39 // pred_region
          %s440 = sand.u32 %s25, 1
          %s441 = scalar_lea.sflag [#allocation5], %s440
          %s442 = sand.u32 %s237, 1
          %s443 = smul.addr %s442, 512
          %s444 = scalar_lea.vmem [#allocation16], %s443
          %s445 = smul.u32 32, %s34
          %s447 = ssub.s32 8192, 8192
          %448 = vsyncadd %s441, %s447
          %s449 = smul.addr %s445, 2
          %s450 = smul.addr %s449, 128
          %s451 = scalar_lea.hbm %s8, %s450
          %s452 = sshll.u32 %s444, 4
          %s453 = int_to_ptr.vmem [resolvable:$true] %s452
          %458 = dma.hbm_to_vmem [thread:$0]  %s451, 8192, %s453, %s441, 256, 256, 16
        $region56: #{tpu_custom_call.1} parent=39 // pred_fallthru
          _
      $region40: #{tpu_custom_call.1} parent=5 // pred_fallthru
        _
      %p459 = scmp.le.s32.totalorder 1, %s25
      %p460 = scmp.lt.s32.totalorder %s25, 9
      %p461 = pnand %p459, %p460
      %p462 = pneg %p461
      // Predicated region
      $region57: #{tpu_custom_call.1} parent=5 // pred_check
        _
      $region58: #{tpu_custom_call.1} parent=5 // pred_check_branch
        %464 = sbr.rel (%p461) target = $region60
      $region59: #{tpu_custom_call.1} parent=5 // pred_region
        %s465 = ssub.s32 %s25, 1
        %s466 = sand.u32 %s30, 1
        %s467 = scalar_lea.sflag [#allocation5], %s466
        %s468 = sand.u32 %s57, 1
        %s469 = smul.addr %s468, 256
        %s470 = scalar_lea.vmem [#allocation4], %s469
        // Predicated region
        $region61: #{tpu_custom_call.1} parent=59 // pred_check
          %p471 = pneg %p70
        $region62: #{tpu_custom_call.1} parent=59 // pred_check_branch
          %473 = sbr.rel (%p471) target = $region64
        $region63: #{tpu_custom_call.1} parent=59 // pred_region
          %474 = dma.done %s467, 4096
        $region64: #{tpu_custom_call.1} parent=59 // pred_fallthru
          _
        // Predicated region
        $region65: #{tpu_custom_call.1} parent=59 // pred_check
          %p475 = pneg %p91
        $region66: #{tpu_custom_call.1} parent=59 // pred_check_branch
          %477 = sbr.rel (%p475) target = $region68
        $region67: #{tpu_custom_call.1} parent=59 // pred_region
          %478 = dma.done [#allocation8], 16384
        $region68: #{tpu_custom_call.1} parent=59 // pred_fallthru
          _
        // Predicated region
        $region69: #{tpu_custom_call.1} parent=59 // pred_check
          %p479 = pneg %p112
        $region70: #{tpu_custom_call.1} parent=59 // pred_check_branch
          %481 = sbr.rel (%p479) target = $region72
        $region71: #{tpu_custom_call.1} parent=59 // pred_region
          %482 = dma.done [#allocation8], 16384
        $region72: #{tpu_custom_call.1} parent=59 // pred_fallthru
          _
        // Predicated region
        $region73: #{tpu_custom_call.1} parent=59 // pred_check
          %p483 = pneg %p133
        $region74: #{tpu_custom_call.1} parent=59 // pred_check_branch
          %485 = sbr.rel (%p483) target = $region76
        $region75: #{tpu_custom_call.1} parent=59 // pred_region
          %486 = dma.done [#allocation11], 16384
        $region76: #{tpu_custom_call.1} parent=59 // pred_fallthru
          _
        // Predicated region
        $region77: #{tpu_custom_call.1} parent=59 // pred_check
          %p487 = pneg %p154
        $region78: #{tpu_custom_call.1} parent=59 // pred_check_branch
          %489 = sbr.rel (%p487) target = $region80
        $region79: #{tpu_custom_call.1} parent=59 // pred_region
          %490 = dma.done [#allocation11], 256
        $region80: #{tpu_custom_call.1} parent=59 // pred_fallthru
          _
        // Predicated region
        $region81: #{tpu_custom_call.1} parent=59 // pred_check
          %p491 = pneg %p175
        $region82: #{tpu_custom_call.1} parent=59 // pred_check_branch
          %493 = sbr.rel (%p491) target = $region84
        $region83: #{tpu_custom_call.1} parent=59 // pred_region
          %494 = dma.done [#allocation14], 16384
        $region84: #{tpu_custom_call.1} parent=59 // pred_fallthru
          _
        %s495 = sand.u32 %s30, 1
        %s496 = scalar_lea.sflag [#allocation5], %s495
        %s497 = sand.u32 %s188, 1
        %s498 = smul.addr %s497, 512
        %s499 = scalar_lea.vmem [#allocation15], %s498
        // Predicated region
        $region85: #{tpu_custom_call.1} parent=59 // pred_check
          %p500 = pneg %p201
        $region86: #{tpu_custom_call.1} parent=59 // pred_check_branch
          %502 = sbr.rel (%p500) target = $region88
        $region87: #{tpu_custom_call.1} parent=59 // pred_region
          %503 = dma.done %s496, 8192
        $region88: #{tpu_custom_call.1} parent=59 // pred_fallthru
          _
        %s504 = sand.u32 %s30, 1
        %s505 = scalar_lea.sflag [#allocation5], %s504
        %s506 = sand.u32 %s240, 1
        %s507 = smul.addr %s506, 512
        %s508 = scalar_lea.vmem [#allocation16], %s507
        // Predicated region
        $region89: #{tpu_custom_call.1} parent=59 // pred_check
          %p509 = pneg %p253
        $region90: #{tpu_custom_call.1} parent=59 // pred_check_branch
          %511 = sbr.rel (%p509) target = $region92
        $region91: #{tpu_custom_call.1} parent=59 // pred_region
          %512 = dma.done %s505, 8192
        $region92: #{tpu_custom_call.1} parent=59 // pred_fallthru
          _
        %s513 = sand.u32 %s30, 1
        %s514 = scalar_lea.sflag [#allocation5], %s513
        %s515 = sand.u32 %s57, 1
        %s516 = smul.addr %s515, 256
        %s517 = scalar_lea.vmem [#allocation4], %s516
        %p518 = pneg %p70
        %p519 = pneg %p67
        %p520 = pneg %p91
        %p521 = pneg %p88
        %p522 = pneg %p112
        %p523 = pneg %p109
        %p524 = pneg %p133
        %p525 = pneg %p130
        %p526 = pneg %p154
        %p527 = pneg %p151
        %p528 = pneg %p175
        %p529 = pneg %p172
        %s530 = sand.u32 %s30, 1
        %s531 = scalar_lea.sflag [#allocation5], %s530
        %s532 = sand.u32 %s188, 1
        %s533 = smul.addr %s532, 512
        %s534 = scalar_lea.vmem [#allocation15], %s533
        %p535 = pneg %p201
        %p536 = pneg %p198
        %s537 = smul.u32 2, %s37
        %p538 = scmp.lt.s32.totalorder %s537, 3
        %s539 = scalar_select %p538, %s537, 3
        %s540 = scalar_lea.vmem %s7, %s539
        %p541 = pneg %p227
        %p542 = pneg %p224
        %s543 = sand.u32 %s30, 1
        %s544 = scalar_lea.sflag [#allocation5], %s543
        %s545 = sand.u32 %s240, 1
        %s546 = smul.addr %s545, 512
        %s547 = scalar_lea.vmem [#allocation16], %s546
        %p548 = pneg %p253
        %p549 = pneg %p250
        %p550 = pneg %p274
        %p551 = pneg %p271
        %p552 = pneg %p302
        %p553 = pneg %p299
        %s554 = sand.u32 %s289, 1
        %s555 = scalar_lea.sflag [#allocation6], %s554
        %s556 = sand.u32 %s289, 1
        %s557 = smul.addr %s556, 128
        %s558 = scalar_lea.vmem [#allocation17], %s557
        %s559 = smul.u32 2, %s37
        %s560 = smul.u32 2, %s37
        %p561 = scmp.lt.s32.totalorder %s560, 3
        %s562 = scalar_select %p561, %s560, 3
        %s563 = scalar_lea.vmem %s7, %s562
        %s564 = smul.u32 2, %s37
        %s565 = smul.u32 32, %s37
        %s566 = smul.u32 8, %s36
        %p567 = scmp.eq.s32.totalorder %s37, 0
        // Predicated region
        $region93: #{tpu_custom_call.1} parent=59 // pred_check
          %p568 = pneg %p567
        $region94: #{tpu_custom_call.1} parent=59 // pred_check_branch
          %570 = sbr.rel (%p568) target = $region96
        $region95: #{tpu_custom_call.1} parent=59 // pred_region
          %v571 = vld [vmem:[%s470] sm:$0xff]
          %v572 = vld [vmem:[%s470 + $0x8] sm:$0xff]
          %v573 = vld [vmem:[%s470 + $0x10] sm:$0xff]
          %v574 = vld [vmem:[%s470 + $0x18] sm:$0xff]
          %v575 = vld [vmem:[%s470 + $0x20] sm:$0xff]
          %v576 = vld [vmem:[%s470 + $0x28] sm:$0xff]
          %v577 = vld [vmem:[%s470 + $0x30] sm:$0xff]
          %v578 = vld [vmem:[%s470 + $0x38] sm:$0xff]
          %v579 = vld [vmem:[%s470 + $0x40] sm:$0xff]
          %v580 = vld [vmem:[%s470 + $0x48] sm:$0xff]
          %v581 = vld [vmem:[%s470 + $0x50] sm:$0xff]
          %v582 = vld [vmem:[%s470 + $0x58] sm:$0xff]
          %v583 = vld [vmem:[%s470 + $0x60] sm:$0xff]
          %v584 = vld [vmem:[%s470 + $0x68] sm:$0xff]
          %v585 = vld [vmem:[%s470 + $0x70] sm:$0xff]
          %v586 = vld [vmem:[%s470 + $0x78] sm:$0xff]
          %v587 = vld [vmem:[%s470 + $0x80] sm:$0xff]
          %v588 = vld [vmem:[%s470 + $0x88] sm:$0xff]
          %v589 = vld [vmem:[%s470 + $0x90] sm:$0xff]
          %v590 = vld [vmem:[%s470 + $0x98] sm:$0xff]
          %v591 = vld [vmem:[%s470 + $0xa0] sm:$0xff]
          %v592 = vld [vmem:[%s470 + $0xa8] sm:$0xff]
          %v593 = vld [vmem:[%s470 + $0xb0] sm:$0xff]
          %v594 = vld [vmem:[%s470 + $0xb8] sm:$0xff]
          %v595 = vld [vmem:[%s470 + $0xc0] sm:$0xff]
          %v596 = vld [vmem:[%s470 + $0xc8] sm:$0xff]
          %v597 = vld [vmem:[%s470 + $0xd0] sm:$0xff]
          %v598 = vld [vmem:[%s470 + $0xd8] sm:$0xff]
          %v599 = vld [vmem:[%s470 + $0xe0] sm:$0xff]
          %v600 = vld [vmem:[%s470 + $0xe8] sm:$0xff]
          %v601 = vld [vmem:[%s470 + $0xf0] sm:$0xff]
          %v602 = vld [vmem:[%s470 + $0xf8] sm:$0xff]
          %s603 = smul.u32 %s36, 64
          %s604 = sshra.s32 %s603, 3
          %s605 = sand.u32 %s603, 7
          %s606 = smul.u32 %s604, 2
          %s607 = smul.addr %s606, 8
          %s608 = scalar_lea.vmem %s470, %s607 [#allocation4]
          %v609 = vld [vmem:[%s608] sm:$0xff]
          %v610 = vld [vmem:[%s608 + $0x8] sm:$0xff]
          %v611 = vld [vmem:[%s608 + $0x10] sm:$0xff]
          %v612 = vld [vmem:[%s608 + $0x18] sm:$0xff]
          %v613 = vld [vmem:[%s608 + $0x20] sm:$0xff]
          %v614 = vld [vmem:[%s608 + $0x28] sm:$0xff]
          %v615 = vld [vmem:[%s608 + $0x30] sm:$0xff]
          %v616 = vld [vmem:[%s608 + $0x38] sm:$0xff]
          %v617 = vld [vmem:[%s608 + $0x40] sm:$0xff]
          %v618 = vld [vmem:[%s608 + $0x48] sm:$0xff]
          %v619 = vld [vmem:[%s608 + $0x50] sm:$0xff]
          %v620 = vld [vmem:[%s608 + $0x58] sm:$0xff]
          %v621 = vld [vmem:[%s608 + $0x60] sm:$0xff]
          %v622 = vld [vmem:[%s608 + $0x68] sm:$0xff]
          %v623 = vld [vmem:[%s608 + $0x70] sm:$0xff]
          %v624 = vld [vmem:[%s608 + $0x78] sm:$0xff]
          %v625 = vld [vmem:[#allocation7] sm:$0xff]
          %v626 = vld [vmem:[#allocation7 + $0x8] sm:$0xff]
          %v627 = vld [vmem:[#allocation7 + $0x10] sm:$0xff]
          %v628 = vld [vmem:[#allocation7 + $0x18] sm:$0xff]
          %v629 = vld [vmem:[#allocation7 + $0x20] sm:$0xff]
          %v630 = vld [vmem:[#allocation7 + $0x28] sm:$0xff]
          %v631 = vld [vmem:[#allocation7 + $0x30] sm:$0xff]
          %v632 = vld [vmem:[#allocation7 + $0x38] sm:$0xff]
          %v633 = vld [vmem:[#allocation7 + $0x40] sm:$0xff]
          %v634 = vld [vmem:[#allocation7 + $0x48] sm:$0xff]
          %v635 = vld [vmem:[#allocation7 + $0x50] sm:$0xff]
          %v636 = vld [vmem:[#allocation7 + $0x58] sm:$0xff]
          %v637 = vld [vmem:[#allocation7 + $0x60] sm:$0xff]
          %v638 = vld [vmem:[#allocation7 + $0x68] sm:$0xff]
          %v639 = vld [vmem:[#allocation7 + $0x70] sm:$0xff]
          %v640 = vld [vmem:[#allocation7 + $0x78] sm:$0xff]
          %v641 = vld [vmem:[#allocation7 + $0x80] sm:$0xff]
          %v642 = vld [vmem:[#allocation7 + $0x88] sm:$0xff]
          %v643 = vld [vmem:[#allocation7 + $0x90] sm:$0xff]
          %v644 = vld [vmem:[#allocation7 + $0x98] sm:$0xff]
          %v645 = vld [vmem:[#allocation7 + $0xa0] sm:$0xff]
          %v646 = vld [vmem:[#allocation7 + $0xa8] sm:$0xff]
          %v647 = vld [vmem:[#allocation7 + $0xb0] sm:$0xff]
          %v648 = vld [vmem:[#allocation7 + $0xb8] sm:$0xff]
          %v649 = vld [vmem:[#allocation7 + $0xc0] sm:$0xff]
          %v650 = vld [vmem:[#allocation7 + $0xc8] sm:$0xff]
          %v651 = vld [vmem:[#allocation7 + $0xd0] sm:$0xff]
          %v652 = vld [vmem:[#allocation7 + $0xd8] sm:$0xff]
          %v653 = vld [vmem:[#allocation7 + $0xe0] sm:$0xff]
          %v654 = vld [vmem:[#allocation7 + $0xe8] sm:$0xff]
          %v655 = vld [vmem:[#allocation7 + $0xf0] sm:$0xff]
          %v656 = vld [vmem:[#allocation7 + $0xf8] sm:$0xff]
          %v657 = vld [vmem:[#allocation7 + $0x100] sm:$0xff]
          %v658 = vld [vmem:[#allocation7 + $0x108] sm:$0xff]
          %v659 = vld [vmem:[#allocation7 + $0x110] sm:$0xff]
          %v660 = vld [vmem:[#allocation7 + $0x118] sm:$0xff]
          %v661 = vld [vmem:[#allocation7 + $0x120] sm:$0xff]
          %v662 = vld [vmem:[#allocation7 + $0x128] sm:$0xff]
          %v663 = vld [vmem:[#allocation7 + $0x130] sm:$0xff]
          %v664 = vld [vmem:[#allocation7 + $0x138] sm:$0xff]
          %v665 = vld [vmem:[#allocation7 + $0x140] sm:$0xff]
          %v666 = vld [vmem:[#allocation7 + $0x148] sm:$0xff]
          %v667 = vld [vmem:[#allocation7 + $0x150] sm:$0xff]
          %v668 = vld [vmem:[#allocation7 + $0x158] sm:$0xff]
          %v669 = vld [vmem:[#allocation7 + $0x160] sm:$0xff]
          %v670 = vld [vmem:[#allocation7 + $0x168] sm:$0xff]
          %v671 = vld [vmem:[#allocation7 + $0x170] sm:$0xff]
          %v672 = vld [vmem:[#allocation7 + $0x178] sm:$0xff]
          %v673 = vld [vmem:[#allocation7 + $0x180] sm:$0xff]
          %v674 = vld [vmem:[#allocation7 + $0x188] sm:$0xff]
          %v675 = vld [vmem:[#allocation7 + $0x190] sm:$0xff]
          %v676 = vld [vmem:[#allocation7 + $0x198] sm:$0xff]
          %v677 = vld [vmem:[#allocation7 + $0x1a0] sm:$0xff]
          %v678 = vld [vmem:[#allocation7 + $0x1a8] sm:$0xff]
          %v679 = vld [vmem:[#allocation7 + $0x1b0] sm:$0xff]
          %v680 = vld [vmem:[#allocation7 + $0x1b8] sm:$0xff]
          %v681 = vld [vmem:[#allocation7 + $0x1c0] sm:$0xff]
          %v682 = vld [vmem:[#allocation7 + $0x1c8] sm:$0xff]
          %v683 = vld [vmem:[#allocation7 + $0x1d0] sm:$0xff]
          %v684 = vld [vmem:[#allocation7 + $0x1d8] sm:$0xff]
          %v685 = vld [vmem:[#allocation7 + $0x1e0] sm:$0xff]
          %v686 = vld [vmem:[#allocation7 + $0x1e8] sm:$0xff]
          %v687 = vld [vmem:[#allocation7 + $0x1f0] sm:$0xff]
          %v688 = vld [vmem:[#allocation7 + $0x1f8] sm:$0xff]
          %v689 = vld [vmem:[#allocation7 + $0x200] sm:$0xff]
          %v690 = vld [vmem:[#allocation7 + $0x208] sm:$0xff]
          %v691 = vld [vmem:[#allocation7 + $0x210] sm:$0xff]
          %v692 = vld [vmem:[#allocation7 + $0x218] sm:$0xff]
          %v693 = vld [vmem:[#allocation7 + $0x220] sm:$0xff]
          %v694 = vld [vmem:[#allocation7 + $0x228] sm:$0xff]
          %v695 = vld [vmem:[#allocation7 + $0x230] sm:$0xff]
          %v696 = vld [vmem:[#allocation7 + $0x238] sm:$0xff]
          %v697 = vld [vmem:[#allocation7 + $0x240] sm:$0xff]
          %v698 = vld [vmem:[#allocation7 + $0x248] sm:$0xff]
          %v699 = vld [vmem:[#allocation7 + $0x250] sm:$0xff]
          %v700 = vld [vmem:[#allocation7 + $0x258] sm:$0xff]
          %v701 = vld [vmem:[#allocation7 + $0x260] sm:$0xff]
          %v702 = vld [vmem:[#allocation7 + $0x268] sm:$0xff]
          %v703 = vld [vmem:[#allocation7 + $0x270] sm:$0xff]
          %v704 = vld [vmem:[#allocation7 + $0x278] sm:$0xff]
          %v705 = vld [vmem:[#allocation7 + $0x280] sm:$0xff]
          %v706 = vld [vmem:[#allocation7 + $0x288] sm:$0xff]
          %v707 = vld [vmem:[#allocation7 + $0x290] sm:$0xff]
          %v708 = vld [vmem:[#allocation7 + $0x298] sm:$0xff]
          %v709 = vld [vmem:[#allocation7 + $0x2a0] sm:$0xff]
          %v710 = vld [vmem:[#allocation7 + $0x2a8] sm:$0xff]
          %v711 = vld [vmem:[#allocation7 + $0x2b0] sm:$0xff]
          %v712 = vld [vmem:[#allocation7 + $0x2b8] sm:$0xff]
          %v713 = vld [vmem:[#allocation7 + $0x2c0] sm:$0xff]
          %v714 = vld [vmem:[#allocation7 + $0x2c8] sm:$0xff]
          %v715 = vld [vmem:[#allocation7 + $0x2d0] sm:$0xff]
          %v716 = vld [vmem:[#allocation7 + $0x2d8] sm:$0xff]
          %v717 = vld [vmem:[#allocation7 + $0x2e0] sm:$0xff]
          %v718 = vld [vmem:[#allocation7 + $0x2e8] sm:$0xff]
          %v719 = vld [vmem:[#allocation7 + $0x2f0] sm:$0xff]
          %v720 = vld [vmem:[#allocation7 + $0x2f8] sm:$0xff]
          %v721 = vld [vmem:[#allocation7 + $0x300] sm:$0xff]
          %v722 = vld [vmem:[#allocation7 + $0x308] sm:$0xff]
          %v723 = vld [vmem:[#allocation7 + $0x310] sm:$0xff]
          %v724 = vld [vmem:[#allocation7 + $0x318] sm:$0xff]
          %v725 = vld [vmem:[#allocation7 + $0x320] sm:$0xff]
          %v726 = vld [vmem:[#allocation7 + $0x328] sm:$0xff]
          %v727 = vld [vmem:[#allocation7 + $0x330] sm:$0xff]
          %v728 = vld [vmem:[#allocation7 + $0x338] sm:$0xff]
          %v729 = vld [vmem:[#allocation7 + $0x340] sm:$0xff]
          %v730 = vld [vmem:[#allocation7 + $0x348] sm:$0xff]
          %v731 = vld [vmem:[#allocation7 + $0x350] sm:$0xff]
          %v732 = vld [vmem:[#allocation7 + $0x358] sm:$0xff]
          %v733 = vld [vmem:[#allocation7 + $0x360] sm:$0xff]
          %v734 = vld [vmem:[#allocation7 + $0x368] sm:$0xff]
          %v735 = vld [vmem:[#allocation7 + $0x370] sm:$0xff]
          %v736 = vld [vmem:[#allocation7 + $0x378] sm:$0xff]
          %v737 = vld [vmem:[#allocation7 + $0x380] sm:$0xff]
          %v738 = vld [vmem:[#allocation7 + $0x388] sm:$0xff]
          %v739 = vld [vmem:[#allocation7 + $0x390] sm:$0xff]
          %v740 = vld [vmem:[#allocation7 + $0x398] sm:$0xff]
          %v741 = vld [vmem:[#allocation7 + $0x3a0] sm:$0xff]
          %v742 = vld [vmem:[#allocation7 + $0x3a8] sm:$0xff]
          %v743 = vld [vmem:[#allocation7 + $0x3b0] sm:$0xff]
          %v744 = vld [vmem:[#allocation7 + $0x3b8] sm:$0xff]
          %v745 = vld [vmem:[#allocation7 + $0x3c0] sm:$0xff]
          %v746 = vld [vmem:[#allocation7 + $0x3c8] sm:$0xff]
          %v747 = vld [vmem:[#allocation7 + $0x3d0] sm:$0xff]
          %v748 = vld [vmem:[#allocation7 + $0x3d8] sm:$0xff]
          %v749 = vld [vmem:[#allocation7 + $0x3e0] sm:$0xff]
          %v750 = vld [vmem:[#allocation7 + $0x3e8] sm:$0xff]
          %v751 = vld [vmem:[#allocation7 + $0x3f0] sm:$0xff]
          %v752 = vld [vmem:[#allocation7 + $0x3f8] sm:$0xff]
          %v753 = vld [vmem:[#allocation12] ss:$4 sm:$0xf]
          %v755 = vlaneseq
          %v756 = vshrl.u32 %v755, 7
          %v757 = vsub.s32 0, %v756
          %v758 = vrot.slane %v753, %v757
          %v759 = vlaneseq
          %v760 = vshrl.u32 %v759, 7
          %v761 = vsub.s32 1, %v760
          %v762 = vrot.slane %v753, %v761
          %v763 = vlaneseq
          %v764 = vshrl.u32 %v763, 7
          %v765 = vsub.s32 2, %v764
          %v766 = vrot.slane %v753, %v765
          %v767 = vlaneseq
          %v768 = vshrl.u32 %v767, 7
          %v769 = vsub.s32 3, %v768
          %v770 = vrot.slane %v753, %v769
          %775 = vmatprep.subr.mxu0 %v626
          %776 = vmatpush1.msra.mxu0 %v625
          %777 = vmatprep.subr.mxu0 %v630
          %778 = vmatpush1.msra.mxu0 %v629
          %779 = vmatprep.subr.mxu0 %v634
          %780 = vmatpush1.msra.mxu0 %v633
          %781 = vmatprep.subr.mxu0 %v638
          %782 = vmatpush1.msra.mxu0 %v637
          %783 = vmatprep.subr.mxu0 %v642
          %784 = vmatpush1.msra.mxu0 %v641
          %785 = vmatprep.subr.mxu0 %v646
          %786 = vmatpush1.msra.mxu0 %v645
          %787 = vmatprep.subr.mxu0 %v650
          %788 = vmatpush1.msra.mxu0 %v649
          %789 = vmatprep.subr.mxu0 %v654
          %790 = vmatpush1.msra.mxu0 %v653
          %791 = vmatprep.subr.mxu0 %v658
          %792 = vmatpush1.msra.mxu0 %v657
          %793 = vmatprep.subr.mxu0 %v662
          %794 = vmatpush1.msra.mxu0 %v661
          %795 = vmatprep.subr.mxu0 %v666
          %796 = vmatpush1.msra.mxu0 %v665
          %797 = vmatprep.subr.mxu0 %v670
          %798 = vmatpush1.msra.mxu0 %v669
          %799 = vmatprep.subr.mxu0 %v674
          %800 = vmatpush1.msra.mxu0 %v673
          %801 = vmatprep.subr.mxu0 %v678
          %802 = vmatpush1.msra.mxu0 %v677
          %803 = vmatprep.subr.mxu0 %v682
          %804 = vmatpush1.msra.mxu0 %v681
          %805 = vmatprep.subr.mxu0 %v686
          %806 = vmatpush1.msra.mxu0 %v685
          %807 = vmatprep.subr.mxu0 %v690
          %808 = vmatpush1.msra.mxu0 %v689
          %809 = vmatprep.subr.mxu0 %v694
          %810 = vmatpush1.msra.mxu0 %v693
          %811 = vmatprep.subr.mxu0 %v698
          %812 = vmatpush1.msra.mxu0 %v697
          %813 = vmatprep.subr.mxu0 %v702
          %814 = vmatpush1.msra.mxu0 %v701
          %815 = vmatprep.subr.mxu0 %v706
          %816 = vmatpush1.msra.mxu0 %v705
          %817 = vmatprep.subr.mxu0 %v710
          %818 = vmatpush1.msra.mxu0 %v709
          %819 = vmatprep.subr.mxu0 %v714
          %820 = vmatpush1.msra.mxu0 %v713
          %821 = vmatprep.subr.mxu0 %v718
          %822 = vmatpush1.msra.mxu0 %v717
          %823 = vmatprep.subr.mxu0 %v722
          %824 = vmatpush1.msra.mxu0 %v721
          %825 = vmatprep.subr.mxu0 %v726
          %826 = vmatpush1.msra.mxu0 %v725
          %827 = vmatprep.subr.mxu0 %v730
          %828 = vmatpush1.msra.mxu0 %v729
          %829 = vmatprep.subr.mxu0 %v734
          %830 = vmatpush1.msra.mxu0 %v733
          %831 = vmatprep.subr.mxu0 %v738
          %832 = vmatpush1.msra.mxu0 %v737
          %833 = vmatprep.subr.mxu0 %v742
          %834 = vmatpush1.msra.mxu0 %v741
          %835 = vmatprep.subr.mxu0 %v746
          %836 = vmatpush1.msra.mxu0 %v745
          %837 = vmatprep.subr.mxu0 %v750
          %838 = vmatpush1.msra.mxu0 %v749
          %839 = vmatprep.mubr.f32.mxu0 %v610
          %840 = vmatmul.mubr.f32.gmra.mrb[0].mxu0 %v609
          %v841 = vpop.f32.mrb[0].mxu0
          %v842 = vadd.f32 %v758, %v841
          %v843 = vpop.f32.mrb[0].mxu0
          %v844 = vadd.f32 %v762, %v843
          %845 = vmatprep.mubr.f32.mxu0 %v612
          %846 = vmatmul.mubr.f32.gmra.mrb[0].mxu0 %v611
          %v847 = vpop.f32.mrb[0].mxu0
          %v848 = vadd.f32 %v758, %v847
          %v849 = vpop.f32.mrb[0].mxu0
          %v850 = vadd.f32 %v762, %v849
          %851 = vmatprep.mubr.f32.mxu0 %v614
          %852 = vmatmul.mubr.f32.gmra.mrb[0].mxu0 %v613
          %v853 = vpop.f32.mrb[0].mxu0
          %v854 = vadd.f32 %v758, %v853
          %v855 = vpop.f32.mrb[0].mxu0
          %v856 = vadd.f32 %v762, %v855
          %857 = vmatprep.mubr.f32.mxu0 %v616
          %858 = vmatmul.mubr.f32.gmra.mrb[0].mxu0 %v615
          %v859 = vpop.f32.mrb[0].mxu0
          %v860 = vadd.f32 %v758, %v859
          %v861 = vpop.f32.mrb[0].mxu0
          %v862 = vadd.f32 %v762, %v861
          %863 = vmatprep.mubr.f32.mxu0 %v618
          %864 = vmatmul.mubr.f32.gmra.mrb[0].mxu0 %v617
          %v865 = vpop.f32.mrb[0].mxu0
          %v866 = vadd.f32 %v758, %v865
          %v867 = vpop.f32.mrb[0].mxu0
          %v868 = vadd.f32 %v762, %v867
          %869 = vmatprep.mubr.f32.mxu0 %v620
          %870 = vmatmul.mubr.f32.gmra.mrb[0].mxu0 %v619
          %v871 = vpop.f32.mrb[0].mxu0
          %v872 = vadd.f32 %v758, %v871
          %v873 = vpop.f32.mrb[0].mxu0
          %v874 = vadd.f32 %v762, %v873
          %875 = vmatprep.mubr.f32.mxu0 %v622
          %876 = vmatmul.mubr.f32.gmra.mrb[0].mxu0 %v621
          %v877 = vpop.f32.mrb[0].mxu0
          %v878 = vadd.f32 %v758, %v877
          %v879 = vpop.f32.mrb[0].mxu0
          %v880 = vadd.f32 %v762, %v879
          %881 = vmatprep.mubr.f32.mxu0 %v624
          %882 = vmatmul.mubr.f32.gmra.mrb[0].mxu0 %v623
          %v883 = vpop.f32.mrb[0].mxu0
          %v884 = vadd.f32 %v758, %v883
          %v885 = vpop.f32.mrb[0].mxu0
          %v886 = vadd.f32 %v762, %v885
          %887 = vdwg.mxu0
          %888 = vmatprep.subr.mxu0 %v628
          %889 = vmatpush1.msra.mxu0 %v627
          %890 = vmatprep.subr.mxu0 %v632
          %891 = vmatpush1.msra.mxu0 %v631
          %892 = vmatprep.subr.mxu0 %v636
          %893 = vmatpush1.msra.mxu0 %v635
          %894 = vmatprep.subr.mxu0 %v640
          %895 = vmatpush1.msra.mxu0 %v639
          %896 = vmatprep.subr.mxu0 %v644
          %897 = vmatpush1.msra.mxu0 %v643
          %898 = vmatprep.subr.mxu0 %v648
          %899 = vmatpush1.msra.mxu0 %v647
          %900 = vmatprep.subr.mxu0 %v652
          %901 = vmatpush1.msra.mxu0 %v651
          %902 = vmatprep.subr.mxu0 %v656
          %903 = vmatpush1.msra.mxu0 %v655
          %904 = vmatprep.subr.mxu0 %v660
          %905 = vmatpush1.msra.mxu0 %v659
          %906 = vmatprep.subr.mxu0 %v664
          %907 = vmatpush1.msra.mxu0 %v663
          %908 = vmatprep.subr.mxu0 %v668
          %909 = vmatpush1.msra.mxu0 %v667
          %910 = vmatprep.subr.mxu0 %v672
          %911 = vmatpush1.msra.mxu0 %v671
          %912 = vmatprep.subr.mxu0 %v676
          %913 = vmatpush1.msra.mxu0 %v675
          %914 = vmatprep.subr.mxu0 %v680
          %915 = vmatpush1.msra.mxu0 %v679
          %916 = vmatprep.subr.mxu0 %v684
          %917 = vmatpush1.msra.mxu0 %v683
          %918 = vmatprep.subr.mxu0 %v688
          %919 = vmatpush1.msra.mxu0 %v687
          %920 = vmatprep.subr.mxu0 %v692
          %921 = vmatpush1.msra.mxu0 %v691
          %922 = vmatprep.subr.mxu0 %v696
          %923 = vmatpush1.msra.mxu0 %v695
          %924 = vmatprep.subr.mxu0 %v700
          %925 = vmatpush1.msra.mxu0 %v699
          %926 = vmatprep.subr.mxu0 %v704
          %927 = vmatpush1.msra.mxu0 %v703
          %928 = vmatprep.subr.mxu0 %v708
          %929 = vmatpush1.msra.mxu0 %v707
          %930 = vmatprep.subr.mxu0 %v712
          %931 = vmatpush1.msra.mxu0 %v711
          %932 = vmatprep.subr.mxu0 %v716
          %933 = vmatpush1.msra.mxu0 %v715
          %934 = vmatprep.subr.mxu0 %v720
          %935 = vmatpush1.msra.mxu0 %v719
          %936 = vmatprep.subr.mxu0 %v724
          %937 = vmatpush1.msra.mxu0 %v723
          %938 = vmatprep.subr.mxu0 %v728
          %939 = vmatpush1.msra.mxu0 %v727
          %940 = vmatprep.subr.mxu0 %v732
          %941 = vmatpush1.msra.mxu0 %v731
          %942 = vmatprep.subr.mxu0 %v736
          %943 = vmatpush1.msra.mxu0 %v735
          %944 = vmatprep.subr.mxu0 %v740
          %945 = vmatpush1.msra.mxu0 %v739
          %946 = vmatprep.subr.mxu0 %v744
          %947 = vmatpush1.msra.mxu0 %v743
          %948 = vmatprep.subr.mxu0 %v748
          %949 = vmatpush1.msra.mxu0 %v747
          %950 = vmatprep.subr.mxu0 %v752
          %951 = vmatpush1.msra.mxu0 %v751
          %952 = vmatprep.mubr.f32.mxu0 %v610
          %953 = vmatmul.mubr.f32.gmra.mrb[0].mxu0 %v609
          %v954 = vpop.f32.mrb[0].mxu0
          %v955 = vadd.f32 %v766, %v954
          %v956 = vpop.f32.mrb[0].mxu0
          %v957 = vadd.f32 %v770, %v956
          %958 = vmatprep.mubr.f32.mxu0 %v612
          %959 = vmatmul.mubr.f32.gmra.mrb[0].mxu0 %v611
          %v960 = vpop.f32.mrb[0].mxu0
          %v961 = vadd.f32 %v766, %v960
          %v962 = vpop.f32.mrb[0].mxu0
          %v963 = vadd.f32 %v770, %v962
          %964 = vmatprep.mubr.f32.mxu0 %v614
          %965 = vmatmul.mubr.f32.gmra.mrb[0].mxu0 %v613
          %v966 = vpop.f32.mrb[0].mxu0
          %v967 = vadd.f32 %v766, %v966
          %v968 = vpop.f32.mrb[0].mxu0
          %v969 = vadd.f32 %v770, %v968
          %970 = vmatprep.mubr.f32.mxu0 %v616
          %971 = vmatmul.mubr.f32.gmra.mrb[0].mxu0 %v615
          %v972 = vpop.f32.mrb[0].mxu0
          %v973 = vadd.f32 %v766, %v972
          %v974 = vpop.f32.mrb[0].mxu0
          %v975 = vadd.f32 %v770, %v974
          %976 = vmatprep.mubr.f32.mxu0 %v618
          %977 = vmatmul.mubr.f32.gmra.mrb[0].mxu0 %v617
          %v978 = vpop.f32.mrb[0].mxu0
          %v979 = vadd.f32 %v766, %v978
          %v980 = vpop.f32.mrb[0].mxu0
          %v981 = vadd.f32 %v770, %v980
          %982 = vmatprep.mubr.f32.mxu0 %v620
          %983 = vmatmul.mubr.f32.gmra.mrb[0].mxu0 %v619
          %v984 = vpop.f32.mrb[0].mxu0
          %v985 = vadd.f32 %v766, %v984
          %v986 = vpop.f32.mrb[0].mxu0
          %v987 = vadd.f32 %v770, %v986
          %988 = vmatprep.mubr.f32.mxu0 %v622
          %989 = vmatmul.mubr.f32.gmra.mrb[0].mxu0 %v621
          %v990 = vpop.f32.mrb[0].mxu0
          %v991 = vadd.f32 %v766, %v990
          %v992 = vpop.f32.mrb[0].mxu0
          %v993 = vadd.f32 %v770, %v992
          %994 = vmatprep.mubr.f32.mxu0 %v624
          %995 = vmatmul.mubr.f32.gmra.mrb[0].mxu0 %v623
          %v996 = vpop.f32.mrb[0].mxu0
          %v997 = vadd.f32 %v766, %v996
          %v998 = vpop.f32.mrb[0].mxu0
          %v999 = vadd.f32 %v770, %v998
          %1000 = vdwg.mxu0
          %v1001 = vld [vmem:[#allocation9] sm:$0xff]
          %v1002 = vld [vmem:[#allocation9 + $0x8] sm:$0xff]
          %v1003 = vld [vmem:[#allocation9 + $0x10] sm:$0xff]
          %v1004 = vld [vmem:[#allocation9 + $0x18] sm:$0xff]
          %v1005 = vld [vmem:[#allocation9 + $0x20] sm:$0xff]
          %v1006 = vld [vmem:[#allocation9 + $0x28] sm:$0xff]
          %v1007 = vld [vmem:[#allocation9 + $0x30] sm:$0xff]
          %v1008 = vld [vmem:[#allocation9 + $0x38] sm:$0xff]
          %v1009 = vld [vmem:[#allocation9 + $0x40] sm:$0xff]
          %v1010 = vld [vmem:[#allocation9 + $0x48] sm:$0xff]
          %v1011 = vld [vmem:[#allocation9 + $0x50] sm:$0xff]
          %v1012 = vld [vmem:[#allocation9 + $0x58] sm:$0xff]
          %v1013 = vld [vmem:[#allocation9 + $0x60] sm:$0xff]
          %v1014 = vld [vmem:[#allocation9 + $0x68] sm:$0xff]
          %v1015 = vld [vmem:[#allocation9 + $0x70] sm:$0xff]
          %v1016 = vld [vmem:[#allocation9 + $0x78] sm:$0xff]
          %v1017 = vld [vmem:[#allocation9 + $0x80] sm:$0xff]
          %v1018 = vld [vmem:[#allocation9 + $0x88] sm:$0xff]
          %v1019 = vld [vmem:[#allocation9 + $0x90] sm:$0xff]
          %v1020 = vld [vmem:[#allocation9 + $0x98] sm:$0xff]
          %v1021 = vld [vmem:[#allocation9 + $0xa0] sm:$0xff]
          %v1022 = vld [vmem:[#allocation9 + $0xa8] sm:$0xff]
          %v1023 = vld [vmem:[#allocation9 + $0xb0] sm:$0xff]
          %v1024 = vld [vmem:[#allocation9 + $0xb8] sm:$0xff]
          %v1025 = vld [vmem:[#allocation9 + $0xc0] sm:$0xff]
          %v1026 = vld [vmem:[#allocation9 + $0xc8] sm:$0xff]
          %v1027 = vld [vmem:[#allocation9 + $0xd0] sm:$0xff]
          %v1028 = vld [vmem:[#allocation9 + $0xd8] sm:$0xff]
          %v1029 = vld [vmem:[#allocation9 + $0xe0] sm:$0xff]
          %v1030 = vld [vmem:[#allocation9 + $0xe8] sm:$0xff]
          %v1031 = vld [vmem:[#allocation9 + $0xf0] sm:$0xff]
          %v1032 = vld [vmem:[#allocation9 + $0xf8] sm:$0xff]
          %v1033 = vld [vmem:[#allocation9 + $0x100] sm:$0xff]
          %v1034 = vld [vmem:[#allocation9 + $0x108] sm:$0xff]
          %v1035 = vld [vmem:[#allocation9 + $0x110] sm:$0xff]
          %v1036 = vld [vmem:[#allocation9 + $0x118] sm:$0xff]
          %v1037 = vld [vmem:[#allocation9 + $0x120] sm:$0xff]
          %v1038 = vld [vmem:[#allocation9 + $0x128] sm:$0xff]
          %v1039 = vld [vmem:[#allocation9 + $0x130] sm:$0xff]
          %v1040 = vld [vmem:[#allocation9 + $0x138] sm:$0xff]
          %v1041 = vld [vmem:[#allocation9 + $0x140] sm:$0xff]
          %v1042 = vld [vmem:[#allocation9 + $0x148] sm:$0xff]
          %v1043 = vld [vmem:[#allocation9 + $0x150] sm:$0xff]
          %v1044 = vld [vmem:[#allocation9 + $0x158] sm:$0xff]
          %v1045 = vld [vmem:[#allocation9 + $0x160] sm:$0xff]
          %v1046 = vld [vmem:[#allocation9 + $0x168] sm:$0xff]
          %v1047 = vld [vmem:[#allocation9 + $0x170] sm:$0xff]
          %v1048 = vld [vmem:[#allocation9 + $0x178] sm:$0xff]
          %v1049 = vld [vmem:[#allocation9 + $0x180] sm:$0xff]
          %v1050 = vld [vmem:[#allocation9 + $0x188] sm:$0xff]
          %v1051 = vld [vmem:[#allocation9 + $0x190] sm:$0xff]
          %v1052 = vld [vmem:[#allocation9 + $0x198] sm:$0xff]
          %v1053 = vld [vmem:[#allocation9 + $0x1a0] sm:$0xff]
          %v1054 = vld [vmem:[#allocation9 + $0x1a8] sm:$0xff]
          %v1055 = vld [vmem:[#allocation9 + $0x1b0] sm:$0xff]
          %v1056 = vld [vmem:[#allocation9 + $0x1b8] sm:$0xff]
          %v1057 = vld [vmem:[#allocation9 + $0x1c0] sm:$0xff]
          %v1058 = vld [vmem:[#allocation9 + $0x1c8] sm:$0xff]
          %v1059 = vld [vmem:[#allocation9 + $0x1d0] sm:$0xff]
          %v1060 = vld [vmem:[#allocation9 + $0x1d8] sm:$0xff]
          %v1061 = vld [vmem:[#allocation9 + $0x1e0] sm:$0xff]
          %v1062 = vld [vmem:[#allocation9 + $0x1e8] sm:$0xff]
          %v1063 = vld [vmem:[#allocation9 + $0x1f0] sm:$0xff]
          %v1064 = vld [vmem:[#allocation9 + $0x1f8] sm:$0xff]
          %v1065 = vld [vmem:[#allocation9 + $0x200] sm:$0xff]
          %v1066 = vld [vmem:[#allocation9 + $0x208] sm:$0xff]
          %v1067 = vld [vmem:[#allocation9 + $0x210] sm:$0xff]
          %v1068 = vld [vmem:[#allocation9 + $0x218] sm:$0xff]
          %v1069 = vld [vmem:[#allocation9 + $0x220] sm:$0xff]
          %v1070 = vld [vmem:[#allocation9 + $0x228] sm:$0xff]
          %v1071 = vld [vmem:[#allocation9 + $0x230] sm:$0xff]
          %v1072 = vld [vmem:[#allocation9 + $0x238] sm:$0xff]
          %v1073 = vld [vmem:[#allocation9 + $0x240] sm:$0xff]
          %v1074 = vld [vmem:[#allocation9 + $0x248] sm:$0xff]
          %v1075 = vld [vmem:[#allocation9 + $0x250] sm:$0xff]
          %v1076 = vld [vmem:[#allocation9 + $0x258] sm:$0xff]
          %v1077 = vld [vmem:[#allocation9 + $0x260] sm:$0xff]
          %v1078 = vld [vmem:[#allocation9 + $0x268] sm:$0xff]
          %v1079 = vld [vmem:[#allocation9 + $0x270] sm:$0xff]
          %v1080 = vld [vmem:[#allocation9 + $0x278] sm:$0xff]
          %v1081 = vld [vmem:[#allocation9 + $0x280] sm:$0xff]
          %v1082 = vld [vmem:[#allocation9 + $0x288] sm:$0xff]
          %v1083 = vld [vmem:[#allocation9 + $0x290] sm:$0xff]
          %v1084 = vld [vmem:[#allocation9 + $0x298] sm:$0xff]
          %v1085 = vld [vmem:[#allocation9 + $0x2a0] sm:$0xff]
          %v1086 = vld [vmem:[#allocation9 + $0x2a8] sm:$0xff]
          %v1087 = vld [vmem:[#allocation9 + $0x2b0] sm:$0xff]
          %v1088 = vld [vmem:[#allocation9 + $0x2b8] sm:$0xff]
          %v1089 = vld [vmem:[#allocation9 + $0x2c0] sm:$0xff]
          %v1090 = vld [vmem:[#allocation9 + $0x2c8] sm:$0xff]
          %v1091 = vld [vmem:[#allocation9 + $0x2d0] sm:$0xff]
          %v1092 = vld [vmem:[#allocation9 + $0x2d8] sm:$0xff]
          %v1093 = vld [vmem:[#allocation9 + $0x2e0] sm:$0xff]
          %v1094 = vld [vmem:[#allocation9 + $0x2e8] sm:$0xff]
          %v1095 = vld [vmem:[#allocation9 + $0x2f0] sm:$0xff]
          %v1096 = vld [vmem:[#allocation9 + $0x2f8] sm:$0xff]
          %v1097 = vld [vmem:[#allocation9 + $0x300] sm:$0xff]
          %v1098 = vld [vmem:[#allocation9 + $0x308] sm:$0xff]
          %v1099 = vld [vmem:[#allocation9 + $0x310] sm:$0xff]
          %v1100 = vld [vmem:[#allocation9 + $0x318] sm:$0xff]
          %v1101 = vld [vmem:[#allocation9 + $0x320] sm:$0xff]
          %v1102 = vld [vmem:[#allocation9 + $0x328] sm:$0xff]
          %v1103 = vld [vmem:[#allocation9 + $0x330] sm:$0xff]
          %v1104 = vld [vmem:[#allocation9 + $0x338] sm:$0xff]
          %v1105 = vld [vmem:[#allocation9 + $0x340] sm:$0xff]
          %v1106 = vld [vmem:[#allocation9 + $0x348] sm:$0xff]
          %v1107 = vld [vmem:[#allocation9 + $0x350] sm:$0xff]
          %v1108 = vld [vmem:[#allocation9 + $0x358] sm:$0xff]
          %v1109 = vld [vmem:[#allocation9 + $0x360] sm:$0xff]
          %v1110 = vld [vmem:[#allocation9 + $0x368] sm:$0xff]
          %v1111 = vld [vmem:[#allocation9 + $0x370] sm:$0xff]
          %v1112 = vld [vmem:[#allocation9 + $0x378] sm:$0xff]
          %v1113 = vld [vmem:[#allocation9 + $0x380] sm:$0xff]
          %v1114 = vld [vmem:[#allocation9 + $0x388] sm:$0xff]
          %v1115 = vld [vmem:[#allocation9 + $0x390] sm:$0xff]
          %v1116 = vld [vmem:[#allocation9 + $0x398] sm:$0xff]
          %v1117 = vld [vmem:[#allocation9 + $0x3a0] sm:$0xff]
          %v1118 = vld [vmem:[#allocation9 + $0x3a8] sm:$0xff]
          %v1119 = vld [vmem:[#allocation9 + $0x3b0] sm:$0xff]
          %v1120 = vld [vmem:[#allocation9 + $0x3b8] sm:$0xff]
          %v1121 = vld [vmem:[#allocation9 + $0x3c0] sm:$0xff]
          %v1122 = vld [vmem:[#allocation9 + $0x3c8] sm:$0xff]
          %v1123 = vld [vmem:[#allocation9 + $0x3d0] sm:$0xff]
          %v1124 = vld [vmem:[#allocation9 + $0x3d8] sm:$0xff]
          %v1125 = vld [vmem:[#allocation9 + $0x3e0] sm:$0xff]
          %v1126 = vld [vmem:[#allocation9 + $0x3e8] sm:$0xff]
          %v1127 = vld [vmem:[#allocation9 + $0x3f0] sm:$0xff]
          %v1128 = vld [vmem:[#allocation9 + $0x3f8] sm:$0xff]
          %s1129 = scalar_lea.vmem [#allocation12], 1
          %v1130 = vld [vmem:[%s1129] ss:$4 sm:$0xf]
          %v1132 = vlaneseq
          %v1133 = vshrl.u32 %v1132, 7
          %v1134 = vsub.s32 0, %v1133
          %v1135 = vrot.slane %v1130, %v1134
          %v1136 = vlaneseq
          %v1137 = vshrl.u32 %v1136, 7
          %v1138 = vsub.s32 1, %v1137
          %v1139 = vrot.slane %v1130, %v1138
          %v1140 = vlaneseq
          %v1141 = vshrl.u32 %v1140, 7
          %v1142 = vsub.s32 2, %v1141
          %v1143 = vrot.slane %v1130, %v1142
          %v1144 = vlaneseq
          %v1145 = vshrl.u32 %v1144, 7
          %v1146 = vsub.s32 3, %v1145
          %v1147 = vrot.slane %v1130, %v1146
          %1152 = vmatprep.subr.mxu0 %v1002
          %1153 = vmatpush1.msra.mxu0 %v1001
          %1154 = vmatprep.subr.mxu0 %v1006
          %1155 = vmatpush1.msra.mxu0 %v1005
          %1156 = vmatprep.subr.mxu0 %v1010
          %1157 = vmatpush1.msra.mxu0 %v1009
          %1158 = vmatprep.subr.mxu0 %v1014
          %1159 = vmatpush1.msra.mxu0 %v1013
          %1160 = vmatprep.subr.mxu0 %v1018
          %1161 = vmatpush1.msra.mxu0 %v1017
          %1162 = vmatprep.subr.mxu0 %v1022
          %1163 = vmatpush1.msra.mxu0 %v1021
          %1164 = vmatprep.subr.mxu0 %v1026
          %1165 = vmatpush1.msra.mxu0 %v1025
          %1166 = vmatprep.subr.mxu0 %v1030
          %1167 = vmatpush1.msra.mxu0 %v1029
          %1168 = vmatprep.subr.mxu0 %v1034
          %1169 = vmatpush1.msra.mxu0 %v1033
          %1170 = vmatprep.subr.mxu0 %v1038
          %1171 = vmatpush1.msra.mxu0 %v1037
          %1172 = vmatprep.subr.mxu0 %v1042
          %1173 = vmatpush1.msra.mxu0 %v1041
          %1174 = vmatprep.subr.mxu0 %v1046
          %1175 = vmatpush1.msra.mxu0 %v1045
          %1176 = vmatprep.subr.mxu0 %v1050
          %1177 = vmatpush1.msra.mxu0 %v1049
          %1178 = vmatprep.subr.mxu0 %v1054
          %1179 = vmatpush1.msra.mxu0 %v1053
          %1180 = vmatprep.subr.mxu0 %v1058
          %1181 = vmatpush1.msra.mxu0 %v1057
          %1182 = vmatprep.subr.mxu0 %v1062
          %1183 = vmatpush1.msra.mxu0 %v1061
          %1184 = vmatprep.subr.mxu0 %v1066
          %1185 = vmatpush1.msra.mxu0 %v1065
          %1186 = vmatprep.subr.mxu0 %v1070
          %1187 = vmatpush1.msra.mxu0 %v1069
          %1188 = vmatprep.subr.mxu0 %v1074
          %1189 = vmatpush1.msra.mxu0 %v1073
          %1190 = vmatprep.subr.mxu0 %v1078
          %1191 = vmatpush1.msra.mxu0 %v1077
          %1192 = vmatprep.subr.mxu0 %v1082
          %1193 = vmatpush1.msra.mxu0 %v1081
          %1194 = vmatprep.subr.mxu0 %v1086
          %1195 = vmatpush1.msra.mxu0 %v1085
          %1196 = vmatprep.subr.mxu0 %v1090
          %1197 = vmatpush1.msra.mxu0 %v1089
          %1198 = vmatprep.subr.mxu0 %v1094
          %1199 = vmatpush1.msra.mxu0 %v1093
          %1200 = vmatprep.subr.mxu0 %v1098
          %1201 = vmatpush1.msra.mxu0 %v1097
          %1202 = vmatprep.subr.mxu0 %v1102
          %1203 = vmatpush1.msra.mxu0 %v1101
          %1204 = vmatprep.subr.mxu0 %v1106
          %1205 = vmatpush1.msra.mxu0 %v1105
          %1206 = vmatprep.subr.mxu0 %v1110
          %1207 = vmatpush1.msra.mxu0 %v1109
          %1208 = vmatprep.subr.mxu0 %v1114
          %1209 = vmatpush1.msra.mxu0 %v1113
          %1210 = vmatprep.subr.mxu0 %v1118
          %1211 = vmatpush1.msra.mxu0 %v1117
          %1212 = vmatprep.subr.mxu0 %v1122
          %1213 = vmatpush1.msra.mxu0 %v1121
          %1214 = vmatprep.subr.mxu0 %v1126
          %1215 = vmatpush1.msra.mxu0 %v1125
          %1216 = vmatprep.mubr.f32.mxu0 %v572
          %1217 = vmatmul.mubr.f32.gmra.mrb[0].mxu0 %v571
          %v1218 = vpop.f32.mrb[0].mxu0
          %v1219 = vadd.f32 %v1135, %v1218
          %v1220 = vpop.f32.mrb[0].mxu0
          %v1221 = vadd.f32 %v1139, %v1220
          %1222 = vmatprep.mubr.f32.mxu0 %v574
          %1223 = vmatmul.mubr.f32.gmra.mrb[0].mxu0 %v573
          %v1224 = vpop.f32.mrb[0].mxu0
          %v1225 = vadd.f32 %v1135, %v1224
          %v1226 = vpop.f32.mrb[0].mxu0
          %v1227 = vadd.f32 %v1139, %v1226
          %1228 = vmatprep.mubr.f32.mxu0 %v576
          %1229 = vmatmul.mubr.f32.gmra.mrb[0].mxu0 %v575
          %v1230 = vpop.f32.mrb[0].mxu0
          %v1231 = vadd.f32 %v1135, %v1230
          %v1232 = vpop.f32.mrb[0].mxu0
          %v1233 = vadd.f32 %v1139, %v1232
          %1234 = vmatprep.mubr.f32.mxu0 %v578
          %1235 = vmatmul.mubr.f32.gmra.mrb[0].mxu0 %v577
          %v1236 = vpop.f32.mrb[0].mxu0
          %v1237 = vadd.f32 %v1135, %v1236
          %v1238 = vpop.f32.mrb[0].mxu0
          %v1239 = vadd.f32 %v1139, %v1238
          %1240 = vmatprep.mubr.f32.mxu0 %v580
          %1241 = vmatmul.mubr.f32.gmra.mrb[0].mxu0 %v579
          %v1242 = vpop.f32.mrb[0].mxu0
          %v1243 = vadd.f32 %v1135, %v1242
          %v1244 = vpop.f32.mrb[0].mxu0
          %v1245 = vadd.f32 %v1139, %v1244
          %1246 = vmatprep.mubr.f32.mxu0 %v582
          %1247 = vmatmul.mubr.f32.gmra.mrb[0].mxu0 %v581
          %v1248 = vpop.f32.mrb[0].mxu0
          %v1249 = vadd.f32 %v1135, %v1248
          %v1250 = vpop.f32.mrb[0].mxu0
          %v1251 = vadd.f32 %v1139, %v1250
          %1252 = vmatprep.mubr.f32.mxu0 %v584
          %1253 = vmatmul.mubr.f32.gmra.mrb[0].mxu0 %v583
          %v1254 = vpop.f32.mrb[0].mxu0
          %v1255 = vadd.f32 %v1135, %v1254
          %v1256 = vpop.f32.mrb[0].mxu0
          %v1257 = vadd.f32 %v1139, %v1256
          %1258 = vmatprep.mubr.f32.mxu0 %v586
          %1259 = vmatmul.mubr.f32.gmra.mrb[0].mxu0 %v585
          %v1260 = vpop.f32.mrb[0].mxu0
          %v1261 = vadd.f32 %v1135, %v1260
          %v1262 = vpop.f32.mrb[0].mxu0
          %v1263 = vadd.f32 %v1139, %v1262
          %1264 = vmatprep.mubr.f32.mxu0 %v588
          %1265 = vmatmul.mubr.f32.gmra.mrb[0].mxu0 %v587
          %v1266 = vpop.f32.mrb[0].mxu0
          %v1267 = vadd.f32 %v1135, %v1266
          %v1268 = vpop.f32.mrb[0].mxu0
          %v1269 = vadd.f32 %v1139, %v1268
          %1270 = vmatprep.mubr.f32.mxu0 %v590
          %1271 = vmatmul.mubr.f32.gmra.mrb[0].mxu0 %v589
          %v1272 = vpop.f32.mrb[0].mxu0
          %v1273 = vadd.f32 %v1135, %v1272
          %v1274 = vpop.f32.mrb[0].mxu0
          %v1275 = vadd.f32 %v1139, %v1274
          %1276 = vmatprep.mubr.f32.mxu0 %v592
          %1277 = vmatmul.mubr.f32.gmra.mrb[0].mxu0 %v591
          %v1278 = vpop.f32.mrb[0].mxu0
          %v1279 = vadd.f32 %v1135, %v1278
          %v1280 = vpop.f32.mrb[0].mxu0
          %v1281 = vadd.f32 %v1139, %v1280
          %1282 = vmatprep.mubr.f32.mxu0 %v594
          %1283 = vmatmul.mubr.f32.gmra.mrb[0].mxu0 %v593
          %v1284 = vpop.f32.mrb[0].mxu0
          %v1285 = vadd.f32 %v1135, %v1284
          %v1286 = vpop.f32.mrb[0].mxu0
          %v1287 = vadd.f32 %v1139, %v1286
          %1288 = vmatprep.mubr.f32.mxu0 %v596
          %1289 = vmatmul.mubr.f32.gmra.mrb[0].mxu0 %v595
          %v1290 = vpop.f32.mrb[0].mxu0
          %v1291 = vadd.f32 %v1135, %v1290
          %v1292 = vpop.f32.mrb[0].mxu0
          %v1293 = vadd.f32 %v1139, %v1292
          %1294 = vmatprep.mubr.f32.mxu0 %v598
          %1295 = vmatmul.mubr.f32.gmra.mrb[0].mxu0 %v597
          %v1296 = vpop.f32.mrb[0].mxu0
          %v1297 = vadd.f32 %v1135, %v1296
          %v1298 = vpop.f32.mrb[0].mxu0
          %v1299 = vadd.f32 %v1139, %v1298
          %1300 = vmatprep.mubr.f32.mxu0 %v600
          %1301 = vmatmul.mubr.f32.gmra.mrb[0].mxu0 %v599
          %v1302 = vpop.f32.mrb[0].mxu0
          %v1303 = vadd.f32 %v1135, %v1302
          %v1304 = vpop.f32.mrb[0].mxu0
          %v1305 = vadd.f32 %v1139, %v1304
          %1306 = vmatprep.mubr.f32.mxu0 %v602
          %1307 = vmatmul.mubr.f32.gmra.mrb[0].mxu0 %v601
          %v1308 = vpop.f32.mrb[0].mxu0
          %v1309 = vadd.f32 %v1135, %v1308
          %v1310 = vpop.f32.mrb[0].mxu0
          %v1311 = vadd.f32 %v1139, %v1310
          %1312 = vdwg.mxu0
          %1313 = vmatprep.subr.mxu0 %v1004
          %1314 = vmatpush1.msra.mxu0 %v1003
          %1315 = vmatprep.subr.mxu0 %v1008
          %1316 = vmatpush1.msra.mxu0 %v1007
          %1317 = vmatprep.subr.mxu0 %v1012
          %1318 = vmatpush1.msra.mxu0 %v1011
          %1319 = vmatprep.subr.mxu0 %v1016
          %1320 = vmatpush1.msra.mxu0 %v1015
          %1321 = vmatprep.subr.mxu0 %v1020
          %1322 = vmatpush1.msra.mxu0 %v1019
          %1323 = vmatprep.subr.mxu0 %v1024
          %1324 = vmatpush1.msra.mxu0 %v1023
          %1325 = vmatprep.subr.mxu0 %v1028
          %1326 = vmatpush1.msra.mxu0 %v1027
          %1327 = vmatprep.subr.mxu0 %v1032
          %1328 = vmatpush1.msra.mxu0 %v1031
          %1329 = vmatprep.subr.mxu0 %v1036
          %1330 = vmatpush1.msra.mxu0 %v1035
          %1331 = vmatprep.subr.mxu0 %v1040
          %1332 = vmatpush1.msra.mxu0 %v1039
          %1333 = vmatprep.subr.mxu0 %v1044
          %1334 = vmatpush1.msra.mxu0 %v1043
          %1335 = vmatprep.subr.mxu0 %v1048
          %1336 = vmatpush1.msra.mxu0 %v1047
          %1337 = vmatprep.subr.mxu0 %v1052
          %1338 = vmatpush1.msra.mxu0 %v1051
          %1339 = vmatprep.subr.mxu0 %v1056
          %1340 = vmatpush1.msra.mxu0 %v1055
          %1341 = vmatprep.subr.mxu0 %v1060
          %1342 = vmatpush1.msra.mxu0 %v1059
          %1343 = vmatprep.subr.mxu0 %v1064
          %1344 = vmatpush1.msra.mxu0 %v1063
          %1345 = vmatprep.subr.mxu0 %v1068
          %1346 = vmatpush1.msra.mxu0 %v1067
          %1347 = vmatprep.subr.mxu0 %v1072
          %1348 = vmatpush1.msra.mxu0 %v1071
          %1349 = vmatprep.subr.mxu0 %v1076
          %1350 = vmatpush1.msra.mxu0 %v1075
          %1351 = vmatprep.subr.mxu0 %v1080
          %1352 = vmatpush1.msra.mxu0 %v1079
          %1353 = vmatprep.subr.mxu0 %v1084
          %1354 = vmatpush1.msra.mxu0 %v1083
          %1355 = vmatprep.subr.mxu0 %v1088
          %1356 = vmatpush1.msra.mxu0 %v1087
          %1357 = vmatprep.subr.mxu0 %v1092
          %1358 = vmatpush1.msra.mxu0 %v1091
          %1359 = vmatprep.subr.mxu0 %v1096
          %1360 = vmatpush1.msra.mxu0 %v1095
          %1361 = vmatprep.subr.mxu0 %v1100
          %1362 = vmatpush1.msra.mxu0 %v1099
          %1363 = vmatprep.subr.mxu0 %v1104
          %1364 = vmatpush1.msra.mxu0 %v1103
          %1365 = vmatprep.subr.mxu0 %v1108
          %1366 = vmatpush1.msra.mxu0 %v1107
          %1367 = vmatprep.subr.mxu0 %v1112
          %1368 = vmatpush1.msra.mxu0 %v1111
          %1369 = vmatprep.subr.mxu0 %v1116
          %1370 = vmatpush1.msra.mxu0 %v1115
          %1371 = vmatprep.subr.mxu0 %v1120
          %1372 = vmatpush1.msra.mxu0 %v1119
          %1373 = vmatprep.subr.mxu0 %v1124
          %1374 = vmatpush1.msra.mxu0 %v1123
          %1375 = vmatprep.subr.mxu0 %v1128
          %1376 = vmatpush1.msra.mxu0 %v1127
          %1377 = vmatprep.mubr.f32.mxu0 %v572
          %1378 = vmatmul.mubr.f32.gmra.mrb[0].mxu0 %v571
          %v1379 = vpop.f32.mrb[0].mxu0
          %v1380 = vadd.f32 %v1143, %v1379
          %v1381 = vpop.f32.mrb[0].mxu0
          %v1382 = vadd.f32 %v1147, %v1381
          %1383 = vmatprep.mubr.f32.mxu0 %v574
          %1384 = vmatmul.mubr.f32.gmra.mrb[0].mxu0 %v573
          %v1385 = vpop.f32.mrb[0].mxu0
          %v1386 = vadd.f32 %v1143, %v1385
          %v1387 = vpop.f32.mrb[0].mxu0
          %v1388 = vadd.f32 %v1147, %v1387
          %1389 = vmatprep.mubr.f32.mxu0 %v576
          %1390 = vmatmul.mubr.f32.gmra.mrb[0].mxu0 %v575
          %v1391 = vpop.f32.mrb[0].mxu0
          %v1392 = vadd.f32 %v1143, %v1391
          %v1393 = vpop.f32.mrb[0].mxu0
          %v1394 = vadd.f32 %v1147, %v1393
          %1395 = vmatprep.mubr.f32.mxu0 %v578
          %1396 = vmatmul.mubr.f32.gmra.mrb[0].mxu0 %v577
          %v1397 = vpop.f32.mrb[0].mxu0
          %v1398 = vadd.f32 %v1143, %v1397
          %v1399 = vpop.f32.mrb[0].mxu0
          %v1400 = vadd.f32 %v1147, %v1399
          %1401 = vmatprep.mubr.f32.mxu0 %v580
          %1402 = vmatmul.mubr.f32.gmra.mrb[0].mxu0 %v579
          %v1403 = vpop.f32.mrb[0].mxu0
          %v1404 = vadd.f32 %v1143, %v1403
          %v1405 = vpop.f32.mrb[0].mxu0
          %v1406 = vadd.f32 %v1147, %v1405
          %1407 = vmatprep.mubr.f32.mxu0 %v582
          %1408 = vmatmul.mubr.f32.gmra.mrb[0].mxu0 %v581
          %v1409 = vpop.f32.mrb[0].mxu0
          %v1410 = vadd.f32 %v1143, %v1409
          %v1411 = vpop.f32.mrb[0].mxu0
          %v1412 = vadd.f32 %v1147, %v1411
          %1413 = vmatprep.mubr.f32.mxu0 %v584
          %1414 = vmatmul.mubr.f32.gmra.mrb[0].mxu0 %v583
          %v1415 = vpop.f32.mrb[0].mxu0
          %v1416 = vadd.f32 %v1143, %v1415
          %v1417 = vpop.f32.mrb[0].mxu0
          %v1418 = vadd.f32 %v1147, %v1417
          %1419 = vmatprep.mubr.f32.mxu0 %v586
          %1420 = vmatmul.mubr.f32.gmra.mrb[0].mxu0 %v585
          %v1421 = vpop.f32.mrb[0].mxu0
          %v1422 = vadd.f32 %v1143, %v1421
          %v1423 = vpop.f32.mrb[0].mxu0
          %v1424 = vadd.f32 %v1147, %v1423
          %1425 = vmatprep.mubr.f32.mxu0 %v588
          %1426 = vmatmul.mubr.f32.gmra.mrb[0].mxu0 %v587
          %v1427 = vpop.f32.mrb[0].mxu0
          %v1428 = vadd.f32 %v1143, %v1427
          %v1429 = vpop.f32.mrb[0].mxu0
          %v1430 = vadd.f32 %v1147, %v1429
          %1431 = vmatprep.mubr.f32.mxu0 %v590
          %1432 = vmatmul.mubr.f32.gmra.mrb[0].mxu0 %v589
          %v1433 = vpop.f32.mrb[0].mxu0
          %v1434 = vadd.f32 %v1143, %v1433
          %v1435 = vpop.f32.mrb[0].mxu0
          %v1436 = vadd.f32 %v1147, %v1435
          %1437 = vmatprep.mubr.f32.mxu0 %v592
          %1438 = vmatmul.mubr.f32.gmra.mrb[0].mxu0 %v591
          %v1439 = vpop.f32.mrb[0].mxu0
          %v1440 = vadd.f32 %v1143, %v1439
          %v1441 = vpop.f32.mrb[0].mxu0
          %v1442 = vadd.f32 %v1147, %v1441
          %1443 = vmatprep.mubr.f32.mxu0 %v594
          %1444 = vmatmul.mubr.f32.gmra.mrb[0].mxu0 %v593
          %v1445 = vpop.f32.mrb[0].mxu0
          %v1446 = vadd.f32 %v1143, %v1445
          %v1447 = vpop.f32.mrb[0].mxu0
          %v1448 = vadd.f32 %v1147, %v1447
          %1449 = vmatprep.mubr.f32.mxu0 %v596
          %1450 = vmatmul.mubr.f32.gmra.mrb[0].mxu0 %v595
          %v1451 = vpop.f32.mrb[0].mxu0
          %v1452 = vadd.f32 %v1143, %v1451
          %v1453 = vpop.f32.mrb[0].mxu0
          %v1454 = vadd.f32 %v1147, %v1453
          %1455 = vmatprep.mubr.f32.mxu0 %v598
          %1456 = vmatmul.mubr.f32.gmra.mrb[0].mxu0 %v597
          %v1457 = vpop.f32.mrb[0].mxu0
          %v1458 = vadd.f32 %v1143, %v1457
          %v1459 = vpop.f32.mrb[0].mxu0
          %v1460 = vadd.f32 %v1147, %v1459
          %1461 = vmatprep.mubr.f32.mxu0 %v600
          %1462 = vmatmul.mubr.f32.gmra.mrb[0].mxu0 %v599
          %v1463 = vpop.f32.mrb[0].mxu0
          %v1464 = vadd.f32 %v1143, %v1463
          %v1465 = vpop.f32.mrb[0].mxu0
          %v1466 = vadd.f32 %v1147, %v1465
          %1467 = vmatprep.mubr.f32.mxu0 %v602
          %1468 = vmatmul.mubr.f32.gmra.mrb[0].mxu0 %v601
          %v1469 = vpop.f32.mrb[0].mxu0
          %v1470 = vadd.f32 %v1143, %v1469
          %v1471 = vpop.f32.mrb[0].mxu0
          %v1472 = vadd.f32 %v1147, %v1471
          %1473 = vdwg.mxu0
          %v1474 = vld [vmem:[#allocation10] sm:$0xff]
          %v1475 = vld [vmem:[#allocation10 + $0x8] sm:$0xff]
          %v1476 = vld [vmem:[#allocation10 + $0x10] sm:$0xff]
          %v1477 = vld [vmem:[#allocation10 + $0x18] sm:$0xff]
          %v1478 = vld [vmem:[#allocation10 + $0x20] sm:$0xff]
          %v1479 = vld [vmem:[#allocation10 + $0x28] sm:$0xff]
          %v1480 = vld [vmem:[#allocation10 + $0x30] sm:$0xff]
          %v1481 = vld [vmem:[#allocation10 + $0x38] sm:$0xff]
          %v1482 = vld [vmem:[#allocation10 + $0x40] sm:$0xff]
          %v1483 = vld [vmem:[#allocation10 + $0x48] sm:$0xff]
          %v1484 = vld [vmem:[#allocation10 + $0x50] sm:$0xff]
          %v1485 = vld [vmem:[#allocation10 + $0x58] sm:$0xff]
          %v1486 = vld [vmem:[#allocation10 + $0x60] sm:$0xff]
          %v1487 = vld [vmem:[#allocation10 + $0x68] sm:$0xff]
          %v1488 = vld [vmem:[#allocation10 + $0x70] sm:$0xff]
          %v1489 = vld [vmem:[#allocation10 + $0x78] sm:$0xff]
          %v1490 = vld [vmem:[#allocation10 + $0x80] sm:$0xff]
          %v1491 = vld [vmem:[#allocation10 + $0x88] sm:$0xff]
          %v1492 = vld [vmem:[#allocation10 + $0x90] sm:$0xff]
          %v1493 = vld [vmem:[#allocation10 + $0x98] sm:$0xff]
          %v1494 = vld [vmem:[#allocation10 + $0xa0] sm:$0xff]
          %v1495 = vld [vmem:[#allocation10 + $0xa8] sm:$0xff]
          %v1496 = vld [vmem:[#allocation10 + $0xb0] sm:$0xff]
          %v1497 = vld [vmem:[#allocation10 + $0xb8] sm:$0xff]
          %v1498 = vld [vmem:[#allocation10 + $0xc0] sm:$0xff]
          %v1499 = vld [vmem:[#allocation10 + $0xc8] sm:$0xff]
          %v1500 = vld [vmem:[#allocation10 + $0xd0] sm:$0xff]
          %v1501 = vld [vmem:[#allocation10 + $0xd8] sm:$0xff]
          %v1502 = vld [vmem:[#allocation10 + $0xe0] sm:$0xff]
          %v1503 = vld [vmem:[#allocation10 + $0xe8] sm:$0xff]
          %v1504 = vld [vmem:[#allocation10 + $0xf0] sm:$0xff]
          %v1505 = vld [vmem:[#allocation10 + $0xf8] sm:$0xff]
          %v1506 = vld [vmem:[#allocation10 + $0x100] sm:$0xff]
          %v1507 = vld [vmem:[#allocation10 + $0x108] sm:$0xff]
          %v1508 = vld [vmem:[#allocation10 + $0x110] sm:$0xff]
          %v1509 = vld [vmem:[#allocation10 + $0x118] sm:$0xff]
          %v1510 = vld [vmem:[#allocation10 + $0x120] sm:$0xff]
          %v1511 = vld [vmem:[#allocation10 + $0x128] sm:$0xff]
          %v1512 = vld [vmem:[#allocation10 + $0x130] sm:$0xff]
          %v1513 = vld [vmem:[#allocation10 + $0x138] sm:$0xff]
          %v1514 = vld [vmem:[#allocation10 + $0x140] sm:$0xff]
          %v1515 = vld [vmem:[#allocation10 + $0x148] sm:$0xff]
          %v1516 = vld [vmem:[#allocation10 + $0x150] sm:$0xff]
          %v1517 = vld [vmem:[#allocation10 + $0x158] sm:$0xff]
          %v1518 = vld [vmem:[#allocation10 + $0x160] sm:$0xff]
          %v1519 = vld [vmem:[#allocation10 + $0x168] sm:$0xff]
          %v1520 = vld [vmem:[#allocation10 + $0x170] sm:$0xff]
          %v1521 = vld [vmem:[#allocation10 + $0x178] sm:$0xff]
          %v1522 = vld [vmem:[#allocation10 + $0x180] sm:$0xff]
          %v1523 = vld [vmem:[#allocation10 + $0x188] sm:$0xff]
          %v1524 = vld [vmem:[#allocation10 + $0x190] sm:$0xff]
          %v1525 = vld [vmem:[#allocation10 + $0x198] sm:$0xff]
          %v1526 = vld [vmem:[#allocation10 + $0x1a0] sm:$0xff]
          %v1527 = vld [vmem:[#allocation10 + $0x1a8] sm:$0xff]
          %v1528 = vld [vmem:[#allocation10 + $0x1b0] sm:$0xff]
          %v1529 = vld [vmem:[#allocation10 + $0x1b8] sm:$0xff]
          %v1530 = vld [vmem:[#allocation10 + $0x1c0] sm:$0xff]
          %v1531 = vld [vmem:[#allocation10 + $0x1c8] sm:$0xff]
          %v1532 = vld [vmem:[#allocation10 + $0x1d0] sm:$0xff]
          %v1533 = vld [vmem:[#allocation10 + $0x1d8] sm:$0xff]
          %v1534 = vld [vmem:[#allocation10 + $0x1e0] sm:$0xff]
          %v1535 = vld [vmem:[#allocation10 + $0x1e8] sm:$0xff]
          %v1536 = vld [vmem:[#allocation10 + $0x1f0] sm:$0xff]
          %v1537 = vld [vmem:[#allocation10 + $0x1f8] sm:$0xff]
          %v1538 = vld [vmem:[#allocation10 + $0x200] sm:$0xff]
          %v1539 = vld [vmem:[#allocation10 + $0x208] sm:$0xff]
          %v1540 = vld [vmem:[#allocation10 + $0x210] sm:$0xff]
          %v1541 = vld [vmem:[#allocation10 + $0x218] sm:$0xff]
          %v1542 = vld [vmem:[#allocation10 + $0x220] sm:$0xff]
          %v1543 = vld [vmem:[#allocation10 + $0x228] sm:$0xff]
          %v1544 = vld [vmem:[#allocation10 + $0x230] sm:$0xff]
          %v1545 = vld [vmem:[#allocation10 + $0x238] sm:$0xff]
          %v1546 = vld [vmem:[#allocation10 + $0x240] sm:$0xff]
          %v1547 = vld [vmem:[#allocation10 + $0x248] sm:$0xff]
          %v1548 = vld [vmem:[#allocation10 + $0x250] sm:$0xff]
          %v1549 = vld [vmem:[#allocation10 + $0x258] sm:$0xff]
          %v1550 = vld [vmem:[#allocation10 + $0x260] sm:$0xff]
          %v1551 = vld [vmem:[#allocation10 + $0x268] sm:$0xff]
          %v1552 = vld [vmem:[#allocation10 + $0x270] sm:$0xff]
          %v1553 = vld [vmem:[#allocation10 + $0x278] sm:$0xff]
          %v1554 = vld [vmem:[#allocation10 + $0x280] sm:$0xff]
          %v1555 = vld [vmem:[#allocation10 + $0x288] sm:$0xff]
          %v1556 = vld [vmem:[#allocation10 + $0x290] sm:$0xff]
          %v1557 = vld [vmem:[#allocation10 + $0x298] sm:$0xff]
          %v1558 = vld [vmem:[#allocation10 + $0x2a0] sm:$0xff]
          %v1559 = vld [vmem:[#allocation10 + $0x2a8] sm:$0xff]
          %v1560 = vld [vmem:[#allocation10 + $0x2b0] sm:$0xff]
          %v1561 = vld [vmem:[#allocation10 + $0x2b8] sm:$0xff]
          %v1562 = vld [vmem:[#allocation10 + $0x2c0] sm:$0xff]
          %v1563 = vld [vmem:[#allocation10 + $0x2c8] sm:$0xff]
          %v1564 = vld [vmem:[#allocation10 + $0x2d0] sm:$0xff]
          %v1565 = vld [vmem:[#allocation10 + $0x2d8] sm:$0xff]
          %v1566 = vld [vmem:[#allocation10 + $0x2e0] sm:$0xff]
          %v1567 = vld [vmem:[#allocation10 + $0x2e8] sm:$0xff]
          %v1568 = vld [vmem:[#allocation10 + $0x2f0] sm:$0xff]
          %v1569 = vld [vmem:[#allocation10 + $0x2f8] sm:$0xff]
          %v1570 = vld [vmem:[#allocation10 + $0x300] sm:$0xff]
          %v1571 = vld [vmem:[#allocation10 + $0x308] sm:$0xff]
          %v1572 = vld [vmem:[#allocation10 + $0x310] sm:$0xff]
          %v1573 = vld [vmem:[#allocation10 + $0x318] sm:$0xff]
          %v1574 = vld [vmem:[#allocation10 + $0x320] sm:$0xff]
          %v1575 = vld [vmem:[#allocation10 + $0x328] sm:$0xff]
          %v1576 = vld [vmem:[#allocation10 + $0x330] sm:$0xff]
          %v1577 = vld [vmem:[#allocation10 + $0x338] sm:$0xff]
          %v1578 = vld [vmem:[#allocation10 + $0x340] sm:$0xff]
          %v1579 = vld [vmem:[#allocation10 + $0x348] sm:$0xff]
          %v1580 = vld [vmem:[#allocation10 + $0x350] sm:$0xff]
          %v1581 = vld [vmem:[#allocation10 + $0x358] sm:$0xff]
          %v1582 = vld [vmem:[#allocation10 + $0x360] sm:$0xff]
          %v1583 = vld [vmem:[#allocation10 + $0x368] sm:$0xff]
          %v1584 = vld [vmem:[#allocation10 + $0x370] sm:$0xff]
          %v1585 = vld [vmem:[#allocation10 + $0x378] sm:$0xff]
          %v1586 = vld [vmem:[#allocation10 + $0x380] sm:$0xff]
          %v1587 = vld [vmem:[#allocation10 + $0x388] sm:$0xff]
          %v1588 = vld [vmem:[#allocation10 + $0x390] sm:$0xff]
          %v1589 = vld [vmem:[#allocation10 + $0x398] sm:$0xff]
          %v1590 = vld [vmem:[#allocation10 + $0x3a0] sm:$0xff]
          %v1591 = vld [vmem:[#allocation10 + $0x3a8] sm:$0xff]
          %v1592 = vld [vmem:[#allocation10 + $0x3b0] sm:$0xff]
          %v1593 = vld [vmem:[#allocation10 + $0x3b8] sm:$0xff]
          %v1594 = vld [vmem:[#allocation10 + $0x3c0] sm:$0xff]
          %v1595 = vld [vmem:[#allocation10 + $0x3c8] sm:$0xff]
          %v1596 = vld [vmem:[#allocation10 + $0x3d0] sm:$0xff]
          %v1597 = vld [vmem:[#allocation10 + $0x3d8] sm:$0xff]
          %v1598 = vld [vmem:[#allocation10 + $0x3e0] sm:$0xff]
          %v1599 = vld [vmem:[#allocation10 + $0x3e8] sm:$0xff]
          %v1600 = vld [vmem:[#allocation10 + $0x3f0] sm:$0xff]
          %v1601 = vld [vmem:[#allocation10 + $0x3f8] sm:$0xff]
          %s1602 = scalar_lea.vmem [#allocation12], 2
          %v1603 = vld [vmem:[%s1602] ss:$4 sm:$0xf]
          %v1605 = vlaneseq
          %v1606 = vshrl.u32 %v1605, 7
          %v1607 = vsub.s32 0, %v1606
          %v1608 = vrot.slane %v1603, %v1607
          %v1609 = vlaneseq
          %v1610 = vshrl.u32 %v1609, 7
          %v1611 = vsub.s32 1, %v1610
          %v1612 = vrot.slane %v1603, %v1611
          %v1613 = vlaneseq
          %v1614 = vshrl.u32 %v1613, 7
          %v1615 = vsub.s32 2, %v1614
          %v1616 = vrot.slane %v1603, %v1615
          %v1617 = vlaneseq
          %v1618 = vshrl.u32 %v1617, 7
          %v1619 = vsub.s32 3, %v1618
          %v1620 = vrot.slane %v1603, %v1619
          %1625 = vmatprep.subr.mxu0 %v1475
          %1626 = vmatpush1.msra.mxu0 %v1474
          %1627 = vmatprep.subr.mxu0 %v1479
          %1628 = vmatpush1.msra.mxu0 %v1478
          %1629 = vmatprep.subr.mxu0 %v1483
          %1630 = vmatpush1.msra.mxu0 %v1482
          %1631 = vmatprep.subr.mxu0 %v1487
          %1632 = vmatpush1.msra.mxu0 %v1486
          %1633 = vmatprep.subr.mxu0 %v1491
          %1634 = vmatpush1.msra.mxu0 %v1490
          %1635 = vmatprep.subr.mxu0 %v1495
          %1636 = vmatpush1.msra.mxu0 %v1494
          %1637 = vmatprep.subr.mxu0 %v1499
          %1638 = vmatpush1.msra.mxu0 %v1498
          %1639 = vmatprep.subr.mxu0 %v1503
          %1640 = vmatpush1.msra.mxu0 %v1502
          %1641 = vmatprep.subr.mxu0 %v1507
          %1642 = vmatpush1.msra.mxu0 %v1506
          %1643 = vmatprep.subr.mxu0 %v1511
          %1644 = vmatpush1.msra.mxu0 %v1510
          %1645 = vmatprep.subr.mxu0 %v1515
          %1646 = vmatpush1.msra.mxu0 %v1514
          %1647 = vmatprep.subr.mxu0 %v1519
          %1648 = vmatpush1.msra.mxu0 %v1518
          %1649 = vmatprep.subr.mxu0 %v1523
          %1650 = vmatpush1.msra.mxu0 %v1522
          %1651 = vmatprep.subr.mxu0 %v1527
          %1652 = vmatpush1.msra.mxu0 %v1526
          %1653 = vmatprep.subr.mxu0 %v1531
          %1654 = vmatpush1.msra.mxu0 %v1530
          %1655 = vmatprep.subr.mxu0 %v1535
          %1656 = vmatpush1.msra.mxu0 %v1534
          %1657 = vmatprep.subr.mxu0 %v1539
          %1658 = vmatpush1.msra.mxu0 %v1538
          %1659 = vmatprep.subr.mxu0 %v1543
          %1660 = vmatpush1.msra.mxu0 %v1542
          %1661 = vmatprep.subr.mxu0 %v1547
          %1662 = vmatpush1.msra.mxu0 %v1546
          %1663 = vmatprep.subr.mxu0 %v1551
          %1664 = vmatpush1.msra.mxu0 %v1550
          %1665 = vmatprep.subr.mxu0 %v1555
          %1666 = vmatpush1.msra.mxu0 %v1554
          %1667 = vmatprep.subr.mxu0 %v1559
          %1668 = vmatpush1.msra.mxu0 %v1558
          %1669 = vmatprep.subr.mxu0 %v1563
          %1670 = vmatpush1.msra.mxu0 %v1562
          %1671 = vmatprep.subr.mxu0 %v1567
          %1672 = vmatpush1.msra.mxu0 %v1566
          %1673 = vmatprep.subr.mxu0 %v1571
          %1674 = vmatpush1.msra.mxu0 %v1570
          %1675 = vmatprep.subr.mxu0 %v1575
          %1676 = vmatpush1.msra.mxu0 %v1574
          %1677 = vmatprep.subr.mxu0 %v1579
          %1678 = vmatpush1.msra.mxu0 %v1578
          %1679 = vmatprep.subr.mxu0 %v1583
          %1680 = vmatpush1.msra.mxu0 %v1582
          %1681 = vmatprep.subr.mxu0 %v1587
          %1682 = vmatpush1.msra.mxu0 %v1586
          %1683 = vmatprep.subr.mxu0 %v1591
          %1684 = vmatpush1.msra.mxu0 %v1590
          %1685 = vmatprep.subr.mxu0 %v1595
          %1686 = vmatpush1.msra.mxu0 %v1594
          %1687 = vmatprep.subr.mxu0 %v1599
          %1688 = vmatpush1.msra.mxu0 %v1598
          %1689 = vmatprep.mubr.f32.mxu0 %v572
          %1690 = vmatmul.mubr.f32.gmra.mrb[0].mxu0 %v571
          %v1691 = vpop.f32.mrb[0].mxu0
          %v1692 = vadd.f32 %v1608, %v1691
          %v1693 = vpop.f32.mrb[0].mxu0
          %v1694 = vadd.f32 %v1612, %v1693
          %1695 = vmatprep.mubr.f32.mxu0 %v574
          %1696 = vmatmul.mubr.f32.gmra.mrb[0].mxu0 %v573
          %v1697 = vpop.f32.mrb[0].mxu0
          %v1698 = vadd.f32 %v1608, %v1697
          %v1699 = vpop.f32.mrb[0].mxu0
          %v1700 = vadd.f32 %v1612, %v1699
          %1701 = vmatprep.mubr.f32.mxu0 %v576
          %1702 = vmatmul.mubr.f32.gmra.mrb[0].mxu0 %v575
          %v1703 = vpop.f32.mrb[0].mxu0
          %v1704 = vadd.f32 %v1608, %v1703
          %v1705 = vpop.f32.mrb[0].mxu0
          %v1706 = vadd.f32 %v1612, %v1705
          %1707 = vmatprep.mubr.f32.mxu0 %v578
          %1708 = vmatmul.mubr.f32.gmra.mrb[0].mxu0 %v577
          %v1709 = vpop.f32.mrb[0].mxu0
          %v1710 = vadd.f32 %v1608, %v1709
          %v1711 = vpop.f32.mrb[0].mxu0
          %v1712 = vadd.f32 %v1612, %v1711
          %1713 = vmatprep.mubr.f32.mxu0 %v580
          %1714 = vmatmul.mubr.f32.gmra.mrb[0].mxu0 %v579
          %v1715 = vpop.f32.mrb[0].mxu0
          %v1716 = vadd.f32 %v1608, %v1715
          %v1717 = vpop.f32.mrb[0].mxu0
          %v1718 = vadd.f32 %v1612, %v1717
          %1719 = vmatprep.mubr.f32.mxu0 %v582
          %1720 = vmatmul.mubr.f32.gmra.mrb[0].mxu0 %v581
          %v1721 = vpop.f32.mrb[0].mxu0
          %v1722 = vadd.f32 %v1608, %v1721
          %v1723 = vpop.f32.mrb[0].mxu0
          %v1724 = vadd.f32 %v1612, %v1723
          %1725 = vmatprep.mubr.f32.mxu0 %v584
          %1726 = vmatmul.mubr.f32.gmra.mrb[0].mxu0 %v583
          %v1727 = vpop.f32.mrb[0].mxu0
          %v1728 = vadd.f32 %v1608, %v1727
          %v1729 = vpop.f32.mrb[0].mxu0
          %v1730 = vadd.f32 %v1612, %v1729
          %1731 = vmatprep.mubr.f32.mxu0 %v586
          %1732 = vmatmul.mubr.f32.gmra.mrb[0].mxu0 %v585
          %v1733 = vpop.f32.mrb[0].mxu0
          %v1734 = vadd.f32 %v1608, %v1733
          %v1735 = vpop.f32.mrb[0].mxu0
          %v1736 = vadd.f32 %v1612, %v1735
          %1737 = vmatprep.mubr.f32.mxu0 %v588
          %1738 = vmatmul.mubr.f32.gmra.mrb[0].mxu0 %v587
          %v1739 = vpop.f32.mrb[0].mxu0
          %v1740 = vadd.f32 %v1608, %v1739
          %v1741 = vpop.f32.mrb[0].mxu0
          %v1742 = vadd.f32 %v1612, %v1741
          %1743 = vmatprep.mubr.f32.mxu0 %v590
          %1744 = vmatmul.mubr.f32.gmra.mrb[0].mxu0 %v589
          %v1745 = vpop.f32.mrb[0].mxu0
          %v1746 = vadd.f32 %v1608, %v1745
          %v1747 = vpop.f32.mrb[0].mxu0
          %v1748 = vadd.f32 %v1612, %v1747
          %1749 = vmatprep.mubr.f32.mxu0 %v592
          %1750 = vmatmul.mubr.f32.gmra.mrb[0].mxu0 %v591
          %v1751 = vpop.f32.mrb[0].mxu0
          %v1752 = vadd.f32 %v1608, %v1751
          %v1753 = vpop.f32.mrb[0].mxu0
          %v1754 = vadd.f32 %v1612, %v1753
          %1755 = vmatprep.mubr.f32.mxu0 %v594
          %1756 = vmatmul.mubr.f32.gmra.mrb[0].mxu0 %v593
          %v1757 = vpop.f32.mrb[0].mxu0
          %v1758 = vadd.f32 %v1608, %v1757
          %v1759 = vpop.f32.mrb[0].mxu0
          %v1760 = vadd.f32 %v1612, %v1759
          %1761 = vmatprep.mubr.f32.mxu0 %v596
          %1762 = vmatmul.mubr.f32.gmra.mrb[0].mxu0 %v595
          %v1763 = vpop.f32.mrb[0].mxu0
          %v1764 = vadd.f32 %v1608, %v1763
          %v1765 = vpop.f32.mrb[0].mxu0
          %v1766 = vadd.f32 %v1612, %v1765
          %1767 = vmatprep.mubr.f32.mxu0 %v598
          %1768 = vmatmul.mubr.f32.gmra.mrb[0].mxu0 %v597
          %v1769 = vpop.f32.mrb[0].mxu0
          %v1770 = vadd.f32 %v1608, %v1769
          %v1771 = vpop.f32.mrb[0].mxu0
          %v1772 = vadd.f32 %v1612, %v1771
          %1773 = vmatprep.mubr.f32.mxu0 %v600
          %1774 = vmatmul.mubr.f32.gmra.mrb[0].mxu0 %v599
          %v1775 = vpop.f32.mrb[0].mxu0
          %v1776 = vadd.f32 %v1608, %v1775
          %v1777 = vpop.f32.mrb[0].mxu0
          %v1778 = vadd.f32 %v1612, %v1777
          %1779 = vmatprep.mubr.f32.mxu0 %v602
          %1780 = vmatmul.mubr.f32.gmra.mrb[0].mxu0 %v601
          %v1781 = vpop.f32.mrb[0].mxu0
          %v1782 = vadd.f32 %v1608, %v1781
          %v1783 = vpop.f32.mrb[0].mxu0
          %v1784 = vadd.f32 %v1612, %v1783
          %1785 = vdwg.mxu0
          %1786 = vmatprep.subr.mxu0 %v1477
          %1787 = vmatpush1.msra.mxu0 %v1476
          %1788 = vmatprep.subr.mxu0 %v1481
          %1789 = vmatpush1.msra.mxu0 %v1480
          %1790 = vmatprep.subr.mxu0 %v1485
          %1791 = vmatpush1.msra.mxu0 %v1484
          %1792 = vmatprep.subr.mxu0 %v1489
          %1793 = vmatpush1.msra.mxu0 %v1488
          %1794 = vmatprep.subr.mxu0 %v1493
          %1795 = vmatpush1.msra.mxu0 %v1492
          %1796 = vmatprep.subr.mxu0 %v1497
          %1797 = vmatpush1.msra.mxu0 %v1496
          %1798 = vmatprep.subr.mxu0 %v1501
          %1799 = vmatpush1.msra.mxu0 %v1500
          %1800 = vmatprep.subr.mxu0 %v1505
          %1801 = vmatpush1.msra.mxu0 %v1504
          %1802 = vmatprep.subr.mxu0 %v1509
          %1803 = vmatpush1.msra.mxu0 %v1508
          %1804 = vmatprep.subr.mxu0 %v1513
          %1805 = vmatpush1.msra.mxu0 %v1512
          %1806 = vmatprep.subr.mxu0 %v1517
          %1807 = vmatpush1.msra.mxu0 %v1516
          %1808 = vmatprep.subr.mxu0 %v1521
          %1809 = vmatpush1.msra.mxu0 %v1520
          %1810 = vmatprep.subr.mxu0 %v1525
          %1811 = vmatpush1.msra.mxu0 %v1524
          %1812 = vmatprep.subr.mxu0 %v1529
          %1813 = vmatpush1.msra.mxu0 %v1528
          %1814 = vmatprep.subr.mxu0 %v1533
          %1815 = vmatpush1.msra.mxu0 %v1532
          %1816 = vmatprep.subr.mxu0 %v1537
          %1817 = vmatpush1.msra.mxu0 %v1536
          %1818 = vmatprep.subr.mxu0 %v1541
          %1819 = vmatpush1.msra.mxu0 %v1540
          %1820 = vmatprep.subr.mxu0 %v1545
          %1821 = vmatpush1.msra.mxu0 %v1544
          %1822 = vmatprep.subr.mxu0 %v1549
          %1823 = vmatpush1.msra.mxu0 %v1548
          %1824 = vmatprep.subr.mxu0 %v1553
          %1825 = vmatpush1.msra.mxu0 %v1552
          %1826 = vmatprep.subr.mxu0 %v1557
          %1827 = vmatpush1.msra.mxu0 %v1556
          %1828 = vmatprep.subr.mxu0 %v1561
          %1829 = vmatpush1.msra.mxu0 %v1560
          %1830 = vmatprep.subr.mxu0 %v1565
          %1831 = vmatpush1.msra.mxu0 %v1564
          %1832 = vmatprep.subr.mxu0 %v1569
          %1833 = vmatpush1.msra.mxu0 %v1568
          %1834 = vmatprep.subr.mxu0 %v1573
          %1835 = vmatpush1.msra.mxu0 %v1572
          %1836 = vmatprep.subr.mxu0 %v1577
          %1837 = vmatpush1.msra.mxu0 %v1576
          %1838 = vmatprep.subr.mxu0 %v1581
          %1839 = vmatpush1.msra.mxu0 %v1580
          %1840 = vmatprep.subr.mxu0 %v1585
          %1841 = vmatpush1.msra.mxu0 %v1584
          %1842 = vmatprep.subr.mxu0 %v1589
          %1843 = vmatpush1.msra.mxu0 %v1588
          %1844 = vmatprep.subr.mxu0 %v1593
          %1845 = vmatpush1.msra.mxu0 %v1592
          %1846 = vmatprep.subr.mxu0 %v1597
          %1847 = vmatpush1.msra.mxu0 %v1596
          %1848 = vmatprep.subr.mxu0 %v1601
          %1849 = vmatpush1.msra.mxu0 %v1600
          %1850 = vmatprep.mubr.f32.mxu0 %v572
          %1851 = vmatmul.mubr.f32.gmra.mrb[0].mxu0 %v571
          %v1852 = vpop.f32.mrb[0].mxu0
          %v1853 = vadd.f32 %v1616, %v1852
          %v1854 = vpop.f32.mrb[0].mxu0
          %v1855 = vadd.f32 %v1620, %v1854
          %1856 = vmatprep.mubr.f32.mxu0 %v574
          %1857 = vmatmul.mubr.f32.gmra.mrb[0].mxu0 %v573
          %v1858 = vpop.f32.mrb[0].mxu0
          %v1859 = vadd.f32 %v1616, %v1858
          %v1860 = vpop.f32.mrb[0].mxu0
          %v1861 = vadd.f32 %v1620, %v1860
          %1862 = vmatprep.mubr.f32.mxu0 %v576
          %1863 = vmatmul.mubr.f32.gmra.mrb[0].mxu0 %v575
          %v1864 = vpop.f32.mrb[0].mxu0
          %v1865 = vadd.f32 %v1616, %v1864
          %v1866 = vpop.f32.mrb[0].mxu0
          %v1867 = vadd.f32 %v1620, %v1866
          %1868 = vmatprep.mubr.f32.mxu0 %v578
          %1869 = vmatmul.mubr.f32.gmra.mrb[0].mxu0 %v577
          %v1870 = vpop.f32.mrb[0].mxu0
          %v1871 = vadd.f32 %v1616, %v1870
          %v1872 = vpop.f32.mrb[0].mxu0
          %v1873 = vadd.f32 %v1620, %v1872
          %1874 = vmatprep.mubr.f32.mxu0 %v580
          %1875 = vmatmul.mubr.f32.gmra.mrb[0].mxu0 %v579
          %v1876 = vpop.f32.mrb[0].mxu0
          %v1877 = vadd.f32 %v1616, %v1876
          %v1878 = vpop.f32.mrb[0].mxu0
          %v1879 = vadd.f32 %v1620, %v1878
          %1880 = vmatprep.mubr.f32.mxu0 %v582
          %1881 = vmatmul.mubr.f32.gmra.mrb[0].mxu0 %v581
          %v1882 = vpop.f32.mrb[0].mxu0
          %v1883 = vadd.f32 %v1616, %v1882
          %v1884 = vpop.f32.mrb[0].mxu0
          %v1885 = vadd.f32 %v1620, %v1884
          %1886 = vmatprep.mubr.f32.mxu0 %v584
          %1887 = vmatmul.mubr.f32.gmra.mrb[0].mxu0 %v583
          %v1888 = vpop.f32.mrb[0].mxu0
          %v1889 = vadd.f32 %v1616, %v1888
          %v1890 = vpop.f32.mrb[0].mxu0
          %v1891 = vadd.f32 %v1620, %v1890
          %1892 = vmatprep.mubr.f32.mxu0 %v586
          %1893 = vmatmul.mubr.f32.gmra.mrb[0].mxu0 %v585
          %v1894 = vpop.f32.mrb[0].mxu0
          %v1895 = vadd.f32 %v1616, %v1894
          %v1896 = vpop.f32.mrb[0].mxu0
          %v1897 = vadd.f32 %v1620, %v1896
          %1898 = vmatprep.mubr.f32.mxu0 %v588
          %1899 = vmatmul.mubr.f32.gmra.mrb[0].mxu0 %v587
          %v1900 = vpop.f32.mrb[0].mxu0
          %v1901 = vadd.f32 %v1616, %v1900
          %v1902 = vpop.f32.mrb[0].mxu0
          %v1903 = vadd.f32 %v1620, %v1902
          %1904 = vmatprep.mubr.f32.mxu0 %v590
          %1905 = vmatmul.mubr.f32.gmra.mrb[0].mxu0 %v589
          %v1906 = vpop.f32.mrb[0].mxu0
          %v1907 = vadd.f32 %v1616, %v1906
          %v1908 = vpop.f32.mrb[0].mxu0
          %v1909 = vadd.f32 %v1620, %v1908
          %1910 = vmatprep.mubr.f32.mxu0 %v592
          %1911 = vmatmul.mubr.f32.gmra.mrb[0].mxu0 %v591
          %v1912 = vpop.f32.mrb[0].mxu0
          %v1913 = vadd.f32 %v1616, %v1912
          %v1914 = vpop.f32.mrb[0].mxu0
          %v1915 = vadd.f32 %v1620, %v1914
          %1916 = vmatprep.mubr.f32.mxu0 %v594
          %1917 = vmatmul.mubr.f32.gmra.mrb[0].mxu0 %v593
          %v1918 = vpop.f32.mrb[0].mxu0
          %v1919 = vadd.f32 %v1616, %v1918
          %v1920 = vpop.f32.mrb[0].mxu0
          %v1921 = vadd.f32 %v1620, %v1920
          %1922 = vmatprep.mubr.f32.mxu0 %v596
          %1923 = vmatmul.mubr.f32.gmra.mrb[0].mxu0 %v595
          %v1924 = vpop.f32.mrb[0].mxu0
          %v1925 = vadd.f32 %v1616, %v1924
          %v1926 = vpop.f32.mrb[0].mxu0
          %v1927 = vadd.f32 %v1620, %v1926
          %1928 = vmatprep.mubr.f32.mxu0 %v598
          %1929 = vmatmul.mubr.f32.gmra.mrb[0].mxu0 %v597
          %v1930 = vpop.f32.mrb[0].mxu0
          %v1931 = vadd.f32 %v1616, %v1930
          %v1932 = vpop.f32.mrb[0].mxu0
          %v1933 = vadd.f32 %v1620, %v1932
          %1934 = vmatprep.mubr.f32.mxu0 %v600
          %1935 = vmatmul.mubr.f32.gmra.mrb[0].mxu0 %v599
          %v1936 = vpop.f32.mrb[0].mxu0
          %v1937 = vadd.f32 %v1616, %v1936
          %v1938 = vpop.f32.mrb[0].mxu0
          %v1939 = vadd.f32 %v1620, %v1938
          %1940 = vmatprep.mubr.f32.mxu0 %v602
          %1941 = vmatmul.mubr.f32.gmra.mrb[0].mxu0 %v601
          %v1942 = vpop.f32.mrb[0].mxu0
          %v1943 = vadd.f32 %v1616, %v1942
          %v1944 = vpop.f32.mrb[0].mxu0
          %v1945 = vadd.f32 %v1620, %v1944
          %1946 = vdwg.mxu0
          %v1947 = vmul.f32 %v842, 0.125
          %v1948 = vmul.f32 %v844, 0.125
          %v1949 = vmul.f32 %v955, 0.125
          %v1950 = vmul.f32 %v957, 0.125
          %v1951 = vmul.f32 %v848, 0.125
          %v1952 = vmul.f32 %v850, 0.125
          %v1953 = vmul.f32 %v961, 0.125
          %v1954 = vmul.f32 %v963, 0.125
          %v1955 = vmul.f32 %v854, 0.125
          %v1956 = vmul.f32 %v856, 0.125
          %v1957 = vmul.f32 %v967, 0.125
          %v1958 = vmul.f32 %v969, 0.125
          %v1959 = vmul.f32 %v860, 0.125
          %v1960 = vmul.f32 %v862, 0.125
          %v1961 = vmul.f32 %v973, 0.125
          %v1962 = vmul.f32 %v975, 0.125
          %v1963 = vmul.f32 %v866, 0.125
          %v1964 = vmul.f32 %v868, 0.125
          %v1965 = vmul.f32 %v979, 0.125
          %v1966 = vmul.f32 %v981, 0.125
          %v1967 = vmul.f32 %v872, 0.125
          %v1968 = vmul.f32 %v874, 0.125
          %v1969 = vmul.f32 %v985, 0.125
          %v1970 = vmul.f32 %v987, 0.125
          %v1971 = vmul.f32 %v878, 0.125
          %v1972 = vmul.f32 %v880, 0.125
          %v1973 = vmul.f32 %v991, 0.125
          %v1974 = vmul.f32 %v993, 0.125
          %v1975 = vmul.f32 %v884, 0.125
          %v1976 = vmul.f32 %v886, 0.125
          %v1977 = vmul.f32 %v997, 0.125
          %v1978 = vmul.f32 %v999, 0.125
          %1979 = vxpose.xlu0.b32.start [1/16] %v1219, 128
          %1980 = vxpose.xlu0.b32.cont [2/16] %v1225, 128
          %1981 = vxpose.xlu0.b32.cont [3/16] %v1231, 128
          %1982 = vxpose.xlu0.b32.cont [4/16] %v1237, 128
          %1983 = vxpose.xlu0.b32.cont [5/16] %v1243, 128
          %1984 = vxpose.xlu0.b32.cont [6/16] %v1249, 128
          %1985 = vxpose.xlu0.b32.cont [7/16] %v1255, 128
          %1986 = vxpose.xlu0.b32.cont [8/16] %v1261, 128
          %1987 = vxpose.xlu0.b32.cont [9/16] %v1267, 128
          %1988 = vxpose.xlu0.b32.cont [10/16] %v1273, 128
          %1989 = vxpose.xlu0.b32.cont [11/16] %v1279, 128
          %1990 = vxpose.xlu0.b32.cont [12/16] %v1285, 128
          %1991 = vxpose.xlu0.b32.cont [13/16] %v1291, 128
          %1992 = vxpose.xlu0.b32.cont [14/16] %v1297, 128
          %1993 = vxpose.xlu0.b32.cont [15/16] %v1303, 128
          %1994 = vxpose.xlu0.b32.end [16/16] %v1309, 128
          %v1995 = vpop.trf.xlu0
          %v1996 = vpop.trf.xlu0
          %v1997 = vpop.trf.xlu0
          %v1998 = vpop.trf.xlu0
          %v1999 = vpop.trf.xlu0
          %v2000 = vpop.trf.xlu0
          %v2001 = vpop.trf.xlu0
          %v2002 = vpop.trf.xlu0
          %v2003 = vpop.trf.xlu0
          %v2004 = vpop.trf.xlu0
          %v2005 = vpop.trf.xlu0
          %v2006 = vpop.trf.xlu0
          %v2007 = vpop.trf.xlu0
          %v2008 = vpop.trf.xlu0
          %v2009 = vpop.trf.xlu0
          %v2010 = vpop.trf.xlu0
          %2011 = vxpose.xlu0.b32.start [1/16] %v1221, 128
          %2012 = vxpose.xlu0.b32.cont [2/16] %v1227, 128
          %2013 = vxpose.xlu0.b32.cont [3/16] %v1233, 128
          %2014 = vxpose.xlu0.b32.cont [4/16] %v1239, 128
          %2015 = vxpose.xlu0.b32.cont [5/16] %v1245, 128
          %2016 = vxpose.xlu0.b32.cont [6/16] %v1251, 128
          %2017 = vxpose.xlu0.b32.cont [7/16] %v1257, 128
          %2018 = vxpose.xlu0.b32.cont [8/16] %v1263, 128
          %2019 = vxpose.xlu0.b32.cont [9/16] %v1269, 128
          %2020 = vxpose.xlu0.b32.cont [10/16] %v1275, 128
          %2021 = vxpose.xlu0.b32.cont [11/16] %v1281, 128
          %2022 = vxpose.xlu0.b32.cont [12/16] %v1287, 128
          %2023 = vxpose.xlu0.b32.cont [13/16] %v1293, 128
          %2024 = vxpose.xlu0.b32.cont [14/16] %v1299, 128
          %2025 = vxpose.xlu0.b32.cont [15/16] %v1305, 128
          %2026 = vxpose.xlu0.b32.end [16/16] %v1311, 128
          %v2027 = vpop.trf.xlu0
          %v2028 = vpop.trf.xlu0
          %v2029 = vpop.trf.xlu0
          %v2030 = vpop.trf.xlu0
          %v2031 = vpop.trf.xlu0
          %v2032 = vpop.trf.xlu0
          %v2033 = vpop.trf.xlu0
          %v2034 = vpop.trf.xlu0
          %v2035 = vpop.trf.xlu0
          %v2036 = vpop.trf.xlu0
          %v2037 = vpop.trf.xlu0
          %v2038 = vpop.trf.xlu0
          %v2039 = vpop.trf.xlu0
          %v2040 = vpop.trf.xlu0
          %v2041 = vpop.trf.xlu0
          %v2042 = vpop.trf.xlu0
          %2043 = vxpose.xlu0.b32.start [1/16] %v1380, 128
          %2044 = vxpose.xlu0.b32.cont [2/16] %v1386, 128
          %2045 = vxpose.xlu0.b32.cont [3/16] %v1392, 128
          %2046 = vxpose.xlu0.b32.cont [4/16] %v1398, 128
          %2047 = vxpose.xlu0.b32.cont [5/16] %v1404, 128
          %2048 = vxpose.xlu0.b32.cont [6/16] %v1410, 128
          %2049 = vxpose.xlu0.b32.cont [7/16] %v1416, 128
          %2050 = vxpose.xlu0.b32.cont [8/16] %v1422, 128
          %2051 = vxpose.xlu0.b32.cont [9/16] %v1428, 128
          %2052 = vxpose.xlu0.b32.cont [10/16] %v1434, 128
          %2053 = vxpose.xlu0.b32.cont [11/16] %v1440, 128
          %2054 = vxpose.xlu0.b32.cont [12/16] %v1446, 128
          %2055 = vxpose.xlu0.b32.cont [13/16] %v1452, 128
          %2056 = vxpose.xlu0.b32.cont [14/16] %v1458, 128
          %2057 = vxpose.xlu0.b32.cont [15/16] %v1464, 128
          %2058 = vxpose.xlu0.b32.end [16/16] %v1470, 128
          %v2059 = vpop.trf.xlu0
          %v2060 = vpop.trf.xlu0
          %v2061 = vpop.trf.xlu0
          %v2062 = vpop.trf.xlu0
          %v2063 = vpop.trf.xlu0
          %v2064 = vpop.trf.xlu0
          %v2065 = vpop.trf.xlu0
          %v2066 = vpop.trf.xlu0
          %v2067 = vpop.trf.xlu0
          %v2068 = vpop.trf.xlu0
          %v2069 = vpop.trf.xlu0
          %v2070 = vpop.trf.xlu0
          %v2071 = vpop.trf.xlu0
          %v2072 = vpop.trf.xlu0
          %v2073 = vpop.trf.xlu0
          %v2074 = vpop.trf.xlu0
          %2075 = vxpose.xlu0.b32.start [1/16] %v1382, 128
          %2076 = vxpose.xlu0.b32.cont [2/16] %v1388, 128
          %2077 = vxpose.xlu0.b32.cont [3/16] %v1394, 128
          %2078 = vxpose.xlu0.b32.cont [4/16] %v1400, 128
          %2079 = vxpose.xlu0.b32.cont [5/16] %v1406, 128
          %2080 = vxpose.xlu0.b32.cont [6/16] %v1412, 128
          %2081 = vxpose.xlu0.b32.cont [7/16] %v1418, 128
          %2082 = vxpose.xlu0.b32.cont [8/16] %v1424, 128
          %2083 = vxpose.xlu0.b32.cont [9/16] %v1430, 128
          %2084 = vxpose.xlu0.b32.cont [10/16] %v1436, 128
          %2085 = vxpose.xlu0.b32.cont [11/16] %v1442, 128
          %2086 = vxpose.xlu0.b32.cont [12/16] %v1448, 128
          %2087 = vxpose.xlu0.b32.cont [13/16] %v1454, 128
          %2088 = vxpose.xlu0.b32.cont [14/16] %v1460, 128
          %2089 = vxpose.xlu0.b32.cont [15/16] %v1466, 128
          %2090 = vxpose.xlu0.b32.end [16/16] %v1472, 128
          %v2091 = vpop.trf.xlu0
          %v2092 = vpop.trf.xlu0
          %v2093 = vpop.trf.xlu0
          %v2094 = vpop.trf.xlu0
          %v2095 = vpop.trf.xlu0
          %v2096 = vpop.trf.xlu0
          %v2097 = vpop.trf.xlu0
          %v2098 = vpop.trf.xlu0
          %v2099 = vpop.trf.xlu0
          %v2100 = vpop.trf.xlu0
          %v2101 = vpop.trf.xlu0
          %v2102 = vpop.trf.xlu0
          %v2103 = vpop.trf.xlu0
          %v2104 = vpop.trf.xlu0
          %v2105 = vpop.trf.xlu0
          %v2106 = vpop.trf.xlu0
          %2107 = vmatprep.subr.mxu0 0.0
          %2108 = vmatpush1.msra.mxu0 %v1995
          %2109 = vmatprep.subr.mxu0 0.0
          %2110 = vmatpush1.msra.mxu0 %v1996
          %2111 = vmatprep.subr.mxu0 0.0
          %2112 = vmatpush1.msra.mxu0 %v1997
          %2113 = vmatprep.subr.mxu0 0.0
          %2114 = vmatpush1.msra.mxu0 %v1998
          %2115 = vmatprep.subr.mxu0 0.0
          %2116 = vmatpush1.msra.mxu0 %v1999
          %2117 = vmatprep.subr.mxu0 0.0
          %2118 = vmatpush1.msra.mxu0 %v2000
          %2119 = vmatprep.subr.mxu0 0.0
          %2120 = vmatpush1.msra.mxu0 %v2001
          %2121 = vmatprep.subr.mxu0 0.0
          %2122 = vmatpush1.msra.mxu0 %v2002
          %2123 = vmatprep.subr.mxu0 0.0
          %2124 = vmatpush1.msra.mxu0 %v2003
          %2125 = vmatprep.subr.mxu0 0.0
          %2126 = vmatpush1.msra.mxu0 %v2004
          %2127 = vmatprep.subr.mxu0 0.0
          %2128 = vmatpush1.msra.mxu0 %v2005
          %2129 = vmatprep.subr.mxu0 0.0
          %2130 = vmatpush1.msra.mxu0 %v2006
          %2131 = vmatprep.subr.mxu0 0.0
          %2132 = vmatpush1.msra.mxu0 %v2007
          %2133 = vmatprep.subr.mxu0 0.0
          %2134 = vmatpush1.msra.mxu0 %v2008
          %2135 = vmatprep.subr.mxu0 0.0
          %2136 = vmatpush1.msra.mxu0 %v2009
          %2137 = vmatprep.subr.mxu0 0.0
          %2138 = vmatpush1.msra.mxu0 %v2010
          %2139 = vmatprep.subr.mxu0 0.0
          %2140 = vmatpush1.msra.mxu0 0.0
          %2141 = vmatprep.subr.mxu0 0.0
          %2142 = vmatpush1.msra.mxu0 0.0
          %2143 = vmatprep.subr.mxu0 0.0
          %2144 = vmatpush1.msra.mxu0 0.0
          %2145 = vmatprep.subr.mxu0 0.0
          %2146 = vmatpush1.msra.mxu0 0.0
          %2147 = vmatprep.subr.mxu0 0.0
          %2148 = vmatpush1.msra.mxu0 0.0
          %2149 = vmatprep.subr.mxu0 0.0
          %2150 = vmatpush1.msra.mxu0 0.0
          %2151 = vmatprep.subr.mxu0 0.0
          %2152 = vmatpush1.msra.mxu0 0.0
          %2153 = vmatprep.subr.mxu0 0.0
          %2154 = vmatpush1.msra.mxu0 0.0
          %2155 = vmatprep.subr.mxu0 0.0
          %2156 = vmatpush1.msra.mxu0 0.0
          %2157 = vmatprep.subr.mxu0 0.0
          %2158 = vmatpush1.msra.mxu0 0.0
          %2159 = vmatprep.subr.mxu0 0.0
          %2160 = vmatpush1.msra.mxu0 0.0
          %2161 = vmatprep.subr.mxu0 0.0
          %2162 = vmatpush1.msra.mxu0 0.0
          %2163 = vmatprep.subr.mxu0 0.0
          %2164 = vmatpush1.msra.mxu0 0.0
          %2165 = vmatprep.subr.mxu0 0.0
          %2166 = vmatpush1.msra.mxu0 0.0
          %2167 = vmatprep.subr.mxu0 0.0
          %2168 = vmatpush1.msra.mxu0 0.0
          %2169 = vmatprep.subr.mxu0 0.0
          %2170 = vmatpush1.msra.mxu0 0.0
          %2171 = vmatprep.mubr.f32.mxu0 0.0
          %2172 = vmatmul.mubr.f32.gmra.mrb[0].mxu0 %v1947
          %v2173 = vpop.f32.mrb[0].mxu0
          %v2174 = vadd.f32 0.0, %v2173
          %v2175 = vpop.f32.mrb[0].mxu0
          %2176 = vmatprep.mubr.f32.mxu0 0.0
          %2177 = vmatmul.mubr.f32.gmra.mrb[0].mxu0 %v1951
          %v2178 = vpop.f32.mrb[0].mxu0
          %v2179 = vadd.f32 0.0, %v2178
          %v2180 = vpop.f32.mrb[0].mxu0
          %2181 = vmatprep.mubr.f32.mxu0 0.0
          %2182 = vmatmul.mubr.f32.gmra.mrb[0].mxu0 %v1955
          %v2183 = vpop.f32.mrb[0].mxu0
          %v2184 = vadd.f32 0.0, %v2183
          %v2185 = vpop.f32.mrb[0].mxu0
          %2186 = vmatprep.mubr.f32.mxu0 0.0
          %2187 = vmatmul.mubr.f32.gmra.mrb[0].mxu0 %v1959
          %v2188 = vpop.f32.mrb[0].mxu0
          %v2189 = vadd.f32 0.0, %v2188
          %v2190 = vpop.f32.mrb[0].mxu0
          %2191 = vmatprep.mubr.f32.mxu0 0.0
          %2192 = vmatmul.mubr.f32.gmra.mrb[0].mxu0 %v1963
          %v2193 = vpop.f32.mrb[0].mxu0
          %v2194 = vadd.f32 0.0, %v2193
          %v2195 = vpop.f32.mrb[0].mxu0
          %2196 = vmatprep.mubr.f32.mxu0 0.0
          %2197 = vmatmul.mubr.f32.gmra.mrb[0].mxu0 %v1967
          %v2198 = vpop.f32.mrb[0].mxu0
          %v2199 = vadd.f32 0.0, %v2198
          %v2200 = vpop.f32.mrb[0].mxu0
          %2201 = vmatprep.mubr.f32.mxu0 0.0
          %2202 = vmatmul.mubr.f32.gmra.mrb[0].mxu0 %v1971
          %v2203 = vpop.f32.mrb[0].mxu0
          %v2204 = vadd.f32 0.0, %v2203
          %v2205 = vpop.f32.mrb[0].mxu0
          %2206 = vmatprep.mubr.f32.mxu0 0.0
          %2207 = vmatmul.mubr.f32.gmra.mrb[0].mxu0 %v1975
          %v2208 = vpop.f32.mrb[0].mxu0
          %v2209 = vadd.f32 0.0, %v2208
          %v2210 = vpop.f32.mrb[0].mxu0
          %2211 = vdwg.mxu0
          %2212 = vmatprep.subr.mxu0 0.0
          %2213 = vmatpush1.msra.mxu0 %v2027
          %2214 = vmatprep.subr.mxu0 0.0
          %2215 = vmatpush1.msra.mxu0 %v2028
          %2216 = vmatprep.subr.mxu0 0.0
          %2217 = vmatpush1.msra.mxu0 %v2029
          %2218 = vmatprep.subr.mxu0 0.0
          %2219 = vmatpush1.msra.mxu0 %v2030
          %2220 = vmatprep.subr.mxu0 0.0
          %2221 = vmatpush1.msra.mxu0 %v2031
          %2222 = vmatprep.subr.mxu0 0.0
          %2223 = vmatpush1.msra.mxu0 %v2032
          %2224 = vmatprep.subr.mxu0 0.0
          %2225 = vmatpush1.msra.mxu0 %v2033
          %2226 = vmatprep.subr.mxu0 0.0
          %2227 = vmatpush1.msra.mxu0 %v2034
          %2228 = vmatprep.subr.mxu0 0.0
          %2229 = vmatpush1.msra.mxu0 %v2035
          %2230 = vmatprep.subr.mxu0 0.0
          %2231 = vmatpush1.msra.mxu0 %v2036
          %2232 = vmatprep.subr.mxu0 0.0
          %2233 = vmatpush1.msra.mxu0 %v2037
          %2234 = vmatprep.subr.mxu0 0.0
          %2235 = vmatpush1.msra.mxu0 %v2038
          %2236 = vmatprep.subr.mxu0 0.0
          %2237 = vmatpush1.msra.mxu0 %v2039
          %2238 = vmatprep.subr.mxu0 0.0
          %2239 = vmatpush1.msra.mxu0 %v2040
          %2240 = vmatprep.subr.mxu0 0.0
          %2241 = vmatpush1.msra.mxu0 %v2041
          %2242 = vmatprep.subr.mxu0 0.0
          %2243 = vmatpush1.msra.mxu0 %v2042
          %2244 = vmatprep.subr.mxu0 0.0
          %2245 = vmatpush1.msra.mxu0 0.0
          %2246 = vmatprep.subr.mxu0 0.0
          %2247 = vmatpush1.msra.mxu0 0.0
          %2248 = vmatprep.subr.mxu0 0.0
          %2249 = vmatpush1.msra.mxu0 0.0
          %2250 = vmatprep.subr.mxu0 0.0
          %2251 = vmatpush1.msra.mxu0 0.0
          %2252 = vmatprep.subr.mxu0 0.0
          %2253 = vmatpush1.msra.mxu0 0.0
          %2254 = vmatprep.subr.mxu0 0.0
          %2255 = vmatpush1.msra.mxu0 0.0
          %2256 = vmatprep.subr.mxu0 0.0
          %2257 = vmatpush1.msra.mxu0 0.0
          %2258 = vmatprep.subr.mxu0 0.0
          %2259 = vmatpush1.msra.mxu0 0.0
          %2260 = vmatprep.subr.mxu0 0.0
          %2261 = vmatpush1.msra.mxu0 0.0
          %2262 = vmatprep.subr.mxu0 0.0
          %2263 = vmatpush1.msra.mxu0 0.0
          %2264 = vmatprep.subr.mxu0 0.0
          %2265 = vmatpush1.msra.mxu0 0.0
          %2266 = vmatprep.subr.mxu0 0.0
          %2267 = vmatpush1.msra.mxu0 0.0
          %2268 = vmatprep.subr.mxu0 0.0
          %2269 = vmatpush1.msra.mxu0 0.0
          %2270 = vmatprep.subr.mxu0 0.0
          %2271 = vmatpush1.msra.mxu0 0.0
          %2272 = vmatprep.subr.mxu0 0.0
          %2273 = vmatpush1.msra.mxu0 0.0
          %2274 = vmatprep.subr.mxu0 0.0
          %2275 = vmatpush1.msra.mxu0 0.0
          %2276 = vmatprep.mubr.f32.mxu0 0.0
          %2277 = vmatmul.mubr.f32.gmra.mrb[0].mxu0 %v1948
          %v2278 = vpop.f32.mrb[0].mxu0
          %v2279 = vadd.f32 0.0, %v2278
          %v2280 = vpop.f32.mrb[0].mxu0
          %2281 = vmatprep.mubr.f32.mxu0 0.0
          %2282 = vmatmul.mubr.f32.gmra.mrb[0].mxu0 %v1952
          %v2283 = vpop.f32.mrb[0].mxu0
          %v2284 = vadd.f32 0.0, %v2283
          %v2285 = vpop.f32.mrb[0].mxu0
          %2286 = vmatprep.mubr.f32.mxu0 0.0
          %2287 = vmatmul.mubr.f32.gmra.mrb[0].mxu0 %v1956
          %v2288 = vpop.f32.mrb[0].mxu0
          %v2289 = vadd.f32 0.0, %v2288
          %v2290 = vpop.f32.mrb[0].mxu0
          %2291 = vmatprep.mubr.f32.mxu0 0.0
          %2292 = vmatmul.mubr.f32.gmra.mrb[0].mxu0 %v1960
          %v2293 = vpop.f32.mrb[0].mxu0
          %v2294 = vadd.f32 0.0, %v2293
          %v2295 = vpop.f32.mrb[0].mxu0
          %2296 = vmatprep.mubr.f32.mxu0 0.0
          %2297 = vmatmul.mubr.f32.gmra.mrb[0].mxu0 %v1964
          %v2298 = vpop.f32.mrb[0].mxu0
          %v2299 = vadd.f32 0.0, %v2298
          %v2300 = vpop.f32.mrb[0].mxu0
          %2301 = vmatprep.mubr.f32.mxu0 0.0
          %2302 = vmatmul.mubr.f32.gmra.mrb[0].mxu0 %v1968
          %v2303 = vpop.f32.mrb[0].mxu0
          %v2304 = vadd.f32 0.0, %v2303
          %v2305 = vpop.f32.mrb[0].mxu0
          %2306 = vmatprep.mubr.f32.mxu0 0.0
          %2307 = vmatmul.mubr.f32.gmra.mrb[0].mxu0 %v1972
          %v2308 = vpop.f32.mrb[0].mxu0
          %v2309 = vadd.f32 0.0, %v2308
          %v2310 = vpop.f32.mrb[0].mxu0
          %2311 = vmatprep.mubr.f32.mxu0 0.0
          %2312 = vmatmul.mubr.f32.gmra.mrb[0].mxu0 %v1976
          %v2313 = vpop.f32.mrb[0].mxu0
          %v2314 = vadd.f32 0.0, %v2313
          %v2315 = vpop.f32.mrb[0].mxu0
          %2316 = vdwg.mxu0
          %2317 = vmatprep.subr.mxu0 0.0
          %2318 = vmatpush1.msra.mxu0 %v2059
          %2319 = vmatprep.subr.mxu0 0.0
          %2320 = vmatpush1.msra.mxu0 %v2060
          %2321 = vmatprep.subr.mxu0 0.0
          %2322 = vmatpush1.msra.mxu0 %v2061
          %2323 = vmatprep.subr.mxu0 0.0
          %2324 = vmatpush1.msra.mxu0 %v2062
          %2325 = vmatprep.subr.mxu0 0.0
          %2326 = vmatpush1.msra.mxu0 %v2063
          %2327 = vmatprep.subr.mxu0 0.0
          %2328 = vmatpush1.msra.mxu0 %v2064
          %2329 = vmatprep.subr.mxu0 0.0
          %2330 = vmatpush1.msra.mxu0 %v2065
          %2331 = vmatprep.subr.mxu0 0.0
          %2332 = vmatpush1.msra.mxu0 %v2066
          %2333 = vmatprep.subr.mxu0 0.0
          %2334 = vmatpush1.msra.mxu0 %v2067
          %2335 = vmatprep.subr.mxu0 0.0
          %2336 = vmatpush1.msra.mxu0 %v2068
          %2337 = vmatprep.subr.mxu0 0.0
          %2338 = vmatpush1.msra.mxu0 %v2069
          %2339 = vmatprep.subr.mxu0 0.0
          %2340 = vmatpush1.msra.mxu0 %v2070
          %2341 = vmatprep.subr.mxu0 0.0
          %2342 = vmatpush1.msra.mxu0 %v2071
          %2343 = vmatprep.subr.mxu0 0.0
          %2344 = vmatpush1.msra.mxu0 %v2072
          %2345 = vmatprep.subr.mxu0 0.0
          %2346 = vmatpush1.msra.mxu0 %v2073
          %2347 = vmatprep.subr.mxu0 0.0
          %2348 = vmatpush1.msra.mxu0 %v2074
          %2349 = vmatprep.subr.mxu0 0.0
          %2350 = vmatpush1.msra.mxu0 0.0
          %2351 = vmatprep.subr.mxu0 0.0
          %2352 = vmatpush1.msra.mxu0 0.0
          %2353 = vmatprep.subr.mxu0 0.0
          %2354 = vmatpush1.msra.mxu0 0.0
          %2355 = vmatprep.subr.mxu0 0.0
          %2356 = vmatpush1.msra.mxu0 0.0
          %2357 = vmatprep.subr.mxu0 0.0
          %2358 = vmatpush1.msra.mxu0 0.0
          %2359 = vmatprep.subr.mxu0 0.0
          %2360 = vmatpush1.msra.mxu0 0.0
          %2361 = vmatprep.subr.mxu0 0.0
          %2362 = vmatpush1.msra.mxu0 0.0
          %2363 = vmatprep.subr.mxu0 0.0
          %2364 = vmatpush1.msra.mxu0 0.0
          %2365 = vmatprep.subr.mxu0 0.0
          %2366 = vmatpush1.msra.mxu0 0.0
          %2367 = vmatprep.subr.mxu0 0.0
          %2368 = vmatpush1.msra.mxu0 0.0
          %2369 = vmatprep.subr.mxu0 0.0
          %2370 = vmatpush1.msra.mxu0 0.0
          %2371 = vmatprep.subr.mxu0 0.0
          %2372 = vmatpush1.msra.mxu0 0.0
          %2373 = vmatprep.subr.mxu0 0.0
          %2374 = vmatpush1.msra.mxu0 0.0
          %2375 = vmatprep.subr.mxu0 0.0
          %2376 = vmatpush1.msra.mxu0 0.0
          %2377 = vmatprep.subr.mxu0 0.0
          %2378 = vmatpush1.msra.mxu0 0.0
          %2379 = vmatprep.subr.mxu0 0.0
          %2380 = vmatpush1.msra.mxu0 0.0
          %2381 = vmatprep.mubr.f32.mxu0 0.0
          %2382 = vmatmul.mubr.f32.gmra.mrb[0].mxu0 %v1949
          %v2383 = vpop.f32.mrb[0].mxu0
          %v2384 = vadd.f32 0.0, %v2383
          %v2385 = vpop.f32.mrb[0].mxu0
          %2386 = vmatprep.mubr.f32.mxu0 0.0
          %2387 = vmatmul.mubr.f32.gmra.mrb[0].mxu0 %v1953
          %v2388 = vpop.f32.mrb[0].mxu0
          %v2389 = vadd.f32 0.0, %v2388
          %v2390 = vpop.f32.mrb[0].mxu0
          %2391 = vmatprep.mubr.f32.mxu0 0.0
          %2392 = vmatmul.mubr.f32.gmra.mrb[0].mxu0 %v1957
          %v2393 = vpop.f32.mrb[0].mxu0
          %v2394 = vadd.f32 0.0, %v2393
          %v2395 = vpop.f32.mrb[0].mxu0
          %2396 = vmatprep.mubr.f32.mxu0 0.0
          %2397 = vmatmul.mubr.f32.gmra.mrb[0].mxu0 %v1961
          %v2398 = vpop.f32.mrb[0].mxu0
          %v2399 = vadd.f32 0.0, %v2398
          %v2400 = vpop.f32.mrb[0].mxu0
          %2401 = vmatprep.mubr.f32.mxu0 0.0
          %2402 = vmatmul.mubr.f32.gmra.mrb[0].mxu0 %v1965
          %v2403 = vpop.f32.mrb[0].mxu0
          %v2404 = vadd.f32 0.0, %v2403
          %v2405 = vpop.f32.mrb[0].mxu0
          %2406 = vmatprep.mubr.f32.mxu0 0.0
          %2407 = vmatmul.mubr.f32.gmra.mrb[0].mxu0 %v1969
          %v2408 = vpop.f32.mrb[0].mxu0
          %v2409 = vadd.f32 0.0, %v2408
          %v2410 = vpop.f32.mrb[0].mxu0
          %2411 = vmatprep.mubr.f32.mxu0 0.0
          %2412 = vmatmul.mubr.f32.gmra.mrb[0].mxu0 %v1973
          %v2413 = vpop.f32.mrb[0].mxu0
          %v2414 = vadd.f32 0.0, %v2413
          %v2415 = vpop.f32.mrb[0].mxu0
          %2416 = vmatprep.mubr.f32.mxu0 0.0
          %2417 = vmatmul.mubr.f32.gmra.mrb[0].mxu0 %v1977
          %v2418 = vpop.f32.mrb[0].mxu0
          %v2419 = vadd.f32 0.0, %v2418
          %v2420 = vpop.f32.mrb[0].mxu0
          %2421 = vdwg.mxu0
          %2422 = vmatprep.subr.mxu0 0.0
          %2423 = vmatpush1.msra.mxu0 %v2091
          %2424 = vmatprep.subr.mxu0 0.0
          %2425 = vmatpush1.msra.mxu0 %v2092
          %2426 = vmatprep.subr.mxu0 0.0
          %2427 = vmatpush1.msra.mxu0 %v2093
          %2428 = vmatprep.subr.mxu0 0.0
          %2429 = vmatpush1.msra.mxu0 %v2094
          %2430 = vmatprep.subr.mxu0 0.0
          %2431 = vmatpush1.msra.mxu0 %v2095
          %2432 = vmatprep.subr.mxu0 0.0
          %2433 = vmatpush1.msra.mxu0 %v2096
          %2434 = vmatprep.subr.mxu0 0.0
          %2435 = vmatpush1.msra.mxu0 %v2097
          %2436 = vmatprep.subr.mxu0 0.0
          %2437 = vmatpush1.msra.mxu0 %v2098
          %2438 = vmatprep.subr.mxu0 0.0
          %2439 = vmatpush1.msra.mxu0 %v2099
          %2440 = vmatprep.subr.mxu0 0.0
          %2441 = vmatpush1.msra.mxu0 %v2100
          %2442 = vmatprep.subr.mxu0 0.0
          %2443 = vmatpush1.msra.mxu0 %v2101
          %2444 = vmatprep.subr.mxu0 0.0
          %2445 = vmatpush1.msra.mxu0 %v2102
          %2446 = vmatprep.subr.mxu0 0.0
          %2447 = vmatpush1.msra.mxu0 %v2103
          %2448 = vmatprep.subr.mxu0 0.0
          %2449 = vmatpush1.msra.mxu0 %v2104
          %2450 = vmatprep.subr.mxu0 0.0
          %2451 = vmatpush1.msra.mxu0 %v2105
          %2452 = vmatprep.subr.mxu0 0.0
          %2453 = vmatpush1.msra.mxu0 %v2106
          %2454 = vmatprep.subr.mxu0 0.0
          %2455 = vmatpush1.msra.mxu0 0.0
          %2456 = vmatprep.subr.mxu0 0.0
          %2457 = vmatpush1.msra.mxu0 0.0
          %2458 = vmatprep.subr.mxu0 0.0
          %2459 = vmatpush1.msra.mxu0 0.0
          %2460 = vmatprep.subr.mxu0 0.0
          %2461 = vmatpush1.msra.mxu0 0.0
          %2462 = vmatprep.subr.mxu0 0.0
          %2463 = vmatpush1.msra.mxu0 0.0
          %2464 = vmatprep.subr.mxu0 0.0
          %2465 = vmatpush1.msra.mxu0 0.0
          %2466 = vmatprep.subr.mxu0 0.0
          %2467 = vmatpush1.msra.mxu0 0.0
          %2468 = vmatprep.subr.mxu0 0.0
          %2469 = vmatpush1.msra.mxu0 0.0
          %2470 = vmatprep.subr.mxu0 0.0
          %2471 = vmatpush1.msra.mxu0 0.0
          %2472 = vmatprep.subr.mxu0 0.0
          %2473 = vmatpush1.msra.mxu0 0.0
          %2474 = vmatprep.subr.mxu0 0.0
          %2475 = vmatpush1.msra.mxu0 0.0
          %2476 = vmatprep.subr.mxu0 0.0
          %2477 = vmatpush1.msra.mxu0 0.0
          %2478 = vmatprep.subr.mxu0 0.0
          %2479 = vmatpush1.msra.mxu0 0.0
          %2480 = vmatprep.subr.mxu0 0.0
          %2481 = vmatpush1.msra.mxu0 0.0
          %2482 = vmatprep.subr.mxu0 0.0
          %2483 = vmatpush1.msra.mxu0 0.0
          %2484 = vmatprep.subr.mxu0 0.0
          %2485 = vmatpush1.msra.mxu0 0.0
          %2486 = vmatprep.mubr.f32.mxu0 0.0
          %2487 = vmatmul.mubr.f32.gmra.mrb[0].mxu0 %v1950
          %v2488 = vpop.f32.mrb[0].mxu0
          %v2489 = vadd.f32 0.0, %v2488
          %v2490 = vpop.f32.mrb[0].mxu0
          %2491 = vmatprep.mubr.f32.mxu0 0.0
          %2492 = vmatmul.mubr.f32.gmra.mrb[0].mxu0 %v1954
          %v2493 = vpop.f32.mrb[0].mxu0
          %v2494 = vadd.f32 0.0, %v2493
          %v2495 = vpop.f32.mrb[0].mxu0
          %2496 = vmatprep.mubr.f32.mxu0 0.0
          %2497 = vmatmul.mubr.f32.gmra.mrb[0].mxu0 %v1958
          %v2498 = vpop.f32.mrb[0].mxu0
          %v2499 = vadd.f32 0.0, %v2498
          %v2500 = vpop.f32.mrb[0].mxu0
          %2501 = vmatprep.mubr.f32.mxu0 0.0
          %2502 = vmatmul.mubr.f32.gmra.mrb[0].mxu0 %v1962
          %v2503 = vpop.f32.mrb[0].mxu0
          %v2504 = vadd.f32 0.0, %v2503
          %v2505 = vpop.f32.mrb[0].mxu0
          %2506 = vmatprep.mubr.f32.mxu0 0.0
          %2507 = vmatmul.mubr.f32.gmra.mrb[0].mxu0 %v1966
          %v2508 = vpop.f32.mrb[0].mxu0
          %v2509 = vadd.f32 0.0, %v2508
          %v2510 = vpop.f32.mrb[0].mxu0
          %2511 = vmatprep.mubr.f32.mxu0 0.0
          %2512 = vmatmul.mubr.f32.gmra.mrb[0].mxu0 %v1970
          %v2513 = vpop.f32.mrb[0].mxu0
          %v2514 = vadd.f32 0.0, %v2513
          %v2515 = vpop.f32.mrb[0].mxu0
          %2516 = vmatprep.mubr.f32.mxu0 0.0
          %2517 = vmatmul.mubr.f32.gmra.mrb[0].mxu0 %v1974
          %v2518 = vpop.f32.mrb[0].mxu0
          %v2519 = vadd.f32 0.0, %v2518
          %v2520 = vpop.f32.mrb[0].mxu0
          %2521 = vmatprep.mubr.f32.mxu0 0.0
          %2522 = vmatmul.mubr.f32.gmra.mrb[0].mxu0 %v1978
          %v2523 = vpop.f32.mrb[0].mxu0
          %v2524 = vadd.f32 0.0, %v2523
          %v2525 = vpop.f32.mrb[0].mxu0
          %2526 = vdwg.mxu0
          %2527 = vmax.xlane.f32.xlu0 %v2174
          %v2528 = vpop.xlane.xlu0 %2527
          %2529 = vmax.xlane.f32.xlu0 %v2179
          %v2530 = vpop.xlane.xlu0 %2529
          %2531 = vmax.xlane.f32.xlu0 %v2184
          %v2532 = vpop.xlane.xlu0 %2531
          %2533 = vmax.xlane.f32.xlu0 %v2189
          %v2534 = vpop.xlane.xlu0 %2533
          %2535 = vmax.xlane.f32.xlu0 %v2194
          %v2536 = vpop.xlane.xlu0 %2535
          %2537 = vmax.xlane.f32.xlu0 %v2199
          %v2538 = vpop.xlane.xlu0 %2537
          %2539 = vmax.xlane.f32.xlu0 %v2204
          %v2540 = vpop.xlane.xlu0 %2539
          %2541 = vmax.xlane.f32.xlu0 %v2209
          %v2542 = vpop.xlane.xlu0 %2541
          %2543 = vmax.xlane.f32.xlu0 %v2279
          %v2544 = vpop.xlane.xlu0 %2543
          %2545 = vmax.xlane.f32.xlu0 %v2284
          %v2546 = vpop.xlane.xlu0 %2545
          %2547 = vmax.xlane.f32.xlu0 %v2289
          %v2548 = vpop.xlane.xlu0 %2547
          %2549 = vmax.xlane.f32.xlu0 %v2294
          %v2550 = vpop.xlane.xlu0 %2549
          %2551 = vmax.xlane.f32.xlu0 %v2299
          %v2552 = vpop.xlane.xlu0 %2551
          %2553 = vmax.xlane.f32.xlu0 %v2304
          %v2554 = vpop.xlane.xlu0 %2553
          %2555 = vmax.xlane.f32.xlu0 %v2309
          %v2556 = vpop.xlane.xlu0 %2555
          %2557 = vmax.xlane.f32.xlu0 %v2314
          %v2558 = vpop.xlane.xlu0 %2557
          %2559 = vmax.xlane.f32.xlu0 %v2384
          %v2560 = vpop.xlane.xlu0 %2559
          %2561 = vmax.xlane.f32.xlu0 %v2389
          %v2562 = vpop.xlane.xlu0 %2561
          %2563 = vmax.xlane.f32.xlu0 %v2394
          %v2564 = vpop.xlane.xlu0 %2563
          %2565 = vmax.xlane.f32.xlu0 %v2399
          %v2566 = vpop.xlane.xlu0 %2565
          %2567 = vmax.xlane.f32.xlu0 %v2404
          %v2568 = vpop.xlane.xlu0 %2567
          %2569 = vmax.xlane.f32.xlu0 %v2409
          %v2570 = vpop.xlane.xlu0 %2569
          %2571 = vmax.xlane.f32.xlu0 %v2414
          %v2572 = vpop.xlane.xlu0 %2571
          %2573 = vmax.xlane.f32.xlu0 %v2419
          %v2574 = vpop.xlane.xlu0 %2573
          %2575 = vmax.xlane.f32.xlu0 %v2489
          %v2576 = vpop.xlane.xlu0 %2575
          %2577 = vmax.xlane.f32.xlu0 %v2494
          %v2578 = vpop.xlane.xlu0 %2577
          %2579 = vmax.xlane.f32.xlu0 %v2499
          %v2580 = vpop.xlane.xlu0 %2579
          %2581 = vmax.xlane.f32.xlu0 %v2504
          %v2582 = vpop.xlane.xlu0 %2581
          %2583 = vmax.xlane.f32.xlu0 %v2509
          %v2584 = vpop.xlane.xlu0 %2583
          %2585 = vmax.xlane.f32.xlu0 %v2514
          %v2586 = vpop.xlane.xlu0 %2585
          %2587 = vmax.xlane.f32.xlu0 %v2519
          %v2588 = vpop.xlane.xlu0 %2587
          %2589 = vmax.xlane.f32.xlu0 %v2524
          %v2590 = vpop.xlane.xlu0 %2589
          %v2591 = vsub.f32 %v2174, %v2528
          %v2592 = vsub.f32 %v2179, %v2530
          %v2593 = vsub.f32 %v2184, %v2532
          %v2594 = vsub.f32 %v2189, %v2534
          %v2595 = vsub.f32 %v2194, %v2536
          %v2596 = vsub.f32 %v2199, %v2538
          %v2597 = vsub.f32 %v2204, %v2540
          %v2598 = vsub.f32 %v2209, %v2542
          %v2599 = vsub.f32 %v2279, %v2544
          %v2600 = vsub.f32 %v2284, %v2546
          %v2601 = vsub.f32 %v2289, %v2548
          %v2602 = vsub.f32 %v2294, %v2550
          %v2603 = vsub.f32 %v2299, %v2552
          %v2604 = vsub.f32 %v2304, %v2554
          %v2605 = vsub.f32 %v2309, %v2556
          %v2606 = vsub.f32 %v2314, %v2558
          %v2607 = vsub.f32 %v2384, %v2560
          %v2608 = vsub.f32 %v2389, %v2562
          %v2609 = vsub.f32 %v2394, %v2564
          %v2610 = vsub.f32 %v2399, %v2566
          %v2611 = vsub.f32 %v2404, %v2568
          %v2612 = vsub.f32 %v2409, %v2570
          %v2613 = vsub.f32 %v2414, %v2572
          %v2614 = vsub.f32 %v2419, %v2574
          %v2615 = vsub.f32 %v2489, %v2576
          %v2616 = vsub.f32 %v2494, %v2578
          %v2617 = vsub.f32 %v2499, %v2580
          %v2618 = vsub.f32 %v2504, %v2582
          %v2619 = vsub.f32 %v2509, %v2584
          %v2620 = vsub.f32 %v2514, %v2586
          %v2621 = vsub.f32 %v2519, %v2588
          %v2622 = vsub.f32 %v2524, %v2590
          %v2623 = vmul.f32 %v2591, 1.442695
          %v2624 = vpow.pop %v2623
          %v2625 = vmul.f32 %v2592, 1.442695
          %v2626 = vpow.pop %v2625
          %v2627 = vmul.f32 %v2593, 1.442695
          %v2628 = vpow.pop %v2627
          %v2629 = vmul.f32 %v2594, 1.442695
          %v2630 = vpow.pop %v2629
          %v2631 = vmul.f32 %v2595, 1.442695
          %v2632 = vpow.pop %v2631
          %v2633 = vmul.f32 %v2596, 1.442695
          %v2634 = vpow.pop %v2633
          %v2635 = vmul.f32 %v2597, 1.442695
          %v2636 = vpow.pop %v2635
          %v2637 = vmul.f32 %v2598, 1.442695
          %v2638 = vpow.pop %v2637
          %v2639 = vmul.f32 %v2599, 1.442695
          %v2640 = vpow.pop %v2639
          %v2641 = vmul.f32 %v2600, 1.442695
          %v2642 = vpow.pop %v2641
          %v2643 = vmul.f32 %v2601, 1.442695
          %v2644 = vpow.pop %v2643
          %v2645 = vmul.f32 %v2602, 1.442695
          %v2646 = vpow.pop %v2645
          %v2647 = vmul.f32 %v2603, 1.442695
          %v2648 = vpow.pop %v2647
          %v2649 = vmul.f32 %v2604, 1.442695
          %v2650 = vpow.pop %v2649
          %v2651 = vmul.f32 %v2605, 1.442695
          %v2652 = vpow.pop %v2651
          %v2653 = vmul.f32 %v2606, 1.442695
          %v2654 = vpow.pop %v2653
          %v2655 = vmul.f32 %v2607, 1.442695
          %v2656 = vpow.pop %v2655
          %v2657 = vmul.f32 %v2608, 1.442695
          %v2658 = vpow.pop %v2657
          %v2659 = vmul.f32 %v2609, 1.442695
          %v2660 = vpow.pop %v2659
          %v2661 = vmul.f32 %v2610, 1.442695
          %v2662 = vpow.pop %v2661
          %v2663 = vmul.f32 %v2611, 1.442695
          %v2664 = vpow.pop %v2663
          %v2665 = vmul.f32 %v2612, 1.442695
          %v2666 = vpow.pop %v2665
          %v2667 = vmul.f32 %v2613, 1.442695
          %v2668 = vpow.pop %v2667
          %v2669 = vmul.f32 %v2614, 1.442695
          %v2670 = vpow.pop %v2669
          %v2671 = vmul.f32 %v2615, 1.442695
          %v2672 = vpow.pop %v2671
          %v2673 = vmul.f32 %v2616, 1.442695
          %v2674 = vpow.pop %v2673
          %v2675 = vmul.f32 %v2617, 1.442695
          %v2676 = vpow.pop %v2675
          %v2677 = vmul.f32 %v2618, 1.442695
          %v2678 = vpow.pop %v2677
          %v2679 = vmul.f32 %v2619, 1.442695
          %v2680 = vpow.pop %v2679
          %v2681 = vmul.f32 %v2620, 1.442695
          %v2682 = vpow.pop %v2681
          %v2683 = vmul.f32 %v2621, 1.442695
          %v2684 = vpow.pop %v2683
          %v2685 = vmul.f32 %v2622, 1.442695
          %v2686 = vpow.pop %v2685
          %2687 = vadd.xlane.f32.xlu0 %v2624
          %v2688 = vpop.xlane.xlu0 %2687
          %2689 = vadd.xlane.f32.xlu0 %v2626
          %v2690 = vpop.xlane.xlu0 %2689
          %2691 = vadd.xlane.f32.xlu0 %v2628
          %v2692 = vpop.xlane.xlu0 %2691
          %2693 = vadd.xlane.f32.xlu0 %v2630
          %v2694 = vpop.xlane.xlu0 %2693
          %2695 = vadd.xlane.f32.xlu0 %v2632
          %v2696 = vpop.xlane.xlu0 %2695
          %2697 = vadd.xlane.f32.xlu0 %v2634
          %v2698 = vpop.xlane.xlu0 %2697
          %2699 = vadd.xlane.f32.xlu0 %v2636
          %v2700 = vpop.xlane.xlu0 %2699
          %2701 = vadd.xlane.f32.xlu0 %v2638
          %v2702 = vpop.xlane.xlu0 %2701
          %2703 = vadd.xlane.f32.xlu0 %v2640
          %v2704 = vpop.xlane.xlu0 %2703
          %2705 = vadd.xlane.f32.xlu0 %v2642
          %v2706 = vpop.xlane.xlu0 %2705
          %2707 = vadd.xlane.f32.xlu0 %v2644
          %v2708 = vpop.xlane.xlu0 %2707
          %2709 = vadd.xlane.f32.xlu0 %v2646
          %v2710 = vpop.xlane.xlu0 %2709
          %2711 = vadd.xlane.f32.xlu0 %v2648
          %v2712 = vpop.xlane.xlu0 %2711
          %2713 = vadd.xlane.f32.xlu0 %v2650
          %v2714 = vpop.xlane.xlu0 %2713
          %2715 = vadd.xlane.f32.xlu0 %v2652
          %v2716 = vpop.xlane.xlu0 %2715
          %2717 = vadd.xlane.f32.xlu0 %v2654
          %v2718 = vpop.xlane.xlu0 %2717
          %2719 = vadd.xlane.f32.xlu0 %v2656
          %v2720 = vpop.xlane.xlu0 %2719
          %2721 = vadd.xlane.f32.xlu0 %v2658
          %v2722 = vpop.xlane.xlu0 %2721
          %2723 = vadd.xlane.f32.xlu0 %v2660
          %v2724 = vpop.xlane.xlu0 %2723
          %2725 = vadd.xlane.f32.xlu0 %v2662
          %v2726 = vpop.xlane.xlu0 %2725
          %2727 = vadd.xlane.f32.xlu0 %v2664
          %v2728 = vpop.xlane.xlu0 %2727
          %2729 = vadd.xlane.f32.xlu0 %v2666
          %v2730 = vpop.xlane.xlu0 %2729
          %2731 = vadd.xlane.f32.xlu0 %v2668
          %v2732 = vpop.xlane.xlu0 %2731
          %2733 = vadd.xlane.f32.xlu0 %v2670
          %v2734 = vpop.xlane.xlu0 %2733
          %2735 = vadd.xlane.f32.xlu0 %v2672
          %v2736 = vpop.xlane.xlu0 %2735
          %2737 = vadd.xlane.f32.xlu0 %v2674
          %v2738 = vpop.xlane.xlu0 %2737
          %2739 = vadd.xlane.f32.xlu0 %v2676
          %v2740 = vpop.xlane.xlu0 %2739
          %2741 = vadd.xlane.f32.xlu0 %v2678
          %v2742 = vpop.xlane.xlu0 %2741
          %2743 = vadd.xlane.f32.xlu0 %v2680
          %v2744 = vpop.xlane.xlu0 %2743
          %2745 = vadd.xlane.f32.xlu0 %v2682
          %v2746 = vpop.xlane.xlu0 %2745
          %2747 = vadd.xlane.f32.xlu0 %v2684
          %v2748 = vpop.xlane.xlu0 %2747
          %2749 = vadd.xlane.f32.xlu0 %v2686
          %v2750 = vpop.xlane.xlu0 %2749
          %v2751 = vrcp.pop %v2688
          %v2752 = vrcp.pop %v2690
          %v2753 = vrcp.pop %v2692
          %v2754 = vrcp.pop %v2694
          %v2755 = vrcp.pop %v2696
          %v2756 = vrcp.pop %v2698
          %v2757 = vrcp.pop %v2700
          %v2758 = vrcp.pop %v2702
          %v2759 = vrcp.pop %v2704
          %v2760 = vrcp.pop %v2706
          %v2761 = vrcp.pop %v2708
          %v2762 = vrcp.pop %v2710
          %v2763 = vrcp.pop %v2712
          %v2764 = vrcp.pop %v2714
          %v2765 = vrcp.pop %v2716
          %v2766 = vrcp.pop %v2718
          %v2767 = vrcp.pop %v2720
          %v2768 = vrcp.pop %v2722
          %v2769 = vrcp.pop %v2724
          %v2770 = vrcp.pop %v2726
          %v2771 = vrcp.pop %v2728
          %v2772 = vrcp.pop %v2730
          %v2773 = vrcp.pop %v2732
          %v2774 = vrcp.pop %v2734
          %v2775 = vrcp.pop %v2736
          %v2776 = vrcp.pop %v2738
          %v2777 = vrcp.pop %v2740
          %v2778 = vrcp.pop %v2742
          %v2779 = vrcp.pop %v2744
          %v2780 = vrcp.pop %v2746
          %v2781 = vrcp.pop %v2748
          %v2782 = vrcp.pop %v2750
          %v2783 = vmul.f32 %v2624, %v2751
          %v2784 = vmul.f32 %v2626, %v2752
          %v2785 = vmul.f32 %v2628, %v2753
          %v2786 = vmul.f32 %v2630, %v2754
          %v2787 = vmul.f32 %v2632, %v2755
          %v2788 = vmul.f32 %v2634, %v2756
          %v2789 = vmul.f32 %v2636, %v2757
          %v2790 = vmul.f32 %v2638, %v2758
          %v2791 = vmul.f32 %v2640, %v2759
          %v2792 = vmul.f32 %v2642, %v2760
          %v2793 = vmul.f32 %v2644, %v2761
          %v2794 = vmul.f32 %v2646, %v2762
          %v2795 = vmul.f32 %v2648, %v2763
          %v2796 = vmul.f32 %v2650, %v2764
          %v2797 = vmul.f32 %v2652, %v2765
          %v2798 = vmul.f32 %v2654, %v2766
          %v2799 = vmul.f32 %v2656, %v2767
          %v2800 = vmul.f32 %v2658, %v2768
          %v2801 = vmul.f32 %v2660, %v2769
          %v2802 = vmul.f32 %v2662, %v2770
          %v2803 = vmul.f32 %v2664, %v2771
          %v2804 = vmul.f32 %v2666, %v2772
          %v2805 = vmul.f32 %v2668, %v2773
          %v2806 = vmul.f32 %v2670, %v2774
          %v2807 = vmul.f32 %v2672, %v2775
          %v2808 = vmul.f32 %v2674, %v2776
          %v2809 = vmul.f32 %v2676, %v2777
          %v2810 = vmul.f32 %v2678, %v2778
          %v2811 = vmul.f32 %v2680, %v2779
          %v2812 = vmul.f32 %v2682, %v2780
          %v2813 = vmul.f32 %v2684, %v2781
          %v2814 = vmul.f32 %v2686, %v2782
          %2815 = vxpose.xlu0.b32.start [1/16] %v1692, 128
          %2816 = vxpose.xlu0.b32.cont [2/16] %v1698, 128
          %2817 = vxpose.xlu0.b32.cont [3/16] %v1704, 128
          %2818 = vxpose.xlu0.b32.cont [4/16] %v1710, 128
          %2819 = vxpose.xlu0.b32.cont [5/16] %v1716, 128
          %2820 = vxpose.xlu0.b32.cont [6/16] %v1722, 128
          %2821 = vxpose.xlu0.b32.cont [7/16] %v1728, 128
          %2822 = vxpose.xlu0.b32.cont [8/16] %v1734, 128
          %2823 = vxpose.xlu0.b32.cont [9/16] %v1740, 128
          %2824 = vxpose.xlu0.b32.cont [10/16] %v1746, 128
          %2825 = vxpose.xlu0.b32.cont [11/16] %v1752, 128
          %2826 = vxpose.xlu0.b32.cont [12/16] %v1758, 128
          %2827 = vxpose.xlu0.b32.cont [13/16] %v1764, 128
          %2828 = vxpose.xlu0.b32.cont [14/16] %v1770, 128
          %2829 = vxpose.xlu0.b32.cont [15/16] %v1776, 128
          %2830 = vxpose.xlu0.b32.end [16/16] %v1782, 128
          %v2831 = vpop.trf.xlu0
          %v2832 = vpop.trf.xlu0
          %v2833 = vpop.trf.xlu0
          %v2834 = vpop.trf.xlu0
          %v2835 = vpop.trf.xlu0
          %v2836 = vpop.trf.xlu0
          %v2837 = vpop.trf.xlu0
          %v2838 = vpop.trf.xlu0
          %v2839 = vpop.trf.xlu0
          %v2840 = vpop.trf.xlu0
          %v2841 = vpop.trf.xlu0
          %v2842 = vpop.trf.xlu0
          %v2843 = vpop.trf.xlu0
          %v2844 = vpop.trf.xlu0
          %v2845 = vpop.trf.xlu0
          %v2846 = vpop.trf.xlu0
          %2847 = vxpose.xlu0.b32.start [1/16] %v1694, 128
          %2848 = vxpose.xlu0.b32.cont [2/16] %v1700, 128
          %2849 = vxpose.xlu0.b32.cont [3/16] %v1706, 128
          %2850 = vxpose.xlu0.b32.cont [4/16] %v1712, 128
          %2851 = vxpose.xlu0.b32.cont [5/16] %v1718, 128
          %2852 = vxpose.xlu0.b32.cont [6/16] %v1724, 128
          %2853 = vxpose.xlu0.b32.cont [7/16] %v1730, 128
          %2854 = vxpose.xlu0.b32.cont [8/16] %v1736, 128
          %2855 = vxpose.xlu0.b32.cont [9/16] %v1742, 128
          %2856 = vxpose.xlu0.b32.cont [10/16] %v1748, 128
          %2857 = vxpose.xlu0.b32.cont [11/16] %v1754, 128
          %2858 = vxpose.xlu0.b32.cont [12/16] %v1760, 128
          %2859 = vxpose.xlu0.b32.cont [13/16] %v1766, 128
          %2860 = vxpose.xlu0.b32.cont [14/16] %v1772, 128
          %2861 = vxpose.xlu0.b32.cont [15/16] %v1778, 128
          %2862 = vxpose.xlu0.b32.end [16/16] %v1784, 128
          %v2863 = vpop.trf.xlu0
          %v2864 = vpop.trf.xlu0
          %v2865 = vpop.trf.xlu0
          %v2866 = vpop.trf.xlu0
          %v2867 = vpop.trf.xlu0
          %v2868 = vpop.trf.xlu0
          %v2869 = vpop.trf.xlu0
          %v2870 = vpop.trf.xlu0
          %v2871 = vpop.trf.xlu0
          %v2872 = vpop.trf.xlu0
          %v2873 = vpop.trf.xlu0
          %v2874 = vpop.trf.xlu0
          %v2875 = vpop.trf.xlu0
          %v2876 = vpop.trf.xlu0
          %v2877 = vpop.trf.xlu0
          %v2878 = vpop.trf.xlu0
          %2879 = vxpose.xlu0.b32.start [1/16] %v1853, 128
          %2880 = vxpose.xlu0.b32.cont [2/16] %v1859, 128
          %2881 = vxpose.xlu0.b32.cont [3/16] %v1865, 128
          %2882 = vxpose.xlu0.b32.cont [4/16] %v1871, 128
          %2883 = vxpose.xlu0.b32.cont [5/16] %v1877, 128
          %2884 = vxpose.xlu0.b32.cont [6/16] %v1883, 128
          %2885 = vxpose.xlu0.b32.cont [7/16] %v1889, 128
          %2886 = vxpose.xlu0.b32.cont [8/16] %v1895, 128
          %2887 = vxpose.xlu0.b32.cont [9/16] %v1901, 128
          %2888 = vxpose.xlu0.b32.cont [10/16] %v1907, 128
          %2889 = vxpose.xlu0.b32.cont [11/16] %v1913, 128
          %2890 = vxpose.xlu0.b32.cont [12/16] %v1919, 128
          %2891 = vxpose.xlu0.b32.cont [13/16] %v1925, 128
          %2892 = vxpose.xlu0.b32.cont [14/16] %v1931, 128
          %2893 = vxpose.xlu0.b32.cont [15/16] %v1937, 128
          %2894 = vxpose.xlu0.b32.end [16/16] %v1943, 128
          %v2895 = vpop.trf.xlu0
          %v2896 = vpop.trf.xlu0
          %v2897 = vpop.trf.xlu0
          %v2898 = vpop.trf.xlu0
          %v2899 = vpop.trf.xlu0
          %v2900 = vpop.trf.xlu0
          %v2901 = vpop.trf.xlu0
          %v2902 = vpop.trf.xlu0
          %v2903 = vpop.trf.xlu0
          %v2904 = vpop.trf.xlu0
          %v2905 = vpop.trf.xlu0
          %v2906 = vpop.trf.xlu0
          %v2907 = vpop.trf.xlu0
          %v2908 = vpop.trf.xlu0
          %v2909 = vpop.trf.xlu0
          %v2910 = vpop.trf.xlu0
          %2911 = vxpose.xlu0.b32.start [1/16] %v1855, 128
          %2912 = vxpose.xlu0.b32.cont [2/16] %v1861, 128
          %2913 = vxpose.xlu0.b32.cont [3/16] %v1867, 128
          %2914 = vxpose.xlu0.b32.cont [4/16] %v1873, 128
          %2915 = vxpose.xlu0.b32.cont [5/16] %v1879, 128
          %2916 = vxpose.xlu0.b32.cont [6/16] %v1885, 128
          %2917 = vxpose.xlu0.b32.cont [7/16] %v1891, 128
          %2918 = vxpose.xlu0.b32.cont [8/16] %v1897, 128
          %2919 = vxpose.xlu0.b32.cont [9/16] %v1903, 128
          %2920 = vxpose.xlu0.b32.cont [10/16] %v1909, 128
          %2921 = vxpose.xlu0.b32.cont [11/16] %v1915, 128
          %2922 = vxpose.xlu0.b32.cont [12/16] %v1921, 128
          %2923 = vxpose.xlu0.b32.cont [13/16] %v1927, 128
          %2924 = vxpose.xlu0.b32.cont [14/16] %v1933, 128
          %2925 = vxpose.xlu0.b32.cont [15/16] %v1939, 128
          %2926 = vxpose.xlu0.b32.end [16/16] %v1945, 128
          %v2927 = vpop.trf.xlu0
          %v2928 = vpop.trf.xlu0
          %v2929 = vpop.trf.xlu0
          %v2930 = vpop.trf.xlu0
          %v2931 = vpop.trf.xlu0
          %v2932 = vpop.trf.xlu0
          %v2933 = vpop.trf.xlu0
          %v2934 = vpop.trf.xlu0
          %v2935 = vpop.trf.xlu0
          %v2936 = vpop.trf.xlu0
          %v2937 = vpop.trf.xlu0
          %v2938 = vpop.trf.xlu0
          %v2939 = vpop.trf.xlu0
          %v2940 = vpop.trf.xlu0
          %v2941 = vpop.trf.xlu0
          %v2942 = vpop.trf.xlu0
          %2943 = vmatprep.subr.mxu0 0.0
          %2944 = vmatpush1.xpose.msra.mxu0 %v2783
          %2945 = vmatprep.subr.mxu0 0.0
          %2946 = vmatpush1.xpose.msra.mxu0 %v2784
          %2947 = vmatprep.subr.mxu0 0.0
          %2948 = vmatpush1.xpose.msra.mxu0 %v2785
          %2949 = vmatprep.subr.mxu0 0.0
          %2950 = vmatpush1.xpose.msra.mxu0 %v2786
          %2951 = vmatprep.subr.mxu0 0.0
          %2952 = vmatpush1.xpose.msra.mxu0 %v2787
          %2953 = vmatprep.subr.mxu0 0.0
          %2954 = vmatpush1.xpose.msra.mxu0 %v2788
          %2955 = vmatprep.subr.mxu0 0.0
          %2956 = vmatpush1.xpose.msra.mxu0 %v2789
          %2957 = vmatprep.subr.mxu0 0.0
          %2958 = vmatpush1.xpose.msra.mxu0 %v2790
          %2959 = vmatprep.subr.mxu0 0.0
          %2960 = vmatpush1.xpose.msra.mxu0 0.0
          %2961 = vmatprep.subr.mxu0 0.0
          %2962 = vmatpush1.xpose.msra.mxu0 0.0
          %2963 = vmatprep.subr.mxu0 0.0
          %2964 = vmatpush1.xpose.msra.mxu0 0.0
          %2965 = vmatprep.subr.mxu0 0.0
          %2966 = vmatpush1.xpose.msra.mxu0 0.0
          %2967 = vmatprep.subr.mxu0 0.0
          %2968 = vmatpush1.xpose.msra.mxu0 0.0
          %2969 = vmatprep.subr.mxu0 0.0
          %2970 = vmatpush1.xpose.msra.mxu0 0.0
          %2971 = vmatprep.subr.mxu0 0.0
          %2972 = vmatpush1.xpose.msra.mxu0 0.0
          %2973 = vmatprep.subr.mxu0 0.0
          %2974 = vmatpush1.xpose.msra.mxu0 0.0
          %2975 = vmatprep.subr.mxu0 0.0
          %2976 = vmatpush1.xpose.msra.mxu0 0.0
          %2977 = vmatprep.subr.mxu0 0.0
          %2978 = vmatpush1.xpose.msra.mxu0 0.0
          %2979 = vmatprep.subr.mxu0 0.0
          %2980 = vmatpush1.xpose.msra.mxu0 0.0
          %2981 = vmatprep.subr.mxu0 0.0
          %2982 = vmatpush1.xpose.msra.mxu0 0.0
          %2983 = vmatprep.subr.mxu0 0.0
          %2984 = vmatpush1.xpose.msra.mxu0 0.0
          %2985 = vmatprep.subr.mxu0 0.0
          %2986 = vmatpush1.xpose.msra.mxu0 0.0
          %2987 = vmatprep.subr.mxu0 0.0
          %2988 = vmatpush1.xpose.msra.mxu0 0.0
          %2989 = vmatprep.subr.mxu0 0.0
          %2990 = vmatpush1.xpose.msra.mxu0 0.0
          %2991 = vmatprep.subr.mxu0 0.0
          %2992 = vmatpush1.xpose.msra.mxu0 0.0
          %2993 = vmatprep.subr.mxu0 0.0
          %2994 = vmatpush1.xpose.msra.mxu0 0.0
          %2995 = vmatprep.subr.mxu0 0.0
          %2996 = vmatpush1.xpose.msra.mxu0 0.0
          %2997 = vmatprep.subr.mxu0 0.0
          %2998 = vmatpush1.xpose.msra.mxu0 0.0
          %2999 = vmatprep.subr.mxu0 0.0
          %3000 = vmatpush1.xpose.msra.mxu0 0.0
          %3001 = vmatprep.subr.mxu0 0.0
          %3002 = vmatpush1.xpose.msra.mxu0 0.0
          %3003 = vmatprep.subr.mxu0 0.0
          %3004 = vmatpush1.xpose.msra.mxu0 0.0
          %3005 = vmatprep.subr.mxu0 0.0
          %3006 = vmatpush1.xpose.msra.mxu0 0.0
          %3007 = vmatprep.mubr.f32.mxu0 0.0
          %3008 = vmatmul.mubr.f32.gmra.mrb[0].mxu0 %v2831
          %v3009 = vpop.f32.mrb[0].mxu0
          %v3010 = vadd.f32 0.0, %v3009
          %v3011 = vpop.f32.mrb[0].mxu0
          %3012 = vmatprep.mubr.f32.mxu0 0.0
          %3013 = vmatmul.mubr.f32.gmra.mrb[0].mxu0 %v2832
          %v3014 = vpop.f32.mrb[0].mxu0
          %v3015 = vadd.f32 0.0, %v3014
          %v3016 = vpop.f32.mrb[0].mxu0
          %3017 = vmatprep.mubr.f32.mxu0 0.0
          %3018 = vmatmul.mubr.f32.gmra.mrb[0].mxu0 %v2833
          %v3019 = vpop.f32.mrb[0].mxu0
          %v3020 = vadd.f32 0.0, %v3019
          %v3021 = vpop.f32.mrb[0].mxu0
          %3022 = vmatprep.mubr.f32.mxu0 0.0
          %3023 = vmatmul.mubr.f32.gmra.mrb[0].mxu0 %v2834
          %v3024 = vpop.f32.mrb[0].mxu0
          %v3025 = vadd.f32 0.0, %v3024
          %v3026 = vpop.f32.mrb[0].mxu0
          %3027 = vmatprep.mubr.f32.mxu0 0.0
          %3028 = vmatmul.mubr.f32.gmra.mrb[0].mxu0 %v2835
          %v3029 = vpop.f32.mrb[0].mxu0
          %v3030 = vadd.f32 0.0, %v3029
          %v3031 = vpop.f32.mrb[0].mxu0
          %3032 = vmatprep.mubr.f32.mxu0 0.0
          %3033 = vmatmul.mubr.f32.gmra.mrb[0].mxu0 %v2836
          %v3034 = vpop.f32.mrb[0].mxu0
          %v3035 = vadd.f32 0.0, %v3034
          %v3036 = vpop.f32.mrb[0].mxu0
          %3037 = vmatprep.mubr.f32.mxu0 0.0
          %3038 = vmatmul.mubr.f32.gmra.mrb[0].mxu0 %v2837
          %v3039 = vpop.f32.mrb[0].mxu0
          %v3040 = vadd.f32 0.0, %v3039
          %v3041 = vpop.f32.mrb[0].mxu0
          %3042 = vmatprep.mubr.f32.mxu0 0.0
          %3043 = vmatmul.mubr.f32.gmra.mrb[0].mxu0 %v2838
          %v3044 = vpop.f32.mrb[0].mxu0
          %v3045 = vadd.f32 0.0, %v3044
          %v3046 = vpop.f32.mrb[0].mxu0
          %3047 = vmatprep.mubr.f32.mxu0 0.0
          %3048 = vmatmul.mubr.f32.gmra.mrb[0].mxu0 %v2839
          %v3049 = vpop.f32.mrb[0].mxu0
          %v3050 = vadd.f32 0.0, %v3049
          %v3051 = vpop.f32.mrb[0].mxu0
          %3052 = vmatprep.mubr.f32.mxu0 0.0
          %3053 = vmatmul.mubr.f32.gmra.mrb[0].mxu0 %v2840
          %v3054 = vpop.f32.mrb[0].mxu0
          %v3055 = vadd.f32 0.0, %v3054
          %v3056 = vpop.f32.mrb[0].mxu0
          %3057 = vmatprep.mubr.f32.mxu0 0.0
          %3058 = vmatmul.mubr.f32.gmra.mrb[0].mxu0 %v2841
          %v3059 = vpop.f32.mrb[0].mxu0
          %v3060 = vadd.f32 0.0, %v3059
          %v3061 = vpop.f32.mrb[0].mxu0
          %3062 = vmatprep.mubr.f32.mxu0 0.0
          %3063 = vmatmul.mubr.f32.gmra.mrb[0].mxu0 %v2842
          %v3064 = vpop.f32.mrb[0].mxu0
          %v3065 = vadd.f32 0.0, %v3064
          %v3066 = vpop.f32.mrb[0].mxu0
          %3067 = vmatprep.mubr.f32.mxu0 0.0
          %3068 = vmatmul.mubr.f32.gmra.mrb[0].mxu0 %v2843
          %v3069 = vpop.f32.mrb[0].mxu0
          %v3070 = vadd.f32 0.0, %v3069
          %v3071 = vpop.f32.mrb[0].mxu0
          %3072 = vmatprep.mubr.f32.mxu0 0.0
          %3073 = vmatmul.mubr.f32.gmra.mrb[0].mxu0 %v2844
          %v3074 = vpop.f32.mrb[0].mxu0
          %v3075 = vadd.f32 0.0, %v3074
          %v3076 = vpop.f32.mrb[0].mxu0
          %3077 = vmatprep.mubr.f32.mxu0 0.0
          %3078 = vmatmul.mubr.f32.gmra.mrb[0].mxu0 %v2845
          %v3079 = vpop.f32.mrb[0].mxu0
          %v3080 = vadd.f32 0.0, %v3079
          %v3081 = vpop.f32.mrb[0].mxu0
          %3082 = vmatprep.mubr.f32.mxu0 0.0
          %3083 = vmatmul.mubr.f32.gmra.mrb[0].mxu0 %v2846
          %v3084 = vpop.f32.mrb[0].mxu0
          %v3085 = vadd.f32 0.0, %v3084
          %v3086 = vpop.f32.mrb[0].mxu0
          %3087 = vdwg.mxu0
          %3088 = vmatprep.subr.mxu0 0.0
          %3089 = vmatpush1.xpose.msra.mxu0 %v2791
          %3090 = vmatprep.subr.mxu0 0.0
          %3091 = vmatpush1.xpose.msra.mxu0 %v2792
          %3092 = vmatprep.subr.mxu0 0.0
          %3093 = vmatpush1.xpose.msra.mxu0 %v2793
          %3094 = vmatprep.subr.mxu0 0.0
          %3095 = vmatpush1.xpose.msra.mxu0 %v2794
          %3096 = vmatprep.subr.mxu0 0.0
          %3097 = vmatpush1.xpose.msra.mxu0 %v2795
          %3098 = vmatprep.subr.mxu0 0.0
          %3099 = vmatpush1.xpose.msra.mxu0 %v2796
          %3100 = vmatprep.subr.mxu0 0.0
          %3101 = vmatpush1.xpose.msra.mxu0 %v2797
          %3102 = vmatprep.subr.mxu0 0.0
          %3103 = vmatpush1.xpose.msra.mxu0 %v2798
          %3104 = vmatprep.subr.mxu0 0.0
          %3105 = vmatpush1.xpose.msra.mxu0 0.0
          %3106 = vmatprep.subr.mxu0 0.0
          %3107 = vmatpush1.xpose.msra.mxu0 0.0
          %3108 = vmatprep.subr.mxu0 0.0
          %3109 = vmatpush1.xpose.msra.mxu0 0.0
          %3110 = vmatprep.subr.mxu0 0.0
          %3111 = vmatpush1.xpose.msra.mxu0 0.0
          %3112 = vmatprep.subr.mxu0 0.0
          %3113 = vmatpush1.xpose.msra.mxu0 0.0
          %3114 = vmatprep.subr.mxu0 0.0
          %3115 = vmatpush1.xpose.msra.mxu0 0.0
          %3116 = vmatprep.subr.mxu0 0.0
          %3117 = vmatpush1.xpose.msra.mxu0 0.0
          %3118 = vmatprep.subr.mxu0 0.0
          %3119 = vmatpush1.xpose.msra.mxu0 0.0
          %3120 = vmatprep.subr.mxu0 0.0
          %3121 = vmatpush1.xpose.msra.mxu0 0.0
          %3122 = vmatprep.subr.mxu0 0.0
          %3123 = vmatpush1.xpose.msra.mxu0 0.0
          %3124 = vmatprep.subr.mxu0 0.0
          %3125 = vmatpush1.xpose.msra.mxu0 0.0
          %3126 = vmatprep.subr.mxu0 0.0
          %3127 = vmatpush1.xpose.msra.mxu0 0.0
          %3128 = vmatprep.subr.mxu0 0.0
          %3129 = vmatpush1.xpose.msra.mxu0 0.0
          %3130 = vmatprep.subr.mxu0 0.0
          %3131 = vmatpush1.xpose.msra.mxu0 0.0
          %3132 = vmatprep.subr.mxu0 0.0
          %3133 = vmatpush1.xpose.msra.mxu0 0.0
          %3134 = vmatprep.subr.mxu0 0.0
          %3135 = vmatpush1.xpose.msra.mxu0 0.0
          %3136 = vmatprep.subr.mxu0 0.0
          %3137 = vmatpush1.xpose.msra.mxu0 0.0
          %3138 = vmatprep.subr.mxu0 0.0
          %3139 = vmatpush1.xpose.msra.mxu0 0.0
          %3140 = vmatprep.subr.mxu0 0.0
          %3141 = vmatpush1.xpose.msra.mxu0 0.0
          %3142 = vmatprep.subr.mxu0 0.0
          %3143 = vmatpush1.xpose.msra.mxu0 0.0
          %3144 = vmatprep.subr.mxu0 0.0
          %3145 = vmatpush1.xpose.msra.mxu0 0.0
          %3146 = vmatprep.subr.mxu0 0.0
          %3147 = vmatpush1.xpose.msra.mxu0 0.0
          %3148 = vmatprep.subr.mxu0 0.0
          %3149 = vmatpush1.xpose.msra.mxu0 0.0
          %3150 = vmatprep.subr.mxu0 0.0
          %3151 = vmatpush1.xpose.msra.mxu0 0.0
          %3152 = vmatprep.mubr.f32.mxu0 0.0
          %3153 = vmatmul.mubr.f32.gmra.mrb[0].mxu0 %v2863
          %v3154 = vpop.f32.mrb[0].mxu0
          %v3155 = vadd.f32 0.0, %v3154
          %v3156 = vpop.f32.mrb[0].mxu0
          %3157 = vmatprep.mubr.f32.mxu0 0.0
          %3158 = vmatmul.mubr.f32.gmra.mrb[0].mxu0 %v2864
          %v3159 = vpop.f32.mrb[0].mxu0
          %v3160 = vadd.f32 0.0, %v3159
          %v3161 = vpop.f32.mrb[0].mxu0
          %3162 = vmatprep.mubr.f32.mxu0 0.0
          %3163 = vmatmul.mubr.f32.gmra.mrb[0].mxu0 %v2865
          %v3164 = vpop.f32.mrb[0].mxu0
          %v3165 = vadd.f32 0.0, %v3164
          %v3166 = vpop.f32.mrb[0].mxu0
          %3167 = vmatprep.mubr.f32.mxu0 0.0
          %3168 = vmatmul.mubr.f32.gmra.mrb[0].mxu0 %v2866
          %v3169 = vpop.f32.mrb[0].mxu0
          %v3170 = vadd.f32 0.0, %v3169
          %v3171 = vpop.f32.mrb[0].mxu0
          %3172 = vmatprep.mubr.f32.mxu0 0.0
          %3173 = vmatmul.mubr.f32.gmra.mrb[0].mxu0 %v2867
          %v3174 = vpop.f32.mrb[0].mxu0
          %v3175 = vadd.f32 0.0, %v3174
          %v3176 = vpop.f32.mrb[0].mxu0
          %3177 = vmatprep.mubr.f32.mxu0 0.0
          %3178 = vmatmul.mubr.f32.gmra.mrb[0].mxu0 %v2868
          %v3179 = vpop.f32.mrb[0].mxu0
          %v3180 = vadd.f32 0.0, %v3179
          %v3181 = vpop.f32.mrb[0].mxu0
          %3182 = vmatprep.mubr.f32.mxu0 0.0
          %3183 = vmatmul.mubr.f32.gmra.mrb[0].mxu0 %v2869
          %v3184 = vpop.f32.mrb[0].mxu0
          %v3185 = vadd.f32 0.0, %v3184
          %v3186 = vpop.f32.mrb[0].mxu0
          %3187 = vmatprep.mubr.f32.mxu0 0.0
          %3188 = vmatmul.mubr.f32.gmra.mrb[0].mxu0 %v2870
          %v3189 = vpop.f32.mrb[0].mxu0
          %v3190 = vadd.f32 0.0, %v3189
          %v3191 = vpop.f32.mrb[0].mxu0
          %3192 = vmatprep.mubr.f32.mxu0 0.0
          %3193 = vmatmul.mubr.f32.gmra.mrb[0].mxu0 %v2871
          %v3194 = vpop.f32.mrb[0].mxu0
          %v3195 = vadd.f32 0.0, %v3194
          %v3196 = vpop.f32.mrb[0].mxu0
          %3197 = vmatprep.mubr.f32.mxu0 0.0
          %3198 = vmatmul.mubr.f32.gmra.mrb[0].mxu0 %v2872
          %v3199 = vpop.f32.mrb[0].mxu0
          %v3200 = vadd.f32 0.0, %v3199
          %v3201 = vpop.f32.mrb[0].mxu0
          %3202 = vmatprep.mubr.f32.mxu0 0.0
          %3203 = vmatmul.mubr.f32.gmra.mrb[0].mxu0 %v2873
          %v3204 = vpop.f32.mrb[0].mxu0
          %v3205 = vadd.f32 0.0, %v3204
          %v3206 = vpop.f32.mrb[0].mxu0
          %3207 = vmatprep.mubr.f32.mxu0 0.0
          %3208 = vmatmul.mubr.f32.gmra.mrb[0].mxu0 %v2874
          %v3209 = vpop.f32.mrb[0].mxu0
          %v3210 = vadd.f32 0.0, %v3209
          %v3211 = vpop.f32.mrb[0].mxu0
          %3212 = vmatprep.mubr.f32.mxu0 0.0
          %3213 = vmatmul.mubr.f32.gmra.mrb[0].mxu0 %v2875
          %v3214 = vpop.f32.mrb[0].mxu0
          %v3215 = vadd.f32 0.0, %v3214
          %v3216 = vpop.f32.mrb[0].mxu0
          %3217 = vmatprep.mubr.f32.mxu0 0.0
          %3218 = vmatmul.mubr.f32.gmra.mrb[0].mxu0 %v2876
          %v3219 = vpop.f32.mrb[0].mxu0
          %v3220 = vadd.f32 0.0, %v3219
          %v3221 = vpop.f32.mrb[0].mxu0
          %3222 = vmatprep.mubr.f32.mxu0 0.0
          %3223 = vmatmul.mubr.f32.gmra.mrb[0].mxu0 %v2877
          %v3224 = vpop.f32.mrb[0].mxu0
          %v3225 = vadd.f32 0.0, %v3224
          %v3226 = vpop.f32.mrb[0].mxu0
          %3227 = vmatprep.mubr.f32.mxu0 0.0
          %3228 = vmatmul.mubr.f32.gmra.mrb[0].mxu0 %v2878
          %v3229 = vpop.f32.mrb[0].mxu0
          %v3230 = vadd.f32 0.0, %v3229
          %v3231 = vpop.f32.mrb[0].mxu0
          %3232 = vdwg.mxu0
          %3233 = vmatprep.subr.mxu0 0.0
          %3234 = vmatpush1.xpose.msra.mxu0 %v2799
          %3235 = vmatprep.subr.mxu0 0.0
          %3236 = vmatpush1.xpose.msra.mxu0 %v2800
          %3237 = vmatprep.subr.mxu0 0.0
          %3238 = vmatpush1.xpose.msra.mxu0 %v2801
          %3239 = vmatprep.subr.mxu0 0.0
          %3240 = vmatpush1.xpose.msra.mxu0 %v2802
          %3241 = vmatprep.subr.mxu0 0.0
          %3242 = vmatpush1.xpose.msra.mxu0 %v2803
          %3243 = vmatprep.subr.mxu0 0.0
          %3244 = vmatpush1.xpose.msra.mxu0 %v2804
          %3245 = vmatprep.subr.mxu0 0.0
          %3246 = vmatpush1.xpose.msra.mxu0 %v2805
          %3247 = vmatprep.subr.mxu0 0.0
          %3248 = vmatpush1.xpose.msra.mxu0 %v2806
          %3249 = vmatprep.subr.mxu0 0.0
          %3250 = vmatpush1.xpose.msra.mxu0 0.0
          %3251 = vmatprep.subr.mxu0 0.0
          %3252 = vmatpush1.xpose.msra.mxu0 0.0
          %3253 = vmatprep.subr.mxu0 0.0
          %3254 = vmatpush1.xpose.msra.mxu0 0.0
          %3255 = vmatprep.subr.mxu0 0.0
          %3256 = vmatpush1.xpose.msra.mxu0 0.0
          %3257 = vmatprep.subr.mxu0 0.0
          %3258 = vmatpush1.xpose.msra.mxu0 0.0
          %3259 = vmatprep.subr.mxu0 0.0
          %3260 = vmatpush1.xpose.msra.mxu0 0.0
          %3261 = vmatprep.subr.mxu0 0.0
          %3262 = vmatpush1.xpose.msra.mxu0 0.0
          %3263 = vmatprep.subr.mxu0 0.0
          %3264 = vmatpush1.xpose.msra.mxu0 0.0
          %3265 = vmatprep.subr.mxu0 0.0
          %3266 = vmatpush1.xpose.msra.mxu0 0.0
          %3267 = vmatprep.subr.mxu0 0.0
          %3268 = vmatpush1.xpose.msra.mxu0 0.0
          %3269 = vmatprep.subr.mxu0 0.0
          %3270 = vmatpush1.xpose.msra.mxu0 0.0
          %3271 = vmatprep.subr.mxu0 0.0
          %3272 = vmatpush1.xpose.msra.mxu0 0.0
          %3273 = vmatprep.subr.mxu0 0.0
          %3274 = vmatpush1.xpose.msra.mxu0 0.0
          %3275 = vmatprep.subr.mxu0 0.0
          %3276 = vmatpush1.xpose.msra.mxu0 0.0
          %3277 = vmatprep.subr.mxu0 0.0
          %3278 = vmatpush1.xpose.msra.mxu0 0.0
          %3279 = vmatprep.subr.mxu0 0.0
          %3280 = vmatpush1.xpose.msra.mxu0 0.0
          %3281 = vmatprep.subr.mxu0 0.0
          %3282 = vmatpush1.xpose.msra.mxu0 0.0
          %3283 = vmatprep.subr.mxu0 0.0
          %3284 = vmatpush1.xpose.msra.mxu0 0.0
          %3285 = vmatprep.subr.mxu0 0.0
          %3286 = vmatpush1.xpose.msra.mxu0 0.0
          %3287 = vmatprep.subr.mxu0 0.0
          %3288 = vmatpush1.xpose.msra.mxu0 0.0
          %3289 = vmatprep.subr.mxu0 0.0
          %3290 = vmatpush1.xpose.msra.mxu0 0.0
          %3291 = vmatprep.subr.mxu0 0.0
          %3292 = vmatpush1.xpose.msra.mxu0 0.0
          %3293 = vmatprep.subr.mxu0 0.0
          %3294 = vmatpush1.xpose.msra.mxu0 0.0
          %3295 = vmatprep.subr.mxu0 0.0
          %3296 = vmatpush1.xpose.msra.mxu0 0.0
          %3297 = vmatprep.mubr.f32.mxu0 0.0
          %3298 = vmatmul.mubr.f32.gmra.mrb[0].mxu0 %v2895
          %v3299 = vpop.f32.mrb[0].mxu0
          %v3300 = vadd.f32 0.0, %v3299
          %v3301 = vpop.f32.mrb[0].mxu0
          %3302 = vmatprep.mubr.f32.mxu0 0.0
          %3303 = vmatmul.mubr.f32.gmra.mrb[0].mxu0 %v2896
          %v3304 = vpop.f32.mrb[0].mxu0
          %v3305 = vadd.f32 0.0, %v3304
          %v3306 = vpop.f32.mrb[0].mxu0
          %3307 = vmatprep.mubr.f32.mxu0 0.0
          %3308 = vmatmul.mubr.f32.gmra.mrb[0].mxu0 %v2897
          %v3309 = vpop.f32.mrb[0].mxu0
          %v3310 = vadd.f32 0.0, %v3309
          %v3311 = vpop.f32.mrb[0].mxu0
          %3312 = vmatprep.mubr.f32.mxu0 0.0
          %3313 = vmatmul.mubr.f32.gmra.mrb[0].mxu0 %v2898
          %v3314 = vpop.f32.mrb[0].mxu0
          %v3315 = vadd.f32 0.0, %v3314
          %v3316 = vpop.f32.mrb[0].mxu0
          %3317 = vmatprep.mubr.f32.mxu0 0.0
          %3318 = vmatmul.mubr.f32.gmra.mrb[0].mxu0 %v2899
          %v3319 = vpop.f32.mrb[0].mxu0
          %v3320 = vadd.f32 0.0, %v3319
          %v3321 = vpop.f32.mrb[0].mxu0
          %3322 = vmatprep.mubr.f32.mxu0 0.0
          %3323 = vmatmul.mubr.f32.gmra.mrb[0].mxu0 %v2900
          %v3324 = vpop.f32.mrb[0].mxu0
          %v3325 = vadd.f32 0.0, %v3324
          %v3326 = vpop.f32.mrb[0].mxu0
          %3327 = vmatprep.mubr.f32.mxu0 0.0
          %3328 = vmatmul.mubr.f32.gmra.mrb[0].mxu0 %v2901
          %v3329 = vpop.f32.mrb[0].mxu0
          %v3330 = vadd.f32 0.0, %v3329
          %v3331 = vpop.f32.mrb[0].mxu0
          %3332 = vmatprep.mubr.f32.mxu0 0.0
          %3333 = vmatmul.mubr.f32.gmra.mrb[0].mxu0 %v2902
          %v3334 = vpop.f32.mrb[0].mxu0
          %v3335 = vadd.f32 0.0, %v3334
          %v3336 = vpop.f32.mrb[0].mxu0
          %3337 = vmatprep.mubr.f32.mxu0 0.0
          %3338 = vmatmul.mubr.f32.gmra.mrb[0].mxu0 %v2903
          %v3339 = vpop.f32.mrb[0].mxu0
          %v3340 = vadd.f32 0.0, %v3339
          %v3341 = vpop.f32.mrb[0].mxu0
          %3342 = vmatprep.mubr.f32.mxu0 0.0
          %3343 = vmatmul.mubr.f32.gmra.mrb[0].mxu0 %v2904
          %v3344 = vpop.f32.mrb[0].mxu0
          %v3345 = vadd.f32 0.0, %v3344
          %v3346 = vpop.f32.mrb[0].mxu0
          %3347 = vmatprep.mubr.f32.mxu0 0.0
          %3348 = vmatmul.mubr.f32.gmra.mrb[0].mxu0 %v2905
          %v3349 = vpop.f32.mrb[0].mxu0
          %v3350 = vadd.f32 0.0, %v3349
          %v3351 = vpop.f32.mrb[0].mxu0
          %3352 = vmatprep.mubr.f32.mxu0 0.0
          %3353 = vmatmul.mubr.f32.gmra.mrb[0].mxu0 %v2906
          %v3354 = vpop.f32.mrb[0].mxu0
          %v3355 = vadd.f32 0.0, %v3354
          %v3356 = vpop.f32.mrb[0].mxu0
          %3357 = vmatprep.mubr.f32.mxu0 0.0
          %3358 = vmatmul.mubr.f32.gmra.mrb[0].mxu0 %v2907
          %v3359 = vpop.f32.mrb[0].mxu0
          %v3360 = vadd.f32 0.0, %v3359
          %v3361 = vpop.f32.mrb[0].mxu0
          %3362 = vmatprep.mubr.f32.mxu0 0.0
          %3363 = vmatmul.mubr.f32.gmra.mrb[0].mxu0 %v2908
          %v3364 = vpop.f32.mrb[0].mxu0
          %v3365 = vadd.f32 0.0, %v3364
          %v3366 = vpop.f32.mrb[0].mxu0
          %3367 = vmatprep.mubr.f32.mxu0 0.0
          %3368 = vmatmul.mubr.f32.gmra.mrb[0].mxu0 %v2909
          %v3369 = vpop.f32.mrb[0].mxu0
          %v3370 = vadd.f32 0.0, %v3369
          %v3371 = vpop.f32.mrb[0].mxu0
          %3372 = vmatprep.mubr.f32.mxu0 0.0
          %3373 = vmatmul.mubr.f32.gmra.mrb[0].mxu0 %v2910
          %v3374 = vpop.f32.mrb[0].mxu0
          %v3375 = vadd.f32 0.0, %v3374
          %v3376 = vpop.f32.mrb[0].mxu0
          %3377 = vdwg.mxu0
          %3378 = vmatprep.subr.mxu0 0.0
          %3379 = vmatpush1.xpose.msra.mxu0 %v2807
          %3380 = vmatprep.subr.mxu0 0.0
          %3381 = vmatpush1.xpose.msra.mxu0 %v2808
          %3382 = vmatprep.subr.mxu0 0.0
          %3383 = vmatpush1.xpose.msra.mxu0 %v2809
          %3384 = vmatprep.subr.mxu0 0.0
          %3385 = vmatpush1.xpose.msra.mxu0 %v2810
          %3386 = vmatprep.subr.mxu0 0.0
          %3387 = vmatpush1.xpose.msra.mxu0 %v2811
          %3388 = vmatprep.subr.mxu0 0.0
          %3389 = vmatpush1.xpose.msra.mxu0 %v2812
          %3390 = vmatprep.subr.mxu0 0.0
          %3391 = vmatpush1.xpose.msra.mxu0 %v2813
          %3392 = vmatprep.subr.mxu0 0.0
          %3393 = vmatpush1.xpose.msra.mxu0 %v2814
          %3394 = vmatprep.subr.mxu0 0.0
          %3395 = vmatpush1.xpose.msra.mxu0 0.0
          %3396 = vmatprep.subr.mxu0 0.0
          %3397 = vmatpush1.xpose.msra.mxu0 0.0
          %3398 = vmatprep.subr.mxu0 0.0
          %3399 = vmatpush1.xpose.msra.mxu0 0.0
          %3400 = vmatprep.subr.mxu0 0.0
          %3401 = vmatpush1.xpose.msra.mxu0 0.0
          %3402 = vmatprep.subr.mxu0 0.0
          %3403 = vmatpush1.xpose.msra.mxu0 0.0
          %3404 = vmatprep.subr.mxu0 0.0
          %3405 = vmatpush1.xpose.msra.mxu0 0.0
          %3406 = vmatprep.subr.mxu0 0.0
          %3407 = vmatpush1.xpose.msra.mxu0 0.0
          %3408 = vmatprep.subr.mxu0 0.0
          %3409 = vmatpush1.xpose.msra.mxu0 0.0
          %3410 = vmatprep.subr.mxu0 0.0
          %3411 = vmatpush1.xpose.msra.mxu0 0.0
          %3412 = vmatprep.subr.mxu0 0.0
          %3413 = vmatpush1.xpose.msra.mxu0 0.0
          %3414 = vmatprep.subr.mxu0 0.0
          %3415 = vmatpush1.xpose.msra.mxu0 0.0
          %3416 = vmatprep.subr.mxu0 0.0
          %3417 = vmatpush1.xpose.msra.mxu0 0.0
          %3418 = vmatprep.subr.mxu0 0.0
          %3419 = vmatpush1.xpose.msra.mxu0 0.0
          %3420 = vmatprep.subr.mxu0 0.0
          %3421 = vmatpush1.xpose.msra.mxu0 0.0
          %3422 = vmatprep.subr.mxu0 0.0
          %3423 = vmatpush1.xpose.msra.mxu0 0.0
          %3424 = vmatprep.subr.mxu0 0.0
          %3425 = vmatpush1.xpose.msra.mxu0 0.0
          %3426 = vmatprep.subr.mxu0 0.0
          %3427 = vmatpush1.xpose.msra.mxu0 0.0
          %3428 = vmatprep.subr.mxu0 0.0
          %3429 = vmatpush1.xpose.msra.mxu0 0.0
          %3430 = vmatprep.subr.mxu0 0.0
          %3431 = vmatpush1.xpose.msra.mxu0 0.0
          %3432 = vmatprep.subr.mxu0 0.0
          %3433 = vmatpush1.xpose.msra.mxu0 0.0
          %3434 = vmatprep.subr.mxu0 0.0
          %3435 = vmatpush1.xpose.msra.mxu0 0.0
          %3436 = vmatprep.subr.mxu0 0.0
          %3437 = vmatpush1.xpose.msra.mxu0 0.0
          %3438 = vmatprep.subr.mxu0 0.0
          %3439 = vmatpush1.xpose.msra.mxu0 0.0
          %3440 = vmatprep.subr.mxu0 0.0
          %3441 = vmatpush1.xpose.msra.mxu0 0.0
          %3442 = vmatprep.mubr.f32.mxu0 0.0
          %3443 = vmatmul.mubr.f32.gmra.mrb[0].mxu0 %v2927
          %v3444 = vpop.f32.mrb[0].mxu0
          %v3445 = vadd.f32 0.0, %v3444
          %v3446 = vpop.f32.mrb[0].mxu0
          %3447 = vmatprep.mubr.f32.mxu0 0.0
          %3448 = vmatmul.mubr.f32.gmra.mrb[0].mxu0 %v2928
          %v3449 = vpop.f32.mrb[0].mxu0
          %v3450 = vadd.f32 0.0, %v3449
          %v3451 = vpop.f32.mrb[0].mxu0
          %3452 = vmatprep.mubr.f32.mxu0 0.0
          %3453 = vmatmul.mubr.f32.gmra.mrb[0].mxu0 %v2929
          %v3454 = vpop.f32.mrb[0].mxu0
          %v3455 = vadd.f32 0.0, %v3454
          %v3456 = vpop.f32.mrb[0].mxu0
          %3457 = vmatprep.mubr.f32.mxu0 0.0
          %3458 = vmatmul.mubr.f32.gmra.mrb[0].mxu0 %v2930
          %v3459 = vpop.f32.mrb[0].mxu0
          %v3460 = vadd.f32 0.0, %v3459
          %v3461 = vpop.f32.mrb[0].mxu0
          %3462 = vmatprep.mubr.f32.mxu0 0.0
          %3463 = vmatmul.mubr.f32.gmra.mrb[0].mxu0 %v2931
          %v3464 = vpop.f32.mrb[0].mxu0
          %v3465 = vadd.f32 0.0, %v3464
          %v3466 = vpop.f32.mrb[0].mxu0
          %3467 = vmatprep.mubr.f32.mxu0 0.0
          %3468 = vmatmul.mubr.f32.gmra.mrb[0].mxu0 %v2932
          %v3469 = vpop.f32.mrb[0].mxu0
          %v3470 = vadd.f32 0.0, %v3469
          %v3471 = vpop.f32.mrb[0].mxu0
          %3472 = vmatprep.mubr.f32.mxu0 0.0
          %3473 = vmatmul.mubr.f32.gmra.mrb[0].mxu0 %v2933
          %v3474 = vpop.f32.mrb[0].mxu0
          %v3475 = vadd.f32 0.0, %v3474
          %v3476 = vpop.f32.mrb[0].mxu0
          %3477 = vmatprep.mubr.f32.mxu0 0.0
          %3478 = vmatmul.mubr.f32.gmra.mrb[0].mxu0 %v2934
          %v3479 = vpop.f32.mrb[0].mxu0
          %v3480 = vadd.f32 0.0, %v3479
          %v3481 = vpop.f32.mrb[0].mxu0
          %3482 = vmatprep.mubr.f32.mxu0 0.0
          %3483 = vmatmul.mubr.f32.gmra.mrb[0].mxu0 %v2935
          %v3484 = vpop.f32.mrb[0].mxu0
          %v3485 = vadd.f32 0.0, %v3484
          %v3486 = vpop.f32.mrb[0].mxu0
          %3487 = vmatprep.mubr.f32.mxu0 0.0
          %3488 = vmatmul.mubr.f32.gmra.mrb[0].mxu0 %v2936
          %v3489 = vpop.f32.mrb[0].mxu0
          %v3490 = vadd.f32 0.0, %v3489
          %v3491 = vpop.f32.mrb[0].mxu0
          %3492 = vmatprep.mubr.f32.mxu0 0.0
          %3493 = vmatmul.mubr.f32.gmra.mrb[0].mxu0 %v2937
          %v3494 = vpop.f32.mrb[0].mxu0
          %v3495 = vadd.f32 0.0, %v3494
          %v3496 = vpop.f32.mrb[0].mxu0
          %3497 = vmatprep.mubr.f32.mxu0 0.0
          %3498 = vmatmul.mubr.f32.gmra.mrb[0].mxu0 %v2938
          %v3499 = vpop.f32.mrb[0].mxu0
          %v3500 = vadd.f32 0.0, %v3499
          %v3501 = vpop.f32.mrb[0].mxu0
          %3502 = vmatprep.mubr.f32.mxu0 0.0
          %3503 = vmatmul.mubr.f32.gmra.mrb[0].mxu0 %v2939
          %v3504 = vpop.f32.mrb[0].mxu0
          %v3505 = vadd.f32 0.0, %v3504
          %v3506 = vpop.f32.mrb[0].mxu0
          %3507 = vmatprep.mubr.f32.mxu0 0.0
          %3508 = vmatmul.mubr.f32.gmra.mrb[0].mxu0 %v2940
          %v3509 = vpop.f32.mrb[0].mxu0
          %v3510 = vadd.f32 0.0, %v3509
          %v3511 = vpop.f32.mrb[0].mxu0
          %3512 = vmatprep.mubr.f32.mxu0 0.0
          %3513 = vmatmul.mubr.f32.gmra.mrb[0].mxu0 %v2941
          %v3514 = vpop.f32.mrb[0].mxu0
          %v3515 = vadd.f32 0.0, %v3514
          %v3516 = vpop.f32.mrb[0].mxu0
          %3517 = vmatprep.mubr.f32.mxu0 0.0
          %3518 = vmatmul.mubr.f32.gmra.mrb[0].mxu0 %v2942
          %v3519 = vpop.f32.mrb[0].mxu0
          %v3520 = vadd.f32 0.0, %v3519
          %v3521 = vpop.f32.mrb[0].mxu0
          %3522 = vdwg.mxu0
          %3523 = vxpose.xlu0.b32.start [1/16] %v3010, 128
          %3524 = vxpose.xlu0.b32.cont [2/16] %v3015, 128
          %3525 = vxpose.xlu0.b32.cont [3/16] %v3020, 128
          %3526 = vxpose.xlu0.b32.cont [4/16] %v3025, 128
          %3527 = vxpose.xlu0.b32.cont [5/16] %v3030, 128
          %3528 = vxpose.xlu0.b32.cont [6/16] %v3035, 128
          %3529 = vxpose.xlu0.b32.cont [7/16] %v3040, 128
          %3530 = vxpose.xlu0.b32.cont [8/16] %v3045, 128
          %3531 = vxpose.xlu0.b32.cont [9/16] %v3050, 128
          %3532 = vxpose.xlu0.b32.cont [10/16] %v3055, 128
          %3533 = vxpose.xlu0.b32.cont [11/16] %v3060, 128
          %3534 = vxpose.xlu0.b32.cont [12/16] %v3065, 128
          %3535 = vxpose.xlu0.b32.cont [13/16] %v3070, 128
          %3536 = vxpose.xlu0.b32.cont [14/16] %v3075, 128
          %3537 = vxpose.xlu0.b32.cont [15/16] %v3080, 128
          %3538 = vxpose.xlu0.b32.end [16/16] %v3085, 128
          %v3539 = vpop.trf.xlu0
          %v3540 = vpop.trf.xlu0
          %v3541 = vpop.trf.xlu0
          %v3542 = vpop.trf.xlu0
          %v3543 = vpop.trf.xlu0
          %v3544 = vpop.trf.xlu0
          %v3545 = vpop.trf.xlu0
          %v3546 = vpop.trf.xlu0
          %v3547 = vpop.trf.xlu0
          %v3548 = vpop.trf.xlu0
          %v3549 = vpop.trf.xlu0
          %v3550 = vpop.trf.xlu0
          %v3551 = vpop.trf.xlu0
          %v3552 = vpop.trf.xlu0
          %v3553 = vpop.trf.xlu0
          %v3554 = vpop.trf.xlu0
          %3555 = vxpose.xlu0.b32.start [1/16] %v3155, 128
          %3556 = vxpose.xlu0.b32.cont [2/16] %v3160, 128
          %3557 = vxpose.xlu0.b32.cont [3/16] %v3165, 128
          %3558 = vxpose.xlu0.b32.cont [4/16] %v3170, 128
          %3559 = vxpose.xlu0.b32.cont [5/16] %v3175, 128
          %3560 = vxpose.xlu0.b32.cont [6/16] %v3180, 128
          %3561 = vxpose.xlu0.b32.cont [7/16] %v3185, 128
          %3562 = vxpose.xlu0.b32.cont [8/16] %v3190, 128
          %3563 = vxpose.xlu0.b32.cont [9/16] %v3195, 128
          %3564 = vxpose.xlu0.b32.cont [10/16] %v3200, 128
          %3565 = vxpose.xlu0.b32.cont [11/16] %v3205, 128
          %3566 = vxpose.xlu0.b32.cont [12/16] %v3210, 128
          %3567 = vxpose.xlu0.b32.cont [13/16] %v3215, 128
          %3568 = vxpose.xlu0.b32.cont [14/16] %v3220, 128
          %3569 = vxpose.xlu0.b32.cont [15/16] %v3225, 128
          %3570 = vxpose.xlu0.b32.end [16/16] %v3230, 128
          %v3571 = vpop.trf.xlu0
          %v3572 = vpop.trf.xlu0
          %v3573 = vpop.trf.xlu0
          %v3574 = vpop.trf.xlu0
          %v3575 = vpop.trf.xlu0
          %v3576 = vpop.trf.xlu0
          %v3577 = vpop.trf.xlu0
          %v3578 = vpop.trf.xlu0
          %v3579 = vpop.trf.xlu0
          %v3580 = vpop.trf.xlu0
          %v3581 = vpop.trf.xlu0
          %v3582 = vpop.trf.xlu0
          %v3583 = vpop.trf.xlu0
          %v3584 = vpop.trf.xlu0
          %v3585 = vpop.trf.xlu0
          %v3586 = vpop.trf.xlu0
          %3587 = vxpose.xlu0.b32.start [1/16] %v3300, 128
          %3588 = vxpose.xlu0.b32.cont [2/16] %v3305, 128
          %3589 = vxpose.xlu0.b32.cont [3/16] %v3310, 128
          %3590 = vxpose.xlu0.b32.cont [4/16] %v3315, 128
          %3591 = vxpose.xlu0.b32.cont [5/16] %v3320, 128
          %3592 = vxpose.xlu0.b32.cont [6/16] %v3325, 128
          %3593 = vxpose.xlu0.b32.cont [7/16] %v3330, 128
          %3594 = vxpose.xlu0.b32.cont [8/16] %v3335, 128
          %3595 = vxpose.xlu0.b32.cont [9/16] %v3340, 128
          %3596 = vxpose.xlu0.b32.cont [10/16] %v3345, 128
          %3597 = vxpose.xlu0.b32.cont [11/16] %v3350, 128
          %3598 = vxpose.xlu0.b32.cont [12/16] %v3355, 128
          %3599 = vxpose.xlu0.b32.cont [13/16] %v3360, 128
          %3600 = vxpose.xlu0.b32.cont [14/16] %v3365, 128
          %3601 = vxpose.xlu0.b32.cont [15/16] %v3370, 128
          %3602 = vxpose.xlu0.b32.end [16/16] %v3375, 128
          %v3603 = vpop.trf.xlu0
          %v3604 = vpop.trf.xlu0
          %v3605 = vpop.trf.xlu0
          %v3606 = vpop.trf.xlu0
          %v3607 = vpop.trf.xlu0
          %v3608 = vpop.trf.xlu0
          %v3609 = vpop.trf.xlu0
          %v3610 = vpop.trf.xlu0
          %v3611 = vpop.trf.xlu0
          %v3612 = vpop.trf.xlu0
          %v3613 = vpop.trf.xlu0
          %v3614 = vpop.trf.xlu0
          %v3615 = vpop.trf.xlu0
          %v3616 = vpop.trf.xlu0
          %v3617 = vpop.trf.xlu0
          %v3618 = vpop.trf.xlu0
          %3619 = vxpose.xlu0.b32.start [1/16] %v3445, 128
          %3620 = vxpose.xlu0.b32.cont [2/16] %v3450, 128
          %3621 = vxpose.xlu0.b32.cont [3/16] %v3455, 128
          %3622 = vxpose.xlu0.b32.cont [4/16] %v3460, 128
          %3623 = vxpose.xlu0.b32.cont [5/16] %v3465, 128
          %3624 = vxpose.xlu0.b32.cont [6/16] %v3470, 128
          %3625 = vxpose.xlu0.b32.cont [7/16] %v3475, 128
          %3626 = vxpose.xlu0.b32.cont [8/16] %v3480, 128
          %3627 = vxpose.xlu0.b32.cont [9/16] %v3485, 128
          %3628 = vxpose.xlu0.b32.cont [10/16] %v3490, 128
          %3629 = vxpose.xlu0.b32.cont [11/16] %v3495, 128
          %3630 = vxpose.xlu0.b32.cont [12/16] %v3500, 128
          %3631 = vxpose.xlu0.b32.cont [13/16] %v3505, 128
          %3632 = vxpose.xlu0.b32.cont [14/16] %v3510, 128
          %3633 = vxpose.xlu0.b32.cont [15/16] %v3515, 128
          %3634 = vxpose.xlu0.b32.end [16/16] %v3520, 128
          %v3635 = vpop.trf.xlu0
          %v3636 = vpop.trf.xlu0
          %v3637 = vpop.trf.xlu0
          %v3638 = vpop.trf.xlu0
          %v3639 = vpop.trf.xlu0
          %v3640 = vpop.trf.xlu0
          %v3641 = vpop.trf.xlu0
          %v3642 = vpop.trf.xlu0
          %v3643 = vpop.trf.xlu0
          %v3644 = vpop.trf.xlu0
          %v3645 = vpop.trf.xlu0
          %v3646 = vpop.trf.xlu0
          %v3647 = vpop.trf.xlu0
          %v3648 = vpop.trf.xlu0
          %v3649 = vpop.trf.xlu0
          %v3650 = vpop.trf.xlu0
          %v3651 = vcombine.low %v3539, %v3603
          %v3652 = vcombine.high %v3539, %v3603
          %v3654 = vunpack.c.l.s4 1983009808
          %v3655 = vunpack.c.0.s8 %v3654
          %v3656 = vlaneseq
          %v3657 = vshrl.u32 %v3656, 7
          %v3658 = vsub.s32 %v3655, %v3657
          %v3659 = vrot.slane %v3651, %v3658
          %v3661 = vunpack.c.l.s4 1983009808
          %v3662 = vunpack.c.0.s8 %v3661
          %v3663 = vlaneseq
          %v3664 = vshrl.u32 %v3663, 7
          %v3665 = vsub.s32 %v3662, %v3664
          %v3666 = vrot.slane %v3652, %v3665
          %v3667 = vcombine.low %v3571, %v3635
          %v3668 = vcombine.high %v3571, %v3635
          %v3670 = vunpack.c.l.s4 1983009808
          %v3671 = vunpack.c.0.s8 %v3670
          %v3672 = vlaneseq
          %v3673 = vshrl.u32 %v3672, 7
          %v3674 = vsub.s32 %v3671, %v3673
          %v3675 = vrot.slane %v3667, %v3674
          %v3677 = vunpack.c.l.s4 1983009808
          %v3678 = vunpack.c.0.s8 %v3677
          %v3679 = vlaneseq
          %v3680 = vshrl.u32 %v3679, 7
          %v3681 = vsub.s32 %v3678, %v3680
          %v3682 = vrot.slane %v3668, %v3681
          %v3683 = vcombine.low %v3659, %v3675
          %v3684 = vcombine.high %v3659, %v3675
          %v3686 = vunpack.c.l.s4 1934713408
          %v3687 = vunpack.c.0.s8 %v3686
          %v3688 = vlaneseq
          %v3689 = vshrl.u32 %v3688, 7
          %v3690 = vsub.s32 %v3687, %v3689
          %v3691 = vrot.slane %v3683, %v3690
          %v3693 = vunpack.c.l.s4 1934713408
          %v3694 = vunpack.c.0.s8 %v3693
          %v3695 = vlaneseq
          %v3696 = vshrl.u32 %v3695, 7
          %v3697 = vsub.s32 %v3694, %v3696
          %v3698 = vrot.slane %v3684, %v3697
          %v3699 = vcombine.low %v3666, %v3682
          %v3700 = vcombine.high %v3666, %v3682
          %v3702 = vunpack.c.l.s4 1934713408
          %v3703 = vunpack.c.0.s8 %v3702
          %v3704 = vlaneseq
          %v3705 = vshrl.u32 %v3704, 7
          %v3706 = vsub.s32 %v3703, %v3705
          %v3707 = vrot.slane %v3699, %v3706
          %v3709 = vunpack.c.l.s4 1934713408
          %v3710 = vunpack.c.0.s8 %v3709
          %v3711 = vlaneseq
          %v3712 = vshrl.u32 %v3711, 7
          %v3713 = vsub.s32 %v3710, %v3712
          %v3714 = vrot.slane %v3700, %v3713
          %v3715 = vcombine.high %v3691, 0.0
          %v3716 = vcombine.high %v3698, 0.0
          %v3717 = vcombine.high %v3707, 0.0
          %v3718 = vcombine.high %v3714, 0.0
          %v3719 = vcombine.low %v3540, %v3604
          %v3720 = vcombine.high %v3540, %v3604
          %v3722 = vunpack.c.l.s4 1983009808
          %v3723 = vunpack.c.0.s8 %v3722
          %v3724 = vlaneseq
          %v3725 = vshrl.u32 %v3724, 7
          %v3726 = vsub.s32 %v3723, %v3725
          %v3727 = vrot.slane %v3719, %v3726
          %v3729 = vunpack.c.l.s4 1983009808
          %v3730 = vunpack.c.0.s8 %v3729
          %v3731 = vlaneseq
          %v3732 = vshrl.u32 %v3731, 7
          %v3733 = vsub.s32 %v3730, %v3732
          %v3734 = vrot.slane %v3720, %v3733
          %v3735 = vcombine.low %v3572, %v3636
          %v3736 = vcombine.high %v3572, %v3636
          %v3738 = vunpack.c.l.s4 1983009808
          %v3739 = vunpack.c.0.s8 %v3738
          %v3740 = vlaneseq
          %v3741 = vshrl.u32 %v3740, 7
          %v3742 = vsub.s32 %v3739, %v3741
          %v3743 = vrot.slane %v3735, %v3742
          %v3745 = vunpack.c.l.s4 1983009808
          %v3746 = vunpack.c.0.s8 %v3745
          %v3747 = vlaneseq
          %v3748 = vshrl.u32 %v3747, 7
          %v3749 = vsub.s32 %v3746, %v3748
          %v3750 = vrot.slane %v3736, %v3749
          %v3751 = vcombine.low %v3727, %v3743
          %v3752 = vcombine.high %v3727, %v3743
          %v3754 = vunpack.c.l.s4 1934713408
          %v3755 = vunpack.c.0.s8 %v3754
          %v3756 = vlaneseq
          %v3757 = vshrl.u32 %v3756, 7
          %v3758 = vsub.s32 %v3755, %v3757
          %v3759 = vrot.slane %v3751, %v3758
          %v3761 = vunpack.c.l.s4 1934713408
          %v3762 = vunpack.c.0.s8 %v3761
          %v3763 = vlaneseq
          %v3764 = vshrl.u32 %v3763, 7
          %v3765 = vsub.s32 %v3762, %v3764
          %v3766 = vrot.slane %v3752, %v3765
          %v3767 = vcombine.low %v3734, %v3750
          %v3768 = vcombine.high %v3734, %v3750
          %v3770 = vunpack.c.l.s4 1934713408
          %v3771 = vunpack.c.0.s8 %v3770
          %v3772 = vlaneseq
          %v3773 = vshrl.u32 %v3772, 7
          %v3774 = vsub.s32 %v3771, %v3773
          %v3775 = vrot.slane %v3767, %v3774
          %v3777 = vunpack.c.l.s4 1934713408
          %v3778 = vunpack.c.0.s8 %v3777
          %v3779 = vlaneseq
          %v3780 = vshrl.u32 %v3779, 7
          %v3781 = vsub.s32 %v3778, %v3780
          %v3782 = vrot.slane %v3768, %v3781
          %v3783 = vcombine.high %v3759, 0.0
          %v3784 = vcombine.high %v3766, 0.0
          %v3785 = vcombine.high %v3775, 0.0
          %v3786 = vcombine.high %v3782, 0.0
          %v3787 = vcombine.low %v3541, %v3605
          %v3788 = vcombine.high %v3541, %v3605
          %v3790 = vunpack.c.l.s4 1983009808
          %v3791 = vunpack.c.0.s8 %v3790
          %v3792 = vlaneseq
          %v3793 = vshrl.u32 %v3792, 7
          %v3794 = vsub.s32 %v3791, %v3793
          %v3795 = vrot.slane %v3787, %v3794
          %v3797 = vunpack.c.l.s4 1983009808
          %v3798 = vunpack.c.0.s8 %v3797
          %v3799 = vlaneseq
          %v3800 = vshrl.u32 %v3799, 7
          %v3801 = vsub.s32 %v3798, %v3800
          %v3802 = vrot.slane %v3788, %v3801
          %v3803 = vcombine.low %v3573, %v3637
          %v3804 = vcombine.high %v3573, %v3637
          %v3806 = vunpack.c.l.s4 1983009808
          %v3807 = vunpack.c.0.s8 %v3806
          %v3808 = vlaneseq
          %v3809 = vshrl.u32 %v3808, 7
          %v3810 = vsub.s32 %v3807, %v3809
          %v3811 = vrot.slane %v3803, %v3810
          %v3813 = vunpack.c.l.s4 1983009808
          %v3814 = vunpack.c.0.s8 %v3813
          %v3815 = vlaneseq
          %v3816 = vshrl.u32 %v3815, 7
          %v3817 = vsub.s32 %v3814, %v3816
          %v3818 = vrot.slane %v3804, %v3817
          %v3819 = vcombine.low %v3795, %v3811
          %v3820 = vcombine.high %v3795, %v3811
          %v3822 = vunpack.c.l.s4 1934713408
          %v3823 = vunpack.c.0.s8 %v3822
          %v3824 = vlaneseq
          %v3825 = vshrl.u32 %v3824, 7
          %v3826 = vsub.s32 %v3823, %v3825
          %v3827 = vrot.slane %v3819, %v3826
          %v3829 = vunpack.c.l.s4 1934713408
          %v3830 = vunpack.c.0.s8 %v3829
          %v3831 = vlaneseq
          %v3832 = vshrl.u32 %v3831, 7
          %v3833 = vsub.s32 %v3830, %v3832
          %v3834 = vrot.slane %v3820, %v3833
          %v3835 = vcombine.low %v3802, %v3818
          %v3836 = vcombine.high %v3802, %v3818
          %v3838 = vunpack.c.l.s4 1934713408
          %v3839 = vunpack.c.0.s8 %v3838
          %v3840 = vlaneseq
          %v3841 = vshrl.u32 %v3840, 7
          %v3842 = vsub.s32 %v3839, %v3841
          %v3843 = vrot.slane %v3835, %v3842
          %v3845 = vunpack.c.l.s4 1934713408
          %v3846 = vunpack.c.0.s8 %v3845
          %v3847 = vlaneseq
          %v3848 = vshrl.u32 %v3847, 7
          %v3849 = vsub.s32 %v3846, %v3848
          %v3850 = vrot.slane %v3836, %v3849
          %v3851 = vcombine.high %v3827, 0.0
          %v3852 = vcombine.high %v3834, 0.0
          %v3853 = vcombine.high %v3843, 0.0
          %v3854 = vcombine.high %v3850, 0.0
          %v3855 = vcombine.low %v3542, %v3606
          %v3856 = vcombine.high %v3542, %v3606
          %v3858 = vunpack.c.l.s4 1983009808
          %v3859 = vunpack.c.0.s8 %v3858
          %v3860 = vlaneseq
          %v3861 = vshrl.u32 %v3860, 7
          %v3862 = vsub.s32 %v3859, %v3861
          %v3863 = vrot.slane %v3855, %v3862
          %v3865 = vunpack.c.l.s4 1983009808
          %v3866 = vunpack.c.0.s8 %v3865
          %v3867 = vlaneseq
          %v3868 = vshrl.u32 %v3867, 7
          %v3869 = vsub.s32 %v3866, %v3868
          %v3870 = vrot.slane %v3856, %v3869
          %v3871 = vcombine.low %v3574, %v3638
          %v3872 = vcombine.high %v3574, %v3638
          %v3874 = vunpack.c.l.s4 1983009808
          %v3875 = vunpack.c.0.s8 %v3874
          %v3876 = vlaneseq
          %v3877 = vshrl.u32 %v3876, 7
          %v3878 = vsub.s32 %v3875, %v3877
          %v3879 = vrot.slane %v3871, %v3878
          %v3881 = vunpack.c.l.s4 1983009808
          %v3882 = vunpack.c.0.s8 %v3881
          %v3883 = vlaneseq
          %v3884 = vshrl.u32 %v3883, 7
          %v3885 = vsub.s32 %v3882, %v3884
          %v3886 = vrot.slane %v3872, %v3885
          %v3887 = vcombine.low %v3863, %v3879
          %v3888 = vcombine.high %v3863, %v3879
          %v3890 = vunpack.c.l.s4 1934713408
          %v3891 = vunpack.c.0.s8 %v3890
          %v3892 = vlaneseq
          %v3893 = vshrl.u32 %v3892, 7
          %v3894 = vsub.s32 %v3891, %v3893
          %v3895 = vrot.slane %v3887, %v3894
          %v3897 = vunpack.c.l.s4 1934713408
          %v3898 = vunpack.c.0.s8 %v3897
          %v3899 = vlaneseq
          %v3900 = vshrl.u32 %v3899, 7
          %v3901 = vsub.s32 %v3898, %v3900
          %v3902 = vrot.slane %v3888, %v3901
          %v3903 = vcombine.low %v3870, %v3886
          %v3904 = vcombine.high %v3870, %v3886
          %v3906 = vunpack.c.l.s4 1934713408
          %v3907 = vunpack.c.0.s8 %v3906
          %v3908 = vlaneseq
          %v3909 = vshrl.u32 %v3908, 7
          %v3910 = vsub.s32 %v3907, %v3909
          %v3911 = vrot.slane %v3903, %v3910
          %v3913 = vunpack.c.l.s4 1934713408
          %v3914 = vunpack.c.0.s8 %v3913
          %v3915 = vlaneseq
          %v3916 = vshrl.u32 %v3915, 7
          %v3917 = vsub.s32 %v3914, %v3916
          %v3918 = vrot.slane %v3904, %v3917
          %v3919 = vcombine.high %v3895, 0.0
          %v3920 = vcombine.high %v3902, 0.0
          %v3921 = vcombine.high %v3911, 0.0
          %v3922 = vcombine.high %v3918, 0.0
          %v3923 = vcombine.low %v3543, %v3607
          %v3924 = vcombine.high %v3543, %v3607
          %v3926 = vunpack.c.l.s4 1983009808
          %v3927 = vunpack.c.0.s8 %v3926
          %v3928 = vlaneseq
          %v3929 = vshrl.u32 %v3928, 7
          %v3930 = vsub.s32 %v3927, %v3929
          %v3931 = vrot.slane %v3923, %v3930
          %v3933 = vunpack.c.l.s4 1983009808
          %v3934 = vunpack.c.0.s8 %v3933
          %v3935 = vlaneseq
          %v3936 = vshrl.u32 %v3935, 7
          %v3937 = vsub.s32 %v3934, %v3936
          %v3938 = vrot.slane %v3924, %v3937
          %v3939 = vcombine.low %v3575, %v3639
          %v3940 = vcombine.high %v3575, %v3639
          %v3942 = vunpack.c.l.s4 1983009808
          %v3943 = vunpack.c.0.s8 %v3942
          %v3944 = vlaneseq
          %v3945 = vshrl.u32 %v3944, 7
          %v3946 = vsub.s32 %v3943, %v3945
          %v3947 = vrot.slane %v3939, %v3946
          %v3949 = vunpack.c.l.s4 1983009808
          %v3950 = vunpack.c.0.s8 %v3949
          %v3951 = vlaneseq
          %v3952 = vshrl.u32 %v3951, 7
          %v3953 = vsub.s32 %v3950, %v3952
          %v3954 = vrot.slane %v3940, %v3953
          %v3955 = vcombine.low %v3931, %v3947
          %v3956 = vcombine.high %v3931, %v3947
          %v3958 = vunpack.c.l.s4 1934713408
          %v3959 = vunpack.c.0.s8 %v3958
          %v3960 = vlaneseq
          %v3961 = vshrl.u32 %v3960, 7
          %v3962 = vsub.s32 %v3959, %v3961
          %v3963 = vrot.slane %v3955, %v3962
          %v3965 = vunpack.c.l.s4 1934713408
          %v3966 = vunpack.c.0.s8 %v3965
          %v3967 = vlaneseq
          %v3968 = vshrl.u32 %v3967, 7
          %v3969 = vsub.s32 %v3966, %v3968
          %v3970 = vrot.slane %v3956, %v3969
          %v3971 = vcombine.low %v3938, %v3954
          %v3972 = vcombine.high %v3938, %v3954
          %v3974 = vunpack.c.l.s4 1934713408
          %v3975 = vunpack.c.0.s8 %v3974
          %v3976 = vlaneseq
          %v3977 = vshrl.u32 %v3976, 7
          %v3978 = vsub.s32 %v3975, %v3977
          %v3979 = vrot.slane %v3971, %v3978
          %v3981 = vunpack.c.l.s4 1934713408
          %v3982 = vunpack.c.0.s8 %v3981
          %v3983 = vlaneseq
          %v3984 = vshrl.u32 %v3983, 7
          %v3985 = vsub.s32 %v3982, %v3984
          %v3986 = vrot.slane %v3972, %v3985
          %v3987 = vcombine.high %v3963, 0.0
          %v3988 = vcombine.high %v3970, 0.0
          %v3989 = vcombine.high %v3979, 0.0
          %v3990 = vcombine.high %v3986, 0.0
          %v3991 = vcombine.low %v3544, %v3608
          %v3992 = vcombine.high %v3544, %v3608
          %v3994 = vunpack.c.l.s4 1983009808
          %v3995 = vunpack.c.0.s8 %v3994
          %v3996 = vlaneseq
          %v3997 = vshrl.u32 %v3996, 7
          %v3998 = vsub.s32 %v3995, %v3997
          %v3999 = vrot.slane %v3991, %v3998
          %v4001 = vunpack.c.l.s4 1983009808
          %v4002 = vunpack.c.0.s8 %v4001
          %v4003 = vlaneseq
          %v4004 = vshrl.u32 %v4003, 7
          %v4005 = vsub.s32 %v4002, %v4004
          %v4006 = vrot.slane %v3992, %v4005
          %v4007 = vcombine.low %v3576, %v3640
          %v4008 = vcombine.high %v3576, %v3640
          %v4010 = vunpack.c.l.s4 1983009808
          %v4011 = vunpack.c.0.s8 %v4010
          %v4012 = vlaneseq
          %v4013 = vshrl.u32 %v4012, 7
          %v4014 = vsub.s32 %v4011, %v4013
          %v4015 = vrot.slane %v4007, %v4014
          %v4017 = vunpack.c.l.s4 1983009808
          %v4018 = vunpack.c.0.s8 %v4017
          %v4019 = vlaneseq
          %v4020 = vshrl.u32 %v4019, 7
          %v4021 = vsub.s32 %v4018, %v4020
          %v4022 = vrot.slane %v4008, %v4021
          %v4023 = vcombine.low %v3999, %v4015
          %v4024 = vcombine.high %v3999, %v4015
          %v4026 = vunpack.c.l.s4 1934713408
          %v4027 = vunpack.c.0.s8 %v4026
          %v4028 = vlaneseq
          %v4029 = vshrl.u32 %v4028, 7
          %v4030 = vsub.s32 %v4027, %v4029
          %v4031 = vrot.slane %v4023, %v4030
          %v4033 = vunpack.c.l.s4 1934713408
          %v4034 = vunpack.c.0.s8 %v4033
          %v4035 = vlaneseq
          %v4036 = vshrl.u32 %v4035, 7
          %v4037 = vsub.s32 %v4034, %v4036
          %v4038 = vrot.slane %v4024, %v4037
          %v4039 = vcombine.low %v4006, %v4022
          %v4040 = vcombine.high %v4006, %v4022
          %v4042 = vunpack.c.l.s4 1934713408
          %v4043 = vunpack.c.0.s8 %v4042
          %v4044 = vlaneseq
          %v4045 = vshrl.u32 %v4044, 7
          %v4046 = vsub.s32 %v4043, %v4045
          %v4047 = vrot.slane %v4039, %v4046
          %v4049 = vunpack.c.l.s4 1934713408
          %v4050 = vunpack.c.0.s8 %v4049
          %v4051 = vlaneseq
          %v4052 = vshrl.u32 %v4051, 7
          %v4053 = vsub.s32 %v4050, %v4052
          %v4054 = vrot.slane %v4040, %v4053
          %v4055 = vcombine.high %v4031, 0.0
          %v4056 = vcombine.high %v4038, 0.0
          %v4057 = vcombine.high %v4047, 0.0
          %v4058 = vcombine.high %v4054, 0.0
          %v4059 = vcombine.low %v3545, %v3609
          %v4060 = vcombine.high %v3545, %v3609
          %v4062 = vunpack.c.l.s4 1983009808
          %v4063 = vunpack.c.0.s8 %v4062
          %v4064 = vlaneseq
          %v4065 = vshrl.u32 %v4064, 7
          %v4066 = vsub.s32 %v4063, %v4065
          %v4067 = vrot.slane %v4059, %v4066
          %v4069 = vunpack.c.l.s4 1983009808
          %v4070 = vunpack.c.0.s8 %v4069
          %v4071 = vlaneseq
          %v4072 = vshrl.u32 %v4071, 7
          %v4073 = vsub.s32 %v4070, %v4072
          %v4074 = vrot.slane %v4060, %v4073
          %v4075 = vcombine.low %v3577, %v3641
          %v4076 = vcombine.high %v3577, %v3641
          %v4078 = vunpack.c.l.s4 1983009808
          %v4079 = vunpack.c.0.s8 %v4078
          %v4080 = vlaneseq
          %v4081 = vshrl.u32 %v4080, 7
          %v4082 = vsub.s32 %v4079, %v4081
          %v4083 = vrot.slane %v4075, %v4082
          %v4085 = vunpack.c.l.s4 1983009808
          %v4086 = vunpack.c.0.s8 %v4085
          %v4087 = vlaneseq
          %v4088 = vshrl.u32 %v4087, 7
          %v4089 = vsub.s32 %v4086, %v4088
          %v4090 = vrot.slane %v4076, %v4089
          %v4091 = vcombine.low %v4067, %v4083
          %v4092 = vcombine.high %v4067, %v4083
          %v4094 = vunpack.c.l.s4 1934713408
          %v4095 = vunpack.c.0.s8 %v4094
          %v4096 = vlaneseq
          %v4097 = vshrl.u32 %v4096, 7
          %v4098 = vsub.s32 %v4095, %v4097
          %v4099 = vrot.slane %v4091, %v4098
          %v4101 = vunpack.c.l.s4 1934713408
          %v4102 = vunpack.c.0.s8 %v4101
          %v4103 = vlaneseq
          %v4104 = vshrl.u32 %v4103, 7
          %v4105 = vsub.s32 %v4102, %v4104
          %v4106 = vrot.slane %v4092, %v4105
          %v4107 = vcombine.low %v4074, %v4090
          %v4108 = vcombine.high %v4074, %v4090
          %v4110 = vunpack.c.l.s4 1934713408
          %v4111 = vunpack.c.0.s8 %v4110
          %v4112 = vlaneseq
          %v4113 = vshrl.u32 %v4112, 7
          %v4114 = vsub.s32 %v4111, %v4113
          %v4115 = vrot.slane %v4107, %v4114
          %v4117 = vunpack.c.l.s4 1934713408
          %v4118 = vunpack.c.0.s8 %v4117
          %v4119 = vlaneseq
          %v4120 = vshrl.u32 %v4119, 7
          %v4121 = vsub.s32 %v4118, %v4120
          %v4122 = vrot.slane %v4108, %v4121
          %v4123 = vcombine.high %v4099, 0.0
          %v4124 = vcombine.high %v4106, 0.0
          %v4125 = vcombine.high %v4115, 0.0
          %v4126 = vcombine.high %v4122, 0.0
          %v4127 = vcombine.low %v3546, %v3610
          %v4128 = vcombine.high %v3546, %v3610
          %v4130 = vunpack.c.l.s4 1983009808
          %v4131 = vunpack.c.0.s8 %v4130
          %v4132 = vlaneseq
          %v4133 = vshrl.u32 %v4132, 7
          %v4134 = vsub.s32 %v4131, %v4133
          %v4135 = vrot.slane %v4127, %v4134
          %v4137 = vunpack.c.l.s4 1983009808
          %v4138 = vunpack.c.0.s8 %v4137
          %v4139 = vlaneseq
          %v4140 = vshrl.u32 %v4139, 7
          %v4141 = vsub.s32 %v4138, %v4140
          %v4142 = vrot.slane %v4128, %v4141
          %v4143 = vcombine.low %v3578, %v3642
          %v4144 = vcombine.high %v3578, %v3642
          %v4146 = vunpack.c.l.s4 1983009808
          %v4147 = vunpack.c.0.s8 %v4146
          %v4148 = vlaneseq
          %v4149 = vshrl.u32 %v4148, 7
          %v4150 = vsub.s32 %v4147, %v4149
          %v4151 = vrot.slane %v4143, %v4150
          %v4153 = vunpack.c.l.s4 1983009808
          %v4154 = vunpack.c.0.s8 %v4153
          %v4155 = vlaneseq
          %v4156 = vshrl.u32 %v4155, 7
          %v4157 = vsub.s32 %v4154, %v4156
          %v4158 = vrot.slane %v4144, %v4157
          %v4159 = vcombine.low %v4135, %v4151
          %v4160 = vcombine.high %v4135, %v4151
          %v4162 = vunpack.c.l.s4 1934713408
          %v4163 = vunpack.c.0.s8 %v4162
          %v4164 = vlaneseq
          %v4165 = vshrl.u32 %v4164, 7
          %v4166 = vsub.s32 %v4163, %v4165
          %v4167 = vrot.slane %v4159, %v4166
          %v4169 = vunpack.c.l.s4 1934713408
          %v4170 = vunpack.c.0.s8 %v4169
          %v4171 = vlaneseq
          %v4172 = vshrl.u32 %v4171, 7
          %v4173 = vsub.s32 %v4170, %v4172
          %v4174 = vrot.slane %v4160, %v4173
          %v4175 = vcombine.low %v4142, %v4158
          %v4176 = vcombine.high %v4142, %v4158
          %v4178 = vunpack.c.l.s4 1934713408
          %v4179 = vunpack.c.0.s8 %v4178
          %v4180 = vlaneseq
          %v4181 = vshrl.u32 %v4180, 7
          %v4182 = vsub.s32 %v4179, %v4181
          %v4183 = vrot.slane %v4175, %v4182
          %v4185 = vunpack.c.l.s4 1934713408
          %v4186 = vunpack.c.0.s8 %v4185
          %v4187 = vlaneseq
          %v4188 = vshrl.u32 %v4187, 7
          %v4189 = vsub.s32 %v4186, %v4188
          %v4190 = vrot.slane %v4176, %v4189
          %v4191 = vcombine.high %v4167, 0.0
          %v4192 = vcombine.high %v4174, 0.0
          %v4193 = vcombine.high %v4183, 0.0
          %v4194 = vcombine.high %v4190, 0.0
          %v4195 = vcombine.low %v3691, %v3698
          %v4197 = vunpack.c.l.s4 1983009808
          %v4198 = vunpack.c.0.s8 %v4197
          %v4199 = vlaneseq
          %v4200 = vshrl.u32 %v4199, 7
          %v4201 = vsub.s32 %v4198, %v4200
          %v4202 = vrot.slane %v4195, %v4201
          %v4203 = vcombine.low %v3715, %v3716
          %v4205 = vunpack.c.l.s4 1983009808
          %v4206 = vunpack.c.0.s8 %v4205
          %v4207 = vlaneseq
          %v4208 = vshrl.u32 %v4207, 7
          %v4209 = vsub.s32 %v4206, %v4208
          %v4210 = vrot.slane %v4203, %v4209
          %v4211 = vcombine.low %v3707, %v3714
          %v4213 = vunpack.c.l.s4 1983009808
          %v4214 = vunpack.c.0.s8 %v4213
          %v4215 = vlaneseq
          %v4216 = vshrl.u32 %v4215, 7
          %v4217 = vsub.s32 %v4214, %v4216
          %v4218 = vrot.slane %v4211, %v4217
          %v4219 = vcombine.low %v3717, %v3718
          %v4221 = vunpack.c.l.s4 1983009808
          %v4222 = vunpack.c.0.s8 %v4221
          %v4223 = vlaneseq
          %v4224 = vshrl.u32 %v4223, 7
          %v4225 = vsub.s32 %v4222, %v4224
          %v4226 = vrot.slane %v4219, %v4225
          %v4227 = vcombine.low %v4202, %v4210
          %v4228 = vcombine.high %v4202, %v4210
          %v4230 = vunpack.c.l.s4 1934713408
          %v4231 = vunpack.c.0.s8 %v4230
          %v4232 = vlaneseq
          %v4233 = vshrl.u32 %v4232, 7
          %v4234 = vsub.s32 %v4231, %v4233
          %v4235 = vrot.slane %v4227, %v4234
          %v4237 = vunpack.c.l.s4 1934713408
          %v4238 = vunpack.c.0.s8 %v4237
          %v4239 = vlaneseq
          %v4240 = vshrl.u32 %v4239, 7
          %v4241 = vsub.s32 %v4238, %v4240
          %v4242 = vrot.slane %v4228, %v4241
          %v4243 = vcombine.low %v4218, %v4226
          %v4244 = vcombine.high %v4218, %v4226
          %v4246 = vunpack.c.l.s4 1934713408
          %v4247 = vunpack.c.0.s8 %v4246
          %v4248 = vlaneseq
          %v4249 = vshrl.u32 %v4248, 7
          %v4250 = vsub.s32 %v4247, %v4249
          %v4251 = vrot.slane %v4243, %v4250
          %v4253 = vunpack.c.l.s4 1934713408
          %v4254 = vunpack.c.0.s8 %v4253
          %v4255 = vlaneseq
          %v4256 = vshrl.u32 %v4255, 7
          %v4257 = vsub.s32 %v4254, %v4256
          %v4258 = vrot.slane %v4244, %v4257
          %v4259 = vcombine.low %v4235, %v4251
          %v4260 = vcombine.high %v4235, %v4251
          %v4261 = vcombine.low %v4242, %v4258
          %v4262 = vcombine.high %v4242, %v4258
          %v4263 = vcombine.low %v3759, %v3766
          %v4265 = vunpack.c.l.s4 1983009808
          %v4266 = vunpack.c.0.s8 %v4265
          %v4267 = vlaneseq
          %v4268 = vshrl.u32 %v4267, 7
          %v4269 = vsub.s32 %v4266, %v4268
          %v4270 = vrot.slane %v4263, %v4269
          %v4271 = vcombine.low %v3783, %v3784
          %v4273 = vunpack.c.l.s4 1983009808
          %v4274 = vunpack.c.0.s8 %v4273
          %v4275 = vlaneseq
          %v4276 = vshrl.u32 %v4275, 7
          %v4277 = vsub.s32 %v4274, %v4276
          %v4278 = vrot.slane %v4271, %v4277
          %v4279 = vcombine.low %v3775, %v3782
          %v4281 = vunpack.c.l.s4 1983009808
          %v4282 = vunpack.c.0.s8 %v4281
          %v4283 = vlaneseq
          %v4284 = vshrl.u32 %v4283, 7
          %v4285 = vsub.s32 %v4282, %v4284
          %v4286 = vrot.slane %v4279, %v4285
          %v4287 = vcombine.low %v3785, %v3786
          %v4289 = vunpack.c.l.s4 1983009808
          %v4290 = vunpack.c.0.s8 %v4289
          %v4291 = vlaneseq
          %v4292 = vshrl.u32 %v4291, 7
          %v4293 = vsub.s32 %v4290, %v4292
          %v4294 = vrot.slane %v4287, %v4293
          %v4295 = vcombine.low %v4270, %v4278
          %v4296 = vcombine.high %v4270, %v4278
          %v4298 = vunpack.c.l.s4 1934713408
          %v4299 = vunpack.c.0.s8 %v4298
          %v4300 = vlaneseq
          %v4301 = vshrl.u32 %v4300, 7
          %v4302 = vsub.s32 %v4299, %v4301
          %v4303 = vrot.slane %v4295, %v4302
          %v4305 = vunpack.c.l.s4 1934713408
          %v4306 = vunpack.c.0.s8 %v4305
          %v4307 = vlaneseq
          %v4308 = vshrl.u32 %v4307, 7
          %v4309 = vsub.s32 %v4306, %v4308
          %v4310 = vrot.slane %v4296, %v4309
          %v4311 = vcombine.low %v4286, %v4294
          %v4312 = vcombine.high %v4286, %v4294
          %v4314 = vunpack.c.l.s4 1934713408
          %v4315 = vunpack.c.0.s8 %v4314
          %v4316 = vlaneseq
          %v4317 = vshrl.u32 %v4316, 7
          %v4318 = vsub.s32 %v4315, %v4317
          %v4319 = vrot.slane %v4311, %v4318
          %v4321 = vunpack.c.l.s4 1934713408
          %v4322 = vunpack.c.0.s8 %v4321
          %v4323 = vlaneseq
          %v4324 = vshrl.u32 %v4323, 7
          %v4325 = vsub.s32 %v4322, %v4324
          %v4326 = vrot.slane %v4312, %v4325
          %v4327 = vcombine.low %v4303, %v4319
          %v4328 = vcombine.high %v4303, %v4319
          %v4329 = vcombine.low %v4310, %v4326
          %v4330 = vcombine.high %v4310, %v4326
          %v4331 = vcombine.low %v3827, %v3834
          %v4333 = vunpack.c.l.s4 1983009808
          %v4334 = vunpack.c.0.s8 %v4333
          %v4335 = vlaneseq
          %v4336 = vshrl.u32 %v4335, 7
          %v4337 = vsub.s32 %v4334, %v4336
          %v4338 = vrot.slane %v4331, %v4337
          %v4339 = vcombine.low %v3851, %v3852
          %v4341 = vunpack.c.l.s4 1983009808
          %v4342 = vunpack.c.0.s8 %v4341
          %v4343 = vlaneseq
          %v4344 = vshrl.u32 %v4343, 7
          %v4345 = vsub.s32 %v4342, %v4344
          %v4346 = vrot.slane %v4339, %v4345
          %v4347 = vcombine.low %v3843, %v3850
          %v4349 = vunpack.c.l.s4 1983009808
          %v4350 = vunpack.c.0.s8 %v4349
          %v4351 = vlaneseq
          %v4352 = vshrl.u32 %v4351, 7
          %v4353 = vsub.s32 %v4350, %v4352
          %v4354 = vrot.slane %v4347, %v4353
          %v4355 = vcombine.low %v3853, %v3854
          %v4357 = vunpack.c.l.s4 1983009808
          %v4358 = vunpack.c.0.s8 %v4357
          %v4359 = vlaneseq
          %v4360 = vshrl.u32 %v4359, 7
          %v4361 = vsub.s32 %v4358, %v4360
          %v4362 = vrot.slane %v4355, %v4361
          %v4363 = vcombine.low %v4338, %v4346
          %v4364 = vcombine.high %v4338, %v4346
          %v4366 = vunpack.c.l.s4 1934713408
          %v4367 = vunpack.c.0.s8 %v4366
          %v4368 = vlaneseq
          %v4369 = vshrl.u32 %v4368, 7
          %v4370 = vsub.s32 %v4367, %v4369
          %v4371 = vrot.slane %v4363, %v4370
          %v4373 = vunpack.c.l.s4 1934713408
          %v4374 = vunpack.c.0.s8 %v4373
          %v4375 = vlaneseq
          %v4376 = vshrl.u32 %v4375, 7
          %v4377 = vsub.s32 %v4374, %v4376
          %v4378 = vrot.slane %v4364, %v4377
          %v4379 = vcombine.low %v4354, %v4362
          %v4380 = vcombine.high %v4354, %v4362
          %v4382 = vunpack.c.l.s4 1934713408
          %v4383 = vunpack.c.0.s8 %v4382
          %v4384 = vlaneseq
          %v4385 = vshrl.u32 %v4384, 7
          %v4386 = vsub.s32 %v4383, %v4385
          %v4387 = vrot.slane %v4379, %v4386
          %v4389 = vunpack.c.l.s4 1934713408
          %v4390 = vunpack.c.0.s8 %v4389
          %v4391 = vlaneseq
          %v4392 = vshrl.u32 %v4391, 7
          %v4393 = vsub.s32 %v4390, %v4392
          %v4394 = vrot.slane %v4380, %v4393
          %v4395 = vcombine.low %v4371, %v4387
          %v4396 = vcombine.high %v4371, %v4387
          %v4397 = vcombine.low %v4378, %v4394
          %v4398 = vcombine.high %v4378, %v4394
          %v4399 = vcombine.low %v3895, %v3902
          %v4401 = vunpack.c.l.s4 1983009808
          %v4402 = vunpack.c.0.s8 %v4401
          %v4403 = vlaneseq
          %v4404 = vshrl.u32 %v4403, 7
          %v4405 = vsub.s32 %v4402, %v4404
          %v4406 = vrot.slane %v4399, %v4405
          %v4407 = vcombine.low %v3919, %v3920
          %v4409 = vunpack.c.l.s4 1983009808
          %v4410 = vunpack.c.0.s8 %v4409
          %v4411 = vlaneseq
          %v4412 = vshrl.u32 %v4411, 7
          %v4413 = vsub.s32 %v4410, %v4412
          %v4414 = vrot.slane %v4407, %v4413
          %v4415 = vcombine.low %v3911, %v3918
          %v4417 = vunpack.c.l.s4 1983009808
          %v4418 = vunpack.c.0.s8 %v4417
          %v4419 = vlaneseq
          %v4420 = vshrl.u32 %v4419, 7
          %v4421 = vsub.s32 %v4418, %v4420
          %v4422 = vrot.slane %v4415, %v4421
          %v4423 = vcombine.low %v3921, %v3922
          %v4425 = vunpack.c.l.s4 1983009808
          %v4426 = vunpack.c.0.s8 %v4425
          %v4427 = vlaneseq
          %v4428 = vshrl.u32 %v4427, 7
          %v4429 = vsub.s32 %v4426, %v4428
          %v4430 = vrot.slane %v4423, %v4429
          %v4431 = vcombine.low %v4406, %v4414
          %v4432 = vcombine.high %v4406, %v4414
          %v4434 = vunpack.c.l.s4 1934713408
          %v4435 = vunpack.c.0.s8 %v4434
          %v4436 = vlaneseq
          %v4437 = vshrl.u32 %v4436, 7
          %v4438 = vsub.s32 %v4435, %v4437
          %v4439 = vrot.slane %v4431, %v4438
          %v4441 = vunpack.c.l.s4 1934713408
          %v4442 = vunpack.c.0.s8 %v4441
          %v4443 = vlaneseq
          %v4444 = vshrl.u32 %v4443, 7
          %v4445 = vsub.s32 %v4442, %v4444
          %v4446 = vrot.slane %v4432, %v4445
          %v4447 = vcombine.low %v4422, %v4430
          %v4448 = vcombine.high %v4422, %v4430
          %v4450 = vunpack.c.l.s4 1934713408
          %v4451 = vunpack.c.0.s8 %v4450
          %v4452 = vlaneseq
          %v4453 = vshrl.u32 %v4452, 7
          %v4454 = vsub.s32 %v4451, %v4453
          %v4455 = vrot.slane %v4447, %v4454
          %v4457 = vunpack.c.l.s4 1934713408
          %v4458 = vunpack.c.0.s8 %v4457
          %v4459 = vlaneseq
          %v4460 = vshrl.u32 %v4459, 7
          %v4461 = vsub.s32 %v4458, %v4460
          %v4462 = vrot.slane %v4448, %v4461
          %v4463 = vcombine.low %v4439, %v4455
          %v4464 = vcombine.high %v4439, %v4455
          %v4465 = vcombine.low %v4446, %v4462
          %v4466 = vcombine.high %v4446, %v4462
          %v4467 = vcombine.low %v3963, %v3970
          %v4469 = vunpack.c.l.s4 1983009808
          %v4470 = vunpack.c.0.s8 %v4469
          %v4471 = vlaneseq
          %v4472 = vshrl.u32 %v4471, 7
          %v4473 = vsub.s32 %v4470, %v4472
          %v4474 = vrot.slane %v4467, %v4473
          %v4475 = vcombine.low %v3987, %v3988
          %v4477 = vunpack.c.l.s4 1983009808
          %v4478 = vunpack.c.0.s8 %v4477
          %v4479 = vlaneseq
          %v4480 = vshrl.u32 %v4479, 7
          %v4481 = vsub.s32 %v4478, %v4480
          %v4482 = vrot.slane %v4475, %v4481
          %v4483 = vcombine.low %v3979, %v3986
          %v4485 = vunpack.c.l.s4 1983009808
          %v4486 = vunpack.c.0.s8 %v4485
          %v4487 = vlaneseq
          %v4488 = vshrl.u32 %v4487, 7
          %v4489 = vsub.s32 %v4486, %v4488
          %v4490 = vrot.slane %v4483, %v4489
          %v4491 = vcombine.low %v3989, %v3990
          %v4493 = vunpack.c.l.s4 1983009808
          %v4494 = vunpack.c.0.s8 %v4493
          %v4495 = vlaneseq
          %v4496 = vshrl.u32 %v4495, 7
          %v4497 = vsub.s32 %v4494, %v4496
          %v4498 = vrot.slane %v4491, %v4497
          %v4499 = vcombine.low %v4474, %v4482
          %v4500 = vcombine.high %v4474, %v4482
          %v4502 = vunpack.c.l.s4 1934713408
          %v4503 = vunpack.c.0.s8 %v4502
          %v4504 = vlaneseq
          %v4505 = vshrl.u32 %v4504, 7
          %v4506 = vsub.s32 %v4503, %v4505
          %v4507 = vrot.slane %v4499, %v4506
          %v4509 = vunpack.c.l.s4 1934713408
          %v4510 = vunpack.c.0.s8 %v4509
          %v4511 = vlaneseq
          %v4512 = vshrl.u32 %v4511, 7
          %v4513 = vsub.s32 %v4510, %v4512
          %v4514 = vrot.slane %v4500, %v4513
          %v4515 = vcombine.low %v4490, %v4498
          %v4516 = vcombine.high %v4490, %v4498
          %v4518 = vunpack.c.l.s4 1934713408
          %v4519 = vunpack.c.0.s8 %v4518
          %v4520 = vlaneseq
          %v4521 = vshrl.u32 %v4520, 7
          %v4522 = vsub.s32 %v4519, %v4521
          %v4523 = vrot.slane %v4515, %v4522
          %v4525 = vunpack.c.l.s4 1934713408
          %v4526 = vunpack.c.0.s8 %v4525
          %v4527 = vlaneseq
          %v4528 = vshrl.u32 %v4527, 7
          %v4529 = vsub.s32 %v4526, %v4528
          %v4530 = vrot.slane %v4516, %v4529
          %v4531 = vcombine.low %v4507, %v4523
          %v4532 = vcombine.high %v4507, %v4523
          %v4533 = vcombine.low %v4514, %v4530
          %v4534 = vcombine.high %v4514, %v4530
          %v4535 = vcombine.low %v4031, %v4038
          %v4537 = vunpack.c.l.s4 1983009808
          %v4538 = vunpack.c.0.s8 %v4537
          %v4539 = vlaneseq
          %v4540 = vshrl.u32 %v4539, 7
          %v4541 = vsub.s32 %v4538, %v4540
          %v4542 = vrot.slane %v4535, %v4541
          %v4543 = vcombine.low %v4055, %v4056
          %v4545 = vunpack.c.l.s4 1983009808
          %v4546 = vunpack.c.0.s8 %v4545
          %v4547 = vlaneseq
          %v4548 = vshrl.u32 %v4547, 7
          %v4549 = vsub.s32 %v4546, %v4548
          %v4550 = vrot.slane %v4543, %v4549
          %v4551 = vcombine.low %v4047, %v4054
          %v4553 = vunpack.c.l.s4 1983009808
          %v4554 = vunpack.c.0.s8 %v4553
          %v4555 = vlaneseq
          %v4556 = vshrl.u32 %v4555, 7
          %v4557 = vsub.s32 %v4554, %v4556
          %v4558 = vrot.slane %v4551, %v4557
          %v4559 = vcombine.low %v4057, %v4058
          %v4561 = vunpack.c.l.s4 1983009808
          %v4562 = vunpack.c.0.s8 %v4561
          %v4563 = vlaneseq
          %v4564 = vshrl.u32 %v4563, 7
          %v4565 = vsub.s32 %v4562, %v4564
          %v4566 = vrot.slane %v4559, %v4565
          %v4567 = vcombine.low %v4542, %v4550
          %v4568 = vcombine.high %v4542, %v4550
          %v4570 = vunpack.c.l.s4 1934713408
          %v4571 = vunpack.c.0.s8 %v4570
          %v4572 = vlaneseq
          %v4573 = vshrl.u32 %v4572, 7
          %v4574 = vsub.s32 %v4571, %v4573
          %v4575 = vrot.slane %v4567, %v4574
          %v4577 = vunpack.c.l.s4 1934713408
          %v4578 = vunpack.c.0.s8 %v4577
          %v4579 = vlaneseq
          %v4580 = vshrl.u32 %v4579, 7
          %v4581 = vsub.s32 %v4578, %v4580
          %v4582 = vrot.slane %v4568, %v4581
          %v4583 = vcombine.low %v4558, %v4566
          %v4584 = vcombine.high %v4558, %v4566
          %v4586 = vunpack.c.l.s4 1934713408
          %v4587 = vunpack.c.0.s8 %v4586
          %v4588 = vlaneseq
          %v4589 = vshrl.u32 %v4588, 7
          %v4590 = vsub.s32 %v4587, %v4589
          %v4591 = vrot.slane %v4583, %v4590
          %v4593 = vunpack.c.l.s4 1934713408
          %v4594 = vunpack.c.0.s8 %v4593
          %v4595 = vlaneseq
          %v4596 = vshrl.u32 %v4595, 7
          %v4597 = vsub.s32 %v4594, %v4596
          %v4598 = vrot.slane %v4584, %v4597
          %v4599 = vcombine.low %v4575, %v4591
          %v4600 = vcombine.high %v4575, %v4591
          %v4601 = vcombine.low %v4582, %v4598
          %v4602 = vcombine.high %v4582, %v4598
          %v4603 = vcombine.low %v4099, %v4106
          %v4605 = vunpack.c.l.s4 1983009808
          %v4606 = vunpack.c.0.s8 %v4605
          %v4607 = vlaneseq
          %v4608 = vshrl.u32 %v4607, 7
          %v4609 = vsub.s32 %v4606, %v4608
          %v4610 = vrot.slane %v4603, %v4609
          %v4611 = vcombine.low %v4123, %v4124
          %v4613 = vunpack.c.l.s4 1983009808
          %v4614 = vunpack.c.0.s8 %v4613
          %v4615 = vlaneseq
          %v4616 = vshrl.u32 %v4615, 7
          %v4617 = vsub.s32 %v4614, %v4616
          %v4618 = vrot.slane %v4611, %v4617
          %v4619 = vcombine.low %v4115, %v4122
          %v4621 = vunpack.c.l.s4 1983009808
          %v4622 = vunpack.c.0.s8 %v4621
          %v4623 = vlaneseq
          %v4624 = vshrl.u32 %v4623, 7
          %v4625 = vsub.s32 %v4622, %v4624
          %v4626 = vrot.slane %v4619, %v4625
          %v4627 = vcombine.low %v4125, %v4126
          %v4629 = vunpack.c.l.s4 1983009808
          %v4630 = vunpack.c.0.s8 %v4629
          %v4631 = vlaneseq
          %v4632 = vshrl.u32 %v4631, 7
          %v4633 = vsub.s32 %v4630, %v4632
          %v4634 = vrot.slane %v4627, %v4633
          %v4635 = vcombine.low %v4610, %v4618
          %v4636 = vcombine.high %v4610, %v4618
          %v4638 = vunpack.c.l.s4 1934713408
          %v4639 = vunpack.c.0.s8 %v4638
          %v4640 = vlaneseq
          %v4641 = vshrl.u32 %v4640, 7
          %v4642 = vsub.s32 %v4639, %v4641
          %v4643 = vrot.slane %v4635, %v4642
          %v4645 = vunpack.c.l.s4 1934713408
          %v4646 = vunpack.c.0.s8 %v4645
          %v4647 = vlaneseq
          %v4648 = vshrl.u32 %v4647, 7
          %v4649 = vsub.s32 %v4646, %v4648
          %v4650 = vrot.slane %v4636, %v4649
          %v4651 = vcombine.low %v4626, %v4634
          %v4652 = vcombine.high %v4626, %v4634
          %v4654 = vunpack.c.l.s4 1934713408
          %v4655 = vunpack.c.0.s8 %v4654
          %v4656 = vlaneseq
          %v4657 = vshrl.u32 %v4656, 7
          %v4658 = vsub.s32 %v4655, %v4657
          %v4659 = vrot.slane %v4651, %v4658
          %v4661 = vunpack.c.l.s4 1934713408
          %v4662 = vunpack.c.0.s8 %v4661
          %v4663 = vlaneseq
          %v4664 = vshrl.u32 %v4663, 7
          %v4665 = vsub.s32 %v4662, %v4664
          %v4666 = vrot.slane %v4652, %v4665
          %v4667 = vcombine.low %v4643, %v4659
          %v4668 = vcombine.high %v4643, %v4659
          %v4669 = vcombine.low %v4650, %v4666
          %v4670 = vcombine.high %v4650, %v4666
          %v4671 = vcombine.low %v4167, %v4174
          %v4673 = vunpack.c.l.s4 1983009808
          %v4674 = vunpack.c.0.s8 %v4673
          %v4675 = vlaneseq
          %v4676 = vshrl.u32 %v4675, 7
          %v4677 = vsub.s32 %v4674, %v4676
          %v4678 = vrot.slane %v4671, %v4677
          %v4679 = vcombine.low %v4191, %v4192
          %v4681 = vunpack.c.l.s4 1983009808
          %v4682 = vunpack.c.0.s8 %v4681
          %v4683 = vlaneseq
          %v4684 = vshrl.u32 %v4683, 7
          %v4685 = vsub.s32 %v4682, %v4684
          %v4686 = vrot.slane %v4679, %v4685
          %v4687 = vcombine.low %v4183, %v4190
          %v4689 = vunpack.c.l.s4 1983009808
          %v4690 = vunpack.c.0.s8 %v4689
          %v4691 = vlaneseq
          %v4692 = vshrl.u32 %v4691, 7
          %v4693 = vsub.s32 %v4690, %v4692
          %v4694 = vrot.slane %v4687, %v4693
          %v4695 = vcombine.low %v4193, %v4194
          %v4697 = vunpack.c.l.s4 1983009808
          %v4698 = vunpack.c.0.s8 %v4697
          %v4699 = vlaneseq
          %v4700 = vshrl.u32 %v4699, 7
          %v4701 = vsub.s32 %v4698, %v4700
          %v4702 = vrot.slane %v4695, %v4701
          %v4703 = vcombine.low %v4678, %v4686
          %v4704 = vcombine.high %v4678, %v4686
          %v4706 = vunpack.c.l.s4 1934713408
          %v4707 = vunpack.c.0.s8 %v4706
          %v4708 = vlaneseq
          %v4709 = vshrl.u32 %v4708, 7
          %v4710 = vsub.s32 %v4707, %v4709
          %v4711 = vrot.slane %v4703, %v4710
          %v4713 = vunpack.c.l.s4 1934713408
          %v4714 = vunpack.c.0.s8 %v4713
          %v4715 = vlaneseq
          %v4716 = vshrl.u32 %v4715, 7
          %v4717 = vsub.s32 %v4714, %v4716
          %v4718 = vrot.slane %v4704, %v4717
          %v4719 = vcombine.low %v4694, %v4702
          %v4720 = vcombine.high %v4694, %v4702
          %v4722 = vunpack.c.l.s4 1934713408
          %v4723 = vunpack.c.0.s8 %v4722
          %v4724 = vlaneseq
          %v4725 = vshrl.u32 %v4724, 7
          %v4726 = vsub.s32 %v4723, %v4725
          %v4727 = vrot.slane %v4719, %v4726
          %v4729 = vunpack.c.l.s4 1934713408
          %v4730 = vunpack.c.0.s8 %v4729
          %v4731 = vlaneseq
          %v4732 = vshrl.u32 %v4731, 7
          %v4733 = vsub.s32 %v4730, %v4732
          %v4734 = vrot.slane %v4720, %v4733
          %v4735 = vcombine.low %v4711, %v4727
          %v4736 = vcombine.high %v4711, %v4727
          %v4737 = vcombine.low %v4718, %v4734
          %v4738 = vcombine.high %v4718, %v4734
          %v4739 = vld [vmem:[#allocation13] sm:$0xff]
          %v4740 = vld [vmem:[#allocation13 + $0x8] sm:$0xff]
          %v4741 = vld [vmem:[#allocation13 + $0x10] sm:$0xff]
          %v4742 = vld [vmem:[#allocation13 + $0x18] sm:$0xff]
          %v4743 = vld [vmem:[#allocation13 + $0x20] sm:$0xff]
          %v4744 = vld [vmem:[#allocation13 + $0x28] sm:$0xff]
          %v4745 = vld [vmem:[#allocation13 + $0x30] sm:$0xff]
          %v4746 = vld [vmem:[#allocation13 + $0x38] sm:$0xff]
          %v4747 = vld [vmem:[#allocation13 + $0x40] sm:$0xff]
          %v4748 = vld [vmem:[#allocation13 + $0x48] sm:$0xff]
          %v4749 = vld [vmem:[#allocation13 + $0x50] sm:$0xff]
          %v4750 = vld [vmem:[#allocation13 + $0x58] sm:$0xff]
          %v4751 = vld [vmem:[#allocation13 + $0x60] sm:$0xff]
          %v4752 = vld [vmem:[#allocation13 + $0x68] sm:$0xff]
          %v4753 = vld [vmem:[#allocation13 + $0x70] sm:$0xff]
          %v4754 = vld [vmem:[#allocation13 + $0x78] sm:$0xff]
          %v4755 = vld [vmem:[#allocation13 + $0x80] sm:$0xff]
          %v4756 = vld [vmem:[#allocation13 + $0x88] sm:$0xff]
          %v4757 = vld [vmem:[#allocation13 + $0x90] sm:$0xff]
          %v4758 = vld [vmem:[#allocation13 + $0x98] sm:$0xff]
          %v4759 = vld [vmem:[#allocation13 + $0xa0] sm:$0xff]
          %v4760 = vld [vmem:[#allocation13 + $0xa8] sm:$0xff]
          %v4761 = vld [vmem:[#allocation13 + $0xb0] sm:$0xff]
          %v4762 = vld [vmem:[#allocation13 + $0xb8] sm:$0xff]
          %v4763 = vld [vmem:[#allocation13 + $0xc0] sm:$0xff]
          %v4764 = vld [vmem:[#allocation13 + $0xc8] sm:$0xff]
          %v4765 = vld [vmem:[#allocation13 + $0xd0] sm:$0xff]
          %v4766 = vld [vmem:[#allocation13 + $0xd8] sm:$0xff]
          %v4767 = vld [vmem:[#allocation13 + $0xe0] sm:$0xff]
          %v4768 = vld [vmem:[#allocation13 + $0xe8] sm:$0xff]
          %v4769 = vld [vmem:[#allocation13 + $0xf0] sm:$0xff]
          %v4770 = vld [vmem:[#allocation13 + $0xf8] sm:$0xff]
          %v4771 = vld [vmem:[#allocation13 + $0x100] sm:$0xff]
          %v4772 = vld [vmem:[#allocation13 + $0x108] sm:$0xff]
          %v4773 = vld [vmem:[#allocation13 + $0x110] sm:$0xff]
          %v4774 = vld [vmem:[#allocation13 + $0x118] sm:$0xff]
          %v4775 = vld [vmem:[#allocation13 + $0x120] sm:$0xff]
          %v4776 = vld [vmem:[#allocation13 + $0x128] sm:$0xff]
          %v4777 = vld [vmem:[#allocation13 + $0x130] sm:$0xff]
          %v4778 = vld [vmem:[#allocation13 + $0x138] sm:$0xff]
          %v4779 = vld [vmem:[#allocation13 + $0x140] sm:$0xff]
          %v4780 = vld [vmem:[#allocation13 + $0x148] sm:$0xff]
          %v4781 = vld [vmem:[#allocation13 + $0x150] sm:$0xff]
          %v4782 = vld [vmem:[#allocation13 + $0x158] sm:$0xff]
          %v4783 = vld [vmem:[#allocation13 + $0x160] sm:$0xff]
          %v4784 = vld [vmem:[#allocation13 + $0x168] sm:$0xff]
          %v4785 = vld [vmem:[#allocation13 + $0x170] sm:$0xff]
          %v4786 = vld [vmem:[#allocation13 + $0x178] sm:$0xff]
          %v4787 = vld [vmem:[#allocation13 + $0x180] sm:$0xff]
          %v4788 = vld [vmem:[#allocation13 + $0x188] sm:$0xff]
          %v4789 = vld [vmem:[#allocation13 + $0x190] sm:$0xff]
          %v4790 = vld [vmem:[#allocation13 + $0x198] sm:$0xff]
          %v4791 = vld [vmem:[#allocation13 + $0x1a0] sm:$0xff]
          %v4792 = vld [vmem:[#allocation13 + $0x1a8] sm:$0xff]
          %v4793 = vld [vmem:[#allocation13 + $0x1b0] sm:$0xff]
          %v4794 = vld [vmem:[#allocation13 + $0x1b8] sm:$0xff]
          %v4795 = vld [vmem:[#allocation13 + $0x1c0] sm:$0xff]
          %v4796 = vld [vmem:[#allocation13 + $0x1c8] sm:$0xff]
          %v4797 = vld [vmem:[#allocation13 + $0x1d0] sm:$0xff]
          %v4798 = vld [vmem:[#allocation13 + $0x1d8] sm:$0xff]
          %v4799 = vld [vmem:[#allocation13 + $0x1e0] sm:$0xff]
          %v4800 = vld [vmem:[#allocation13 + $0x1e8] sm:$0xff]
          %v4801 = vld [vmem:[#allocation13 + $0x1f0] sm:$0xff]
          %v4802 = vld [vmem:[#allocation13 + $0x1f8] sm:$0xff]
          %v4803 = vld [vmem:[#allocation13 + $0x200] sm:$0xff]
          %v4804 = vld [vmem:[#allocation13 + $0x208] sm:$0xff]
          %v4805 = vld [vmem:[#allocation13 + $0x210] sm:$0xff]
          %v4806 = vld [vmem:[#allocation13 + $0x218] sm:$0xff]
          %v4807 = vld [vmem:[#allocation13 + $0x220] sm:$0xff]
          %v4808 = vld [vmem:[#allocation13 + $0x228] sm:$0xff]
          %v4809 = vld [vmem:[#allocation13 + $0x230] sm:$0xff]
          %v4810 = vld [vmem:[#allocation13 + $0x238] sm:$0xff]
          %v4811 = vld [vmem:[#allocation13 + $0x240] sm:$0xff]
          %v4812 = vld [vmem:[#allocation13 + $0x248] sm:$0xff]
          %v4813 = vld [vmem:[#allocation13 + $0x250] sm:$0xff]
          %v4814 = vld [vmem:[#allocation13 + $0x258] sm:$0xff]
          %v4815 = vld [vmem:[#allocation13 + $0x260] sm:$0xff]
          %v4816 = vld [vmem:[#allocation13 + $0x268] sm:$0xff]
          %v4817 = vld [vmem:[#allocation13 + $0x270] sm:$0xff]
          %v4818 = vld [vmem:[#allocation13 + $0x278] sm:$0xff]
          %v4819 = vld [vmem:[#allocation13 + $0x280] sm:$0xff]
          %v4820 = vld [vmem:[#allocation13 + $0x288] sm:$0xff]
          %v4821 = vld [vmem:[#allocation13 + $0x290] sm:$0xff]
          %v4822 = vld [vmem:[#allocation13 + $0x298] sm:$0xff]
          %v4823 = vld [vmem:[#allocation13 + $0x2a0] sm:$0xff]
          %v4824 = vld [vmem:[#allocation13 + $0x2a8] sm:$0xff]
          %v4825 = vld [vmem:[#allocation13 + $0x2b0] sm:$0xff]
          %v4826 = vld [vmem:[#allocation13 + $0x2b8] sm:$0xff]
          %v4827 = vld [vmem:[#allocation13 + $0x2c0] sm:$0xff]
          %v4828 = vld [vmem:[#allocation13 + $0x2c8] sm:$0xff]
          %v4829 = vld [vmem:[#allocation13 + $0x2d0] sm:$0xff]
          %v4830 = vld [vmem:[#allocation13 + $0x2d8] sm:$0xff]
          %v4831 = vld [vmem:[#allocation13 + $0x2e0] sm:$0xff]
          %v4832 = vld [vmem:[#allocation13 + $0x2e8] sm:$0xff]
          %v4833 = vld [vmem:[#allocation13 + $0x2f0] sm:$0xff]
          %v4834 = vld [vmem:[#allocation13 + $0x2f8] sm:$0xff]
          %v4835 = vld [vmem:[#allocation13 + $0x300] sm:$0xff]
          %v4836 = vld [vmem:[#allocation13 + $0x308] sm:$0xff]
          %v4837 = vld [vmem:[#allocation13 + $0x310] sm:$0xff]
          %v4838 = vld [vmem:[#allocation13 + $0x318] sm:$0xff]
          %v4839 = vld [vmem:[#allocation13 + $0x320] sm:$0xff]
          %v4840 = vld [vmem:[#allocation13 + $0x328] sm:$0xff]
          %v4841 = vld [vmem:[#allocation13 + $0x330] sm:$0xff]
          %v4842 = vld [vmem:[#allocation13 + $0x338] sm:$0xff]
          %v4843 = vld [vmem:[#allocation13 + $0x340] sm:$0xff]
          %v4844 = vld [vmem:[#allocation13 + $0x348] sm:$0xff]
          %v4845 = vld [vmem:[#allocation13 + $0x350] sm:$0xff]
          %v4846 = vld [vmem:[#allocation13 + $0x358] sm:$0xff]
          %v4847 = vld [vmem:[#allocation13 + $0x360] sm:$0xff]
          %v4848 = vld [vmem:[#allocation13 + $0x368] sm:$0xff]
          %v4849 = vld [vmem:[#allocation13 + $0x370] sm:$0xff]
          %v4850 = vld [vmem:[#allocation13 + $0x378] sm:$0xff]
          %v4851 = vld [vmem:[#allocation13 + $0x380] sm:$0xff]
          %v4852 = vld [vmem:[#allocation13 + $0x388] sm:$0xff]
          %v4853 = vld [vmem:[#allocation13 + $0x390] sm:$0xff]
          %v4854 = vld [vmem:[#allocation13 + $0x398] sm:$0xff]
          %v4855 = vld [vmem:[#allocation13 + $0x3a0] sm:$0xff]
          %v4856 = vld [vmem:[#allocation13 + $0x3a8] sm:$0xff]
          %v4857 = vld [vmem:[#allocation13 + $0x3b0] sm:$0xff]
          %v4858 = vld [vmem:[#allocation13 + $0x3b8] sm:$0xff]
          %v4859 = vld [vmem:[#allocation13 + $0x3c0] sm:$0xff]
          %v4860 = vld [vmem:[#allocation13 + $0x3c8] sm:$0xff]
          %v4861 = vld [vmem:[#allocation13 + $0x3d0] sm:$0xff]
          %v4862 = vld [vmem:[#allocation13 + $0x3d8] sm:$0xff]
          %v4863 = vld [vmem:[#allocation13 + $0x3e0] sm:$0xff]
          %v4864 = vld [vmem:[#allocation13 + $0x3e8] sm:$0xff]
          %v4865 = vld [vmem:[#allocation13 + $0x3f0] sm:$0xff]
          %v4866 = vld [vmem:[#allocation13 + $0x3f8] sm:$0xff]
          %v4867 = vld [vmem:[%s9] ss:$8 sm:$0x3]
          %v4869 = vlaneseq
          %v4870 = vshrl.u32 %v4869, 7
          %v4871 = vsub.s32 0, %v4870
          %v4872 = vrot.slane %v4867, %v4871
          %v4873 = vlaneseq
          %v4874 = vshrl.u32 %v4873, 7
          %v4875 = vsub.s32 1, %v4874
          %v4876 = vrot.slane %v4867, %v4875
          %4879 = vmatprep.subr.mxu0 %v4740
          %4880 = vmatpush1.msra.mxu0 %v4739
          %4881 = vmatprep.subr.mxu0 %v4742
          %4882 = vmatpush1.msra.mxu0 %v4741
          %4883 = vmatprep.subr.mxu0 %v4744
          %4884 = vmatpush1.msra.mxu0 %v4743
          %4885 = vmatprep.subr.mxu0 %v4746
          %4886 = vmatpush1.msra.mxu0 %v4745
          %4887 = vmatprep.subr.mxu0 %v4748
          %4888 = vmatpush1.msra.mxu0 %v4747
          %4889 = vmatprep.subr.mxu0 %v4750
          %4890 = vmatpush1.msra.mxu0 %v4749
          %4891 = vmatprep.subr.mxu0 %v4752
          %4892 = vmatpush1.msra.mxu0 %v4751
          %4893 = vmatprep.subr.mxu0 %v4754
          %4894 = vmatpush1.msra.mxu0 %v4753
          %4895 = vmatprep.subr.mxu0 %v4756
          %4896 = vmatpush1.msra.mxu0 %v4755
          %4897 = vmatprep.subr.mxu0 %v4758
          %4898 = vmatpush1.msra.mxu0 %v4757
          %4899 = vmatprep.subr.mxu0 %v4760
          %4900 = vmatpush1.msra.mxu0 %v4759
          %4901 = vmatprep.subr.mxu0 %v4762
          %4902 = vmatpush1.msra.mxu0 %v4761
          %4903 = vmatprep.subr.mxu0 %v4764
          %4904 = vmatpush1.msra.mxu0 %v4763
          %4905 = vmatprep.subr.mxu0 %v4766
          %4906 = vmatpush1.msra.mxu0 %v4765
          %4907 = vmatprep.subr.mxu0 %v4768
          %4908 = vmatpush1.msra.mxu0 %v4767
          %4909 = vmatprep.subr.mxu0 %v4770
          %4910 = vmatpush1.msra.mxu0 %v4769
          %4911 = vmatprep.subr.mxu0 %v4772
          %4912 = vmatpush1.msra.mxu0 %v4771
          %4913 = vmatprep.subr.mxu0 %v4774
          %4914 = vmatpush1.msra.mxu0 %v4773
          %4915 = vmatprep.subr.mxu0 %v4776
          %4916 = vmatpush1.msra.mxu0 %v4775
          %4917 = vmatprep.subr.mxu0 %v4778
          %4918 = vmatpush1.msra.mxu0 %v4777
          %4919 = vmatprep.subr.mxu0 %v4780
          %4920 = vmatpush1.msra.mxu0 %v4779
          %4921 = vmatprep.subr.mxu0 %v4782
          %4922 = vmatpush1.msra.mxu0 %v4781
          %4923 = vmatprep.subr.mxu0 %v4784
          %4924 = vmatpush1.msra.mxu0 %v4783
          %4925 = vmatprep.subr.mxu0 %v4786
          %4926 = vmatpush1.msra.mxu0 %v4785
          %4927 = vmatprep.subr.mxu0 %v4788
          %4928 = vmatpush1.msra.mxu0 %v4787
          %4929 = vmatprep.subr.mxu0 %v4790
          %4930 = vmatpush1.msra.mxu0 %v4789
          %4931 = vmatprep.subr.mxu0 %v4792
          %4932 = vmatpush1.msra.mxu0 %v4791
          %4933 = vmatprep.subr.mxu0 %v4794
          %4934 = vmatpush1.msra.mxu0 %v4793
          %4935 = vmatprep.subr.mxu0 %v4796
          %4936 = vmatpush1.msra.mxu0 %v4795
          %4937 = vmatprep.subr.mxu0 %v4798
          %4938 = vmatpush1.msra.mxu0 %v4797
          %4939 = vmatprep.subr.mxu0 %v4800
          %4940 = vmatpush1.msra.mxu0 %v4799
          %4941 = vmatprep.subr.mxu0 %v4802
          %4942 = vmatpush1.msra.mxu0 %v4801
          %4943 = vmatprep.mubr.f32.mxu0 %v4260
          %4944 = vmatmul.mubr.f32.gmra.mrb[0].mxu0 %v4259
          %v4945 = vpop.f32.mrb[0].mxu0
          %v4946 = vadd.f32 %v4872, %v4945
          %v4947 = vpop.f32.mrb[0].mxu0
          %v4948 = vadd.f32 %v4876, %v4947
          %4949 = vmatprep.mubr.f32.mxu0 %v4328
          %4950 = vmatmul.mubr.f32.gmra.mrb[0].mxu0 %v4327
          %v4951 = vpop.f32.mrb[0].mxu0
          %v4952 = vadd.f32 %v4872, %v4951
          %v4953 = vpop.f32.mrb[0].mxu0
          %v4954 = vadd.f32 %v4876, %v4953
          %4955 = vmatprep.mubr.f32.mxu0 %v4396
          %4956 = vmatmul.mubr.f32.gmra.mrb[0].mxu0 %v4395
          %v4957 = vpop.f32.mrb[0].mxu0
          %v4958 = vadd.f32 %v4872, %v4957
          %v4959 = vpop.f32.mrb[0].mxu0
          %v4960 = vadd.f32 %v4876, %v4959
          %4961 = vmatprep.mubr.f32.mxu0 %v4464
          %4962 = vmatmul.mubr.f32.gmra.mrb[0].mxu0 %v4463
          %v4963 = vpop.f32.mrb[0].mxu0
          %v4964 = vadd.f32 %v4872, %v4963
          %v4965 = vpop.f32.mrb[0].mxu0
          %v4966 = vadd.f32 %v4876, %v4965
          %4967 = vmatprep.mubr.f32.mxu0 %v4532
          %4968 = vmatmul.mubr.f32.gmra.mrb[0].mxu0 %v4531
          %v4969 = vpop.f32.mrb[0].mxu0
          %v4970 = vadd.f32 %v4872, %v4969
          %v4971 = vpop.f32.mrb[0].mxu0
          %v4972 = vadd.f32 %v4876, %v4971
          %4973 = vmatprep.mubr.f32.mxu0 %v4600
          %4974 = vmatmul.mubr.f32.gmra.mrb[0].mxu0 %v4599
          %v4975 = vpop.f32.mrb[0].mxu0
          %v4976 = vadd.f32 %v4872, %v4975
          %v4977 = vpop.f32.mrb[0].mxu0
          %v4978 = vadd.f32 %v4876, %v4977
          %4979 = vmatprep.mubr.f32.mxu0 %v4668
          %4980 = vmatmul.mubr.f32.gmra.mrb[0].mxu0 %v4667
          %v4981 = vpop.f32.mrb[0].mxu0
          %v4982 = vadd.f32 %v4872, %v4981
          %v4983 = vpop.f32.mrb[0].mxu0
          %v4984 = vadd.f32 %v4876, %v4983
          %4985 = vmatprep.mubr.f32.mxu0 %v4736
          %4986 = vmatmul.mubr.f32.gmra.mrb[0].mxu0 %v4735
          %v4987 = vpop.f32.mrb[0].mxu0
          %v4988 = vadd.f32 %v4872, %v4987
          %v4989 = vpop.f32.mrb[0].mxu0
          %v4990 = vadd.f32 %v4876, %v4989
          %4991 = vdwg.mxu0
          %4992 = vmatprep.subr.mxu0 %v4804
          %4993 = vmatpush1.msra.mxu0 %v4803
          %4994 = vmatprep.subr.mxu0 %v4806
          %4995 = vmatpush1.msra.mxu0 %v4805
          %4996 = vmatprep.subr.mxu0 %v4808
          %4997 = vmatpush1.msra.mxu0 %v4807
          %4998 = vmatprep.subr.mxu0 %v4810
          %4999 = vmatpush1.msra.mxu0 %v4809
          %5000 = vmatprep.subr.mxu0 %v4812
          %5001 = vmatpush1.msra.mxu0 %v4811
          %5002 = vmatprep.subr.mxu0 %v4814
          %5003 = vmatpush1.msra.mxu0 %v4813
          %5004 = vmatprep.subr.mxu0 %v4816
          %5005 = vmatpush1.msra.mxu0 %v4815
          %5006 = vmatprep.subr.mxu0 %v4818
          %5007 = vmatpush1.msra.mxu0 %v4817
          %5008 = vmatprep.subr.mxu0 %v4820
          %5009 = vmatpush1.msra.mxu0 %v4819
          %5010 = vmatprep.subr.mxu0 %v4822
          %5011 = vmatpush1.msra.mxu0 %v4821
          %5012 = vmatprep.subr.mxu0 %v4824
          %5013 = vmatpush1.msra.mxu0 %v4823
          %5014 = vmatprep.subr.mxu0 %v4826
          %5015 = vmatpush1.msra.mxu0 %v4825
          %5016 = vmatprep.subr.mxu0 %v4828
          %5017 = vmatpush1.msra.mxu0 %v4827
          %5018 = vmatprep.subr.mxu0 %v4830
          %5019 = vmatpush1.msra.mxu0 %v4829
          %5020 = vmatprep.subr.mxu0 %v4832
          %5021 = vmatpush1.msra.mxu0 %v4831
          %5022 = vmatprep.subr.mxu0 %v4834
          %5023 = vmatpush1.msra.mxu0 %v4833
          %5024 = vmatprep.subr.mxu0 %v4836
          %5025 = vmatpush1.msra.mxu0 %v4835
          %5026 = vmatprep.subr.mxu0 %v4838
          %5027 = vmatpush1.msra.mxu0 %v4837
          %5028 = vmatprep.subr.mxu0 %v4840
          %5029 = vmatpush1.msra.mxu0 %v4839
          %5030 = vmatprep.subr.mxu0 %v4842
          %5031 = vmatpush1.msra.mxu0 %v4841
          %5032 = vmatprep.subr.mxu0 %v4844
          %5033 = vmatpush1.msra.mxu0 %v4843
          %5034 = vmatprep.subr.mxu0 %v4846
          %5035 = vmatpush1.msra.mxu0 %v4845
          %5036 = vmatprep.subr.mxu0 %v4848
          %5037 = vmatpush1.msra.mxu0 %v4847
          %5038 = vmatprep.subr.mxu0 %v4850
          %5039 = vmatpush1.msra.mxu0 %v4849
          %5040 = vmatprep.subr.mxu0 %v4852
          %5041 = vmatpush1.msra.mxu0 %v4851
          %5042 = vmatprep.subr.mxu0 %v4854
          %5043 = vmatpush1.msra.mxu0 %v4853
          %5044 = vmatprep.subr.mxu0 %v4856
          %5045 = vmatpush1.msra.mxu0 %v4855
          %5046 = vmatprep.subr.mxu0 %v4858
          %5047 = vmatpush1.msra.mxu0 %v4857
          %5048 = vmatprep.subr.mxu0 %v4860
          %5049 = vmatpush1.msra.mxu0 %v4859
          %5050 = vmatprep.subr.mxu0 %v4862
          %5051 = vmatpush1.msra.mxu0 %v4861
          %5052 = vmatprep.subr.mxu0 %v4864
          %5053 = vmatpush1.msra.mxu0 %v4863
          %5054 = vmatprep.subr.mxu0 %v4866
          %5055 = vmatpush1.msra.mxu0 %v4865
          %5056 = vmatprep.mubr.f32.mxu0 %v4262
          %5057 = vmatmul.mubr.f32.gmra.mrb[0].mxu0 %v4261
          %v5058 = vpop.f32.mrb[0].mxu0
          %v5059 = vadd.f32 %v4946, %v5058
          %v5060 = vpop.f32.mrb[0].mxu0
          %v5061 = vadd.f32 %v4948, %v5060
          %5062 = vmatprep.mubr.f32.mxu0 %v4330
          %5063 = vmatmul.mubr.f32.gmra.mrb[0].mxu0 %v4329
          %v5064 = vpop.f32.mrb[0].mxu0
          %v5065 = vadd.f32 %v4952, %v5064
          %v5066 = vpop.f32.mrb[0].mxu0
          %v5067 = vadd.f32 %v4954, %v5066
          %5068 = vmatprep.mubr.f32.mxu0 %v4398
          %5069 = vmatmul.mubr.f32.gmra.mrb[0].mxu0 %v4397
          %v5070 = vpop.f32.mrb[0].mxu0
          %v5071 = vadd.f32 %v4958, %v5070
          %v5072 = vpop.f32.mrb[0].mxu0
          %v5073 = vadd.f32 %v4960, %v5072
          %5074 = vmatprep.mubr.f32.mxu0 %v4466
          %5075 = vmatmul.mubr.f32.gmra.mrb[0].mxu0 %v4465
          %v5076 = vpop.f32.mrb[0].mxu0
          %v5077 = vadd.f32 %v4964, %v5076
          %v5078 = vpop.f32.mrb[0].mxu0
          %v5079 = vadd.f32 %v4966, %v5078
          %5080 = vmatprep.mubr.f32.mxu0 %v4534
          %5081 = vmatmul.mubr.f32.gmra.mrb[0].mxu0 %v4533
          %v5082 = vpop.f32.mrb[0].mxu0
          %v5083 = vadd.f32 %v4970, %v5082
          %v5084 = vpop.f32.mrb[0].mxu0
          %v5085 = vadd.f32 %v4972, %v5084
          %5086 = vmatprep.mubr.f32.mxu0 %v4602
          %5087 = vmatmul.mubr.f32.gmra.mrb[0].mxu0 %v4601
          %v5088 = vpop.f32.mrb[0].mxu0
          %v5089 = vadd.f32 %v4976, %v5088
          %v5090 = vpop.f32.mrb[0].mxu0
          %v5091 = vadd.f32 %v4978, %v5090
          %5092 = vmatprep.mubr.f32.mxu0 %v4670
          %5093 = vmatmul.mubr.f32.gmra.mrb[0].mxu0 %v4669
          %v5094 = vpop.f32.mrb[0].mxu0
          %v5095 = vadd.f32 %v4982, %v5094
          %v5096 = vpop.f32.mrb[0].mxu0
          %v5097 = vadd.f32 %v4984, %v5096
          %5098 = vmatprep.mubr.f32.mxu0 %v4738
          %5099 = vmatmul.mubr.f32.gmra.mrb[0].mxu0 %v4737
          %v5100 = vpop.f32.mrb[0].mxu0
          %v5101 = vadd.f32 %v4988, %v5100
          %v5102 = vpop.f32.mrb[0].mxu0
          %v5103 = vadd.f32 %v4990, %v5102
          %5104 = vdwg.mxu0
          %v5105 = vadd.f32 %v609, %v5059
          %v5106 = vadd.f32 %v610, %v5061
          %v5107 = vadd.f32 %v611, %v5065
          %v5108 = vadd.f32 %v612, %v5067
          %v5109 = vadd.f32 %v613, %v5071
          %v5110 = vadd.f32 %v614, %v5073
          %v5111 = vadd.f32 %v615, %v5077
          %v5112 = vadd.f32 %v616, %v5079
          %v5113 = vadd.f32 %v617, %v5083
          %v5114 = vadd.f32 %v618, %v5085
          %v5115 = vadd.f32 %v619, %v5089
          %v5116 = vadd.f32 %v620, %v5091
          %v5117 = vadd.f32 %v621, %v5095
          %v5118 = vadd.f32 %v622, %v5097
          %v5119 = vadd.f32 %v623, %v5101
          %v5120 = vadd.f32 %v624, %v5103
          %s5121 = scalar_lea.vmem %s9, 1
          %v5122 = vld [vmem:[%s5121] ss:$8 sm:$0x3]
          %s5123 = scalar_lea.vmem %s9, 2
          %v5124 = vld [vmem:[%s5123] ss:$8 sm:$0x3]
          %v5125 = vadd.f32 %v5105, %v5106
          %5126 = vadd.xlane.f32.xlu0 %v5125
          %v5127 = vpop.xlane.xlu0 %5126
          %v5128 = vadd.f32 %v5107, %v5108
          %5129 = vadd.xlane.f32.xlu0 %v5128
          %v5130 = vpop.xlane.xlu0 %5129
          %v5131 = vadd.f32 %v5109, %v5110
          %5132 = vadd.xlane.f32.xlu0 %v5131
          %v5133 = vpop.xlane.xlu0 %5132
          %v5134 = vadd.f32 %v5111, %v5112
          %5135 = vadd.xlane.f32.xlu0 %v5134
          %v5136 = vpop.xlane.xlu0 %5135
          %v5137 = vadd.f32 %v5113, %v5114
          %5138 = vadd.xlane.f32.xlu0 %v5137
          %v5139 = vpop.xlane.xlu0 %5138
          %v5140 = vadd.f32 %v5115, %v5116
          %5141 = vadd.xlane.f32.xlu0 %v5140
          %v5142 = vpop.xlane.xlu0 %5141
          %v5143 = vadd.f32 %v5117, %v5118
          %5144 = vadd.xlane.f32.xlu0 %v5143
          %v5145 = vpop.xlane.xlu0 %5144
          %v5146 = vadd.f32 %v5119, %v5120
          %5147 = vadd.xlane.f32.xlu0 %v5146
          %v5148 = vpop.xlane.xlu0 %5147
          %v5149 = vrcp.pop 256.0
          %v5150 = vmul.f32 %v5127, %v5149
          %v5151 = vmul.f32 %v5130, %v5149
          %v5152 = vmul.f32 %v5133, %v5149
          %v5153 = vmul.f32 %v5136, %v5149
          %v5154 = vmul.f32 %v5139, %v5149
          %v5155 = vmul.f32 %v5142, %v5149
          %v5156 = vmul.f32 %v5145, %v5149
          %v5157 = vmul.f32 %v5148, %v5149
          %v5158 = vsub.f32 %v5105, %v5150
          %v5159 = vsub.f32 %v5106, %v5150
          %v5160 = vsub.f32 %v5107, %v5151
          %v5161 = vsub.f32 %v5108, %v5151
          %v5162 = vsub.f32 %v5109, %v5152
          %v5163 = vsub.f32 %v5110, %v5152
          %v5164 = vsub.f32 %v5111, %v5153
          %v5165 = vsub.f32 %v5112, %v5153
          %v5166 = vsub.f32 %v5113, %v5154
          %v5167 = vsub.f32 %v5114, %v5154
          %v5168 = vsub.f32 %v5115, %v5155
          %v5169 = vsub.f32 %v5116, %v5155
          %v5170 = vsub.f32 %v5117, %v5156
          %v5171 = vsub.f32 %v5118, %v5156
          %v5172 = vsub.f32 %v5119, %v5157
          %v5173 = vsub.f32 %v5120, %v5157
          %v5174 = vmul.f32 %v5158, %v5158
          %v5175 = vmul.f32 %v5159, %v5159
          %v5176 = vmul.f32 %v5160, %v5160
          %v5177 = vmul.f32 %v5161, %v5161
          %v5178 = vmul.f32 %v5162, %v5162
          %v5179 = vmul.f32 %v5163, %v5163
          %v5180 = vmul.f32 %v5164, %v5164
          %v5181 = vmul.f32 %v5165, %v5165
          %v5182 = vmul.f32 %v5166, %v5166
          %v5183 = vmul.f32 %v5167, %v5167
          %v5184 = vmul.f32 %v5168, %v5168
          %v5185 = vmul.f32 %v5169, %v5169
          %v5186 = vmul.f32 %v5170, %v5170
          %v5187 = vmul.f32 %v5171, %v5171
          %v5188 = vmul.f32 %v5172, %v5172
          %v5189 = vmul.f32 %v5173, %v5173
          %v5190 = vadd.f32 %v5174, %v5175
          %5191 = vadd.xlane.f32.xlu0 %v5190
          %v5192 = vpop.xlane.xlu0 %5191
          %v5193 = vadd.f32 %v5176, %v5177
          %5194 = vadd.xlane.f32.xlu0 %v5193
          %v5195 = vpop.xlane.xlu0 %5194
          %v5196 = vadd.f32 %v5178, %v5179
          %5197 = vadd.xlane.f32.xlu0 %v5196
          %v5198 = vpop.xlane.xlu0 %5197
          %v5199 = vadd.f32 %v5180, %v5181
          %5200 = vadd.xlane.f32.xlu0 %v5199
          %v5201 = vpop.xlane.xlu0 %5200
          %v5202 = vadd.f32 %v5182, %v5183
          %5203 = vadd.xlane.f32.xlu0 %v5202
          %v5204 = vpop.xlane.xlu0 %5203
          %v5205 = vadd.f32 %v5184, %v5185
          %5206 = vadd.xlane.f32.xlu0 %v5205
          %v5207 = vpop.xlane.xlu0 %5206
          %v5208 = vadd.f32 %v5186, %v5187
          %5209 = vadd.xlane.f32.xlu0 %v5208
          %v5210 = vpop.xlane.xlu0 %5209
          %v5211 = vadd.f32 %v5188, %v5189
          %5212 = vadd.xlane.f32.xlu0 %v5211
          %v5213 = vpop.xlane.xlu0 %5212
          %v5214 = vmul.f32 %v5192, %v5149
          %v5215 = vmul.f32 %v5195, %v5149
          %v5216 = vmul.f32 %v5198, %v5149
          %v5217 = vmul.f32 %v5201, %v5149
          %v5218 = vmul.f32 %v5204, %v5149
          %v5219 = vmul.f32 %v5207, %v5149
          %v5220 = vmul.f32 %v5210, %v5149
          %v5221 = vmul.f32 %v5213, %v5149
          %v5222 = vadd.f32 %v5214, 1e-05
          %v5223 = vadd.f32 %v5215, 1e-05
          %v5224 = vadd.f32 %v5216, 1e-05
          %v5225 = vadd.f32 %v5217, 1e-05
          %v5226 = vadd.f32 %v5218, 1e-05
          %v5227 = vadd.f32 %v5219, 1e-05
          %v5228 = vadd.f32 %v5220, 1e-05
          %v5229 = vadd.f32 %v5221, 1e-05
          %v5230 = vrsqrt.pop %v5222
          %v5231 = vrsqrt.pop %v5223
          %v5232 = vrsqrt.pop %v5224
          %v5233 = vrsqrt.pop %v5225
          %v5234 = vrsqrt.pop %v5226
          %v5235 = vrsqrt.pop %v5227
          %v5236 = vrsqrt.pop %v5228
          %v5237 = vrsqrt.pop %v5229
          %v5238 = vmul.f32 %v5158, %v5230
          %v5239 = vmul.f32 %v5159, %v5230
          %v5240 = vmul.f32 %v5160, %v5231
          %v5241 = vmul.f32 %v5161, %v5231
          %v5242 = vmul.f32 %v5162, %v5232
          %v5243 = vmul.f32 %v5163, %v5232
          %v5244 = vmul.f32 %v5164, %v5233
          %v5245 = vmul.f32 %v5165, %v5233
          %v5246 = vmul.f32 %v5166, %v5234
          %v5247 = vmul.f32 %v5167, %v5234
          %v5248 = vmul.f32 %v5168, %v5235
          %v5249 = vmul.f32 %v5169, %v5235
          %v5250 = vmul.f32 %v5170, %v5236
          %v5251 = vmul.f32 %v5171, %v5236
          %v5252 = vmul.f32 %v5172, %v5237
          %v5253 = vmul.f32 %v5173, %v5237
          %v5255 = vlaneseq
          %v5256 = vshrl.u32 %v5255, 7
          %v5257 = vsub.s32 0, %v5256
          %v5258 = vrot.slane %v5122, %v5257
          %v5259 = vlaneseq
          %v5260 = vshrl.u32 %v5259, 7
          %v5261 = vsub.s32 1, %v5260
          %v5262 = vrot.slane %v5122, %v5261
          %v5265 = vmul.f32 %v5238, %v5258
          %v5266 = vmul.f32 %v5239, %v5262
          %v5267 = vmul.f32 %v5240, %v5258
          %v5268 = vmul.f32 %v5241, %v5262
          %v5269 = vmul.f32 %v5242, %v5258
          %v5270 = vmul.f32 %v5243, %v5262
          %v5271 = vmul.f32 %v5244, %v5258
          %v5272 = vmul.f32 %v5245, %v5262
          %v5273 = vmul.f32 %v5246, %v5258
          %v5274 = vmul.f32 %v5247, %v5262
          %v5275 = vmul.f32 %v5248, %v5258
          %v5276 = vmul.f32 %v5249, %v5262
          %v5277 = vmul.f32 %v5250, %v5258
          %v5278 = vmul.f32 %v5251, %v5262
          %v5279 = vmul.f32 %v5252, %v5258
          %v5280 = vmul.f32 %v5253, %v5262
          %v5282 = vlaneseq
          %v5283 = vshrl.u32 %v5282, 7
          %v5284 = vsub.s32 0, %v5283
          %v5285 = vrot.slane %v5124, %v5284
          %v5286 = vlaneseq
          %v5287 = vshrl.u32 %v5286, 7
          %v5288 = vsub.s32 1, %v5287
          %v5289 = vrot.slane %v5124, %v5288
          %v5292 = vadd.f32 %v5265, %v5285
          %v5293 = vadd.f32 %v5266, %v5289
          %v5294 = vadd.f32 %v5267, %v5285
          %v5295 = vadd.f32 %v5268, %v5289
          %v5296 = vadd.f32 %v5269, %v5285
          %v5297 = vadd.f32 %v5270, %v5289
          %v5298 = vadd.f32 %v5271, %v5285
          %v5299 = vadd.f32 %v5272, %v5289
          %v5300 = vadd.f32 %v5273, %v5285
          %v5301 = vadd.f32 %v5274, %v5289
          %v5302 = vadd.f32 %v5275, %v5285
          %v5303 = vadd.f32 %v5276, %v5289
          %v5304 = vadd.f32 %v5277, %v5285
          %v5305 = vadd.f32 %v5278, %v5289
          %v5306 = vadd.f32 %v5279, %v5285
          %v5307 = vadd.f32 %v5280, %v5289
          %5308 = vst [vmem:[#allocation2] sm:$0xff] %v5292
          %5309 = vst [vmem:[#allocation2 + $0x8] sm:$0xff] %v5293
          %5310 = vst [vmem:[#allocation2 + $0x10] sm:$0xff] %v5294
          %5311 = vst [vmem:[#allocation2 + $0x18] sm:$0xff] %v5295
          %5312 = vst [vmem:[#allocation2 + $0x20] sm:$0xff] %v5296
          %5313 = vst [vmem:[#allocation2 + $0x28] sm:$0xff] %v5297
          %5314 = vst [vmem:[#allocation2 + $0x30] sm:$0xff] %v5298
          %5315 = vst [vmem:[#allocation2 + $0x38] sm:$0xff] %v5299
          %5316 = vst [vmem:[#allocation2 + $0x40] sm:$0xff] %v5300
          %5317 = vst [vmem:[#allocation2 + $0x48] sm:$0xff] %v5301
          %5318 = vst [vmem:[#allocation2 + $0x50] sm:$0xff] %v5302
          %5319 = vst [vmem:[#allocation2 + $0x58] sm:$0xff] %v5303
          %5320 = vst [vmem:[#allocation2 + $0x60] sm:$0xff] %v5304
          %5321 = vst [vmem:[#allocation2 + $0x68] sm:$0xff] %v5305
          %5322 = vst [vmem:[#allocation2 + $0x70] sm:$0xff] %v5306
          %5323 = vst [vmem:[#allocation2 + $0x78] sm:$0xff] %v5307
          %5324 = vst [vmem:[#allocation3] sm:$0xff] 0.0
          %5325 = vst [vmem:[#allocation3 + $0x8] sm:$0xff] 0.0
          %5326 = vst [vmem:[#allocation3 + $0x10] sm:$0xff] 0.0
          %5327 = vst [vmem:[#allocation3 + $0x18] sm:$0xff] 0.0
          %5328 = vst [vmem:[#allocation3 + $0x20] sm:$0xff] 0.0
          %5329 = vst [vmem:[#allocation3 + $0x28] sm:$0xff] 0.0
          %5330 = vst [vmem:[#allocation3 + $0x30] sm:$0xff] 0.0
          %5331 = vst [vmem:[#allocation3 + $0x38] sm:$0xff] 0.0
          %5332 = vst [vmem:[#allocation3 + $0x40] sm:$0xff] 0.0
          %5333 = vst [vmem:[#allocation3 + $0x48] sm:$0xff] 0.0
          %5334 = vst [vmem:[#allocation3 + $0x50] sm:$0xff] 0.0
          %5335 = vst [vmem:[#allocation3 + $0x58] sm:$0xff] 0.0
          %5336 = vst [vmem:[#allocation3 + $0x60] sm:$0xff] 0.0
          %5337 = vst [vmem:[#allocation3 + $0x68] sm:$0xff] 0.0
          %5338 = vst [vmem:[#allocation3 + $0x70] sm:$0xff] 0.0
          %5339 = vst [vmem:[#allocation3 + $0x78] sm:$0xff] 0.0
        $region96: #{tpu_custom_call.1} parent=59 // pred_fallthru
          _
        %v5340 = vld [vmem:[#allocation2] sm:$0xff]
        %v5341 = vld [vmem:[#allocation2 + $0x8] sm:$0xff]
        %v5342 = vld [vmem:[#allocation2 + $0x10] sm:$0xff]
        %v5343 = vld [vmem:[#allocation2 + $0x18] sm:$0xff]
        %v5344 = vld [vmem:[#allocation2 + $0x20] sm:$0xff]
        %v5345 = vld [vmem:[#allocation2 + $0x28] sm:$0xff]
        %v5346 = vld [vmem:[#allocation2 + $0x30] sm:$0xff]
        %v5347 = vld [vmem:[#allocation2 + $0x38] sm:$0xff]
        %v5348 = vld [vmem:[#allocation2 + $0x40] sm:$0xff]
        %v5349 = vld [vmem:[#allocation2 + $0x48] sm:$0xff]
        %v5350 = vld [vmem:[#allocation2 + $0x50] sm:$0xff]
        %v5351 = vld [vmem:[#allocation2 + $0x58] sm:$0xff]
        %v5352 = vld [vmem:[#allocation2 + $0x60] sm:$0xff]
        %v5353 = vld [vmem:[#allocation2 + $0x68] sm:$0xff]
        %v5354 = vld [vmem:[#allocation2 + $0x70] sm:$0xff]
        %v5355 = vld [vmem:[#allocation2 + $0x78] sm:$0xff]
        %v5356 = vld [vmem:[%s499] sm:$0xff]
        %v5357 = vld [vmem:[%s499 + $0x8] sm:$0xff]
        %v5358 = vld [vmem:[%s499 + $0x10] sm:$0xff]
        %v5359 = vld [vmem:[%s499 + $0x18] sm:$0xff]
        %v5360 = vld [vmem:[%s499 + $0x20] sm:$0xff]
        %v5361 = vld [vmem:[%s499 + $0x28] sm:$0xff]
        %v5362 = vld [vmem:[%s499 + $0x30] sm:$0xff]
        %v5363 = vld [vmem:[%s499 + $0x38] sm:$0xff]
        %v5364 = vld [vmem:[%s499 + $0x40] sm:$0xff]
        %v5365 = vld [vmem:[%s499 + $0x48] sm:$0xff]
        %v5366 = vld [vmem:[%s499 + $0x50] sm:$0xff]
        %v5367 = vld [vmem:[%s499 + $0x58] sm:$0xff]
        %v5368 = vld [vmem:[%s499 + $0x60] sm:$0xff]
        %v5369 = vld [vmem:[%s499 + $0x68] sm:$0xff]
        %v5370 = vld [vmem:[%s499 + $0x70] sm:$0xff]
        %v5371 = vld [vmem:[%s499 + $0x78] sm:$0xff]
        %v5372 = vld [vmem:[%s499 + $0x80] sm:$0xff]
        %v5373 = vld [vmem:[%s499 + $0x88] sm:$0xff]
        %v5374 = vld [vmem:[%s499 + $0x90] sm:$0xff]
        %v5375 = vld [vmem:[%s499 + $0x98] sm:$0xff]
        %v5376 = vld [vmem:[%s499 + $0xa0] sm:$0xff]
        %v5377 = vld [vmem:[%s499 + $0xa8] sm:$0xff]
        %v5378 = vld [vmem:[%s499 + $0xb0] sm:$0xff]
        %v5379 = vld [vmem:[%s499 + $0xb8] sm:$0xff]
        %v5380 = vld [vmem:[%s499 + $0xc0] sm:$0xff]
        %v5381 = vld [vmem:[%s499 + $0xc8] sm:$0xff]
        %v5382 = vld [vmem:[%s499 + $0xd0] sm:$0xff]
        %v5383 = vld [vmem:[%s499 + $0xd8] sm:$0xff]
        %v5384 = vld [vmem:[%s499 + $0xe0] sm:$0xff]
        %v5385 = vld [vmem:[%s499 + $0xe8] sm:$0xff]
        %v5386 = vld [vmem:[%s499 + $0xf0] sm:$0xff]
        %v5387 = vld [vmem:[%s499 + $0xf8] sm:$0xff]
        %v5388 = vld [vmem:[%s499 + $0x100] sm:$0xff]
        %v5389 = vld [vmem:[%s499 + $0x108] sm:$0xff]
        %v5390 = vld [vmem:[%s499 + $0x110] sm:$0xff]
        %v5391 = vld [vmem:[%s499 + $0x118] sm:$0xff]
        %v5392 = vld [vmem:[%s499 + $0x120] sm:$0xff]
        %v5393 = vld [vmem:[%s499 + $0x128] sm:$0xff]
        %v5394 = vld [vmem:[%s499 + $0x130] sm:$0xff]
        %v5395 = vld [vmem:[%s499 + $0x138] sm:$0xff]
        %v5396 = vld [vmem:[%s499 + $0x140] sm:$0xff]
        %v5397 = vld [vmem:[%s499 + $0x148] sm:$0xff]
        %v5398 = vld [vmem:[%s499 + $0x150] sm:$0xff]
        %v5399 = vld [vmem:[%s499 + $0x158] sm:$0xff]
        %v5400 = vld [vmem:[%s499 + $0x160] sm:$0xff]
        %v5401 = vld [vmem:[%s499 + $0x168] sm:$0xff]
        %v5402 = vld [vmem:[%s499 + $0x170] sm:$0xff]
        %v5403 = vld [vmem:[%s499 + $0x178] sm:$0xff]
        %v5404 = vld [vmem:[%s499 + $0x180] sm:$0xff]
        %v5405 = vld [vmem:[%s499 + $0x188] sm:$0xff]
        %v5406 = vld [vmem:[%s499 + $0x190] sm:$0xff]
        %v5407 = vld [vmem:[%s499 + $0x198] sm:$0xff]
        %v5408 = vld [vmem:[%s499 + $0x1a0] sm:$0xff]
        %v5409 = vld [vmem:[%s499 + $0x1a8] sm:$0xff]
        %v5410 = vld [vmem:[%s499 + $0x1b0] sm:$0xff]
        %v5411 = vld [vmem:[%s499 + $0x1b8] sm:$0xff]
        %v5412 = vld [vmem:[%s499 + $0x1c0] sm:$0xff]
        %v5413 = vld [vmem:[%s499 + $0x1c8] sm:$0xff]
        %v5414 = vld [vmem:[%s499 + $0x1d0] sm:$0xff]
        %v5415 = vld [vmem:[%s499 + $0x1d8] sm:$0xff]
        %v5416 = vld [vmem:[%s499 + $0x1e0] sm:$0xff]
        %v5417 = vld [vmem:[%s499 + $0x1e8] sm:$0xff]
        %v5418 = vld [vmem:[%s499 + $0x1f0] sm:$0xff]
        %v5419 = vld [vmem:[%s499 + $0x1f8] sm:$0xff]
        %v5420 = vld [vmem:[%s563] sm:$0x3]
        %v5422 = vlaneseq
        %v5423 = vshrl.u32 %v5422, 7
        %v5424 = vsub.s32 0, %v5423
        %v5425 = vrot.slane %v5420, %v5424
        %v5426 = vlaneseq
        %v5427 = vshrl.u32 %v5426, 7
        %v5428 = vsub.s32 1, %v5427
        %v5429 = vrot.slane %v5420, %v5428
        %5432 = vmatprep.subr.mxu0 %v5357
        %5433 = vmatpush1.msra.mxu0 %v5356
        %5434 = vmatprep.subr.mxu0 %v5359
        %5435 = vmatpush1.msra.mxu0 %v5358
        %5436 = vmatprep.subr.mxu0 %v5361
        %5437 = vmatpush1.msra.mxu0 %v5360
        %5438 = vmatprep.subr.mxu0 %v5363
        %5439 = vmatpush1.msra.mxu0 %v5362
        %5440 = vmatprep.subr.mxu0 %v5365
        %5441 = vmatpush1.msra.mxu0 %v5364
        %5442 = vmatprep.subr.mxu0 %v5367
        %5443 = vmatpush1.msra.mxu0 %v5366
        %5444 = vmatprep.subr.mxu0 %v5369
        %5445 = vmatpush1.msra.mxu0 %v5368
        %5446 = vmatprep.subr.mxu0 %v5371
        %5447 = vmatpush1.msra.mxu0 %v5370
        %5448 = vmatprep.subr.mxu0 %v5373
        %5449 = vmatpush1.msra.mxu0 %v5372
        %5450 = vmatprep.subr.mxu0 %v5375
        %5451 = vmatpush1.msra.mxu0 %v5374
        %5452 = vmatprep.subr.mxu0 %v5377
        %5453 = vmatpush1.msra.mxu0 %v5376
        %5454 = vmatprep.subr.mxu0 %v5379
        %5455 = vmatpush1.msra.mxu0 %v5378
        %5456 = vmatprep.subr.mxu0 %v5381
        %5457 = vmatpush1.msra.mxu0 %v5380
        %5458 = vmatprep.subr.mxu0 %v5383
        %5459 = vmatpush1.msra.mxu0 %v5382
        %5460 = vmatprep.subr.mxu0 %v5385
        %5461 = vmatpush1.msra.mxu0 %v5384
        %5462 = vmatprep.subr.mxu0 %v5387
        %5463 = vmatpush1.msra.mxu0 %v5386
        %5464 = vmatprep.subr.mxu0 %v5389
        %5465 = vmatpush1.msra.mxu0 %v5388
        %5466 = vmatprep.subr.mxu0 %v5391
        %5467 = vmatpush1.msra.mxu0 %v5390
        %5468 = vmatprep.subr.mxu0 %v5393
        %5469 = vmatpush1.msra.mxu0 %v5392
        %5470 = vmatprep.subr.mxu0 %v5395
        %5471 = vmatpush1.msra.mxu0 %v5394
        %5472 = vmatprep.subr.mxu0 %v5397
        %5473 = vmatpush1.msra.mxu0 %v5396
        %5474 = vmatprep.subr.mxu0 %v5399
        %5475 = vmatpush1.msra.mxu0 %v5398
        %5476 = vmatprep.subr.mxu0 %v5401
        %5477 = vmatpush1.msra.mxu0 %v5400
        %5478 = vmatprep.subr.mxu0 %v5403
        %5479 = vmatpush1.msra.mxu0 %v5402
        %5480 = vmatprep.subr.mxu0 %v5405
        %5481 = vmatpush1.msra.mxu0 %v5404
        %5482 = vmatprep.subr.mxu0 %v5407
        %5483 = vmatpush1.msra.mxu0 %v5406
        %5484 = vmatprep.subr.mxu0 %v5409
        %5485 = vmatpush1.msra.mxu0 %v5408
        %5486 = vmatprep.subr.mxu0 %v5411
        %5487 = vmatpush1.msra.mxu0 %v5410
        %5488 = vmatprep.subr.mxu0 %v5413
        %5489 = vmatpush1.msra.mxu0 %v5412
        %5490 = vmatprep.subr.mxu0 %v5415
        %5491 = vmatpush1.msra.mxu0 %v5414
        %5492 = vmatprep.subr.mxu0 %v5417
        %5493 = vmatpush1.msra.mxu0 %v5416
        %5494 = vmatprep.subr.mxu0 %v5419
        %5495 = vmatpush1.msra.mxu0 %v5418
        %5496 = vmatprep.mubr.f32.mxu0 %v5341
        %5497 = vmatmul.mubr.f32.gmra.mrb[0].mxu0 %v5340
        %v5498 = vpop.f32.mrb[0].mxu0
        %v5499 = vadd.f32 %v5425, %v5498
        %v5500 = vpop.f32.mrb[0].mxu0
        %v5501 = vadd.f32 %v5429, %v5500
        %5502 = vmatprep.mubr.f32.mxu0 %v5343
        %5503 = vmatmul.mubr.f32.gmra.mrb[0].mxu0 %v5342
        %v5504 = vpop.f32.mrb[0].mxu0
        %v5505 = vadd.f32 %v5425, %v5504
        %v5506 = vpop.f32.mrb[0].mxu0
        %v5507 = vadd.f32 %v5429, %v5506
        %5508 = vmatprep.mubr.f32.mxu0 %v5345
        %5509 = vmatmul.mubr.f32.gmra.mrb[0].mxu0 %v5344
        %v5510 = vpop.f32.mrb[0].mxu0
        %v5511 = vadd.f32 %v5425, %v5510
        %v5512 = vpop.f32.mrb[0].mxu0
        %v5513 = vadd.f32 %v5429, %v5512
        %5514 = vmatprep.mubr.f32.mxu0 %v5347
        %5515 = vmatmul.mubr.f32.gmra.mrb[0].mxu0 %v5346
        %v5516 = vpop.f32.mrb[0].mxu0
        %v5517 = vadd.f32 %v5425, %v5516
        %v5518 = vpop.f32.mrb[0].mxu0
        %v5519 = vadd.f32 %v5429, %v5518
        %5520 = vmatprep.mubr.f32.mxu0 %v5349
        %5521 = vmatmul.mubr.f32.gmra.mrb[0].mxu0 %v5348
        %v5522 = vpop.f32.mrb[0].mxu0
        %v5523 = vadd.f32 %v5425, %v5522
        %v5524 = vpop.f32.mrb[0].mxu0
        %v5525 = vadd.f32 %v5429, %v5524
        %5526 = vmatprep.mubr.f32.mxu0 %v5351
        %5527 = vmatmul.mubr.f32.gmra.mrb[0].mxu0 %v5350
        %v5528 = vpop.f32.mrb[0].mxu0
        %v5529 = vadd.f32 %v5425, %v5528
        %v5530 = vpop.f32.mrb[0].mxu0
        %v5531 = vadd.f32 %v5429, %v5530
        %5532 = vmatprep.mubr.f32.mxu0 %v5353
        %5533 = vmatmul.mubr.f32.gmra.mrb[0].mxu0 %v5352
        %v5534 = vpop.f32.mrb[0].mxu0
        %v5535 = vadd.f32 %v5425, %v5534
        %v5536 = vpop.f32.mrb[0].mxu0
        %v5537 = vadd.f32 %v5429, %v5536
        %5538 = vmatprep.mubr.f32.mxu0 %v5355
        %5539 = vmatmul.mubr.f32.gmra.mrb[0].mxu0 %v5354
        %v5540 = vpop.f32.mrb[0].mxu0
        %v5541 = vadd.f32 %v5425, %v5540
        %v5542 = vpop.f32.mrb[0].mxu0
        %v5543 = vadd.f32 %v5429, %v5542
        %5544 = vdwg.mxu0
        %v5545 = vmax.f32 %v5499, 0.0
        %v5546 = vmax.f32 %v5501, 0.0
        %v5547 = vmax.f32 %v5505, 0.0
        %v5548 = vmax.f32 %v5507, 0.0
        %v5549 = vmax.f32 %v5511, 0.0
        %v5550 = vmax.f32 %v5513, 0.0
        %v5551 = vmax.f32 %v5517, 0.0
        %v5552 = vmax.f32 %v5519, 0.0
        %v5553 = vmax.f32 %v5523, 0.0
        %v5554 = vmax.f32 %v5525, 0.0
        %v5555 = vmax.f32 %v5529, 0.0
        %v5556 = vmax.f32 %v5531, 0.0
        %v5557 = vmax.f32 %v5535, 0.0
        %v5558 = vmax.f32 %v5537, 0.0
        %v5559 = vmax.f32 %v5541, 0.0
        %v5560 = vmax.f32 %v5543, 0.0
        %v5561 = vld [vmem:[#allocation3] sm:$0xff]
        %v5562 = vld [vmem:[#allocation3 + $0x8] sm:$0xff]
        %v5563 = vld [vmem:[#allocation3 + $0x10] sm:$0xff]
        %v5564 = vld [vmem:[#allocation3 + $0x18] sm:$0xff]
        %v5565 = vld [vmem:[#allocation3 + $0x20] sm:$0xff]
        %v5566 = vld [vmem:[#allocation3 + $0x28] sm:$0xff]
        %v5567 = vld [vmem:[#allocation3 + $0x30] sm:$0xff]
        %v5568 = vld [vmem:[#allocation3 + $0x38] sm:$0xff]
        %v5569 = vld [vmem:[#allocation3 + $0x40] sm:$0xff]
        %v5570 = vld [vmem:[#allocation3 + $0x48] sm:$0xff]
        %v5571 = vld [vmem:[#allocation3 + $0x50] sm:$0xff]
        %v5572 = vld [vmem:[#allocation3 + $0x58] sm:$0xff]
        %v5573 = vld [vmem:[#allocation3 + $0x60] sm:$0xff]
        %v5574 = vld [vmem:[#allocation3 + $0x68] sm:$0xff]
        %v5575 = vld [vmem:[#allocation3 + $0x70] sm:$0xff]
        %v5576 = vld [vmem:[#allocation3 + $0x78] sm:$0xff]
        %v5577 = vld [vmem:[%s508] sm:$0xff]
        %v5578 = vld [vmem:[%s508 + $0x8] sm:$0xff]
        %v5579 = vld [vmem:[%s508 + $0x10] sm:$0xff]
        %v5580 = vld [vmem:[%s508 + $0x18] sm:$0xff]
        %v5581 = vld [vmem:[%s508 + $0x20] sm:$0xff]
        %v5582 = vld [vmem:[%s508 + $0x28] sm:$0xff]
        %v5583 = vld [vmem:[%s508 + $0x30] sm:$0xff]
        %v5584 = vld [vmem:[%s508 + $0x38] sm:$0xff]
        %v5585 = vld [vmem:[%s508 + $0x40] sm:$0xff]
        %v5586 = vld [vmem:[%s508 + $0x48] sm:$0xff]
        %v5587 = vld [vmem:[%s508 + $0x50] sm:$0xff]
        %v5588 = vld [vmem:[%s508 + $0x58] sm:$0xff]
        %v5589 = vld [vmem:[%s508 + $0x60] sm:$0xff]
        %v5590 = vld [vmem:[%s508 + $0x68] sm:$0xff]
        %v5591 = vld [vmem:[%s508 + $0x70] sm:$0xff]
        %v5592 = vld [vmem:[%s508 + $0x78] sm:$0xff]
        %v5593 = vld [vmem:[%s508 + $0x80] sm:$0xff]
        %v5594 = vld [vmem:[%s508 + $0x88] sm:$0xff]
        %v5595 = vld [vmem:[%s508 + $0x90] sm:$0xff]
        %v5596 = vld [vmem:[%s508 + $0x98] sm:$0xff]
        %v5597 = vld [vmem:[%s508 + $0xa0] sm:$0xff]
        %v5598 = vld [vmem:[%s508 + $0xa8] sm:$0xff]
        %v5599 = vld [vmem:[%s508 + $0xb0] sm:$0xff]
        %v5600 = vld [vmem:[%s508 + $0xb8] sm:$0xff]
        %v5601 = vld [vmem:[%s508 + $0xc0] sm:$0xff]
        %v5602 = vld [vmem:[%s508 + $0xc8] sm:$0xff]
        %v5603 = vld [vmem:[%s508 + $0xd0] sm:$0xff]
        %v5604 = vld [vmem:[%s508 + $0xd8] sm:$0xff]
        %v5605 = vld [vmem:[%s508 + $0xe0] sm:$0xff]
        %v5606 = vld [vmem:[%s508 + $0xe8] sm:$0xff]
        %v5607 = vld [vmem:[%s508 + $0xf0] sm:$0xff]
        %v5608 = vld [vmem:[%s508 + $0xf8] sm:$0xff]
        %v5609 = vld [vmem:[%s508 + $0x100] sm:$0xff]
        %v5610 = vld [vmem:[%s508 + $0x108] sm:$0xff]
        %v5611 = vld [vmem:[%s508 + $0x110] sm:$0xff]
        %v5612 = vld [vmem:[%s508 + $0x118] sm:$0xff]
        %v5613 = vld [vmem:[%s508 + $0x120] sm:$0xff]
        %v5614 = vld [vmem:[%s508 + $0x128] sm:$0xff]
        %v5615 = vld [vmem:[%s508 + $0x130] sm:$0xff]
        %v5616 = vld [vmem:[%s508 + $0x138] sm:$0xff]
        %v5617 = vld [vmem:[%s508 + $0x140] sm:$0xff]
        %v5618 = vld [vmem:[%s508 + $0x148] sm:$0xff]
        %v5619 = vld [vmem:[%s508 + $0x150] sm:$0xff]
        %v5620 = vld [vmem:[%s508 + $0x158] sm:$0xff]
        %v5621 = vld [vmem:[%s508 + $0x160] sm:$0xff]
        %v5622 = vld [vmem:[%s508 + $0x168] sm:$0xff]
        %v5623 = vld [vmem:[%s508 + $0x170] sm:$0xff]
        %v5624 = vld [vmem:[%s508 + $0x178] sm:$0xff]
        %v5625 = vld [vmem:[%s508 + $0x180] sm:$0xff]
        %v5626 = vld [vmem:[%s508 + $0x188] sm:$0xff]
        %v5627 = vld [vmem:[%s508 + $0x190] sm:$0xff]
        %v5628 = vld [vmem:[%s508 + $0x198] sm:$0xff]
        %v5629 = vld [vmem:[%s508 + $0x1a0] sm:$0xff]
        %v5630 = vld [vmem:[%s508 + $0x1a8] sm:$0xff]
        %v5631 = vld [vmem:[%s508 + $0x1b0] sm:$0xff]
        %v5632 = vld [vmem:[%s508 + $0x1b8] sm:$0xff]
        %v5633 = vld [vmem:[%s508 + $0x1c0] sm:$0xff]
        %v5634 = vld [vmem:[%s508 + $0x1c8] sm:$0xff]
        %v5635 = vld [vmem:[%s508 + $0x1d0] sm:$0xff]
        %v5636 = vld [vmem:[%s508 + $0x1d8] sm:$0xff]
        %v5637 = vld [vmem:[%s508 + $0x1e0] sm:$0xff]
        %v5638 = vld [vmem:[%s508 + $0x1e8] sm:$0xff]
        %v5639 = vld [vmem:[%s508 + $0x1f0] sm:$0xff]
        %v5640 = vld [vmem:[%s508 + $0x1f8] sm:$0xff]
        %5641 = vmatprep.subr.mxu0 %v5578
        %5642 = vmatpush1.msra.mxu0 %v5577
        %5643 = vmatprep.subr.mxu0 %v5580
        %5644 = vmatpush1.msra.mxu0 %v5579
        %5645 = vmatprep.subr.mxu0 %v5582
        %5646 = vmatpush1.msra.mxu0 %v5581
        %5647 = vmatprep.subr.mxu0 %v5584
        %5648 = vmatpush1.msra.mxu0 %v5583
        %5649 = vmatprep.subr.mxu0 %v5586
        %5650 = vmatpush1.msra.mxu0 %v5585
        %5651 = vmatprep.subr.mxu0 %v5588
        %5652 = vmatpush1.msra.mxu0 %v5587
        %5653 = vmatprep.subr.mxu0 %v5590
        %5654 = vmatpush1.msra.mxu0 %v5589
        %5655 = vmatprep.subr.mxu0 %v5592
        %5656 = vmatpush1.msra.mxu0 %v5591
        %5657 = vmatprep.subr.mxu0 %v5594
        %5658 = vmatpush1.msra.mxu0 %v5593
        %5659 = vmatprep.subr.mxu0 %v5596
        %5660 = vmatpush1.msra.mxu0 %v5595
        %5661 = vmatprep.subr.mxu0 %v5598
        %5662 = vmatpush1.msra.mxu0 %v5597
        %5663 = vmatprep.subr.mxu0 %v5600
        %5664 = vmatpush1.msra.mxu0 %v5599
        %5665 = vmatprep.subr.mxu0 %v5602
        %5666 = vmatpush1.msra.mxu0 %v5601
        %5667 = vmatprep.subr.mxu0 %v5604
        %5668 = vmatpush1.msra.mxu0 %v5603
        %5669 = vmatprep.subr.mxu0 %v5606
        %5670 = vmatpush1.msra.mxu0 %v5605
        %5671 = vmatprep.subr.mxu0 %v5608
        %5672 = vmatpush1.msra.mxu0 %v5607
        %5673 = vmatprep.subr.mxu0 %v5610
        %5674 = vmatpush1.msra.mxu0 %v5609
        %5675 = vmatprep.subr.mxu0 %v5612
        %5676 = vmatpush1.msra.mxu0 %v5611
        %5677 = vmatprep.subr.mxu0 %v5614
        %5678 = vmatpush1.msra.mxu0 %v5613
        %5679 = vmatprep.subr.mxu0 %v5616
        %5680 = vmatpush1.msra.mxu0 %v5615
        %5681 = vmatprep.subr.mxu0 %v5618
        %5682 = vmatpush1.msra.mxu0 %v5617
        %5683 = vmatprep.subr.mxu0 %v5620
        %5684 = vmatpush1.msra.mxu0 %v5619
        %5685 = vmatprep.subr.mxu0 %v5622
        %5686 = vmatpush1.msra.mxu0 %v5621
        %5687 = vmatprep.subr.mxu0 %v5624
        %5688 = vmatpush1.msra.mxu0 %v5623
        %5689 = vmatprep.subr.mxu0 %v5626
        %5690 = vmatpush1.msra.mxu0 %v5625
        %5691 = vmatprep.subr.mxu0 %v5628
        %5692 = vmatpush1.msra.mxu0 %v5627
        %5693 = vmatprep.subr.mxu0 %v5630
        %5694 = vmatpush1.msra.mxu0 %v5629
        %5695 = vmatprep.subr.mxu0 %v5632
        %5696 = vmatpush1.msra.mxu0 %v5631
        %5697 = vmatprep.subr.mxu0 %v5634
        %5698 = vmatpush1.msra.mxu0 %v5633
        %5699 = vmatprep.subr.mxu0 %v5636
        %5700 = vmatpush1.msra.mxu0 %v5635
        %5701 = vmatprep.subr.mxu0 %v5638
        %5702 = vmatpush1.msra.mxu0 %v5637
        %5703 = vmatprep.subr.mxu0 %v5640
        %5704 = vmatpush1.msra.mxu0 %v5639
        %5705 = vmatprep.mubr.f32.mxu0 %v5546
        %5706 = vmatmul.mubr.f32.gmra.mrb[0].mxu0 %v5545
        %v5707 = vpop.f32.mrb[0].mxu0
        %v5708 = vadd.f32 0.0, %v5707
        %v5709 = vpop.f32.mrb[0].mxu0
        %v5710 = vadd.f32 0.0, %v5709
        %5711 = vmatprep.mubr.f32.mxu0 %v5548
        %5712 = vmatmul.mubr.f32.gmra.mrb[0].mxu0 %v5547
        %v5713 = vpop.f32.mrb[0].mxu0
        %v5714 = vadd.f32 0.0, %v5713
        %v5715 = vpop.f32.mrb[0].mxu0
        %v5716 = vadd.f32 0.0, %v5715
        %5717 = vmatprep.mubr.f32.mxu0 %v5550
        %5718 = vmatmul.mubr.f32.gmra.mrb[0].mxu0 %v5549
        %v5719 = vpop.f32.mrb[0].mxu0
        %v5720 = vadd.f32 0.0, %v5719
        %v5721 = vpop.f32.mrb[0].mxu0
        %v5722 = vadd.f32 0.0, %v5721
        %5723 = vmatprep.mubr.f32.mxu0 %v5552
        %5724 = vmatmul.mubr.f32.gmra.mrb[0].mxu0 %v5551
        %v5725 = vpop.f32.mrb[0].mxu0
        %v5726 = vadd.f32 0.0, %v5725
        %v5727 = vpop.f32.mrb[0].mxu0
        %v5728 = vadd.f32 0.0, %v5727
        %5729 = vmatprep.mubr.f32.mxu0 %v5554
        %5730 = vmatmul.mubr.f32.gmra.mrb[0].mxu0 %v5553
        %v5731 = vpop.f32.mrb[0].mxu0
        %v5732 = vadd.f32 0.0, %v5731
        %v5733 = vpop.f32.mrb[0].mxu0
        %v5734 = vadd.f32 0.0, %v5733
        %5735 = vmatprep.mubr.f32.mxu0 %v5556
        %5736 = vmatmul.mubr.f32.gmra.mrb[0].mxu0 %v5555
        %v5737 = vpop.f32.mrb[0].mxu0
        %v5738 = vadd.f32 0.0, %v5737
        %v5739 = vpop.f32.mrb[0].mxu0
        %v5740 = vadd.f32 0.0, %v5739
        %5741 = vmatprep.mubr.f32.mxu0 %v5558
        %5742 = vmatmul.mubr.f32.gmra.mrb[0].mxu0 %v5557
        %v5743 = vpop.f32.mrb[0].mxu0
        %v5744 = vadd.f32 0.0, %v5743
        %v5745 = vpop.f32.mrb[0].mxu0
        %v5746 = vadd.f32 0.0, %v5745
        %5747 = vmatprep.mubr.f32.mxu0 %v5560
        %5748 = vmatmul.mubr.f32.gmra.mrb[0].mxu0 %v5559
        %v5749 = vpop.f32.mrb[0].mxu0
        %v5750 = vadd.f32 0.0, %v5749
        %v5751 = vpop.f32.mrb[0].mxu0
        %v5752 = vadd.f32 0.0, %v5751
        %5753 = vdwg.mxu0
        %v5754 = vadd.f32 %v5561, %v5708
        %v5755 = vadd.f32 %v5562, %v5710
        %v5756 = vadd.f32 %v5563, %v5714
        %v5757 = vadd.f32 %v5564, %v5716
        %v5758 = vadd.f32 %v5565, %v5720
        %v5759 = vadd.f32 %v5566, %v5722
        %v5760 = vadd.f32 %v5567, %v5726
        %v5761 = vadd.f32 %v5568, %v5728
        %v5762 = vadd.f32 %v5569, %v5732
        %v5763 = vadd.f32 %v5570, %v5734
        %v5764 = vadd.f32 %v5571, %v5738
        %v5765 = vadd.f32 %v5572, %v5740
        %v5766 = vadd.f32 %v5573, %v5744
        %v5767 = vadd.f32 %v5574, %v5746
        %v5768 = vadd.f32 %v5575, %v5750
        %v5769 = vadd.f32 %v5576, %v5752
        %5770 = vst [vmem:[#allocation3] sm:$0xff] %v5754
        %5771 = vst [vmem:[#allocation3 + $0x8] sm:$0xff] %v5755
        %5772 = vst [vmem:[#allocation3 + $0x10] sm:$0xff] %v5756
        %5773 = vst [vmem:[#allocation3 + $0x18] sm:$0xff] %v5757
        %5774 = vst [vmem:[#allocation3 + $0x20] sm:$0xff] %v5758
        %5775 = vst [vmem:[#allocation3 + $0x28] sm:$0xff] %v5759
        %5776 = vst [vmem:[#allocation3 + $0x30] sm:$0xff] %v5760
        %5777 = vst [vmem:[#allocation3 + $0x38] sm:$0xff] %v5761
        %5778 = vst [vmem:[#allocation3 + $0x40] sm:$0xff] %v5762
        %5779 = vst [vmem:[#allocation3 + $0x48] sm:$0xff] %v5763
        %5780 = vst [vmem:[#allocation3 + $0x50] sm:$0xff] %v5764
        %5781 = vst [vmem:[#allocation3 + $0x58] sm:$0xff] %v5765
        %5782 = vst [vmem:[#allocation3 + $0x60] sm:$0xff] %v5766
        %5783 = vst [vmem:[#allocation3 + $0x68] sm:$0xff] %v5767
        %5784 = vst [vmem:[#allocation3 + $0x70] sm:$0xff] %v5768
        %5785 = vst [vmem:[#allocation3 + $0x78] sm:$0xff] %v5769
        %p5786 = scmp.eq.s32.totalorder %s37, 1
        // Predicated region
        $region97: #{tpu_custom_call.1} parent=59 // pred_check
          %p5787 = pneg %p5786
        $region98: #{tpu_custom_call.1} parent=59 // pred_check_branch
          %5789 = sbr.rel (%p5787) target = $region100
        $region99: #{tpu_custom_call.1} parent=59 // pred_region
          %v5790 = vld [vmem:[#allocation3] sm:$0xff]
          %v5791 = vld [vmem:[#allocation3 + $0x8] sm:$0xff]
          %v5792 = vld [vmem:[#allocation3 + $0x10] sm:$0xff]
          %v5793 = vld [vmem:[#allocation3 + $0x18] sm:$0xff]
          %v5794 = vld [vmem:[#allocation3 + $0x20] sm:$0xff]
          %v5795 = vld [vmem:[#allocation3 + $0x28] sm:$0xff]
          %v5796 = vld [vmem:[#allocation3 + $0x30] sm:$0xff]
          %v5797 = vld [vmem:[#allocation3 + $0x38] sm:$0xff]
          %v5798 = vld [vmem:[#allocation3 + $0x40] sm:$0xff]
          %v5799 = vld [vmem:[#allocation3 + $0x48] sm:$0xff]
          %v5800 = vld [vmem:[#allocation3 + $0x50] sm:$0xff]
          %v5801 = vld [vmem:[#allocation3 + $0x58] sm:$0xff]
          %v5802 = vld [vmem:[#allocation3 + $0x60] sm:$0xff]
          %v5803 = vld [vmem:[#allocation3 + $0x68] sm:$0xff]
          %v5804 = vld [vmem:[#allocation3 + $0x70] sm:$0xff]
          %v5805 = vld [vmem:[#allocation3 + $0x78] sm:$0xff]
          %s5806 = scalar_lea.vmem %s9, 3
          %v5807 = vld [vmem:[%s5806] ss:$8 sm:$0x3]
          %v5809 = vlaneseq
          %v5810 = vshrl.u32 %v5809, 7
          %v5811 = vsub.s32 0, %v5810
          %v5812 = vrot.slane %v5807, %v5811
          %v5813 = vlaneseq
          %v5814 = vshrl.u32 %v5813, 7
          %v5815 = vsub.s32 1, %v5814
          %v5816 = vrot.slane %v5807, %v5815
          %v5819 = vadd.f32 %v5790, %v5812
          %v5820 = vadd.f32 %v5791, %v5816
          %v5821 = vadd.f32 %v5792, %v5812
          %v5822 = vadd.f32 %v5793, %v5816
          %v5823 = vadd.f32 %v5794, %v5812
          %v5824 = vadd.f32 %v5795, %v5816
          %v5825 = vadd.f32 %v5796, %v5812
          %v5826 = vadd.f32 %v5797, %v5816
          %v5827 = vadd.f32 %v5798, %v5812
          %v5828 = vadd.f32 %v5799, %v5816
          %v5829 = vadd.f32 %v5800, %v5812
          %v5830 = vadd.f32 %v5801, %v5816
          %v5831 = vadd.f32 %v5802, %v5812
          %v5832 = vadd.f32 %v5803, %v5816
          %v5833 = vadd.f32 %v5804, %v5812
          %v5834 = vadd.f32 %v5805, %v5816
          %v5835 = vld [vmem:[#allocation2] sm:$0xff]
          %v5836 = vld [vmem:[#allocation2 + $0x8] sm:$0xff]
          %v5837 = vld [vmem:[#allocation2 + $0x10] sm:$0xff]
          %v5838 = vld [vmem:[#allocation2 + $0x18] sm:$0xff]
          %v5839 = vld [vmem:[#allocation2 + $0x20] sm:$0xff]
          %v5840 = vld [vmem:[#allocation2 + $0x28] sm:$0xff]
          %v5841 = vld [vmem:[#allocation2 + $0x30] sm:$0xff]
          %v5842 = vld [vmem:[#allocation2 + $0x38] sm:$0xff]
          %v5843 = vld [vmem:[#allocation2 + $0x40] sm:$0xff]
          %v5844 = vld [vmem:[#allocation2 + $0x48] sm:$0xff]
          %v5845 = vld [vmem:[#allocation2 + $0x50] sm:$0xff]
          %v5846 = vld [vmem:[#allocation2 + $0x58] sm:$0xff]
          %v5847 = vld [vmem:[#allocation2 + $0x60] sm:$0xff]
          %v5848 = vld [vmem:[#allocation2 + $0x68] sm:$0xff]
          %v5849 = vld [vmem:[#allocation2 + $0x70] sm:$0xff]
          %v5850 = vld [vmem:[#allocation2 + $0x78] sm:$0xff]
          %v5851 = vadd.f32 %v5819, %v5835
          %v5852 = vadd.f32 %v5820, %v5836
          %v5853 = vadd.f32 %v5821, %v5837
          %v5854 = vadd.f32 %v5822, %v5838
          %v5855 = vadd.f32 %v5823, %v5839
          %v5856 = vadd.f32 %v5824, %v5840
          %v5857 = vadd.f32 %v5825, %v5841
          %v5858 = vadd.f32 %v5826, %v5842
          %v5859 = vadd.f32 %v5827, %v5843
          %v5860 = vadd.f32 %v5828, %v5844
          %v5861 = vadd.f32 %v5829, %v5845
          %v5862 = vadd.f32 %v5830, %v5846
          %v5863 = vadd.f32 %v5831, %v5847
          %v5864 = vadd.f32 %v5832, %v5848
          %v5865 = vadd.f32 %v5833, %v5849
          %v5866 = vadd.f32 %v5834, %v5850
          %s5867 = scalar_lea.vmem %s9, 4
          %v5868 = vld [vmem:[%s5867] ss:$8 sm:$0x3]
          %s5869 = scalar_lea.vmem %s9, 5
          %v5870 = vld [vmem:[%s5869] ss:$8 sm:$0x3]
          %v5871 = vadd.f32 %v5851, %v5852
          %5872 = vadd.xlane.f32.xlu0 %v5871
          %v5873 = vpop.xlane.xlu0 %5872
          %v5874 = vadd.f32 %v5853, %v5854
          %5875 = vadd.xlane.f32.xlu0 %v5874
          %v5876 = vpop.xlane.xlu0 %5875
          %v5877 = vadd.f32 %v5855, %v5856
          %5878 = vadd.xlane.f32.xlu0 %v5877
          %v5879 = vpop.xlane.xlu0 %5878
          %v5880 = vadd.f32 %v5857, %v5858
          %5881 = vadd.xlane.f32.xlu0 %v5880
          %v5882 = vpop.xlane.xlu0 %5881
          %v5883 = vadd.f32 %v5859, %v5860
          %5884 = vadd.xlane.f32.xlu0 %v5883
          %v5885 = vpop.xlane.xlu0 %5884
          %v5886 = vadd.f32 %v5861, %v5862
          %5887 = vadd.xlane.f32.xlu0 %v5886
          %v5888 = vpop.xlane.xlu0 %5887
          %v5889 = vadd.f32 %v5863, %v5864
          %5890 = vadd.xlane.f32.xlu0 %v5889
          %v5891 = vpop.xlane.xlu0 %5890
          %v5892 = vadd.f32 %v5865, %v5866
          %5893 = vadd.xlane.f32.xlu0 %v5892
          %v5894 = vpop.xlane.xlu0 %5893
          %v5895 = vrcp.pop 256.0
          %v5896 = vmul.f32 %v5873, %v5895
          %v5897 = vmul.f32 %v5876, %v5895
          %v5898 = vmul.f32 %v5879, %v5895
          %v5899 = vmul.f32 %v5882, %v5895
          %v5900 = vmul.f32 %v5885, %v5895
          %v5901 = vmul.f32 %v5888, %v5895
          %v5902 = vmul.f32 %v5891, %v5895
          %v5903 = vmul.f32 %v5894, %v5895
          %v5904 = vsub.f32 %v5851, %v5896
          %v5905 = vsub.f32 %v5852, %v5896
          %v5906 = vsub.f32 %v5853, %v5897
          %v5907 = vsub.f32 %v5854, %v5897
          %v5908 = vsub.f32 %v5855, %v5898
          %v5909 = vsub.f32 %v5856, %v5898
          %v5910 = vsub.f32 %v5857, %v5899
          %v5911 = vsub.f32 %v5858, %v5899
          %v5912 = vsub.f32 %v5859, %v5900
          %v5913 = vsub.f32 %v5860, %v5900
          %v5914 = vsub.f32 %v5861, %v5901
          %v5915 = vsub.f32 %v5862, %v5901
          %v5916 = vsub.f32 %v5863, %v5902
          %v5917 = vsub.f32 %v5864, %v5902
          %v5918 = vsub.f32 %v5865, %v5903
          %v5919 = vsub.f32 %v5866, %v5903
          %v5920 = vmul.f32 %v5904, %v5904
          %v5921 = vmul.f32 %v5905, %v5905
          %v5922 = vmul.f32 %v5906, %v5906
          %v5923 = vmul.f32 %v5907, %v5907
          %v5924 = vmul.f32 %v5908, %v5908
          %v5925 = vmul.f32 %v5909, %v5909
          %v5926 = vmul.f32 %v5910, %v5910
          %v5927 = vmul.f32 %v5911, %v5911
          %v5928 = vmul.f32 %v5912, %v5912
          %v5929 = vmul.f32 %v5913, %v5913
          %v5930 = vmul.f32 %v5914, %v5914
          %v5931 = vmul.f32 %v5915, %v5915
          %v5932 = vmul.f32 %v5916, %v5916
          %v5933 = vmul.f32 %v5917, %v5917
          %v5934 = vmul.f32 %v5918, %v5918
          %v5935 = vmul.f32 %v5919, %v5919
          %v5936 = vadd.f32 %v5920, %v5921
          %5937 = vadd.xlane.f32.xlu0 %v5936
          %v5938 = vpop.xlane.xlu0 %5937
          %v5939 = vadd.f32 %v5922, %v5923
          %5940 = vadd.xlane.f32.xlu0 %v5939
          %v5941 = vpop.xlane.xlu0 %5940
          %v5942 = vadd.f32 %v5924, %v5925
          %5943 = vadd.xlane.f32.xlu0 %v5942
          %v5944 = vpop.xlane.xlu0 %5943
          %v5945 = vadd.f32 %v5926, %v5927
          %5946 = vadd.xlane.f32.xlu0 %v5945
          %v5947 = vpop.xlane.xlu0 %5946
          %v5948 = vadd.f32 %v5928, %v5929
          %5949 = vadd.xlane.f32.xlu0 %v5948
          %v5950 = vpop.xlane.xlu0 %5949
          %v5951 = vadd.f32 %v5930, %v5931
          %5952 = vadd.xlane.f32.xlu0 %v5951
          %v5953 = vpop.xlane.xlu0 %5952
          %v5954 = vadd.f32 %v5932, %v5933
          %5955 = vadd.xlane.f32.xlu0 %v5954
          %v5956 = vpop.xlane.xlu0 %5955
          %v5957 = vadd.f32 %v5934, %v5935
          %5958 = vadd.xlane.f32.xlu0 %v5957
          %v5959 = vpop.xlane.xlu0 %5958
          %v5960 = vmul.f32 %v5938, %v5895
          %v5961 = vmul.f32 %v5941, %v5895
          %v5962 = vmul.f32 %v5944, %v5895
          %v5963 = vmul.f32 %v5947, %v5895
          %v5964 = vmul.f32 %v5950, %v5895
          %v5965 = vmul.f32 %v5953, %v5895
          %v5966 = vmul.f32 %v5956, %v5895
          %v5967 = vmul.f32 %v5959, %v5895
          %v5968 = vadd.f32 %v5960, 1e-05
          %v5969 = vadd.f32 %v5961, 1e-05
          %v5970 = vadd.f32 %v5962, 1e-05
          %v5971 = vadd.f32 %v5963, 1e-05
          %v5972 = vadd.f32 %v5964, 1e-05
          %v5973 = vadd.f32 %v5965, 1e-05
          %v5974 = vadd.f32 %v5966, 1e-05
          %v5975 = vadd.f32 %v5967, 1e-05
          %v5976 = vrsqrt.pop %v5968
          %v5977 = vrsqrt.pop %v5969
          %v5978 = vrsqrt.pop %v5970
          %v5979 = vrsqrt.pop %v5971
          %v5980 = vrsqrt.pop %v5972
          %v5981 = vrsqrt.pop %v5973
          %v5982 = vrsqrt.pop %v5974
          %v5983 = vrsqrt.pop %v5975
          %v5984 = vmul.f32 %v5904, %v5976
          %v5985 = vmul.f32 %v5905, %v5976
          %v5986 = vmul.f32 %v5906, %v5977
          %v5987 = vmul.f32 %v5907, %v5977
          %v5988 = vmul.f32 %v5908, %v5978
          %v5989 = vmul.f32 %v5909, %v5978
          %v5990 = vmul.f32 %v5910, %v5979
          %v5991 = vmul.f32 %v5911, %v5979
          %v5992 = vmul.f32 %v5912, %v5980
          %v5993 = vmul.f32 %v5913, %v5980
          %v5994 = vmul.f32 %v5914, %v5981
          %v5995 = vmul.f32 %v5915, %v5981
          %v5996 = vmul.f32 %v5916, %v5982
          %v5997 = vmul.f32 %v5917, %v5982
          %v5998 = vmul.f32 %v5918, %v5983
          %v5999 = vmul.f32 %v5919, %v5983
          %v6001 = vlaneseq
          %v6002 = vshrl.u32 %v6001, 7
          %v6003 = vsub.s32 0, %v6002
          %v6004 = vrot.slane %v5868, %v6003
          %v6005 = vlaneseq
          %v6006 = vshrl.u32 %v6005, 7
          %v6007 = vsub.s32 1, %v6006
          %v6008 = vrot.slane %v5868, %v6007
          %v6011 = vmul.f32 %v5984, %v6004
          %v6012 = vmul.f32 %v5985, %v6008
          %v6013 = vmul.f32 %v5986, %v6004
          %v6014 = vmul.f32 %v5987, %v6008
          %v6015 = vmul.f32 %v5988, %v6004
          %v6016 = vmul.f32 %v5989, %v6008
          %v6017 = vmul.f32 %v5990, %v6004
          %v6018 = vmul.f32 %v5991, %v6008
          %v6019 = vmul.f32 %v5992, %v6004
          %v6020 = vmul.f32 %v5993, %v6008
          %v6021 = vmul.f32 %v5994, %v6004
          %v6022 = vmul.f32 %v5995, %v6008
          %v6023 = vmul.f32 %v5996, %v6004
          %v6024 = vmul.f32 %v5997, %v6008
          %v6025 = vmul.f32 %v5998, %v6004
          %v6026 = vmul.f32 %v5999, %v6008
          %v6028 = vlaneseq
          %v6029 = vshrl.u32 %v6028, 7
          %v6030 = vsub.s32 0, %v6029
          %v6031 = vrot.slane %v5870, %v6030
          %v6032 = vlaneseq
          %v6033 = vshrl.u32 %v6032, 7
          %v6034 = vsub.s32 1, %v6033
          %v6035 = vrot.slane %v5870, %v6034
          %v6038 = vadd.f32 %v6011, %v6031
          %v6039 = vadd.f32 %v6012, %v6035
          %v6040 = vadd.f32 %v6013, %v6031
          %v6041 = vadd.f32 %v6014, %v6035
          %v6042 = vadd.f32 %v6015, %v6031
          %v6043 = vadd.f32 %v6016, %v6035
          %v6044 = vadd.f32 %v6017, %v6031
          %v6045 = vadd.f32 %v6018, %v6035
          %v6046 = vadd.f32 %v6019, %v6031
          %v6047 = vadd.f32 %v6020, %v6035
          %v6048 = vadd.f32 %v6021, %v6031
          %v6049 = vadd.f32 %v6022, %v6035
          %v6050 = vadd.f32 %v6023, %v6031
          %v6051 = vadd.f32 %v6024, %v6035
          %v6052 = vadd.f32 %v6025, %v6031
          %v6053 = vadd.f32 %v6026, %v6035
          %6054 = vst [vmem:[%s558] sm:$0xff] %v6038
          %6055 = vst [vmem:[%s558 + $0x8] sm:$0xff] %v6039
          %6056 = vst [vmem:[%s558 + $0x10] sm:$0xff] %v6040
          %6057 = vst [vmem:[%s558 + $0x18] sm:$0xff] %v6041
          %6058 = vst [vmem:[%s558 + $0x20] sm:$0xff] %v6042
          %6059 = vst [vmem:[%s558 + $0x28] sm:$0xff] %v6043
          %6060 = vst [vmem:[%s558 + $0x30] sm:$0xff] %v6044
          %6061 = vst [vmem:[%s558 + $0x38] sm:$0xff] %v6045
          %6062 = vst [vmem:[%s558 + $0x40] sm:$0xff] %v6046
          %6063 = vst [vmem:[%s558 + $0x48] sm:$0xff] %v6047
          %6064 = vst [vmem:[%s558 + $0x50] sm:$0xff] %v6048
          %6065 = vst [vmem:[%s558 + $0x58] sm:$0xff] %v6049
          %6066 = vst [vmem:[%s558 + $0x60] sm:$0xff] %v6050
          %6067 = vst [vmem:[%s558 + $0x68] sm:$0xff] %v6051
          %6068 = vst [vmem:[%s558 + $0x70] sm:$0xff] %v6052
          %6069 = vst [vmem:[%s558 + $0x78] sm:$0xff] %v6053
        $region100: #{tpu_custom_call.1} parent=59 // pred_fallthru
          _
        %s6070 = sand.u32 %s289, 1
        %s6071 = scalar_lea.sflag [#allocation6], %s6070
        %s6072 = sand.u32 %s289, 1
        %s6073 = smul.addr %s6072, 128
        %s6074 = scalar_lea.vmem [#allocation17], %s6073
        // Predicated region
        $region101: #{tpu_custom_call.1} parent=59 // pred_check
          %p6075 = pneg %p299
        $region102: #{tpu_custom_call.1} parent=59 // pred_check_branch
          %6077 = sbr.rel (%p6075) target = $region104
        $region103: #{tpu_custom_call.1} parent=59 // pred_region
          %s6078 = smul.u32 8, %s36
          %s6080 = ssub.s32 2048, 2048
          %6081 = vsyncadd %s6071, %s6080
          %s6082 = smul.addr %s6078, 2
          %s6083 = smul.addr %s35, 32
          %s6084 = sadd.s32 %s6082, %s6083
          %s6085 = smul.addr %s6084, 128
          %s6086 = scalar_lea.hbm %s10, %s6085
          %s6087 = sshll.u32 %s6074, 4
          %s6088 = int_to_ptr.vmem [resolvable:$true] %s6087
          %6093 = dma.vmem_to_hbm [thread:$0]  %s6088, 2048, %s6086, %s6071, 256, 256, 16
        $region104: #{tpu_custom_call.1} parent=59 // pred_fallthru
          _
      $region60: #{tpu_custom_call.1} parent=5 // pred_fallthru
        _
      %p6094 = scmp.le.s32.totalorder 2, %s25
      // Predicated region
      $region105: #{tpu_custom_call.1} parent=5 // pred_check
        %p6095 = pneg %p6094
      $region106: #{tpu_custom_call.1} parent=5 // pred_check_branch
        %6097 = sbr.rel (%p6095) target = $region108
      $region107: #{tpu_custom_call.1} parent=5 // pred_region
        %s6098 = ssub.s32 %s25, 2
        // Predicated region
        $region109: #{tpu_custom_call.1} parent=107 // pred_check
          %p6099 = pneg %p305
        $region110: #{tpu_custom_call.1} parent=107 // pred_check_branch
          %6101 = sbr.rel (%p6099) target = $region112
        $region111: #{tpu_custom_call.1} parent=107 // pred_region
          %s6102 = sand.u32 %s290, 1
          %s6103 = scalar_lea.sflag [#allocation6], %s6102
          %s6104 = sand.u32 %s290, 1
          %s6105 = smul.addr %s6104, 128
          %s6106 = scalar_lea.vmem [#allocation17], %s6105
          %6107 = dma.done %s6103, 2048
        $region112: #{tpu_custom_call.1} parent=107 // pred_fallthru
          _
      $region108: #{tpu_custom_call.1} parent=5 // pred_fallthru
        _
    $region6: #{tpu_custom_call.1} parent=1 // loop_footer
      %s29 = sadd.s32 1, %s25
    $region7: #{tpu_custom_call.1} parent=1 // loop_footer_branch
      %24 = sbr.rel target = $region3
    $region8: #{tpu_custom_call.1} parent=1 // loop_exit
      _
    %6108 = vsyncpa [#allocation5], 1
    %s6109 = scalar_lea.sflag [#allocation5], 1
    %6110 = vsyncpa %s6109, 1
    %6111 = vsyncpa [#allocation8], 1
    %6112 = vsyncpa [#allocation11], 1
    %6113 = vsyncpa [#allocation14], 1
    %6114 = vsyncpa [#allocation6], 1
    %s6115 = scalar_lea.sflag [#allocation6], 1
    %6116 = vsyncpa %s6115, 1

</llo_original>
